<compile_context>
chip_gen: v7x
topology: tpu7x:2x2x1
jax: 0.10.0
libtpu: 0.0.40
codegen_flags: <defaults>
</compile_context>

<pallas_src>
import numpy as np

import jax
import jax.numpy as jnp
from jax.experimental import pallas as pl
from jax.experimental.pallas import tpu as pltpu


# Static DQN geometry (pinned by fc1's 2592 = 32*9*9 input -> 84x84 frames).
_H = 84
_C_IN = 4
_K1, _S1, _C1 = 8, 4, 16       # conv1: 8x8, stride 4, 4 -> 16
_O1 = (_H - _K1) // _S1 + 1    # 20
_K2, _S2, _C2 = 4, 2, 32       # conv2: 4x4, stride 2, 16 -> 32
_O2 = (_O1 - _K2) // _S2 + 1   # 9
_R1 = _O1 * _O1                # 400 conv1 output pixels / sample
_R2 = _O2 * _O2                # 81  conv2 output pixels / sample
_KK1 = _K1 * _K1 * _C_IN       # 256 conv1 patch width
_KK2 = _K2 * _K2 * _C1         # 256 conv2 patch width
_NK2 = _K2 * _K2               # 16 kernel taps of conv2
_FLAT = _R2 * _C2              # 2592
_FC1 = 256
_NACT = 6
_NPAD = 128                    # fc2 output padded to one full lane width


def _build_conv2_selection():
    """[16*81, 400] 0/1 matrix.  Row k*81 + r2 (k = i*4+j, r2 = oy*9+ox) picks
    conv1-output row (2*oy+i)*20 + (2*ox+j).  Multiplying it against the
    conv1 activation performs conv2's im2col row-gather on the MXU, keeping
    the activation VMEM-resident."""
    sel = np.zeros((_NK2 * _R2, _R1), np.float32)
    for k in range(_NK2):
        i, j = divmod(k, _K2)
        for r2 in range(_R2):
            oy, ox = divmod(r2, _O2)
            sel[k * _R2 + r2, (2 * oy + i) * _O1 + (2 * ox + j)] = 1.0
    return jnp.asarray(sel, jnp.bfloat16)


# ----------------------------------------------------------------------------
# Kernel 1: conv1 + conv2 fused (one sample per grid step).
# ----------------------------------------------------------------------------
def _conv_stage_kernel(p1_ref, w1_ref, b1_ref, sel_ref, w2_ref, b2_ref, o_ref):
    # conv1: [400,256] @ [256,16] on the MXU, bias + ReLU.
    p1 = p1_ref[0]                                                  # [400,256] bf16
    a1 = jnp.dot(p1, w1_ref[...], preferred_element_type=jnp.float32)
    a1 = jnp.maximum(a1 + b1_ref[...], 0.0).astype(jnp.bfloat16)    # [400,16]

    # conv2 im2col via the selection matmul (exact row gather, bf16-exact).
    g = jnp.dot(sel_ref[...], a1, preferred_element_type=jnp.float32)
    g = g.astype(jnp.bfloat16)                                      # [1296,16]
    p2 = jnp.concatenate(
        [g[k * _R2:(k + 1) * _R2, :] for k in range(_NK2)], axis=1)  # [81,256]

    # conv2: [81,256] @ [256,32], bias + ReLU.
    h2 = jnp.dot(p2, w2_ref[...], preferred_element_type=jnp.float32)
    h2 = jnp.maximum(h2 + b2_ref[...], 0.0)                          # [81,32]
    o_ref[0] = h2.astype(o_ref.dtype)


def _conv_stage(p1, w1, b1, sel, w2, b2):
    B = p1.shape[0]
    flops = 2 * B * (_R1 * _KK1 * _C1 + _NK2 * _R2 * _R1 * _C1 + _R2 * _KK2 * _C2)
    bytes_accessed = (p1.size * 2 + sel.size * 2 + w1.size * 2 + w2.size * 2
                      + b1.size * 4 + b2.size * 4 + B * _R2 * _C2 * 2)
    return pl.pallas_call(
        _conv_stage_kernel,
        out_shape=jax.ShapeDtypeStruct((B, _R2, _C2), jnp.bfloat16),
        grid=(B,),
        in_specs=[
            pl.BlockSpec((1, _R1, _KK1), lambda b: (b, 0, 0)),   # per-sample patches
            pl.BlockSpec((_KK1, _C1), lambda b: (0, 0)),         # w1 (VMEM resident)
            pl.BlockSpec((1, _C1), lambda b: (0, 0)),            # b1
            pl.BlockSpec((_NK2 * _R2, _R1), lambda b: (0, 0)),   # conv2 gather matrix
            pl.BlockSpec((_KK2, _C2), lambda b: (0, 0)),         # w2
            pl.BlockSpec((1, _C2), lambda b: (0, 0)),            # b2
        ],
        out_specs=pl.BlockSpec((1, _R2, _C2), lambda b: (b, 0, 0)),
        compiler_params=pltpu.CompilerParams(
            dimension_semantics=("parallel",)),
        cost_estimate=pl.CostEstimate(
            flops=flops, transcendentals=0, bytes_accessed=bytes_accessed),
    )(p1, w1, b1, sel, w2, b2)


# ----------------------------------------------------------------------------
# Kernel 2: fc1 + ReLU + fc2 fused (batched over rows, lane-dense output).
# ----------------------------------------------------------------------------
def _fc_stage_kernel(f_ref, w3_ref, b3_ref, w4_ref, b4_ref, o_ref):
    h = jnp.dot(f_ref[...], w3_ref[...], preferred_element_type=jnp.float32)
    h = jnp.maximum(h + b3_ref[...], 0.0).astype(jnp.bfloat16)       # [bm,256]
    o = jnp.dot(h, w4_ref[...], preferred_element_type=jnp.float32) + b4_ref[...]
    o_ref[...] = o.astype(o_ref.dtype)


def _fc_stage(f, w3, b3, w4, b4):
    B = f.shape[0]
    bm = B if B <= 256 else 256            # M tile (full batch at small B)
    flops = 2 * B * (_FLAT * _FC1 + _FC1 * _NPAD)
    bytes_accessed = (f.size * 2 + w3.size * 2 + w4.size * 2
                      + b3.size * 4 + b4.size * 4 + B * _NPAD * 4)
    return pl.pallas_call(
        _fc_stage_kernel,
        out_shape=jax.ShapeDtypeStruct((B, _NPAD), jnp.float32),
        grid=(pl.cdiv(B, bm),),
        in_specs=[
            pl.BlockSpec((bm, _FLAT), lambda m: (m, 0)),
            pl.BlockSpec((_FLAT, _FC1), lambda m: (0, 0)),
            pl.BlockSpec((1, _FC1), lambda m: (0, 0)),
            pl.BlockSpec((_FC1, _NPAD), lambda m: (0, 0)),
            pl.BlockSpec((1, _NPAD), lambda m: (0, 0)),
        ],
        out_specs=pl.BlockSpec((bm, _NPAD), lambda m: (m, 0)),
        compiler_params=pltpu.CompilerParams(
            dimension_semantics=("parallel",)),
        cost_estimate=pl.CostEstimate(
            flops=flops, transcendentals=0, bytes_accessed=bytes_accessed),
    )(f, w3, b3, w4, b4)


# ----------------------------------------------------------------------------
# Forward pass.
# ----------------------------------------------------------------------------
def _im2col_conv1(x_nchw):
    """NCHW f32 input -> [B, 400, 256] bf16 conv1 patches; rows in (oy, ox)
    raster order, columns in (kh, kw, ic) order (matches the prefolded w1)."""
    B = x_nchw.shape[0]
    x = jnp.transpose(x_nchw, (0, 2, 3, 1)).astype(jnp.bfloat16)     # NHWC
    span = _S1 * (_O1 - 1) + 1                                       # 77
    cols = []
    for i in range(_K1):
        for j in range(_K1):
            cols.append(x[:, i:i + span:_S1, j:j + span:_S1, :])     # [B,20,20,4]
    p1 = jnp.concatenate(cols, axis=-1)                              # [B,20,20,256]
    return p1.reshape(B, _R1, _KK1)


def dqn_forward(prep, x_nchw):
    """Matches PyTorch DQN.forward on NCHW [B,4,84,84] input -> [B,6] f32."""
    B = x_nchw.shape[0]
    p1 = _im2col_conv1(x_nchw)
    h2 = _conv_stage(p1, prep["w1"], prep["b1"], prep["sel"],
                     prep["w2"], prep["b2"])                         # [B,81,32]
    # fc1's rows were pre-permuted to the kernel's (oy, ox, oc) flatten order,
    # so this reshape is the only glue between the two fused kernels.
    f = h2.reshape(B, _FLAT)
    out = _fc_stage(f, prep["w3"], prep["b3"], prep["w4"], prep["b4"])
    return out[:, :_NACT]


# ----------------------------------------------------------------------------
# Parameters: PyTorch-style init + one-time layout prefolding.
# ----------------------------------------------------------------------------
def init_params(key):
    ks = jax.random.split(key, 8)

    def u(k, shape, fan_in):
        bound = 1.0 / float(fan_in) ** 0.5
        return jax.random.uniform(k, shape, jnp.float32, -bound, bound)

    return {
        "conv1_w": u(ks[0], (16, 4, 8, 8), 4 * 8 * 8),
        "conv1_b": u(ks[1], (16,), 4 * 8 * 8),
        "conv2_w": u(ks[2], (32, 16, 4, 4), 16 * 4 * 4),
        "conv2_b": u(ks[3], (32,), 16 * 4 * 4),
        "fc1_w": u(ks[4], (256, 2592), 2592),
        "fc1_b": u(ks[5], (256,), 2592),
        "fc2_w": u(ks[6], (6, 256), 256),
        "fc2_b": u(ks[7], (6,), 256),
    }


def preprocess_params(params):
    """Fold all layout transforms into the weights once (outside jit)."""
    w1 = params["conv1_w"].transpose(2, 3, 1, 0).reshape(_KK1, _C1)
    w2 = params["conv2_w"].transpose(2, 3, 1, 0).reshape(_KK2, _C2)
    # fc1 rows: PyTorch flatten is (c, h, w); the kernel produces (h, w, c).
    w3 = (params["fc1_w"].reshape(_FC1, _C2, _O2, _O2)
          .transpose(2, 3, 1, 0).reshape(_FLAT, _FC1))
    w4 = jnp.zeros((_FC1, _NPAD), jnp.float32).at[:, :_NACT].set(
        params["fc2_w"].T)
    b4 = jnp.zeros((1, _NPAD), jnp.float32).at[0, :_NACT].set(params["fc2_b"])
    return {
        "w1": w1.astype(jnp.bfloat16),
        "b1": params["conv1_b"].reshape(1, _C1).astype(jnp.float32),
        "w2": w2.astype(jnp.bfloat16),
        "b2": params["conv2_b"].reshape(1, _C2).astype(jnp.float32),
        "w3": w3.astype(jnp.bfloat16),
        "b3": params["fc1_b"].reshape(1, _FC1).astype(jnp.float32),
        "w4": w4.astype(jnp.bfloat16),
        "b4": b4,
        "sel": _build_conv2_selection(),
    }


def reference_forward(params, x):
    """Plain-JAX f32 reference of the PyTorch module."""
    y = jax.lax.conv_general_dilated(
        x, params["conv1_w"], (4, 4), "VALID",
        dimension_numbers=("NCHW", "OIHW", "NCHW"))
    y = jax.nn.relu(y + params["conv1_b"][None, :, None, None])
    y = jax.lax.conv_general_dilated(
        y, params["conv2_w"], (2, 2), "VALID",
        dimension_numbers=("NCHW", "OIHW", "NCHW"))
    y = jax.nn.relu(y + params["conv2_b"][None, :, None, None])
    y = y.reshape(y.shape[0], -1)
    y = jax.nn.relu(y @ params["fc1_w"].T + params["fc1_b"])
    return y @ params["fc2_w"].T + params["fc2_b"]


if __name__ == "__main__":
    key = jax.random.PRNGKey(0)
    k_param, k_x = jax.random.split(key)
    params = init_params(k_param)
    prep = preprocess_params(params)

    # fc1's 2592-wide input pins the spatial size to 84x84 (Atari frames).
    x = jax.random.normal(k_x, (2, 4, 84, 84), dtype=jnp.float32)

    out = jax.block_until_ready(jax.jit(dqn_forward)(prep, x))
    assert out.shape == (2, 6) and out.dtype == jnp.float32

    # Loose tolerance: operands are bf16 on the MXU (f32 accumulation).
    ref = jax.block_until_ready(reference_forward(params, x))
    err = float(jnp.max(jnp.abs(out - ref)))
    assert err < 8e-2, f"mismatch vs reference: max abs err {err}"
    print("KERNEL_OK")
</pallas_src>

<mosaic_0001>
module attributes {stable_mosaic.version = 11 : i64} {
  func.func @_conv_stage_kernel(%arg0: i32, %arg1: memref<1x400x256xbf16, #tpu.memory_space<vmem>>, %arg2: memref<256x16xbf16, #tpu.memory_space<vmem>>, %arg3: memref<1x16xf32, #tpu.memory_space<vmem>>, %arg4: memref<1296x400xbf16, #tpu.memory_space<vmem>>, %arg5: memref<256x32xbf16, #tpu.memory_space<vmem>>, %arg6: memref<1x32xf32, #tpu.memory_space<vmem>>, %arg7: memref<1x81x32xbf16, #tpu.memory_space<vmem>>) attributes {dimension_semantics = [#tpu.dimension_semantics<parallel>], iteration_bounds = array<i64: 2>, scalar_prefetch = 0 : i64, scratch_operands = 0 : i64, tpu.core_type = #tpu.core_type<tc>, window_params = [{transform_indices = @transform_0, window_bounds = array<i64: 1, 400, 256>}, {pipeline_mode = #tpu.pipeline_mode<synchronous>, transform_indices = @transform_1, window_bounds = array<i64: 256, 16>}, {pipeline_mode = #tpu.pipeline_mode<synchronous>, transform_indices = @transform_2, window_bounds = array<i64: 1, 16>}, {pipeline_mode = #tpu.pipeline_mode<synchronous>, transform_indices = @transform_3, window_bounds = array<i64: 1296, 400>}, {pipeline_mode = #tpu.pipeline_mode<synchronous>, transform_indices = @transform_4, window_bounds = array<i64: 256, 32>}, {pipeline_mode = #tpu.pipeline_mode<synchronous>, transform_indices = @transform_5, window_bounds = array<i64: 1, 32>}, {transform_indices = @transform_6, window_bounds = array<i64: 1, 81, 32>}]} {
    %c0 = arith.constant 0 : index
    %c0_0 = arith.constant 0 : index
    %c0_1 = arith.constant 0 : index
    %0 = vector.load %arg1[%c0, %c0_0, %c0_1] : memref<1x400x256xbf16, #tpu.memory_space<vmem>>, vector<1x400x256xbf16>
    %1 = vector.shape_cast %0 : vector<1x400x256xbf16> to vector<400x256xbf16>
    %c0_2 = arith.constant 0 : index
    %c0_3 = arith.constant 0 : index
    %2 = vector.load %arg2[%c0_2, %c0_3] : memref<256x16xbf16, #tpu.memory_space<vmem>>, vector<256x16xbf16>
    %cst = arith.constant dense<0.000000e+00> : vector<400x16xf32>
    %3 = tpu.matmul %1, %2, %cst {dimension_numbers = #tpu.dot_dimension_numbers<[1], [0], [0], [1], [0, 0, 1, 1], [], []>} : vector<400x256xbf16>, vector<256x16xbf16>, vector<400x16xf32> -> vector<400x16xf32>
    %c0_4 = arith.constant 0 : index
    %c0_5 = arith.constant 0 : index
    %4 = vector.load %arg3[%c0_4, %c0_5] : memref<1x16xf32, #tpu.memory_space<vmem>>, vector<1x16xf32>
    %5 = vector.broadcast %4 : vector<1x16xf32> to vector<400x16xf32>
    %6 = arith.addf %3, %5 : vector<400x16xf32>
    %cst_6 = arith.constant 0.000000e+00 : f32
    %7 = vector.broadcast %cst_6 : f32 to vector<400x16xf32>
    %8 = arith.maximumf %6, %7 : vector<400x16xf32>
    %9 = arith.truncf %8 : vector<400x16xf32> to vector<400x16xbf16>
    %c0_7 = arith.constant 0 : index
    %c0_8 = arith.constant 0 : index
    %10 = vector.load %arg4[%c0_7, %c0_8] : memref<1296x400xbf16, #tpu.memory_space<vmem>>, vector<1296x400xbf16>
    %cst_9 = arith.constant dense<0.000000e+00> : vector<1296x16xf32>
    %11 = tpu.matmul %10, %9, %cst_9 {dimension_numbers = #tpu.dot_dimension_numbers<[1], [0], [0], [1], [0, 0, 1, 1], [], []>} : vector<1296x400xbf16>, vector<400x16xbf16>, vector<1296x16xf32> -> vector<1296x16xf32>
    %12 = arith.truncf %11 : vector<1296x16xf32> to vector<1296x16xbf16>
    %13 = vector.extract_strided_slice %12 {offsets = [0, 0], sizes = [81, 16], strides = [1, 1]} : vector<1296x16xbf16> to vector<81x16xbf16>
    %14 = vector.extract_strided_slice %12 {offsets = [81, 0], sizes = [81, 16], strides = [1, 1]} : vector<1296x16xbf16> to vector<81x16xbf16>
    %15 = vector.extract_strided_slice %12 {offsets = [162, 0], sizes = [81, 16], strides = [1, 1]} : vector<1296x16xbf16> to vector<81x16xbf16>
    %16 = vector.extract_strided_slice %12 {offsets = [243, 0], sizes = [81, 16], strides = [1, 1]} : vector<1296x16xbf16> to vector<81x16xbf16>
    %17 = vector.extract_strided_slice %12 {offsets = [324, 0], sizes = [81, 16], strides = [1, 1]} : vector<1296x16xbf16> to vector<81x16xbf16>
    %18 = vector.extract_strided_slice %12 {offsets = [405, 0], sizes = [81, 16], strides = [1, 1]} : vector<1296x16xbf16> to vector<81x16xbf16>
    %19 = vector.extract_strided_slice %12 {offsets = [486, 0], sizes = [81, 16], strides = [1, 1]} : vector<1296x16xbf16> to vector<81x16xbf16>
    %20 = vector.extract_strided_slice %12 {offsets = [567, 0], sizes = [81, 16], strides = [1, 1]} : vector<1296x16xbf16> to vector<81x16xbf16>
    %21 = vector.extract_strided_slice %12 {offsets = [648, 0], sizes = [81, 16], strides = [1, 1]} : vector<1296x16xbf16> to vector<81x16xbf16>
    %22 = vector.extract_strided_slice %12 {offsets = [729, 0], sizes = [81, 16], strides = [1, 1]} : vector<1296x16xbf16> to vector<81x16xbf16>
    %23 = vector.extract_strided_slice %12 {offsets = [810, 0], sizes = [81, 16], strides = [1, 1]} : vector<1296x16xbf16> to vector<81x16xbf16>
    %24 = vector.extract_strided_slice %12 {offsets = [891, 0], sizes = [81, 16], strides = [1, 1]} : vector<1296x16xbf16> to vector<81x16xbf16>
    %25 = vector.extract_strided_slice %12 {offsets = [972, 0], sizes = [81, 16], strides = [1, 1]} : vector<1296x16xbf16> to vector<81x16xbf16>
    %26 = vector.extract_strided_slice %12 {offsets = [1053, 0], sizes = [81, 16], strides = [1, 1]} : vector<1296x16xbf16> to vector<81x16xbf16>
    %27 = vector.extract_strided_slice %12 {offsets = [1134, 0], sizes = [81, 16], strides = [1, 1]} : vector<1296x16xbf16> to vector<81x16xbf16>
    %28 = vector.extract_strided_slice %12 {offsets = [1215, 0], sizes = [81, 16], strides = [1, 1]} : vector<1296x16xbf16> to vector<81x16xbf16>
    %29 = tpu.concatenate %13, %14, %15, %16, %17, %18, %19, %20, %21, %22, %23, %24, %25, %26, %27, %28 in 1 : vector<81x16xbf16>, vector<81x16xbf16>, vector<81x16xbf16>, vector<81x16xbf16>, vector<81x16xbf16>, vector<81x16xbf16>, vector<81x16xbf16>, vector<81x16xbf16>, vector<81x16xbf16>, vector<81x16xbf16>, vector<81x16xbf16>, vector<81x16xbf16>, vector<81x16xbf16>, vector<81x16xbf16>, vector<81x16xbf16>, vector<81x16xbf16> -> vector<81x256xbf16>
    %c0_10 = arith.constant 0 : index
    %c0_11 = arith.constant 0 : index
    %30 = vector.load %arg5[%c0_10, %c0_11] : memref<256x32xbf16, #tpu.memory_space<vmem>>, vector<256x32xbf16>
    %cst_12 = arith.constant dense<0.000000e+00> : vector<81x32xf32>
    %31 = tpu.matmul %29, %30, %cst_12 {dimension_numbers = #tpu.dot_dimension_numbers<[1], [0], [0], [1], [0, 0, 1, 1], [], []>} : vector<81x256xbf16>, vector<256x32xbf16>, vector<81x32xf32> -> vector<81x32xf32>
    %c0_13 = arith.constant 0 : index
    %c0_14 = arith.constant 0 : index
    %32 = vector.load %arg6[%c0_13, %c0_14] : memref<1x32xf32, #tpu.memory_space<vmem>>, vector<1x32xf32>
    %33 = vector.broadcast %32 : vector<1x32xf32> to vector<81x32xf32>
    %34 = arith.addf %31, %33 : vector<81x32xf32>
    %cst_15 = arith.constant 0.000000e+00 : f32
    %35 = vector.broadcast %cst_15 : f32 to vector<81x32xf32>
    %36 = arith.maximumf %34, %35 : vector<81x32xf32>
    %37 = arith.truncf %36 : vector<81x32xf32> to vector<81x32xbf16>
    %c0_16 = arith.constant 0 : index
    %c0_17 = arith.constant 0 : index
    %c0_18 = arith.constant 0 : index
    %38 = vector.load %arg7[%c0_16, %c0_17, %c0_18] : memref<1x81x32xbf16, #tpu.memory_space<vmem>>, vector<1x81x32xbf16>
    %39 = vector.shape_cast %38 : vector<1x81x32xbf16> to vector<81x32xbf16>
    %40 = vector.shape_cast %37 : vector<81x32xbf16> to vector<1x81x32xbf16>
    tpu.vector_store %arg7[%c0_16, %c0_17, %c0_18], %40 {strides = array<i32>} : memref<1x81x32xbf16, #tpu.memory_space<vmem>>, vector<1x81x32xbf16>,
    return
  }
  func.func @transform_0(%arg0: i32) -> (i32, i32, i32) {
    %c0_i32 = arith.constant 0 : i32
    %c0_i32_0 = arith.constant 0 : i32
    %c0_i32_1 = arith.constant 0 : i32
    return %arg0, %c0_i32, %c0_i32_0 : i32, i32, i32
  }
  func.func @transform_1(%arg0: i32) -> (i32, i32) {
    %c0_i32 = arith.constant 0 : i32
    %c0_i32_0 = arith.constant 0 : i32
    %c0_i32_1 = arith.constant 0 : i32
    return %c0_i32, %c0_i32_0 : i32, i32
  }
  func.func @transform_2(%arg0: i32) -> (i32, i32) {
    %c0_i32 = arith.constant 0 : i32
    %c0_i32_0 = arith.constant 0 : i32
    %c0_i32_1 = arith.constant 0 : i32
    return %c0_i32, %c0_i32_0 : i32, i32
  }
  func.func @transform_3(%arg0: i32) -> (i32, i32) {
    %c0_i32 = arith.constant 0 : i32
    %c0_i32_0 = arith.constant 0 : i32
    %c0_i32_1 = arith.constant 0 : i32
    return %c0_i32, %c0_i32_0 : i32, i32
  }
  func.func @transform_4(%arg0: i32) -> (i32, i32) {
    %c0_i32 = arith.constant 0 : i32
    %c0_i32_0 = arith.constant 0 : i32
    %c0_i32_1 = arith.constant 0 : i32
    return %c0_i32, %c0_i32_0 : i32, i32
  }
  func.func @transform_5(%arg0: i32) -> (i32, i32) {
    %c0_i32 = arith.constant 0 : i32
    %c0_i32_0 = arith.constant 0 : i32
    %c0_i32_1 = arith.constant 0 : i32
    return %c0_i32, %c0_i32_0 : i32, i32
  }
  func.func @transform_6(%arg0: i32) -> (i32, i32, i32) {
    %c0_i32 = arith.constant 0 : i32
    %c0_i32_0 = arith.constant 0 : i32
    %c0_i32_1 = arith.constant 0 : i32
    return %arg0, %c0_i32, %c0_i32_0 : i32, i32, i32
  }
}

module attributes {stable_mosaic.version = 11 : i64} {
  func.func @_fc_stage_kernel(%arg0: i32, %arg1: memref<2x2592xbf16, #tpu.memory_space<vmem>>, %arg2: memref<2592x256xbf16, #tpu.memory_space<vmem>>, %arg3: memref<1x256xf32, #tpu.memory_space<vmem>>, %arg4: memref<256x128xbf16, #tpu.memory_space<vmem>>, %arg5: memref<1x128xf32, #tpu.memory_space<vmem>>, %arg6: memref<2x128xf32, #tpu.memory_space<vmem>>) attributes {dimension_semantics = [#tpu.dimension_semantics<parallel>], iteration_bounds = array<i64: 1>, scalar_prefetch = 0 : i64, scratch_operands = 0 : i64, tpu.core_type = #tpu.core_type<tc>, window_params = [{transform_indices = @transform_0, window_bounds = array<i64: 2, 2592>}, {pipeline_mode = #tpu.pipeline_mode<synchronous>, transform_indices = @transform_1, window_bounds = array<i64: 2592, 256>}, {pipeline_mode = #tpu.pipeline_mode<synchronous>, transform_indices = @transform_2, window_bounds = array<i64: 1, 256>}, {pipeline_mode = #tpu.pipeline_mode<synchronous>, transform_indices = @transform_3, window_bounds = array<i64: 256, 128>}, {pipeline_mode = #tpu.pipeline_mode<synchronous>, transform_indices = @transform_4, window_bounds = array<i64: 1, 128>}, {transform_indices = @transform_5, window_bounds = array<i64: 2, 128>}]} {
    %c0 = arith.constant 0 : index
    %c0_0 = arith.constant 0 : index
    %0 = vector.load %arg1[%c0, %c0_0] : memref<2x2592xbf16, #tpu.memory_space<vmem>>, vector<2x2592xbf16>
    %c0_1 = arith.constant 0 : index
    %c0_2 = arith.constant 0 : index
    %1 = vector.load %arg2[%c0_1, %c0_2] : memref<2592x256xbf16, #tpu.memory_space<vmem>>, vector<2592x256xbf16>
    %cst = arith.constant dense<0.000000e+00> : vector<2x256xf32>
    %2 = tpu.matmul %0, %1, %cst {dimension_numbers = #tpu.dot_dimension_numbers<[1], [0], [0], [1], [0, 0, 1, 1], [], []>} : vector<2x2592xbf16>, vector<2592x256xbf16>, vector<2x256xf32> -> vector<2x256xf32>
    %c0_3 = arith.constant 0 : index
    %c0_4 = arith.constant 0 : index
    %3 = vector.load %arg3[%c0_3, %c0_4] : memref<1x256xf32, #tpu.memory_space<vmem>>, vector<1x256xf32>
    %4 = vector.broadcast %3 : vector<1x256xf32> to vector<2x256xf32>
    %5 = arith.addf %2, %4 : vector<2x256xf32>
    %cst_5 = arith.constant 0.000000e+00 : f32
    %6 = vector.broadcast %cst_5 : f32 to vector<2x256xf32>
    %7 = arith.maximumf %5, %6 : vector<2x256xf32>
    %8 = arith.truncf %7 : vector<2x256xf32> to vector<2x256xbf16>
    %c0_6 = arith.constant 0 : index
    %c0_7 = arith.constant 0 : index
    %9 = vector.load %arg4[%c0_6, %c0_7] : memref<256x128xbf16, #tpu.memory_space<vmem>>, vector<256x128xbf16>
    %cst_8 = arith.constant dense<0.000000e+00> : vector<2x128xf32>
    %10 = tpu.matmul %8, %9, %cst_8 {dimension_numbers = #tpu.dot_dimension_numbers<[1], [0], [0], [1], [0, 0, 1, 1], [], []>} : vector<2x256xbf16>, vector<256x128xbf16>, vector<2x128xf32> -> vector<2x128xf32>
    %c0_9 = arith.constant 0 : index
    %c0_10 = arith.constant 0 : index
    %11 = vector.load %arg5[%c0_9, %c0_10] : memref<1x128xf32, #tpu.memory_space<vmem>>, vector<1x128xf32>
    %12 = vector.broadcast %11 : vector<1x128xf32> to vector<2x128xf32>
    %13 = arith.addf %10, %12 : vector<2x128xf32>
    %c0_11 = arith.constant 0 : index
    %c0_12 = arith.constant 0 : index
    %14 = vector.load %arg6[%c0_11, %c0_12] : memref<2x128xf32, #tpu.memory_space<vmem>>, vector<2x128xf32>
    tpu.vector_store %arg6[%c0_11, %c0_12], %13 {strides = array<i32>} : memref<2x128xf32, #tpu.memory_space<vmem>>, vector<2x128xf32>,
    return
  }
  func.func @transform_0(%arg0: i32) -> (i32, i32) {
    %c0_i32 = arith.constant 0 : i32
    %c0_i32_0 = arith.constant 0 : i32
    return %arg0, %c0_i32 : i32, i32
  }
  func.func @transform_1(%arg0: i32) -> (i32, i32) {
    %c0_i32 = arith.constant 0 : i32
    %c0_i32_0 = arith.constant 0 : i32
    %c0_i32_1 = arith.constant 0 : i32
    return %c0_i32, %c0_i32_0 : i32, i32
  }
  func.func @transform_2(%arg0: i32) -> (i32, i32) {
    %c0_i32 = arith.constant 0 : i32
    %c0_i32_0 = arith.constant 0 : i32
    %c0_i32_1 = arith.constant 0 : i32
    return %c0_i32, %c0_i32_0 : i32, i32
  }
  func.func @transform_3(%arg0: i32) -> (i32, i32) {
    %c0_i32 = arith.constant 0 : i32
    %c0_i32_0 = arith.constant 0 : i32
    %c0_i32_1 = arith.constant 0 : i32
    return %c0_i32, %c0_i32_0 : i32, i32
  }
  func.func @transform_4(%arg0: i32) -> (i32, i32) {
    %c0_i32 = arith.constant 0 : i32
    %c0_i32_0 = arith.constant 0 : i32
    %c0_i32_1 = arith.constant 0 : i32
    return %c0_i32, %c0_i32_0 : i32, i32
  }
  func.func @transform_5(%arg0: i32) -> (i32, i32) {
    %c0_i32 = arith.constant 0 : i32
    %c0_i32_0 = arith.constant 0 : i32
    return %arg0, %c0_i32 : i32, i32
  }
}

</mosaic_0001>

<llo_original>
// kernel: dqn_forward.2
$region0: #{dqn_forward.2}
  #allocation0 [shape = 'u32[]', space=smem, size = 0x4, offset = 0x4, fixed_abs, tag = 'smem constant byte address 0x4 - core index']
  #allocation1 [shape = 'u32[144,128]{1,0:T(1,128)}', space=vmem, size = 0x12000, scoped, tag = 'internal scratch']
  %s0 = inlined_call_operand.vmem [shape: bf16[2,400,256], index: 0, kind: input, shape index: {}]
  %s1 = inlined_call_operand.vmem [shape: bf16[256,16], index: 1, kind: input, shape index: {}]
  %s2 = inlined_call_operand.vmem [shape: f32[1,16], index: 2, kind: input, shape index: {}]
  %s3 = inlined_call_operand.vmem [shape: bf16[1296,400], index: 3, kind: input, shape index: {}]
  %s4 = inlined_call_operand.vmem [shape: bf16[256,32], index: 4, kind: input, shape index: {}]
  %s5 = inlined_call_operand.vmem [shape: f32[1,32], index: 5, kind: input, shape index: {}]
  %s6 = inlined_call_operand.vmem [shape: bf16[2,81,32], index: 6, kind: output, shape index: {}]
  %s7 = sld [smem:[#allocation0]]
  $region57: #{dqn_forward.2} parent=0
    _
  %s9 = ssub.s32 1, %s7
  %s10 = scalar_select 0, %s9, %s7
  loop: start=0, step=1, limit=4
  $region2: #{dqn_forward.2} parent=0 // loop_pre_header
    _
  $region3: #{dqn_forward.2} parent=0 // loop_header
    %s12 = sphi 0, %s16
    %p13 = scmp.ge.s32.totalorder %s12, 4
    %s22 = sphi 0, %s24
    %s25 = sphi 0, %s22
    %s26 = sphi 0, %s25
    %s42 = sphi 0, %s26
    %s46 = sphi 0, %s46
    %s48 = sphi 0, %s46
    %s49 = sphi 0, %s48
    %s63 = sphi 0, %s49
    %s67 = sphi 0, %s67
    %s69 = sphi 0, %s67
    %s70 = sphi 0, %s69
    %s84 = sphi 0, %s70
    %s88 = sphi 0, %s88
    %s90 = sphi 0, %s88
    %s91 = sphi 0, %s90
    %s105 = sphi 0, %s91
    %s109 = sphi 0, %s109
    %s111 = sphi 0, %s109
    %s112 = sphi 0, %s111
    %s126 = sphi 0, %s112
    %s130 = sphi 0, %s130
    %s132 = sphi 0, %s130
    %s133 = sphi 0, %s132
    %s147 = sphi 0, %s133
    %s153 = sphi 0, %s155
    %s156 = sphi 0, %s153
    %s157 = sphi 0, %s156
    %s173 = sphi 0, %s157
  $region4: #{dqn_forward.2} parent=0 // loop_header_branch
    %15 = sbr.rel (%p13) target = $region8
  $region5: #{dqn_forward.2} parent=0 // loop_body
    %s17 = ssub.s32 %s12, 1
    %s18 = ssub.s32 %s12, 2
    %s19 = sadd.s32 %s12, 1
    %s20 = ssub.s32 %s12, %s19
    %p21 = scmp.eq.s32.totalorder %s20, 0
    %s23 = sadd.s32 %s22, 1
    %s24 = scalar_select %p21, %s22, %s23
    %p27 = pneg %p21
    %p28 = scmp.eq.s32.totalorder %s12, 1
    %p29 = por %p27, %p28
    %p30 = scmp.ne.s32.totalorder %s22, %s25
    %p31 = scmp.eq.s32.totalorder %s12, 0
    %p32 = por %p30, %p31
    %p33 = scmp.ne.s32.totalorder %s22, %s25
    %p34 = scmp.eq.s32.totalorder %s17, 1
    %p35 = por %p33, %p34
    %p36 = scmp.ne.s32.totalorder %s25, %s26
    %p37 = scmp.eq.s32.totalorder %s17, 0
    %p38 = por %p36, %p37
    %p39 = scmp.ne.s32.totalorder %s25, %s26
    %p40 = scmp.eq.s32.totalorder %s18, 1
    %p41 = por %p39, %p40
    %p43 = scmp.ne.s32.totalorder %s26, %s42
    %p44 = scmp.eq.s32.totalorder %s18, 0
    %p45 = por %p43, %p44
    %s47 = sadd.s32 %s46, 1
    %p50 = scmp.eq.s32.totalorder %s12, 1
    %p51 = scmp.ne.s32.totalorder %s46, %s48
    %p52 = scmp.eq.s32.totalorder %s12, 0
    %p53 = por %p51, %p52
    %p54 = scmp.ne.s32.totalorder %s46, %s48
    %p55 = scmp.eq.s32.totalorder %s17, 1
    %p56 = por %p54, %p55
    %p57 = scmp.ne.s32.totalorder %s48, %s49
    %p58 = scmp.eq.s32.totalorder %s17, 0
    %p59 = por %p57, %p58
    %p60 = scmp.ne.s32.totalorder %s48, %s49
    %p61 = scmp.eq.s32.totalorder %s18, 1
    %p62 = por %p60, %p61
    %p64 = scmp.ne.s32.totalorder %s49, %s63
    %p65 = scmp.eq.s32.totalorder %s18, 0
    %p66 = por %p64, %p65
    %s68 = sadd.s32 %s67, 1
    %p71 = scmp.eq.s32.totalorder %s12, 1
    %p72 = scmp.ne.s32.totalorder %s67, %s69
    %p73 = scmp.eq.s32.totalorder %s12, 0
    %p74 = por %p72, %p73
    %p75 = scmp.ne.s32.totalorder %s67, %s69
    %p76 = scmp.eq.s32.totalorder %s17, 1
    %p77 = por %p75, %p76
    %p78 = scmp.ne.s32.totalorder %s69, %s70
    %p79 = scmp.eq.s32.totalorder %s17, 0
    %p80 = por %p78, %p79
    %p81 = scmp.ne.s32.totalorder %s69, %s70
    %p82 = scmp.eq.s32.totalorder %s18, 1
    %p83 = por %p81, %p82
    %p85 = scmp.ne.s32.totalorder %s70, %s84
    %p86 = scmp.eq.s32.totalorder %s18, 0
    %p87 = por %p85, %p86
    %s89 = sadd.s32 %s88, 1
    %p92 = scmp.eq.s32.totalorder %s12, 1
    %p93 = scmp.ne.s32.totalorder %s88, %s90
    %p94 = scmp.eq.s32.totalorder %s12, 0
    %p95 = por %p93, %p94
    %p96 = scmp.ne.s32.totalorder %s88, %s90
    %p97 = scmp.eq.s32.totalorder %s17, 1
    %p98 = por %p96, %p97
    %p99 = scmp.ne.s32.totalorder %s90, %s91
    %p100 = scmp.eq.s32.totalorder %s17, 0
    %p101 = por %p99, %p100
    %p102 = scmp.ne.s32.totalorder %s90, %s91
    %p103 = scmp.eq.s32.totalorder %s18, 1
    %p104 = por %p102, %p103
    %p106 = scmp.ne.s32.totalorder %s91, %s105
    %p107 = scmp.eq.s32.totalorder %s18, 0
    %p108 = por %p106, %p107
    %s110 = sadd.s32 %s109, 1
    %p113 = scmp.eq.s32.totalorder %s12, 1
    %p114 = scmp.ne.s32.totalorder %s109, %s111
    %p115 = scmp.eq.s32.totalorder %s12, 0
    %p116 = por %p114, %p115
    %p117 = scmp.ne.s32.totalorder %s109, %s111
    %p118 = scmp.eq.s32.totalorder %s17, 1
    %p119 = por %p117, %p118
    %p120 = scmp.ne.s32.totalorder %s111, %s112
    %p121 = scmp.eq.s32.totalorder %s17, 0
    %p122 = por %p120, %p121
    %p123 = scmp.ne.s32.totalorder %s111, %s112
    %p124 = scmp.eq.s32.totalorder %s18, 1
    %p125 = por %p123, %p124
    %p127 = scmp.ne.s32.totalorder %s112, %s126
    %p128 = scmp.eq.s32.totalorder %s18, 0
    %p129 = por %p127, %p128
    %s131 = sadd.s32 %s130, 1
    %p134 = scmp.eq.s32.totalorder %s12, 1
    %p135 = scmp.ne.s32.totalorder %s130, %s132
    %p136 = scmp.eq.s32.totalorder %s12, 0
    %p137 = por %p135, %p136
    %p138 = scmp.ne.s32.totalorder %s130, %s132
    %p139 = scmp.eq.s32.totalorder %s17, 1
    %p140 = por %p138, %p139
    %p141 = scmp.ne.s32.totalorder %s132, %s133
    %p142 = scmp.eq.s32.totalorder %s17, 0
    %p143 = por %p141, %p142
    %p144 = scmp.ne.s32.totalorder %s132, %s133
    %p145 = scmp.eq.s32.totalorder %s18, 1
    %p146 = por %p144, %p145
    %p148 = scmp.ne.s32.totalorder %s133, %s147
    %p149 = scmp.eq.s32.totalorder %s18, 0
    %p150 = por %p148, %p149
    %s151 = ssub.s32 %s12, %s19
    %p152 = scmp.eq.s32.totalorder %s151, 0
    %s154 = sadd.s32 %s153, 1
    %s155 = scalar_select %p152, %s153, %s154
    %p158 = pneg %p152
    %p159 = scmp.eq.s32.totalorder %s12, 1
    %p160 = por %p158, %p159
    %p161 = scmp.ne.s32.totalorder %s153, %s156
    %p162 = scmp.eq.s32.totalorder %s12, 0
    %p163 = por %p161, %p162
    %p164 = scmp.ne.s32.totalorder %s153, %s156
    %p165 = scmp.eq.s32.totalorder %s17, 1
    %p166 = por %p164, %p165
    %p167 = scmp.ne.s32.totalorder %s156, %s157
    %p168 = scmp.eq.s32.totalorder %s17, 0
    %p169 = por %p167, %p168
    %p170 = scmp.ne.s32.totalorder %s156, %s157
    %p171 = scmp.eq.s32.totalorder %s18, 1
    %p172 = por %p170, %p171
    %p174 = scmp.ne.s32.totalorder %s157, %s173
    %p175 = scmp.eq.s32.totalorder %s18, 0
    %p176 = por %p174, %p175
    %p177 = scmp.le.s32.totalorder 1, %s12
    %p178 = scmp.lt.s32.totalorder %s12, 3
    %p179 = pnand %p177, %p178
    %p180 = pneg %p179
    // Predicated region
    $region9: #{dqn_forward.2} parent=5 // pred_check
      _
    $region10: #{dqn_forward.2} parent=5 // pred_check_branch
      %182 = sbr.rel (%p179) target = $region12
    $region11: #{dqn_forward.2} parent=5 // pred_region
      %s183 = ssub.s32 %s12, 1
      // Predicated region
      $region13: #{dqn_forward.2} parent=11 // pred_check
        %p184 = pneg %p59
      $region14: #{dqn_forward.2} parent=11 // pred_check_branch
        %186 = sbr.rel (%p184) target = $region16
      $region15: #{dqn_forward.2} parent=11 // pred_region
        _
      $region16: #{dqn_forward.2} parent=11 // pred_fallthru
        _
      // Predicated region
      $region17: #{dqn_forward.2} parent=11 // pred_check
        %p187 = pneg %p80
      $region18: #{dqn_forward.2} parent=11 // pred_check_branch
        %189 = sbr.rel (%p187) target = $region20
      $region19: #{dqn_forward.2} parent=11 // pred_region
        _
      $region20: #{dqn_forward.2} parent=11 // pred_fallthru
        _
      // Predicated region
      $region21: #{dqn_forward.2} parent=11 // pred_check
        %p190 = pneg %p101
      $region22: #{dqn_forward.2} parent=11 // pred_check_branch
        %192 = sbr.rel (%p190) target = $region24
      $region23: #{dqn_forward.2} parent=11 // pred_region
        _
      $region24: #{dqn_forward.2} parent=11 // pred_fallthru
        _
      // Predicated region
      $region25: #{dqn_forward.2} parent=11 // pred_check
        %p193 = pneg %p122
      $region26: #{dqn_forward.2} parent=11 // pred_check_branch
        %195 = sbr.rel (%p193) target = $region28
      $region27: #{dqn_forward.2} parent=11 // pred_region
        _
      $region28: #{dqn_forward.2} parent=11 // pred_fallthru
        _
      // Predicated region
      $region29: #{dqn_forward.2} parent=11 // pred_check
        %p196 = pneg %p143
      $region30: #{dqn_forward.2} parent=11 // pred_check_branch
        %198 = sbr.rel (%p196) target = $region32
      $region31: #{dqn_forward.2} parent=11 // pred_region
        _
      $region32: #{dqn_forward.2} parent=11 // pred_fallthru
        _
    $region12: #{dqn_forward.2} parent=5 // pred_fallthru
      _
    %p199 = scmp.lt.s32.totalorder %s12, 2
    // Predicated region
    $region33: #{dqn_forward.2} parent=5 // pred_check
      %p200 = pneg %p199
    $region34: #{dqn_forward.2} parent=5 // pred_check_branch
      %202 = sbr.rel (%p200) target = $region36
    $region35: #{dqn_forward.2} parent=5 // pred_region
      // Predicated region
      $region37: #{dqn_forward.2} parent=35 // pred_check
        %p203 = pneg %p32
      $region38: #{dqn_forward.2} parent=35 // pred_check_branch
        %205 = sbr.rel (%p203) target = $region40
      $region39: #{dqn_forward.2} parent=35 // pred_region
        %p206 = scmp.lt.s32.totalorder %s12, 1
        %s207 = scalar_select %p206, %s12, 1
        %s208 = smul.addr %s207, 100
        %s209 = smul.addr %s208, 4
        %s210 = scalar_lea.vmem %s0, %s209
      $region40: #{dqn_forward.2} parent=35 // pred_fallthru
        _
    $region36: #{dqn_forward.2} parent=5 // pred_fallthru
      _
    %p211 = scmp.le.s32.totalorder 1, %s12
    %p212 = scmp.lt.s32.totalorder %s12, 3
    %p213 = pnand %p211, %p212
    %p214 = pneg %p213
    // Predicated region
    $region41: #{dqn_forward.2} parent=5 // pred_check
      _
    $region42: #{dqn_forward.2} parent=5 // pred_check_branch
      %216 = sbr.rel (%p213) target = $region44
    $region43: #{dqn_forward.2} parent=5 // pred_region
      %s217 = ssub.s32 %s12, 1
      %p218 = scmp.lt.s32.totalorder %s17, 1
      %s219 = scalar_select %p218, %s17, 1
      %s220 = smul.addr %s219, 100
      %s221 = smul.addr %s220, 4
      %s222 = scalar_lea.vmem %s0, %s221
      %p223 = pneg %p38
      %p224 = pneg %p35
      %p225 = pneg %p59
      %p226 = pneg %p56
      %p227 = pneg %p80
      %p228 = pneg %p77
      %p229 = pneg %p101
      %p230 = pneg %p98
      %p231 = pneg %p122
      %p232 = pneg %p119
      %p233 = pneg %p143
      %p234 = pneg %p140
      %p235 = pneg %p169
      %p236 = pneg %p166
      %p237 = scmp.lt.s32.totalorder %s17, 1
      %s238 = scalar_select %p237, %s17, 1
      %s239 = smul.addr %s238, 11
      %s240 = smul.addr %s239, 4
      %s241 = scalar_lea.vmem %s6, %s240
      %p242 = scmp.lt.s32.totalorder %s17, 1
      %s243 = scalar_select %p242, %s17, 1
      %s244 = smul.addr %s243, 100
      %s245 = smul.addr %s244, 4
      %s246 = scalar_lea.vmem %s0, %s245
      %p247 = scmp.lt.s32.totalorder %s17, 1
      %s248 = scalar_select %p247, %s17, 1
      %s249 = smul.addr %s248, 11
      %s250 = smul.addr %s249, 4
      %s251 = scalar_lea.vmem %s6, %s250
      %v253 = vld [vmem:[%s246] sm:$0xff]
      %v254 = vld [vmem:[%s246 + $0x8] sm:$0xff]
      %v255 = vld [vmem:[%s246 + $0x10] sm:$0xff]
      %v256 = vld [vmem:[%s246 + $0x18] sm:$0xff]
      %v257 = vld [vmem:[%s246 + $0x20] sm:$0xff]
      %v258 = vld [vmem:[%s246 + $0x28] sm:$0xff]
      %v259 = vld [vmem:[%s246 + $0x30] sm:$0xff]
      %v260 = vld [vmem:[%s246 + $0x38] sm:$0xff]
      %v261 = vld [vmem:[%s246 + $0x40] sm:$0xff]
      %v262 = vld [vmem:[%s246 + $0x48] sm:$0xff]
      %v263 = vld [vmem:[%s246 + $0x50] sm:$0xff]
      %v264 = vld [vmem:[%s246 + $0x58] sm:$0xff]
      %v265 = vld [vmem:[%s246 + $0x60] sm:$0xff]
      %v266 = vld [vmem:[%s246 + $0x68] sm:$0xff]
      %v267 = vld [vmem:[%s246 + $0x70] sm:$0xff]
      %v268 = vld [vmem:[%s246 + $0x78] sm:$0xff]
      %v269 = vld [vmem:[%s246 + $0x80] sm:$0xff]
      %v270 = vld [vmem:[%s246 + $0x88] sm:$0xff]
      %v271 = vld [vmem:[%s246 + $0x90] sm:$0xff]
      %v272 = vld [vmem:[%s246 + $0x98] sm:$0xff]
      %v273 = vld [vmem:[%s246 + $0xa0] sm:$0xff]
      %v274 = vld [vmem:[%s246 + $0xa8] sm:$0xff]
      %v275 = vld [vmem:[%s246 + $0xb0] sm:$0xff]
      %v276 = vld [vmem:[%s246 + $0xb8] sm:$0xff]
      %v277 = vld [vmem:[%s246 + $0xc0] sm:$0xff]
      %v278 = vld [vmem:[%s246 + $0xc8] sm:$0xff]
      %v279 = vld [vmem:[%s246 + $0xd0] sm:$0xff]
      %v280 = vld [vmem:[%s246 + $0xd8] sm:$0xff]
      %v281 = vld [vmem:[%s246 + $0xe0] sm:$0xff]
      %v282 = vld [vmem:[%s246 + $0xe8] sm:$0xff]
      %v283 = vld [vmem:[%s246 + $0xf0] sm:$0xff]
      %v284 = vld [vmem:[%s246 + $0xf8] sm:$0xff]
      %v285 = vld [vmem:[%s246 + $0x100] sm:$0xff]
      %v286 = vld [vmem:[%s246 + $0x108] sm:$0xff]
      %v287 = vld [vmem:[%s246 + $0x110] sm:$0xff]
      %v288 = vld [vmem:[%s246 + $0x118] sm:$0xff]
      %v289 = vld [vmem:[%s246 + $0x120] sm:$0xff]
      %v290 = vld [vmem:[%s246 + $0x128] sm:$0xff]
      %v291 = vld [vmem:[%s246 + $0x130] sm:$0xff]
      %v292 = vld [vmem:[%s246 + $0x138] sm:$0xff]
      %v293 = vld [vmem:[%s246 + $0x140] sm:$0xff]
      %v294 = vld [vmem:[%s246 + $0x148] sm:$0xff]
      %v295 = vld [vmem:[%s246 + $0x150] sm:$0xff]
      %v296 = vld [vmem:[%s246 + $0x158] sm:$0xff]
      %v297 = vld [vmem:[%s246 + $0x160] sm:$0xff]
      %v298 = vld [vmem:[%s246 + $0x168] sm:$0xff]
      %v299 = vld [vmem:[%s246 + $0x170] sm:$0xff]
      %v300 = vld [vmem:[%s246 + $0x178] sm:$0xff]
      %v301 = vld [vmem:[%s246 + $0x180] sm:$0xff]
      %v302 = vld [vmem:[%s246 + $0x188] sm:$0xff]
      %v303 = vld [vmem:[%s1] sm:$0xf]
      %v304 = vld [vmem:[%s1 + $0x4] sm:$0xf]
      %v305 = vld [vmem:[%s1 + $0x8] sm:$0xf]
      %v306 = vld [vmem:[%s1 + $0xc] sm:$0xf]
      %v307 = vld [vmem:[%s1 + $0x10] sm:$0xf]
      %v308 = vld [vmem:[%s1 + $0x14] sm:$0xf]
      %v309 = vld [vmem:[%s1 + $0x18] sm:$0xf]
      %v310 = vld [vmem:[%s1 + $0x1c] sm:$0xf]
      %v311 = vld [vmem:[%s1 + $0x20] sm:$0xf]
      %v312 = vld [vmem:[%s1 + $0x24] sm:$0xf]
      %v313 = vld [vmem:[%s1 + $0x28] sm:$0xf]
      %v314 = vld [vmem:[%s1 + $0x2c] sm:$0xf]
      %v315 = vld [vmem:[%s1 + $0x30] sm:$0xf]
      %v316 = vld [vmem:[%s1 + $0x34] sm:$0xf]
      %v317 = vld [vmem:[%s1 + $0x38] sm:$0xf]
      %v318 = vld [vmem:[%s1 + $0x3c] sm:$0xf]
      %v319 = vld [vmem:[%s1 + $0x40] sm:$0xf]
      %v320 = vld [vmem:[%s1 + $0x44] sm:$0xf]
      %v321 = vld [vmem:[%s1 + $0x48] sm:$0xf]
      %v322 = vld [vmem:[%s1 + $0x4c] sm:$0xf]
      %v323 = vld [vmem:[%s1 + $0x50] sm:$0xf]
      %v324 = vld [vmem:[%s1 + $0x54] sm:$0xf]
      %v325 = vld [vmem:[%s1 + $0x58] sm:$0xf]
      %v326 = vld [vmem:[%s1 + $0x5c] sm:$0xf]
      %v327 = vld [vmem:[%s1 + $0x60] sm:$0xf]
      %v328 = vld [vmem:[%s1 + $0x64] sm:$0xf]
      %v329 = vld [vmem:[%s1 + $0x68] sm:$0xf]
      %v330 = vld [vmem:[%s1 + $0x6c] sm:$0xf]
      %v331 = vld [vmem:[%s1 + $0x70] sm:$0xf]
      %v332 = vld [vmem:[%s1 + $0x74] sm:$0xf]
      %v333 = vld [vmem:[%s1 + $0x78] sm:$0xf]
      %v334 = vld [vmem:[%s1 + $0x7c] sm:$0xf]
      %v335 = vld [vmem:[%s2] sm:$0x1]
      %v337 = vlaneseq
      %v338 = vshrl.u32 %v337, 7
      %v339 = vsub.s32 0, %v338
      %v340 = vrot.slane %v335, %v339
      %v392 = vunpack.c.l.b16 %v253
      %v393 = vunpack.c.h.b16 %v253
      %v394 = vunpack.c.l.b16 %v254
      %v395 = vunpack.c.h.b16 %v254
      %v396 = vunpack.c.l.b16 %v255
      %v397 = vunpack.c.h.b16 %v255
      %v398 = vunpack.c.l.b16 %v256
      %v399 = vunpack.c.h.b16 %v256
      %v400 = vunpack.c.l.b16 %v257
      %v401 = vunpack.c.h.b16 %v257
      %v402 = vunpack.c.l.b16 %v258
      %v403 = vunpack.c.h.b16 %v258
      %v404 = vunpack.c.l.b16 %v259
      %v405 = vunpack.c.h.b16 %v259
      %v406 = vunpack.c.l.b16 %v260
      %v407 = vunpack.c.h.b16 %v260
      %v408 = vunpack.c.l.b16 %v261
      %v409 = vunpack.c.h.b16 %v261
      %v410 = vunpack.c.l.b16 %v262
      %v411 = vunpack.c.h.b16 %v262
      %v412 = vunpack.c.l.b16 %v263
      %v413 = vunpack.c.h.b16 %v263
      %v414 = vunpack.c.l.b16 %v264
      %v415 = vunpack.c.h.b16 %v264
      %v416 = vunpack.c.l.b16 %v265
      %v417 = vunpack.c.h.b16 %v265
      %v418 = vunpack.c.l.b16 %v266
      %v419 = vunpack.c.h.b16 %v266
      %v420 = vunpack.c.l.b16 %v267
      %v421 = vunpack.c.h.b16 %v267
      %v422 = vunpack.c.l.b16 %v268
      %v423 = vunpack.c.h.b16 %v268
      %v424 = vunpack.c.l.b16 %v269
      %v425 = vunpack.c.h.b16 %v269
      %v426 = vunpack.c.l.b16 %v270
      %v427 = vunpack.c.h.b16 %v270
      %v428 = vunpack.c.l.b16 %v271
      %v429 = vunpack.c.h.b16 %v271
      %v430 = vunpack.c.l.b16 %v272
      %v431 = vunpack.c.h.b16 %v272
      %v432 = vunpack.c.l.b16 %v273
      %v433 = vunpack.c.h.b16 %v273
      %v434 = vunpack.c.l.b16 %v274
      %v435 = vunpack.c.h.b16 %v274
      %v436 = vunpack.c.l.b16 %v275
      %v437 = vunpack.c.h.b16 %v275
      %v438 = vunpack.c.l.b16 %v276
      %v439 = vunpack.c.h.b16 %v276
      %v440 = vunpack.c.l.b16 %v277
      %v441 = vunpack.c.h.b16 %v277
      %v442 = vunpack.c.l.b16 %v278
      %v443 = vunpack.c.h.b16 %v278
      %v444 = vunpack.c.l.b16 %v279
      %v445 = vunpack.c.h.b16 %v279
      %v446 = vunpack.c.l.b16 %v280
      %v447 = vunpack.c.h.b16 %v280
      %v448 = vunpack.c.l.b16 %v281
      %v449 = vunpack.c.h.b16 %v281
      %v450 = vunpack.c.l.b16 %v282
      %v451 = vunpack.c.h.b16 %v282
      %v452 = vunpack.c.l.b16 %v283
      %v453 = vunpack.c.h.b16 %v283
      %v454 = vunpack.c.l.b16 %v284
      %v455 = vunpack.c.h.b16 %v284
      %v456 = vunpack.c.l.b16 %v285
      %v457 = vunpack.c.h.b16 %v285
      %v458 = vunpack.c.l.b16 %v286
      %v459 = vunpack.c.h.b16 %v286
      %v460 = vunpack.c.l.b16 %v287
      %v461 = vunpack.c.h.b16 %v287
      %v462 = vunpack.c.l.b16 %v288
      %v463 = vunpack.c.h.b16 %v288
      %v464 = vunpack.c.l.b16 %v289
      %v465 = vunpack.c.h.b16 %v289
      %v466 = vunpack.c.l.b16 %v290
      %v467 = vunpack.c.h.b16 %v290
      %v468 = vunpack.c.l.b16 %v291
      %v469 = vunpack.c.h.b16 %v291
      %v470 = vunpack.c.l.b16 %v292
      %v471 = vunpack.c.h.b16 %v292
      %v472 = vunpack.c.l.b16 %v293
      %v473 = vunpack.c.h.b16 %v293
      %v474 = vunpack.c.l.b16 %v294
      %v475 = vunpack.c.h.b16 %v294
      %v476 = vunpack.c.l.b16 %v295
      %v477 = vunpack.c.h.b16 %v295
      %v478 = vunpack.c.l.b16 %v296
      %v479 = vunpack.c.h.b16 %v296
      %v480 = vunpack.c.l.b16 %v297
      %v481 = vunpack.c.h.b16 %v297
      %v482 = vunpack.c.l.b16 %v298
      %v483 = vunpack.c.h.b16 %v298
      %v484 = vunpack.c.l.b16 %v299
      %v485 = vunpack.c.h.b16 %v299
      %v486 = vunpack.c.l.b16 %v300
      %v487 = vunpack.c.h.b16 %v300
      %v488 = vunpack.c.l.b16 %v301
      %v489 = vunpack.c.h.b16 %v301
      %v490 = vunpack.c.l.b16 %v302
      %v491 = vunpack.c.h.b16 %v302
      %v492 = vpack.c.b16 %v394, %v392
      %v493 = vpack.c.b16 %v395, %v393
      %v494 = vpack.c.b16 %v398, %v396
      %v495 = vpack.c.b16 %v399, %v397
      %v496 = vpack.c.b16 %v402, %v400
      %v497 = vpack.c.b16 %v403, %v401
      %v498 = vpack.c.b16 %v406, %v404
      %v499 = vpack.c.b16 %v407, %v405
      %v500 = vpack.c.b16 %v410, %v408
      %v501 = vpack.c.b16 %v411, %v409
      %v502 = vpack.c.b16 %v414, %v412
      %v503 = vpack.c.b16 %v415, %v413
      %v504 = vpack.c.b16 %v418, %v416
      %v505 = vpack.c.b16 %v419, %v417
      %v506 = vpack.c.b16 %v422, %v420
      %v507 = vpack.c.b16 %v423, %v421
      %v508 = vpack.c.b16 %v426, %v424
      %v509 = vpack.c.b16 %v427, %v425
      %v510 = vpack.c.b16 %v430, %v428
      %v511 = vpack.c.b16 %v431, %v429
      %v512 = vpack.c.b16 %v434, %v432
      %v513 = vpack.c.b16 %v435, %v433
      %v514 = vpack.c.b16 %v438, %v436
      %v515 = vpack.c.b16 %v439, %v437
      %v516 = vpack.c.b16 %v442, %v440
      %v517 = vpack.c.b16 %v443, %v441
      %v518 = vpack.c.b16 %v446, %v444
      %v519 = vpack.c.b16 %v447, %v445
      %v520 = vpack.c.b16 %v450, %v448
      %v521 = vpack.c.b16 %v451, %v449
      %v522 = vpack.c.b16 %v454, %v452
      %v523 = vpack.c.b16 %v455, %v453
      %v524 = vpack.c.b16 %v458, %v456
      %v525 = vpack.c.b16 %v459, %v457
      %v526 = vpack.c.b16 %v462, %v460
      %v527 = vpack.c.b16 %v463, %v461
      %v528 = vpack.c.b16 %v466, %v464
      %v529 = vpack.c.b16 %v467, %v465
      %v530 = vpack.c.b16 %v470, %v468
      %v531 = vpack.c.b16 %v471, %v469
      %v532 = vpack.c.b16 %v474, %v472
      %v533 = vpack.c.b16 %v475, %v473
      %v534 = vpack.c.b16 %v478, %v476
      %v535 = vpack.c.b16 %v479, %v477
      %v536 = vpack.c.b16 %v482, %v480
      %v537 = vpack.c.b16 %v483, %v481
      %v538 = vpack.c.b16 %v486, %v484
      %v539 = vpack.c.b16 %v487, %v485
      %v540 = vpack.c.b16 %v490, %v488
      %v541 = vpack.c.b16 %v491, %v489
      %v624 = vunpack.c.l.b16 %v303
      %v625 = vunpack.c.l.b16 %v304
      %v626 = vunpack.c.l.b16 %v305
      %v627 = vunpack.c.l.b16 %v306
      %v628 = vunpack.c.l.b16 %v307
      %v629 = vunpack.c.l.b16 %v308
      %v630 = vunpack.c.l.b16 %v309
      %v631 = vunpack.c.l.b16 %v310
      %v632 = vunpack.c.l.b16 %v311
      %v633 = vunpack.c.l.b16 %v312
      %v634 = vunpack.c.l.b16 %v313
      %v635 = vunpack.c.l.b16 %v314
      %v636 = vunpack.c.l.b16 %v315
      %v637 = vunpack.c.l.b16 %v316
      %v638 = vunpack.c.l.b16 %v317
      %v639 = vunpack.c.l.b16 %v318
      %v640 = vunpack.c.l.b16 %v319
      %v641 = vunpack.c.l.b16 %v320
      %v642 = vunpack.c.l.b16 %v321
      %v643 = vunpack.c.l.b16 %v322
      %v644 = vunpack.c.l.b16 %v323
      %v645 = vunpack.c.l.b16 %v324
      %v646 = vunpack.c.l.b16 %v325
      %v647 = vunpack.c.l.b16 %v326
      %v648 = vunpack.c.l.b16 %v327
      %v649 = vunpack.c.l.b16 %v328
      %v650 = vunpack.c.l.b16 %v329
      %v651 = vunpack.c.l.b16 %v330
      %v652 = vunpack.c.l.b16 %v331
      %v653 = vunpack.c.l.b16 %v332
      %v654 = vunpack.c.l.b16 %v333
      %v655 = vunpack.c.l.b16 %v334
      %v656 = vpack.c.b16 %v625, %v624
      %v657 = vpack.c.b16 %v627, %v626
      %v658 = vpack.c.b16 %v629, %v628
      %v659 = vpack.c.b16 %v631, %v630
      %v660 = vpack.c.b16 %v633, %v632
      %v661 = vpack.c.b16 %v635, %v634
      %v662 = vpack.c.b16 %v637, %v636
      %v663 = vpack.c.b16 %v639, %v638
      %v664 = vpack.c.b16 %v641, %v640
      %v665 = vpack.c.b16 %v643, %v642
      %v666 = vpack.c.b16 %v645, %v644
      %v667 = vpack.c.b16 %v647, %v646
      %v668 = vpack.c.b16 %v649, %v648
      %v669 = vpack.c.b16 %v651, %v650
      %v670 = vpack.c.b16 %v653, %v652
      %v671 = vpack.c.b16 %v655, %v654
      %688 = vmatprep.subr.bf16.mxu0 0
      %689 = vmatpush1.bf16.msra.mxu0 %v656
      %690 = vmatprep.subr.bf16.mxu0 0
      %691 = vmatpush1.bf16.msra.mxu0 %v657
      %692 = vmatprep.subr.bf16.mxu0 0
      %693 = vmatpush1.bf16.msra.mxu0 %v658
      %694 = vmatprep.subr.bf16.mxu0 0
      %695 = vmatpush1.bf16.msra.mxu0 %v659
      %696 = vmatprep.subr.bf16.mxu0 0
      %697 = vmatpush1.bf16.msra.mxu0 %v660
      %698 = vmatprep.subr.bf16.mxu0 0
      %699 = vmatpush1.bf16.msra.mxu0 %v661
      %700 = vmatprep.subr.bf16.mxu0 0
      %701 = vmatpush1.bf16.msra.mxu0 %v662
      %702 = vmatprep.subr.bf16.mxu0 0
      %703 = vmatpush1.bf16.msra.mxu0 %v663
      %704 = vmatprep.subr.bf16.mxu0 0
      %705 = vmatpush1.bf16.msra.mxu0 %v664
      %706 = vmatprep.subr.bf16.mxu0 0
      %707 = vmatpush1.bf16.msra.mxu0 %v665
      %708 = vmatprep.subr.bf16.mxu0 0
      %709 = vmatpush1.bf16.msra.mxu0 %v666
      %710 = vmatprep.subr.bf16.mxu0 0
      %711 = vmatpush1.bf16.msra.mxu0 %v667
      %712 = vmatprep.subr.bf16.mxu0 0
      %713 = vmatpush1.bf16.msra.mxu0 %v668
      %714 = vmatprep.subr.bf16.mxu0 0
      %715 = vmatpush1.bf16.msra.mxu0 %v669
      %716 = vmatprep.subr.bf16.mxu0 0
      %717 = vmatpush1.bf16.msra.mxu0 %v670
      %718 = vmatprep.subr.bf16.mxu0 0
      %719 = vmatpush1.bf16.msra.mxu0 %v671
      %720 = vmatprep.mubr.bf16.mxu0 %v493
      %721 = vmatmul.mubr.bf16.gmra.mrb[0].mxu0 %v492
      %v722 = vpop.f32.mrb[0].mxu0
      %v723 = vadd.f32 %v340, %v722
      %v724 = vpop.f32.mrb[0].mxu0
      %v725 = vpop.f32.mrb[0].mxu0
      %v726 = vadd.f32 %v340, %v725
      %v727 = vpop.f32.mrb[0].mxu0
      %728 = vmatprep.mubr.bf16.mxu0 %v495
      %729 = vmatmul.mubr.bf16.gmra.mrb[0].mxu0 %v494
      %v730 = vpop.f32.mrb[0].mxu0
      %v731 = vadd.f32 %v340, %v730
      %v732 = vpop.f32.mrb[0].mxu0
      %v733 = vpop.f32.mrb[0].mxu0
      %v734 = vadd.f32 %v340, %v733
      %v735 = vpop.f32.mrb[0].mxu0
      %736 = vmatprep.mubr.bf16.mxu0 %v497
      %737 = vmatmul.mubr.bf16.gmra.mrb[0].mxu0 %v496
      %v738 = vpop.f32.mrb[0].mxu0
      %v739 = vadd.f32 %v340, %v738
      %v740 = vpop.f32.mrb[0].mxu0
      %v741 = vpop.f32.mrb[0].mxu0
      %v742 = vadd.f32 %v340, %v741
      %v743 = vpop.f32.mrb[0].mxu0
      %744 = vmatprep.mubr.bf16.mxu0 %v499
      %745 = vmatmul.mubr.bf16.gmra.mrb[0].mxu0 %v498
      %v746 = vpop.f32.mrb[0].mxu0
      %v747 = vadd.f32 %v340, %v746
      %v748 = vpop.f32.mrb[0].mxu0
      %v749 = vpop.f32.mrb[0].mxu0
      %v750 = vadd.f32 %v340, %v749
      %v751 = vpop.f32.mrb[0].mxu0
      %752 = vmatprep.mubr.bf16.mxu0 %v501
      %753 = vmatmul.mubr.bf16.gmra.mrb[0].mxu0 %v500
      %v754 = vpop.f32.mrb[0].mxu0
      %v755 = vadd.f32 %v340, %v754
      %v756 = vpop.f32.mrb[0].mxu0
      %v757 = vpop.f32.mrb[0].mxu0
      %v758 = vadd.f32 %v340, %v757
      %v759 = vpop.f32.mrb[0].mxu0
      %760 = vmatprep.mubr.bf16.mxu0 %v503
      %761 = vmatmul.mubr.bf16.gmra.mrb[0].mxu0 %v502
      %v762 = vpop.f32.mrb[0].mxu0
      %v763 = vadd.f32 %v340, %v762
      %v764 = vpop.f32.mrb[0].mxu0
      %v765 = vpop.f32.mrb[0].mxu0
      %v766 = vadd.f32 %v340, %v765
      %v767 = vpop.f32.mrb[0].mxu0
      %768 = vmatprep.mubr.bf16.mxu0 %v505
      %769 = vmatmul.mubr.bf16.gmra.mrb[0].mxu0 %v504
      %v770 = vpop.f32.mrb[0].mxu0
      %v771 = vadd.f32 %v340, %v770
      %v772 = vpop.f32.mrb[0].mxu0
      %v773 = vpop.f32.mrb[0].mxu0
      %v774 = vadd.f32 %v340, %v773
      %v775 = vpop.f32.mrb[0].mxu0
      %776 = vmatprep.mubr.bf16.mxu0 %v507
      %777 = vmatmul.mubr.bf16.gmra.mrb[0].mxu0 %v506
      %v778 = vpop.f32.mrb[0].mxu0
      %v779 = vadd.f32 %v340, %v778
      %v780 = vpop.f32.mrb[0].mxu0
      %v781 = vpop.f32.mrb[0].mxu0
      %v782 = vadd.f32 %v340, %v781
      %v783 = vpop.f32.mrb[0].mxu0
      %784 = vmatprep.mubr.bf16.mxu0 %v509
      %785 = vmatmul.mubr.bf16.gmra.mrb[0].mxu0 %v508
      %v786 = vpop.f32.mrb[0].mxu0
      %v787 = vadd.f32 %v340, %v786
      %v788 = vpop.f32.mrb[0].mxu0
      %v789 = vpop.f32.mrb[0].mxu0
      %v790 = vadd.f32 %v340, %v789
      %v791 = vpop.f32.mrb[0].mxu0
      %792 = vmatprep.mubr.bf16.mxu0 %v511
      %793 = vmatmul.mubr.bf16.gmra.mrb[0].mxu0 %v510
      %v794 = vpop.f32.mrb[0].mxu0
      %v795 = vadd.f32 %v340, %v794
      %v796 = vpop.f32.mrb[0].mxu0
      %v797 = vpop.f32.mrb[0].mxu0
      %v798 = vadd.f32 %v340, %v797
      %v799 = vpop.f32.mrb[0].mxu0
      %800 = vmatprep.mubr.bf16.mxu0 %v513
      %801 = vmatmul.mubr.bf16.gmra.mrb[0].mxu0 %v512
      %v802 = vpop.f32.mrb[0].mxu0
      %v803 = vadd.f32 %v340, %v802
      %v804 = vpop.f32.mrb[0].mxu0
      %v805 = vpop.f32.mrb[0].mxu0
      %v806 = vadd.f32 %v340, %v805
      %v807 = vpop.f32.mrb[0].mxu0
      %808 = vmatprep.mubr.bf16.mxu0 %v515
      %809 = vmatmul.mubr.bf16.gmra.mrb[0].mxu0 %v514
      %v810 = vpop.f32.mrb[0].mxu0
      %v811 = vadd.f32 %v340, %v810
      %v812 = vpop.f32.mrb[0].mxu0
      %v813 = vpop.f32.mrb[0].mxu0
      %v814 = vadd.f32 %v340, %v813
      %v815 = vpop.f32.mrb[0].mxu0
      %816 = vmatprep.mubr.bf16.mxu0 %v517
      %817 = vmatmul.mubr.bf16.gmra.mrb[0].mxu0 %v516
      %v818 = vpop.f32.mrb[0].mxu0
      %v819 = vadd.f32 %v340, %v818
      %v820 = vpop.f32.mrb[0].mxu0
      %v821 = vpop.f32.mrb[0].mxu0
      %v822 = vadd.f32 %v340, %v821
      %v823 = vpop.f32.mrb[0].mxu0
      %824 = vmatprep.mubr.bf16.mxu0 %v519
      %825 = vmatmul.mubr.bf16.gmra.mrb[0].mxu0 %v518
      %v826 = vpop.f32.mrb[0].mxu0
      %v827 = vadd.f32 %v340, %v826
      %v828 = vpop.f32.mrb[0].mxu0
      %v829 = vpop.f32.mrb[0].mxu0
      %v830 = vadd.f32 %v340, %v829
      %v831 = vpop.f32.mrb[0].mxu0
      %832 = vmatprep.mubr.bf16.mxu0 %v521
      %833 = vmatmul.mubr.bf16.gmra.mrb[0].mxu0 %v520
      %v834 = vpop.f32.mrb[0].mxu0
      %v835 = vadd.f32 %v340, %v834
      %v836 = vpop.f32.mrb[0].mxu0
      %v837 = vpop.f32.mrb[0].mxu0
      %v838 = vadd.f32 %v340, %v837
      %v839 = vpop.f32.mrb[0].mxu0
      %840 = vmatprep.mubr.bf16.mxu0 %v523
      %841 = vmatmul.mubr.bf16.gmra.mrb[0].mxu0 %v522
      %v842 = vpop.f32.mrb[0].mxu0
      %v843 = vadd.f32 %v340, %v842
      %v844 = vpop.f32.mrb[0].mxu0
      %v845 = vpop.f32.mrb[0].mxu0
      %v846 = vadd.f32 %v340, %v845
      %v847 = vpop.f32.mrb[0].mxu0
      %848 = vmatprep.mubr.bf16.mxu0 %v525
      %849 = vmatmul.mubr.bf16.gmra.mrb[0].mxu0 %v524
      %v850 = vpop.f32.mrb[0].mxu0
      %v851 = vadd.f32 %v340, %v850
      %v852 = vpop.f32.mrb[0].mxu0
      %v853 = vpop.f32.mrb[0].mxu0
      %v854 = vadd.f32 %v340, %v853
      %v855 = vpop.f32.mrb[0].mxu0
      %856 = vmatprep.mubr.bf16.mxu0 %v527
      %857 = vmatmul.mubr.bf16.gmra.mrb[0].mxu0 %v526
      %v858 = vpop.f32.mrb[0].mxu0
      %v859 = vadd.f32 %v340, %v858
      %v860 = vpop.f32.mrb[0].mxu0
      %v861 = vpop.f32.mrb[0].mxu0
      %v862 = vadd.f32 %v340, %v861
      %v863 = vpop.f32.mrb[0].mxu0
      %864 = vmatprep.mubr.bf16.mxu0 %v529
      %865 = vmatmul.mubr.bf16.gmra.mrb[0].mxu0 %v528
      %v866 = vpop.f32.mrb[0].mxu0
      %v867 = vadd.f32 %v340, %v866
      %v868 = vpop.f32.mrb[0].mxu0
      %v869 = vpop.f32.mrb[0].mxu0
      %v870 = vadd.f32 %v340, %v869
      %v871 = vpop.f32.mrb[0].mxu0
      %872 = vmatprep.mubr.bf16.mxu0 %v531
      %873 = vmatmul.mubr.bf16.gmra.mrb[0].mxu0 %v530
      %v874 = vpop.f32.mrb[0].mxu0
      %v875 = vadd.f32 %v340, %v874
      %v876 = vpop.f32.mrb[0].mxu0
      %v877 = vpop.f32.mrb[0].mxu0
      %v878 = vadd.f32 %v340, %v877
      %v879 = vpop.f32.mrb[0].mxu0
      %880 = vmatprep.mubr.bf16.mxu0 %v533
      %881 = vmatmul.mubr.bf16.gmra.mrb[0].mxu0 %v532
      %v882 = vpop.f32.mrb[0].mxu0
      %v883 = vadd.f32 %v340, %v882
      %v884 = vpop.f32.mrb[0].mxu0
      %v885 = vpop.f32.mrb[0].mxu0
      %v886 = vadd.f32 %v340, %v885
      %v887 = vpop.f32.mrb[0].mxu0
      %888 = vmatprep.mubr.bf16.mxu0 %v535
      %889 = vmatmul.mubr.bf16.gmra.mrb[0].mxu0 %v534
      %v890 = vpop.f32.mrb[0].mxu0
      %v891 = vadd.f32 %v340, %v890
      %v892 = vpop.f32.mrb[0].mxu0
      %v893 = vpop.f32.mrb[0].mxu0
      %v894 = vadd.f32 %v340, %v893
      %v895 = vpop.f32.mrb[0].mxu0
      %896 = vmatprep.mubr.bf16.mxu0 %v537
      %897 = vmatmul.mubr.bf16.gmra.mrb[0].mxu0 %v536
      %v898 = vpop.f32.mrb[0].mxu0
      %v899 = vadd.f32 %v340, %v898
      %v900 = vpop.f32.mrb[0].mxu0
      %v901 = vpop.f32.mrb[0].mxu0
      %v902 = vadd.f32 %v340, %v901
      %v903 = vpop.f32.mrb[0].mxu0
      %904 = vmatprep.mubr.bf16.mxu0 %v539
      %905 = vmatmul.mubr.bf16.gmra.mrb[0].mxu0 %v538
      %v906 = vpop.f32.mrb[0].mxu0
      %v907 = vadd.f32 %v340, %v906
      %v908 = vpop.f32.mrb[0].mxu0
      %v909 = vpop.f32.mrb[0].mxu0
      %v910 = vadd.f32 %v340, %v909
      %v911 = vpop.f32.mrb[0].mxu0
      %912 = vmatprep.mubr.bf16.mxu0 %v541
      %913 = vmatmul.mubr.bf16.gmra.mrb[0].mxu0 %v540
      %v914 = vpop.f32.mrb[0].mxu0
      %v915 = vadd.f32 %v340, %v914
      %v916 = vpop.f32.mrb[0].mxu0
      %v917 = vpop.f32.mrb[0].mxu0
      %v918 = vadd.f32 %v340, %v917
      %v919 = vpop.f32.mrb[0].mxu0
      %920 = vdwg.mxu0
      %v921 = vmax.f32 %v723, 0.0
      %v922 = vmax.f32 %v726, 0.0
      %v923 = vmax.f32 %v731, 0.0
      %v924 = vmax.f32 %v734, 0.0
      %v925 = vmax.f32 %v739, 0.0
      %v926 = vmax.f32 %v742, 0.0
      %v927 = vmax.f32 %v747, 0.0
      %v928 = vmax.f32 %v750, 0.0
      %v929 = vmax.f32 %v755, 0.0
      %v930 = vmax.f32 %v758, 0.0
      %v931 = vmax.f32 %v763, 0.0
      %v932 = vmax.f32 %v766, 0.0
      %v933 = vmax.f32 %v771, 0.0
      %v934 = vmax.f32 %v774, 0.0
      %v935 = vmax.f32 %v779, 0.0
      %v936 = vmax.f32 %v782, 0.0
      %v937 = vmax.f32 %v787, 0.0
      %v938 = vmax.f32 %v790, 0.0
      %v939 = vmax.f32 %v795, 0.0
      %v940 = vmax.f32 %v798, 0.0
      %v941 = vmax.f32 %v803, 0.0
      %v942 = vmax.f32 %v806, 0.0
      %v943 = vmax.f32 %v811, 0.0
      %v944 = vmax.f32 %v814, 0.0
      %v945 = vmax.f32 %v819, 0.0
      %v946 = vmax.f32 %v822, 0.0
      %v947 = vmax.f32 %v827, 0.0
      %v948 = vmax.f32 %v830, 0.0
      %v949 = vmax.f32 %v835, 0.0
      %v950 = vmax.f32 %v838, 0.0
      %v951 = vmax.f32 %v843, 0.0
      %v952 = vmax.f32 %v846, 0.0
      %v953 = vmax.f32 %v851, 0.0
      %v954 = vmax.f32 %v854, 0.0
      %v955 = vmax.f32 %v859, 0.0
      %v956 = vmax.f32 %v862, 0.0
      %v957 = vmax.f32 %v867, 0.0
      %v958 = vmax.f32 %v870, 0.0
      %v959 = vmax.f32 %v875, 0.0
      %v960 = vmax.f32 %v878, 0.0
      %v961 = vmax.f32 %v883, 0.0
      %v962 = vmax.f32 %v886, 0.0
      %v963 = vmax.f32 %v891, 0.0
      %v964 = vmax.f32 %v894, 0.0
      %v965 = vmax.f32 %v899, 0.0
      %v966 = vmax.f32 %v902, 0.0
      %v967 = vmax.f32 %v907, 0.0
      %v968 = vmax.f32 %v910, 0.0
      %v969 = vmax.f32 %v915, 0.0
      %v970 = vmax.f32 %v918, 0.0
      %v971 = vpack.c.bf16 %v922, %v921
      %v972 = vpack.c.bf16 %v924, %v923
      %v973 = vpack.c.bf16 %v926, %v925
      %v974 = vpack.c.bf16 %v928, %v927
      %v975 = vpack.c.bf16 %v930, %v929
      %v976 = vpack.c.bf16 %v932, %v931
      %v977 = vpack.c.bf16 %v934, %v933
      %v978 = vpack.c.bf16 %v936, %v935
      %v979 = vpack.c.bf16 %v938, %v937
      %v980 = vpack.c.bf16 %v940, %v939
      %v981 = vpack.c.bf16 %v942, %v941
      %v982 = vpack.c.bf16 %v944, %v943
      %v983 = vpack.c.bf16 %v946, %v945
      %v984 = vpack.c.bf16 %v948, %v947
      %v985 = vpack.c.bf16 %v950, %v949
      %v986 = vpack.c.bf16 %v952, %v951
      %v987 = vpack.c.bf16 %v954, %v953
      %v988 = vpack.c.bf16 %v956, %v955
      %v989 = vpack.c.bf16 %v958, %v957
      %v990 = vpack.c.bf16 %v960, %v959
      %v991 = vpack.c.bf16 %v962, %v961
      %v992 = vpack.c.bf16 %v964, %v963
      %v993 = vpack.c.bf16 %v966, %v965
      %v994 = vpack.c.bf16 %v968, %v967
      %v995 = vpack.c.bf16 %v970, %v969
      %v996 = vld [vmem:[%s3] sm:$0xff]
      %v997 = vld [vmem:[%s3 + $0x8] sm:$0xff]
      %v998 = vld [vmem:[%s3 + $0x10] sm:$0xff]
      %v999 = vld [vmem:[%s3 + $0x18] sm:$0xff]
      %v1000 = vld [vmem:[%s3 + $0x20] sm:$0xff]
      %v1001 = vld [vmem:[%s3 + $0x28] sm:$0xff]
      %v1002 = vld [vmem:[%s3 + $0x30] sm:$0xff]
      %v1003 = vld [vmem:[%s3 + $0x38] sm:$0xff]
      %v1004 = vld [vmem:[%s3 + $0x40] sm:$0xff]
      %v1005 = vld [vmem:[%s3 + $0x48] sm:$0xff]
      %v1006 = vld [vmem:[%s3 + $0x50] sm:$0xff]
      %v1007 = vld [vmem:[%s3 + $0x58] sm:$0xff]
      %v1008 = vld [vmem:[%s3 + $0x60] sm:$0xff]
      %v1009 = vld [vmem:[%s3 + $0x68] sm:$0xff]
      %v1010 = vld [vmem:[%s3 + $0x70] sm:$0xff]
      %v1011 = vld [vmem:[%s3 + $0x78] sm:$0xff]
      %v1012 = vld [vmem:[%s3 + $0x80] sm:$0xff]
      %v1013 = vld [vmem:[%s3 + $0x88] sm:$0xff]
      %v1014 = vld [vmem:[%s3 + $0x90] sm:$0xff]
      %v1015 = vld [vmem:[%s3 + $0x98] sm:$0xff]
      %v1016 = vld [vmem:[%s3 + $0xa0] sm:$0xff]
      %v1017 = vld [vmem:[%s3 + $0xa8] sm:$0xff]
      %v1018 = vld [vmem:[%s3 + $0xb0] sm:$0xff]
      %v1019 = vld [vmem:[%s3 + $0xb8] sm:$0xff]
      %v1020 = vld [vmem:[%s3 + $0xc0] sm:$0xff]
      %v1021 = vld [vmem:[%s3 + $0xc8] sm:$0xff]
      %v1022 = vld [vmem:[%s3 + $0xd0] sm:$0xff]
      %v1023 = vld [vmem:[%s3 + $0xd8] sm:$0xff]
      %v1024 = vld [vmem:[%s3 + $0xe0] sm:$0xff]
      %v1025 = vld [vmem:[%s3 + $0xe8] sm:$0xff]
      %v1026 = vld [vmem:[%s3 + $0xf0] sm:$0xff]
      %v1027 = vld [vmem:[%s3 + $0xf8] sm:$0xff]
      %v1028 = vld [vmem:[%s3 + $0x100] sm:$0xff]
      %v1029 = vld [vmem:[%s3 + $0x108] sm:$0xff]
      %v1030 = vld [vmem:[%s3 + $0x110] sm:$0xff]
      %v1031 = vld [vmem:[%s3 + $0x118] sm:$0xff]
      %v1032 = vld [vmem:[%s3 + $0x120] sm:$0xff]
      %v1033 = vld [vmem:[%s3 + $0x128] sm:$0xff]
      %v1034 = vld [vmem:[%s3 + $0x130] sm:$0xff]
      %v1035 = vld [vmem:[%s3 + $0x138] sm:$0xff]
      %v1036 = vld [vmem:[%s3 + $0x140] sm:$0xff]
      %v1037 = vld [vmem:[%s3 + $0x148] sm:$0xff]
      %v1038 = vld [vmem:[%s3 + $0x150] sm:$0xff]
      %v1039 = vld [vmem:[%s3 + $0x158] sm:$0xff]
      %v1040 = vld [vmem:[%s3 + $0x160] sm:$0xff]
      %v1041 = vld [vmem:[%s3 + $0x168] sm:$0xff]
      %v1042 = vld [vmem:[%s3 + $0x170] sm:$0xff]
      %v1043 = vld [vmem:[%s3 + $0x178] sm:$0xff]
      %v1044 = vld [vmem:[%s3 + $0x180] sm:$0xff]
      %v1045 = vld [vmem:[%s3 + $0x188] sm:$0xff]
      %v1046 = vld [vmem:[%s3 + $0x190] sm:$0xff]
      %v1047 = vld [vmem:[%s3 + $0x198] sm:$0xff]
      %v1048 = vld [vmem:[%s3 + $0x1a0] sm:$0xff]
      %v1049 = vld [vmem:[%s3 + $0x1a8] sm:$0xff]
      %v1050 = vld [vmem:[%s3 + $0x1b0] sm:$0xff]
      %v1051 = vld [vmem:[%s3 + $0x1b8] sm:$0xff]
      %v1052 = vld [vmem:[%s3 + $0x1c0] sm:$0xff]
      %v1053 = vld [vmem:[%s3 + $0x1c8] sm:$0xff]
      %v1054 = vld [vmem:[%s3 + $0x1d0] sm:$0xff]
      %v1055 = vld [vmem:[%s3 + $0x1d8] sm:$0xff]
      %v1056 = vld [vmem:[%s3 + $0x1e0] sm:$0xff]
      %v1057 = vld [vmem:[%s3 + $0x1e8] sm:$0xff]
      %v1058 = vld [vmem:[%s3 + $0x1f0] sm:$0xff]
      %v1059 = vld [vmem:[%s3 + $0x1f8] sm:$0xff]
      %v1060 = vld [vmem:[%s3 + $0x200] sm:$0xff]
      %v1061 = vld [vmem:[%s3 + $0x208] sm:$0xff]
      %v1062 = vld [vmem:[%s3 + $0x210] sm:$0xff]
      %v1063 = vld [vmem:[%s3 + $0x218] sm:$0xff]
      %v1064 = vld [vmem:[%s3 + $0x220] sm:$0xff]
      %v1065 = vld [vmem:[%s3 + $0x228] sm:$0xff]
      %v1066 = vld [vmem:[%s3 + $0x230] sm:$0xff]
      %v1067 = vld [vmem:[%s3 + $0x238] sm:$0xff]
      %v1068 = vld [vmem:[%s3 + $0x240] sm:$0xff]
      %v1069 = vld [vmem:[%s3 + $0x248] sm:$0xff]
      %v1070 = vld [vmem:[%s3 + $0x250] sm:$0xff]
      %v1071 = vld [vmem:[%s3 + $0x258] sm:$0xff]
      %v1072 = vld [vmem:[%s3 + $0x260] sm:$0xff]
      %v1073 = vld [vmem:[%s3 + $0x268] sm:$0xff]
      %v1074 = vld [vmem:[%s3 + $0x270] sm:$0xff]
      %v1075 = vld [vmem:[%s3 + $0x278] sm:$0xff]
      %v1076 = vld [vmem:[%s3 + $0x280] sm:$0xff]
      %v1077 = vld [vmem:[%s3 + $0x288] sm:$0xff]
      %v1078 = vld [vmem:[%s3 + $0x290] sm:$0xff]
      %v1079 = vld [vmem:[%s3 + $0x298] sm:$0xff]
      %v1080 = vld [vmem:[%s3 + $0x2a0] sm:$0xff]
      %v1081 = vld [vmem:[%s3 + $0x2a8] sm:$0xff]
      %v1082 = vld [vmem:[%s3 + $0x2b0] sm:$0xff]
      %v1083 = vld [vmem:[%s3 + $0x2b8] sm:$0xff]
      %v1084 = vld [vmem:[%s3 + $0x2c0] sm:$0xff]
      %v1085 = vld [vmem:[%s3 + $0x2c8] sm:$0xff]
      %v1086 = vld [vmem:[%s3 + $0x2d0] sm:$0xff]
      %v1087 = vld [vmem:[%s3 + $0x2d8] sm:$0xff]
      %v1088 = vld [vmem:[%s3 + $0x2e0] sm:$0xff]
      %v1089 = vld [vmem:[%s3 + $0x2e8] sm:$0xff]
      %v1090 = vld [vmem:[%s3 + $0x2f0] sm:$0xff]
      %v1091 = vld [vmem:[%s3 + $0x2f8] sm:$0xff]
      %v1092 = vld [vmem:[%s3 + $0x300] sm:$0xff]
      %v1093 = vld [vmem:[%s3 + $0x308] sm:$0xff]
      %v1094 = vld [vmem:[%s3 + $0x310] sm:$0xff]
      %v1095 = vld [vmem:[%s3 + $0x318] sm:$0xff]
      %v1096 = vld [vmem:[%s3 + $0x320] sm:$0xff]
      %v1097 = vld [vmem:[%s3 + $0x328] sm:$0xff]
      %v1098 = vld [vmem:[%s3 + $0x330] sm:$0xff]
      %v1099 = vld [vmem:[%s3 + $0x338] sm:$0xff]
      %v1100 = vld [vmem:[%s3 + $0x340] sm:$0xff]
      %v1101 = vld [vmem:[%s3 + $0x348] sm:$0xff]
      %v1102 = vld [vmem:[%s3 + $0x350] sm:$0xff]
      %v1103 = vld [vmem:[%s3 + $0x358] sm:$0xff]
      %v1104 = vld [vmem:[%s3 + $0x360] sm:$0xff]
      %v1105 = vld [vmem:[%s3 + $0x368] sm:$0xff]
      %v1106 = vld [vmem:[%s3 + $0x370] sm:$0xff]
      %v1107 = vld [vmem:[%s3 + $0x378] sm:$0xff]
      %v1108 = vld [vmem:[%s3 + $0x380] sm:$0xff]
      %v1109 = vld [vmem:[%s3 + $0x388] sm:$0xff]
      %v1110 = vld [vmem:[%s3 + $0x390] sm:$0xff]
      %v1111 = vld [vmem:[%s3 + $0x398] sm:$0xff]
      %v1112 = vld [vmem:[%s3 + $0x3a0] sm:$0xff]
      %v1113 = vld [vmem:[%s3 + $0x3a8] sm:$0xff]
      %v1114 = vld [vmem:[%s3 + $0x3b0] sm:$0xff]
      %v1115 = vld [vmem:[%s3 + $0x3b8] sm:$0xff]
      %v1116 = vld [vmem:[%s3 + $0x3c0] sm:$0xff]
      %v1117 = vld [vmem:[%s3 + $0x3c8] sm:$0xff]
      %v1118 = vld [vmem:[%s3 + $0x3d0] sm:$0xff]
      %v1119 = vld [vmem:[%s3 + $0x3d8] sm:$0xff]
      %v1120 = vld [vmem:[%s3 + $0x3e0] sm:$0xff]
      %v1121 = vld [vmem:[%s3 + $0x3e8] sm:$0xff]
      %v1122 = vld [vmem:[%s3 + $0x3f0] sm:$0xff]
      %v1123 = vld [vmem:[%s3 + $0x3f8] sm:$0xff]
      %v1124 = vld [vmem:[%s3 + $0x400] sm:$0xff]
      %v1125 = vld [vmem:[%s3 + $0x408] sm:$0xff]
      %v1126 = vld [vmem:[%s3 + $0x410] sm:$0xff]
      %v1127 = vld [vmem:[%s3 + $0x418] sm:$0xff]
      %v1128 = vld [vmem:[%s3 + $0x420] sm:$0xff]
      %v1129 = vld [vmem:[%s3 + $0x428] sm:$0xff]
      %v1130 = vld [vmem:[%s3 + $0x430] sm:$0xff]
      %v1131 = vld [vmem:[%s3 + $0x438] sm:$0xff]
      %v1132 = vld [vmem:[%s3 + $0x440] sm:$0xff]
      %v1133 = vld [vmem:[%s3 + $0x448] sm:$0xff]
      %v1134 = vld [vmem:[%s3 + $0x450] sm:$0xff]
      %v1135 = vld [vmem:[%s3 + $0x458] sm:$0xff]
      %v1136 = vld [vmem:[%s3 + $0x460] sm:$0xff]
      %v1137 = vld [vmem:[%s3 + $0x468] sm:$0xff]
      %v1138 = vld [vmem:[%s3 + $0x470] sm:$0xff]
      %v1139 = vld [vmem:[%s3 + $0x478] sm:$0xff]
      %v1140 = vld [vmem:[%s3 + $0x480] sm:$0xff]
      %v1141 = vld [vmem:[%s3 + $0x488] sm:$0xff]
      %v1142 = vld [vmem:[%s3 + $0x490] sm:$0xff]
      %v1143 = vld [vmem:[%s3 + $0x498] sm:$0xff]
      %v1144 = vld [vmem:[%s3 + $0x4a0] sm:$0xff]
      %v1145 = vld [vmem:[%s3 + $0x4a8] sm:$0xff]
      %v1146 = vld [vmem:[%s3 + $0x4b0] sm:$0xff]
      %v1147 = vld [vmem:[%s3 + $0x4b8] sm:$0xff]
      %v1148 = vld [vmem:[%s3 + $0x4c0] sm:$0xff]
      %v1149 = vld [vmem:[%s3 + $0x4c8] sm:$0xff]
      %v1150 = vld [vmem:[%s3 + $0x4d0] sm:$0xff]
      %v1151 = vld [vmem:[%s3 + $0x4d8] sm:$0xff]
      %v1152 = vld [vmem:[%s3 + $0x4e0] sm:$0xff]
      %v1153 = vld [vmem:[%s3 + $0x4e8] sm:$0xff]
      %v1154 = vld [vmem:[%s3 + $0x4f0] sm:$0xff]
      %v1155 = vld [vmem:[%s3 + $0x4f8] sm:$0xff]
      %v1156 = vld [vmem:[%s3 + $0x500] sm:$0xff]
      %v1157 = vld [vmem:[%s3 + $0x508] sm:$0xff]
      %v1158 = vld [vmem:[%s3 + $0x510] sm:$0xff]
      %v1159 = vld [vmem:[%s3 + $0x518] sm:$0xff]
      %v1160 = vld [vmem:[%s3 + $0x520] sm:$0xff]
      %v1161 = vld [vmem:[%s3 + $0x528] sm:$0xff]
      %v1162 = vld [vmem:[%s3 + $0x530] sm:$0xff]
      %v1163 = vld [vmem:[%s3 + $0x538] sm:$0xff]
      %v1164 = vld [vmem:[%s3 + $0x540] sm:$0xff]
      %v1165 = vld [vmem:[%s3 + $0x548] sm:$0xff]
      %v1166 = vld [vmem:[%s3 + $0x550] sm:$0xff]
      %v1167 = vld [vmem:[%s3 + $0x558] sm:$0xff]
      %v1168 = vld [vmem:[%s3 + $0x560] sm:$0xff]
      %v1169 = vld [vmem:[%s3 + $0x568] sm:$0xff]
      %v1170 = vld [vmem:[%s3 + $0x570] sm:$0xff]
      %v1171 = vld [vmem:[%s3 + $0x578] sm:$0xff]
      %v1172 = vld [vmem:[%s3 + $0x580] sm:$0xff]
      %v1173 = vld [vmem:[%s3 + $0x588] sm:$0xff]
      %v1174 = vld [vmem:[%s3 + $0x590] sm:$0xff]
      %v1175 = vld [vmem:[%s3 + $0x598] sm:$0xff]
      %v1176 = vld [vmem:[%s3 + $0x5a0] sm:$0xff]
      %v1177 = vld [vmem:[%s3 + $0x5a8] sm:$0xff]
      %v1178 = vld [vmem:[%s3 + $0x5b0] sm:$0xff]
      %v1179 = vld [vmem:[%s3 + $0x5b8] sm:$0xff]
      %v1180 = vld [vmem:[%s3 + $0x5c0] sm:$0xff]
      %v1181 = vld [vmem:[%s3 + $0x5c8] sm:$0xff]
      %v1182 = vld [vmem:[%s3 + $0x5d0] sm:$0xff]
      %v1183 = vld [vmem:[%s3 + $0x5d8] sm:$0xff]
      %v1184 = vld [vmem:[%s3 + $0x5e0] sm:$0xff]
      %v1185 = vld [vmem:[%s3 + $0x5e8] sm:$0xff]
      %v1186 = vld [vmem:[%s3 + $0x5f0] sm:$0xff]
      %v1187 = vld [vmem:[%s3 + $0x5f8] sm:$0xff]
      %v1188 = vld [vmem:[%s3 + $0x600] sm:$0xff]
      %v1189 = vld [vmem:[%s3 + $0x608] sm:$0xff]
      %v1190 = vld [vmem:[%s3 + $0x610] sm:$0xff]
      %v1191 = vld [vmem:[%s3 + $0x618] sm:$0xff]
      %v1192 = vld [vmem:[%s3 + $0x620] sm:$0xff]
      %v1193 = vld [vmem:[%s3 + $0x628] sm:$0xff]
      %v1194 = vld [vmem:[%s3 + $0x630] sm:$0xff]
      %v1195 = vld [vmem:[%s3 + $0x638] sm:$0xff]
      %v1196 = vld [vmem:[%s3 + $0x640] sm:$0xff]
      %v1197 = vld [vmem:[%s3 + $0x648] sm:$0xff]
      %v1198 = vld [vmem:[%s3 + $0x650] sm:$0xff]
      %v1199 = vld [vmem:[%s3 + $0x658] sm:$0xff]
      %v1200 = vld [vmem:[%s3 + $0x660] sm:$0xff]
      %v1201 = vld [vmem:[%s3 + $0x668] sm:$0xff]
      %v1202 = vld [vmem:[%s3 + $0x670] sm:$0xff]
      %v1203 = vld [vmem:[%s3 + $0x678] sm:$0xff]
      %v1204 = vld [vmem:[%s3 + $0x680] sm:$0xff]
      %v1205 = vld [vmem:[%s3 + $0x688] sm:$0xff]
      %v1206 = vld [vmem:[%s3 + $0x690] sm:$0xff]
      %v1207 = vld [vmem:[%s3 + $0x698] sm:$0xff]
      %v1208 = vld [vmem:[%s3 + $0x6a0] sm:$0xff]
      %v1209 = vld [vmem:[%s3 + $0x6a8] sm:$0xff]
      %v1210 = vld [vmem:[%s3 + $0x6b0] sm:$0xff]
      %v1211 = vld [vmem:[%s3 + $0x6b8] sm:$0xff]
      %v1212 = vld [vmem:[%s3 + $0x6c0] sm:$0xff]
      %v1213 = vld [vmem:[%s3 + $0x6c8] sm:$0xff]
      %v1214 = vld [vmem:[%s3 + $0x6d0] sm:$0xff]
      %v1215 = vld [vmem:[%s3 + $0x6d8] sm:$0xff]
      %v1216 = vld [vmem:[%s3 + $0x6e0] sm:$0xff]
      %v1217 = vld [vmem:[%s3 + $0x6e8] sm:$0xff]
      %v1218 = vld [vmem:[%s3 + $0x6f0] sm:$0xff]
      %v1219 = vld [vmem:[%s3 + $0x6f8] sm:$0xff]
      %v1220 = vld [vmem:[%s3 + $0x700] sm:$0xff]
      %v1221 = vld [vmem:[%s3 + $0x708] sm:$0xff]
      %v1222 = vld [vmem:[%s3 + $0x710] sm:$0xff]
      %v1223 = vld [vmem:[%s3 + $0x718] sm:$0xff]
      %v1224 = vld [vmem:[%s3 + $0x720] sm:$0xff]
      %v1225 = vld [vmem:[%s3 + $0x728] sm:$0xff]
      %v1226 = vld [vmem:[%s3 + $0x730] sm:$0xff]
      %v1227 = vld [vmem:[%s3 + $0x738] sm:$0xff]
      %v1228 = vld [vmem:[%s3 + $0x740] sm:$0xff]
      %v1229 = vld [vmem:[%s3 + $0x748] sm:$0xff]
      %v1230 = vld [vmem:[%s3 + $0x750] sm:$0xff]
      %v1231 = vld [vmem:[%s3 + $0x758] sm:$0xff]
      %v1232 = vld [vmem:[%s3 + $0x760] sm:$0xff]
      %v1233 = vld [vmem:[%s3 + $0x768] sm:$0xff]
      %v1234 = vld [vmem:[%s3 + $0x770] sm:$0xff]
      %v1235 = vld [vmem:[%s3 + $0x778] sm:$0xff]
      %v1236 = vld [vmem:[%s3 + $0x780] sm:$0xff]
      %v1237 = vld [vmem:[%s3 + $0x788] sm:$0xff]
      %v1238 = vld [vmem:[%s3 + $0x790] sm:$0xff]
      %v1239 = vld [vmem:[%s3 + $0x798] sm:$0xff]
      %v1240 = vld [vmem:[%s3 + $0x7a0] sm:$0xff]
      %v1241 = vld [vmem:[%s3 + $0x7a8] sm:$0xff]
      %v1242 = vld [vmem:[%s3 + $0x7b0] sm:$0xff]
      %v1243 = vld [vmem:[%s3 + $0x7b8] sm:$0xff]
      %v1244 = vld [vmem:[%s3 + $0x7c0] sm:$0xff]
      %v1245 = vld [vmem:[%s3 + $0x7c8] sm:$0xff]
      %v1246 = vld [vmem:[%s3 + $0x7d0] sm:$0xff]
      %v1247 = vld [vmem:[%s3 + $0x7d8] sm:$0xff]
      %v1248 = vld [vmem:[%s3 + $0x7e0] sm:$0xff]
      %v1249 = vld [vmem:[%s3 + $0x7e8] sm:$0xff]
      %v1250 = vld [vmem:[%s3 + $0x7f0] sm:$0xff]
      %v1251 = vld [vmem:[%s3 + $0x7f8] sm:$0xff]
      %v1252 = vld [vmem:[%s3 + $0x800] sm:$0xff]
      %v1253 = vld [vmem:[%s3 + $0x808] sm:$0xff]
      %v1254 = vld [vmem:[%s3 + $0x810] sm:$0xff]
      %v1255 = vld [vmem:[%s3 + $0x818] sm:$0xff]
      %v1256 = vld [vmem:[%s3 + $0x820] sm:$0xff]
      %v1257 = vld [vmem:[%s3 + $0x828] sm:$0xff]
      %v1258 = vld [vmem:[%s3 + $0x830] sm:$0xff]
      %v1259 = vld [vmem:[%s3 + $0x838] sm:$0xff]
      %v1260 = vld [vmem:[%s3 + $0x840] sm:$0xff]
      %v1261 = vld [vmem:[%s3 + $0x848] sm:$0xff]
      %v1262 = vld [vmem:[%s3 + $0x850] sm:$0xff]
      %v1263 = vld [vmem:[%s3 + $0x858] sm:$0xff]
      %v1264 = vld [vmem:[%s3 + $0x860] sm:$0xff]
      %v1265 = vld [vmem:[%s3 + $0x868] sm:$0xff]
      %v1266 = vld [vmem:[%s3 + $0x870] sm:$0xff]
      %v1267 = vld [vmem:[%s3 + $0x878] sm:$0xff]
      %v1268 = vld [vmem:[%s3 + $0x880] sm:$0xff]
      %v1269 = vld [vmem:[%s3 + $0x888] sm:$0xff]
      %v1270 = vld [vmem:[%s3 + $0x890] sm:$0xff]
      %v1271 = vld [vmem:[%s3 + $0x898] sm:$0xff]
      %v1272 = vld [vmem:[%s3 + $0x8a0] sm:$0xff]
      %v1273 = vld [vmem:[%s3 + $0x8a8] sm:$0xff]
      %v1274 = vld [vmem:[%s3 + $0x8b0] sm:$0xff]
      %v1275 = vld [vmem:[%s3 + $0x8b8] sm:$0xff]
      %v1276 = vld [vmem:[%s3 + $0x8c0] sm:$0xff]
      %v1277 = vld [vmem:[%s3 + $0x8c8] sm:$0xff]
      %v1278 = vld [vmem:[%s3 + $0x8d0] sm:$0xff]
      %v1279 = vld [vmem:[%s3 + $0x8d8] sm:$0xff]
      %v1280 = vld [vmem:[%s3 + $0x8e0] sm:$0xff]
      %v1281 = vld [vmem:[%s3 + $0x8e8] sm:$0xff]
      %v1282 = vld [vmem:[%s3 + $0x8f0] sm:$0xff]
      %v1283 = vld [vmem:[%s3 + $0x8f8] sm:$0xff]
      %v1284 = vld [vmem:[%s3 + $0x900] sm:$0xff]
      %v1285 = vld [vmem:[%s3 + $0x908] sm:$0xff]
      %v1286 = vld [vmem:[%s3 + $0x910] sm:$0xff]
      %v1287 = vld [vmem:[%s3 + $0x918] sm:$0xff]
      %v1288 = vld [vmem:[%s3 + $0x920] sm:$0xff]
      %v1289 = vld [vmem:[%s3 + $0x928] sm:$0xff]
      %v1290 = vld [vmem:[%s3 + $0x930] sm:$0xff]
      %v1291 = vld [vmem:[%s3 + $0x938] sm:$0xff]
      %v1292 = vld [vmem:[%s3 + $0x940] sm:$0xff]
      %v1293 = vld [vmem:[%s3 + $0x948] sm:$0xff]
      %v1294 = vld [vmem:[%s3 + $0x950] sm:$0xff]
      %v1295 = vld [vmem:[%s3 + $0x958] sm:$0xff]
      %v1296 = vld [vmem:[%s3 + $0x960] sm:$0xff]
      %v1297 = vld [vmem:[%s3 + $0x968] sm:$0xff]
      %v1298 = vld [vmem:[%s3 + $0x970] sm:$0xff]
      %v1299 = vld [vmem:[%s3 + $0x978] sm:$0xff]
      %v1300 = vld [vmem:[%s3 + $0x980] sm:$0xff]
      %v1301 = vld [vmem:[%s3 + $0x988] sm:$0xff]
      %v1302 = vld [vmem:[%s3 + $0x990] sm:$0xff]
      %v1303 = vld [vmem:[%s3 + $0x998] sm:$0xff]
      %v1304 = vld [vmem:[%s3 + $0x9a0] sm:$0xff]
      %v1305 = vld [vmem:[%s3 + $0x9a8] sm:$0xff]
      %v1306 = vld [vmem:[%s3 + $0x9b0] sm:$0xff]
      %v1307 = vld [vmem:[%s3 + $0x9b8] sm:$0xff]
      %v1308 = vld [vmem:[%s3 + $0x9c0] sm:$0xff]
      %v1309 = vld [vmem:[%s3 + $0x9c8] sm:$0xff]
      %v1310 = vld [vmem:[%s3 + $0x9d0] sm:$0xff]
      %v1311 = vld [vmem:[%s3 + $0x9d8] sm:$0xff]
      %v1312 = vld [vmem:[%s3 + $0x9e0] sm:$0xff]
      %v1313 = vld [vmem:[%s3 + $0x9e8] sm:$0xff]
      %v1314 = vld [vmem:[%s3 + $0x9f0] sm:$0xff]
      %v1315 = vld [vmem:[%s3 + $0x9f8] sm:$0xff]
      %v1316 = vld [vmem:[%s3 + $0xa00] sm:$0xff]
      %v1317 = vld [vmem:[%s3 + $0xa08] sm:$0xff]
      %v1318 = vld [vmem:[%s3 + $0xa10] sm:$0xff]
      %v1319 = vld [vmem:[%s3 + $0xa18] sm:$0xff]
      %v1644 = vunpack.c.l.b16 %v996
      %v1645 = vunpack.c.h.b16 %v996
      %v1646 = vunpack.c.l.b16 %v997
      %v1647 = vunpack.c.h.b16 %v997
      %v1648 = vunpack.c.l.b16 %v998
      %v1649 = vunpack.c.h.b16 %v998
      %v1650 = vunpack.c.l.b16 %v999
      %v1651 = vunpack.c.h.b16 %v999
      %v1652 = vunpack.c.l.b16 %v1000
      %v1653 = vunpack.c.h.b16 %v1000
      %v1654 = vunpack.c.l.b16 %v1001
      %v1655 = vunpack.c.h.b16 %v1001
      %v1656 = vunpack.c.l.b16 %v1002
      %v1657 = vunpack.c.h.b16 %v1002
      %v1658 = vunpack.c.l.b16 %v1003
      %v1659 = vunpack.c.h.b16 %v1003
      %v1660 = vunpack.c.l.b16 %v1004
      %v1661 = vunpack.c.h.b16 %v1004
      %v1662 = vunpack.c.l.b16 %v1005
      %v1663 = vunpack.c.h.b16 %v1005
      %v1664 = vunpack.c.l.b16 %v1006
      %v1665 = vunpack.c.h.b16 %v1006
      %v1666 = vunpack.c.l.b16 %v1007
      %v1667 = vunpack.c.h.b16 %v1007
      %v1668 = vunpack.c.l.b16 %v1008
      %v1669 = vunpack.c.h.b16 %v1008
      %v1670 = vunpack.c.l.b16 %v1009
      %v1671 = vunpack.c.h.b16 %v1009
      %v1672 = vunpack.c.l.b16 %v1010
      %v1673 = vunpack.c.h.b16 %v1010
      %v1674 = vunpack.c.l.b16 %v1011
      %v1675 = vunpack.c.h.b16 %v1011
      %v1676 = vunpack.c.l.b16 %v1012
      %v1677 = vunpack.c.h.b16 %v1012
      %v1678 = vunpack.c.l.b16 %v1013
      %v1679 = vunpack.c.h.b16 %v1013
      %v1680 = vunpack.c.l.b16 %v1014
      %v1681 = vunpack.c.h.b16 %v1014
      %v1682 = vunpack.c.l.b16 %v1015
      %v1683 = vunpack.c.h.b16 %v1015
      %v1684 = vunpack.c.l.b16 %v1016
      %v1685 = vunpack.c.h.b16 %v1016
      %v1686 = vunpack.c.l.b16 %v1017
      %v1687 = vunpack.c.h.b16 %v1017
      %v1688 = vunpack.c.l.b16 %v1018
      %v1689 = vunpack.c.h.b16 %v1018
      %v1690 = vunpack.c.l.b16 %v1019
      %v1691 = vunpack.c.h.b16 %v1019
      %v1692 = vunpack.c.l.b16 %v1020
      %v1693 = vunpack.c.h.b16 %v1020
      %v1694 = vunpack.c.l.b16 %v1021
      %v1695 = vunpack.c.h.b16 %v1021
      %v1696 = vunpack.c.l.b16 %v1022
      %v1697 = vunpack.c.h.b16 %v1022
      %v1698 = vunpack.c.l.b16 %v1023
      %v1699 = vunpack.c.h.b16 %v1023
      %v1700 = vunpack.c.l.b16 %v1024
      %v1701 = vunpack.c.h.b16 %v1024
      %v1702 = vunpack.c.l.b16 %v1025
      %v1703 = vunpack.c.h.b16 %v1025
      %v1704 = vunpack.c.l.b16 %v1026
      %v1705 = vunpack.c.h.b16 %v1026
      %v1706 = vunpack.c.l.b16 %v1027
      %v1707 = vunpack.c.h.b16 %v1027
      %v1708 = vunpack.c.l.b16 %v1028
      %v1709 = vunpack.c.h.b16 %v1028
      %v1710 = vunpack.c.l.b16 %v1029
      %v1711 = vunpack.c.h.b16 %v1029
      %v1712 = vunpack.c.l.b16 %v1030
      %v1713 = vunpack.c.h.b16 %v1030
      %v1714 = vunpack.c.l.b16 %v1031
      %v1715 = vunpack.c.h.b16 %v1031
      %v1716 = vunpack.c.l.b16 %v1032
      %v1717 = vunpack.c.h.b16 %v1032
      %v1718 = vunpack.c.l.b16 %v1033
      %v1719 = vunpack.c.h.b16 %v1033
      %v1720 = vunpack.c.l.b16 %v1034
      %v1721 = vunpack.c.h.b16 %v1034
      %v1722 = vunpack.c.l.b16 %v1035
      %v1723 = vunpack.c.h.b16 %v1035
      %v1724 = vunpack.c.l.b16 %v1036
      %v1725 = vunpack.c.h.b16 %v1036
      %v1726 = vunpack.c.l.b16 %v1037
      %v1727 = vunpack.c.h.b16 %v1037
      %v1728 = vunpack.c.l.b16 %v1038
      %v1729 = vunpack.c.h.b16 %v1038
      %v1730 = vunpack.c.l.b16 %v1039
      %v1731 = vunpack.c.h.b16 %v1039
      %v1732 = vunpack.c.l.b16 %v1040
      %v1733 = vunpack.c.h.b16 %v1040
      %v1734 = vunpack.c.l.b16 %v1041
      %v1735 = vunpack.c.h.b16 %v1041
      %v1736 = vunpack.c.l.b16 %v1042
      %v1737 = vunpack.c.h.b16 %v1042
      %v1738 = vunpack.c.l.b16 %v1043
      %v1739 = vunpack.c.h.b16 %v1043
      %v1740 = vunpack.c.l.b16 %v1044
      %v1741 = vunpack.c.h.b16 %v1044
      %v1742 = vunpack.c.l.b16 %v1045
      %v1743 = vunpack.c.h.b16 %v1045
      %v1744 = vunpack.c.l.b16 %v1046
      %v1745 = vunpack.c.h.b16 %v1046
      %v1746 = vunpack.c.l.b16 %v1047
      %v1747 = vunpack.c.h.b16 %v1047
      %v1748 = vunpack.c.l.b16 %v1048
      %v1749 = vunpack.c.h.b16 %v1048
      %v1750 = vunpack.c.l.b16 %v1049
      %v1751 = vunpack.c.h.b16 %v1049
      %v1752 = vunpack.c.l.b16 %v1050
      %v1753 = vunpack.c.h.b16 %v1050
      %v1754 = vunpack.c.l.b16 %v1051
      %v1755 = vunpack.c.h.b16 %v1051
      %v1756 = vunpack.c.l.b16 %v1052
      %v1757 = vunpack.c.h.b16 %v1052
      %v1758 = vunpack.c.l.b16 %v1053
      %v1759 = vunpack.c.h.b16 %v1053
      %v1760 = vunpack.c.l.b16 %v1054
      %v1761 = vunpack.c.h.b16 %v1054
      %v1762 = vunpack.c.l.b16 %v1055
      %v1763 = vunpack.c.h.b16 %v1055
      %v1764 = vunpack.c.l.b16 %v1056
      %v1765 = vunpack.c.h.b16 %v1056
      %v1766 = vunpack.c.l.b16 %v1057
      %v1767 = vunpack.c.h.b16 %v1057
      %v1768 = vunpack.c.l.b16 %v1058
      %v1769 = vunpack.c.h.b16 %v1058
      %v1770 = vunpack.c.l.b16 %v1059
      %v1771 = vunpack.c.h.b16 %v1059
      %v1772 = vunpack.c.l.b16 %v1060
      %v1773 = vunpack.c.h.b16 %v1060
      %v1774 = vunpack.c.l.b16 %v1061
      %v1775 = vunpack.c.h.b16 %v1061
      %v1776 = vunpack.c.l.b16 %v1062
      %v1777 = vunpack.c.h.b16 %v1062
      %v1778 = vunpack.c.l.b16 %v1063
      %v1779 = vunpack.c.h.b16 %v1063
      %v1780 = vunpack.c.l.b16 %v1064
      %v1781 = vunpack.c.h.b16 %v1064
      %v1782 = vunpack.c.l.b16 %v1065
      %v1783 = vunpack.c.h.b16 %v1065
      %v1784 = vunpack.c.l.b16 %v1066
      %v1785 = vunpack.c.h.b16 %v1066
      %v1786 = vunpack.c.l.b16 %v1067
      %v1787 = vunpack.c.h.b16 %v1067
      %v1788 = vunpack.c.l.b16 %v1068
      %v1789 = vunpack.c.h.b16 %v1068
      %v1790 = vunpack.c.l.b16 %v1069
      %v1791 = vunpack.c.h.b16 %v1069
      %v1792 = vunpack.c.l.b16 %v1070
      %v1793 = vunpack.c.h.b16 %v1070
      %v1794 = vunpack.c.l.b16 %v1071
      %v1795 = vunpack.c.h.b16 %v1071
      %v1796 = vunpack.c.l.b16 %v1072
      %v1797 = vunpack.c.h.b16 %v1072
      %v1798 = vunpack.c.l.b16 %v1073
      %v1799 = vunpack.c.h.b16 %v1073
      %v1800 = vunpack.c.l.b16 %v1074
      %v1801 = vunpack.c.h.b16 %v1074
      %v1802 = vunpack.c.l.b16 %v1075
      %v1803 = vunpack.c.h.b16 %v1075
      %v1804 = vunpack.c.l.b16 %v1076
      %v1805 = vunpack.c.h.b16 %v1076
      %v1806 = vunpack.c.l.b16 %v1077
      %v1807 = vunpack.c.h.b16 %v1077
      %v1808 = vunpack.c.l.b16 %v1078
      %v1809 = vunpack.c.h.b16 %v1078
      %v1810 = vunpack.c.l.b16 %v1079
      %v1811 = vunpack.c.h.b16 %v1079
      %v1812 = vunpack.c.l.b16 %v1080
      %v1813 = vunpack.c.h.b16 %v1080
      %v1814 = vunpack.c.l.b16 %v1081
      %v1815 = vunpack.c.h.b16 %v1081
      %v1816 = vunpack.c.l.b16 %v1082
      %v1817 = vunpack.c.h.b16 %v1082
      %v1818 = vunpack.c.l.b16 %v1083
      %v1819 = vunpack.c.h.b16 %v1083
      %v1820 = vunpack.c.l.b16 %v1084
      %v1821 = vunpack.c.h.b16 %v1084
      %v1822 = vunpack.c.l.b16 %v1085
      %v1823 = vunpack.c.h.b16 %v1085
      %v1824 = vunpack.c.l.b16 %v1086
      %v1825 = vunpack.c.h.b16 %v1086
      %v1826 = vunpack.c.l.b16 %v1087
      %v1827 = vunpack.c.h.b16 %v1087
      %v1828 = vunpack.c.l.b16 %v1088
      %v1829 = vunpack.c.h.b16 %v1088
      %v1830 = vunpack.c.l.b16 %v1089
      %v1831 = vunpack.c.h.b16 %v1089
      %v1832 = vunpack.c.l.b16 %v1090
      %v1833 = vunpack.c.h.b16 %v1090
      %v1834 = vunpack.c.l.b16 %v1091
      %v1835 = vunpack.c.h.b16 %v1091
      %v1836 = vunpack.c.l.b16 %v1092
      %v1837 = vunpack.c.h.b16 %v1092
      %v1838 = vunpack.c.l.b16 %v1093
      %v1839 = vunpack.c.h.b16 %v1093
      %v1840 = vunpack.c.l.b16 %v1094
      %v1841 = vunpack.c.h.b16 %v1094
      %v1842 = vunpack.c.l.b16 %v1095
      %v1843 = vunpack.c.h.b16 %v1095
      %v1844 = vunpack.c.l.b16 %v1096
      %v1845 = vunpack.c.h.b16 %v1096
      %v1846 = vunpack.c.l.b16 %v1097
      %v1847 = vunpack.c.h.b16 %v1097
      %v1848 = vunpack.c.l.b16 %v1098
      %v1849 = vunpack.c.h.b16 %v1098
      %v1850 = vunpack.c.l.b16 %v1099
      %v1851 = vunpack.c.h.b16 %v1099
      %v1852 = vunpack.c.l.b16 %v1100
      %v1853 = vunpack.c.h.b16 %v1100
      %v1854 = vunpack.c.l.b16 %v1101
      %v1855 = vunpack.c.h.b16 %v1101
      %v1856 = vunpack.c.l.b16 %v1102
      %v1857 = vunpack.c.h.b16 %v1102
      %v1858 = vunpack.c.l.b16 %v1103
      %v1859 = vunpack.c.h.b16 %v1103
      %v1860 = vunpack.c.l.b16 %v1104
      %v1861 = vunpack.c.h.b16 %v1104
      %v1862 = vunpack.c.l.b16 %v1105
      %v1863 = vunpack.c.h.b16 %v1105
      %v1864 = vunpack.c.l.b16 %v1106
      %v1865 = vunpack.c.h.b16 %v1106
      %v1866 = vunpack.c.l.b16 %v1107
      %v1867 = vunpack.c.h.b16 %v1107
      %v1868 = vunpack.c.l.b16 %v1108
      %v1869 = vunpack.c.h.b16 %v1108
      %v1870 = vunpack.c.l.b16 %v1109
      %v1871 = vunpack.c.h.b16 %v1109
      %v1872 = vunpack.c.l.b16 %v1110
      %v1873 = vunpack.c.h.b16 %v1110
      %v1874 = vunpack.c.l.b16 %v1111
      %v1875 = vunpack.c.h.b16 %v1111
      %v1876 = vunpack.c.l.b16 %v1112
      %v1877 = vunpack.c.h.b16 %v1112
      %v1878 = vunpack.c.l.b16 %v1113
      %v1879 = vunpack.c.h.b16 %v1113
      %v1880 = vunpack.c.l.b16 %v1114
      %v1881 = vunpack.c.h.b16 %v1114
      %v1882 = vunpack.c.l.b16 %v1115
      %v1883 = vunpack.c.h.b16 %v1115
      %v1884 = vunpack.c.l.b16 %v1116
      %v1885 = vunpack.c.h.b16 %v1116
      %v1886 = vunpack.c.l.b16 %v1117
      %v1887 = vunpack.c.h.b16 %v1117
      %v1888 = vunpack.c.l.b16 %v1118
      %v1889 = vunpack.c.h.b16 %v1118
      %v1890 = vunpack.c.l.b16 %v1119
      %v1891 = vunpack.c.h.b16 %v1119
      %v1892 = vunpack.c.l.b16 %v1120
      %v1893 = vunpack.c.h.b16 %v1120
      %v1894 = vunpack.c.l.b16 %v1121
      %v1895 = vunpack.c.h.b16 %v1121
      %v1896 = vunpack.c.l.b16 %v1122
      %v1897 = vunpack.c.h.b16 %v1122
      %v1898 = vunpack.c.l.b16 %v1123
      %v1899 = vunpack.c.h.b16 %v1123
      %v1900 = vunpack.c.l.b16 %v1124
      %v1901 = vunpack.c.h.b16 %v1124
      %v1902 = vunpack.c.l.b16 %v1125
      %v1903 = vunpack.c.h.b16 %v1125
      %v1904 = vunpack.c.l.b16 %v1126
      %v1905 = vunpack.c.h.b16 %v1126
      %v1906 = vunpack.c.l.b16 %v1127
      %v1907 = vunpack.c.h.b16 %v1127
      %v1908 = vunpack.c.l.b16 %v1128
      %v1909 = vunpack.c.h.b16 %v1128
      %v1910 = vunpack.c.l.b16 %v1129
      %v1911 = vunpack.c.h.b16 %v1129
      %v1912 = vunpack.c.l.b16 %v1130
      %v1913 = vunpack.c.h.b16 %v1130
      %v1914 = vunpack.c.l.b16 %v1131
      %v1915 = vunpack.c.h.b16 %v1131
      %v1916 = vunpack.c.l.b16 %v1132
      %v1917 = vunpack.c.h.b16 %v1132
      %v1918 = vunpack.c.l.b16 %v1133
      %v1919 = vunpack.c.h.b16 %v1133
      %v1920 = vunpack.c.l.b16 %v1134
      %v1921 = vunpack.c.h.b16 %v1134
      %v1922 = vunpack.c.l.b16 %v1135
      %v1923 = vunpack.c.h.b16 %v1135
      %v1924 = vunpack.c.l.b16 %v1136
      %v1925 = vunpack.c.h.b16 %v1136
      %v1926 = vunpack.c.l.b16 %v1137
      %v1927 = vunpack.c.h.b16 %v1137
      %v1928 = vunpack.c.l.b16 %v1138
      %v1929 = vunpack.c.h.b16 %v1138
      %v1930 = vunpack.c.l.b16 %v1139
      %v1931 = vunpack.c.h.b16 %v1139
      %v1932 = vunpack.c.l.b16 %v1140
      %v1933 = vunpack.c.h.b16 %v1140
      %v1934 = vunpack.c.l.b16 %v1141
      %v1935 = vunpack.c.h.b16 %v1141
      %v1936 = vunpack.c.l.b16 %v1142
      %v1937 = vunpack.c.h.b16 %v1142
      %v1938 = vunpack.c.l.b16 %v1143
      %v1939 = vunpack.c.h.b16 %v1143
      %v1940 = vunpack.c.l.b16 %v1144
      %v1941 = vunpack.c.h.b16 %v1144
      %v1942 = vunpack.c.l.b16 %v1145
      %v1943 = vunpack.c.h.b16 %v1145
      %v1944 = vunpack.c.l.b16 %v1146
      %v1945 = vunpack.c.h.b16 %v1146
      %v1946 = vunpack.c.l.b16 %v1147
      %v1947 = vunpack.c.h.b16 %v1147
      %v1948 = vunpack.c.l.b16 %v1148
      %v1949 = vunpack.c.h.b16 %v1148
      %v1950 = vunpack.c.l.b16 %v1149
      %v1951 = vunpack.c.h.b16 %v1149
      %v1952 = vunpack.c.l.b16 %v1150
      %v1953 = vunpack.c.h.b16 %v1150
      %v1954 = vunpack.c.l.b16 %v1151
      %v1955 = vunpack.c.h.b16 %v1151
      %v1956 = vunpack.c.l.b16 %v1152
      %v1957 = vunpack.c.h.b16 %v1152
      %v1958 = vunpack.c.l.b16 %v1153
      %v1959 = vunpack.c.h.b16 %v1153
      %v1960 = vunpack.c.l.b16 %v1154
      %v1961 = vunpack.c.h.b16 %v1154
      %v1962 = vunpack.c.l.b16 %v1155
      %v1963 = vunpack.c.h.b16 %v1155
      %v1964 = vunpack.c.l.b16 %v1156
      %v1965 = vunpack.c.h.b16 %v1156
      %v1966 = vunpack.c.l.b16 %v1157
      %v1967 = vunpack.c.h.b16 %v1157
      %v1968 = vunpack.c.l.b16 %v1158
      %v1969 = vunpack.c.h.b16 %v1158
      %v1970 = vunpack.c.l.b16 %v1159
      %v1971 = vunpack.c.h.b16 %v1159
      %v1972 = vunpack.c.l.b16 %v1160
      %v1973 = vunpack.c.h.b16 %v1160
      %v1974 = vunpack.c.l.b16 %v1161
      %v1975 = vunpack.c.h.b16 %v1161
      %v1976 = vunpack.c.l.b16 %v1162
      %v1977 = vunpack.c.h.b16 %v1162
      %v1978 = vunpack.c.l.b16 %v1163
      %v1979 = vunpack.c.h.b16 %v1163
      %v1980 = vunpack.c.l.b16 %v1164
      %v1981 = vunpack.c.h.b16 %v1164
      %v1982 = vunpack.c.l.b16 %v1165
      %v1983 = vunpack.c.h.b16 %v1165
      %v1984 = vunpack.c.l.b16 %v1166
      %v1985 = vunpack.c.h.b16 %v1166
      %v1986 = vunpack.c.l.b16 %v1167
      %v1987 = vunpack.c.h.b16 %v1167
      %v1988 = vunpack.c.l.b16 %v1168
      %v1989 = vunpack.c.h.b16 %v1168
      %v1990 = vunpack.c.l.b16 %v1169
      %v1991 = vunpack.c.h.b16 %v1169
      %v1992 = vunpack.c.l.b16 %v1170
      %v1993 = vunpack.c.h.b16 %v1170
      %v1994 = vunpack.c.l.b16 %v1171
      %v1995 = vunpack.c.h.b16 %v1171
      %v1996 = vunpack.c.l.b16 %v1172
      %v1997 = vunpack.c.h.b16 %v1172
      %v1998 = vunpack.c.l.b16 %v1173
      %v1999 = vunpack.c.h.b16 %v1173
      %v2000 = vunpack.c.l.b16 %v1174
      %v2001 = vunpack.c.h.b16 %v1174
      %v2002 = vunpack.c.l.b16 %v1175
      %v2003 = vunpack.c.h.b16 %v1175
      %v2004 = vunpack.c.l.b16 %v1176
      %v2005 = vunpack.c.h.b16 %v1176
      %v2006 = vunpack.c.l.b16 %v1177
      %v2007 = vunpack.c.h.b16 %v1177
      %v2008 = vunpack.c.l.b16 %v1178
      %v2009 = vunpack.c.h.b16 %v1178
      %v2010 = vunpack.c.l.b16 %v1179
      %v2011 = vunpack.c.h.b16 %v1179
      %v2012 = vunpack.c.l.b16 %v1180
      %v2013 = vunpack.c.h.b16 %v1180
      %v2014 = vunpack.c.l.b16 %v1181
      %v2015 = vunpack.c.h.b16 %v1181
      %v2016 = vunpack.c.l.b16 %v1182
      %v2017 = vunpack.c.h.b16 %v1182
      %v2018 = vunpack.c.l.b16 %v1183
      %v2019 = vunpack.c.h.b16 %v1183
      %v2020 = vunpack.c.l.b16 %v1184
      %v2021 = vunpack.c.h.b16 %v1184
      %v2022 = vunpack.c.l.b16 %v1185
      %v2023 = vunpack.c.h.b16 %v1185
      %v2024 = vunpack.c.l.b16 %v1186
      %v2025 = vunpack.c.h.b16 %v1186
      %v2026 = vunpack.c.l.b16 %v1187
      %v2027 = vunpack.c.h.b16 %v1187
      %v2028 = vunpack.c.l.b16 %v1188
      %v2029 = vunpack.c.h.b16 %v1188
      %v2030 = vunpack.c.l.b16 %v1189
      %v2031 = vunpack.c.h.b16 %v1189
      %v2032 = vunpack.c.l.b16 %v1190
      %v2033 = vunpack.c.h.b16 %v1190
      %v2034 = vunpack.c.l.b16 %v1191
      %v2035 = vunpack.c.h.b16 %v1191
      %v2036 = vunpack.c.l.b16 %v1192
      %v2037 = vunpack.c.h.b16 %v1192
      %v2038 = vunpack.c.l.b16 %v1193
      %v2039 = vunpack.c.h.b16 %v1193
      %v2040 = vunpack.c.l.b16 %v1194
      %v2041 = vunpack.c.h.b16 %v1194
      %v2042 = vunpack.c.l.b16 %v1195
      %v2043 = vunpack.c.h.b16 %v1195
      %v2044 = vunpack.c.l.b16 %v1196
      %v2045 = vunpack.c.h.b16 %v1196
      %v2046 = vunpack.c.l.b16 %v1197
      %v2047 = vunpack.c.h.b16 %v1197
      %v2048 = vunpack.c.l.b16 %v1198
      %v2049 = vunpack.c.h.b16 %v1198
      %v2050 = vunpack.c.l.b16 %v1199
      %v2051 = vunpack.c.h.b16 %v1199
      %v2052 = vunpack.c.l.b16 %v1200
      %v2053 = vunpack.c.h.b16 %v1200
      %v2054 = vunpack.c.l.b16 %v1201
      %v2055 = vunpack.c.h.b16 %v1201
      %v2056 = vunpack.c.l.b16 %v1202
      %v2057 = vunpack.c.h.b16 %v1202
      %v2058 = vunpack.c.l.b16 %v1203
      %v2059 = vunpack.c.h.b16 %v1203
      %v2060 = vunpack.c.l.b16 %v1204
      %v2061 = vunpack.c.h.b16 %v1204
      %v2062 = vunpack.c.l.b16 %v1205
      %v2063 = vunpack.c.h.b16 %v1205
      %v2064 = vunpack.c.l.b16 %v1206
      %v2065 = vunpack.c.h.b16 %v1206
      %v2066 = vunpack.c.l.b16 %v1207
      %v2067 = vunpack.c.h.b16 %v1207
      %v2068 = vunpack.c.l.b16 %v1208
      %v2069 = vunpack.c.h.b16 %v1208
      %v2070 = vunpack.c.l.b16 %v1209
      %v2071 = vunpack.c.h.b16 %v1209
      %v2072 = vunpack.c.l.b16 %v1210
      %v2073 = vunpack.c.h.b16 %v1210
      %v2074 = vunpack.c.l.b16 %v1211
      %v2075 = vunpack.c.h.b16 %v1211
      %v2076 = vunpack.c.l.b16 %v1212
      %v2077 = vunpack.c.h.b16 %v1212
      %v2078 = vunpack.c.l.b16 %v1213
      %v2079 = vunpack.c.h.b16 %v1213
      %v2080 = vunpack.c.l.b16 %v1214
      %v2081 = vunpack.c.h.b16 %v1214
      %v2082 = vunpack.c.l.b16 %v1215
      %v2083 = vunpack.c.h.b16 %v1215
      %v2084 = vunpack.c.l.b16 %v1216
      %v2085 = vunpack.c.h.b16 %v1216
      %v2086 = vunpack.c.l.b16 %v1217
      %v2087 = vunpack.c.h.b16 %v1217
      %v2088 = vunpack.c.l.b16 %v1218
      %v2089 = vunpack.c.h.b16 %v1218
      %v2090 = vunpack.c.l.b16 %v1219
      %v2091 = vunpack.c.h.b16 %v1219
      %v2092 = vunpack.c.l.b16 %v1220
      %v2093 = vunpack.c.h.b16 %v1220
      %v2094 = vunpack.c.l.b16 %v1221
      %v2095 = vunpack.c.h.b16 %v1221
      %v2096 = vunpack.c.l.b16 %v1222
      %v2097 = vunpack.c.h.b16 %v1222
      %v2098 = vunpack.c.l.b16 %v1223
      %v2099 = vunpack.c.h.b16 %v1223
      %v2100 = vunpack.c.l.b16 %v1224
      %v2101 = vunpack.c.h.b16 %v1224
      %v2102 = vunpack.c.l.b16 %v1225
      %v2103 = vunpack.c.h.b16 %v1225
      %v2104 = vunpack.c.l.b16 %v1226
      %v2105 = vunpack.c.h.b16 %v1226
      %v2106 = vunpack.c.l.b16 %v1227
      %v2107 = vunpack.c.h.b16 %v1227
      %v2108 = vunpack.c.l.b16 %v1228
      %v2109 = vunpack.c.h.b16 %v1228
      %v2110 = vunpack.c.l.b16 %v1229
      %v2111 = vunpack.c.h.b16 %v1229
      %v2112 = vunpack.c.l.b16 %v1230
      %v2113 = vunpack.c.h.b16 %v1230
      %v2114 = vunpack.c.l.b16 %v1231
      %v2115 = vunpack.c.h.b16 %v1231
      %v2116 = vunpack.c.l.b16 %v1232
      %v2117 = vunpack.c.h.b16 %v1232
      %v2118 = vunpack.c.l.b16 %v1233
      %v2119 = vunpack.c.h.b16 %v1233
      %v2120 = vunpack.c.l.b16 %v1234
      %v2121 = vunpack.c.h.b16 %v1234
      %v2122 = vunpack.c.l.b16 %v1235
      %v2123 = vunpack.c.h.b16 %v1235
      %v2124 = vunpack.c.l.b16 %v1236
      %v2125 = vunpack.c.h.b16 %v1236
      %v2126 = vunpack.c.l.b16 %v1237
      %v2127 = vunpack.c.h.b16 %v1237
      %v2128 = vunpack.c.l.b16 %v1238
      %v2129 = vunpack.c.h.b16 %v1238
      %v2130 = vunpack.c.l.b16 %v1239
      %v2131 = vunpack.c.h.b16 %v1239
      %v2132 = vunpack.c.l.b16 %v1240
      %v2133 = vunpack.c.h.b16 %v1240
      %v2134 = vunpack.c.l.b16 %v1241
      %v2135 = vunpack.c.h.b16 %v1241
      %v2136 = vunpack.c.l.b16 %v1242
      %v2137 = vunpack.c.h.b16 %v1242
      %v2138 = vunpack.c.l.b16 %v1243
      %v2139 = vunpack.c.h.b16 %v1243
      %v2140 = vunpack.c.l.b16 %v1244
      %v2141 = vunpack.c.h.b16 %v1244
      %v2142 = vunpack.c.l.b16 %v1245
      %v2143 = vunpack.c.h.b16 %v1245
      %v2144 = vunpack.c.l.b16 %v1246
      %v2145 = vunpack.c.h.b16 %v1246
      %v2146 = vunpack.c.l.b16 %v1247
      %v2147 = vunpack.c.h.b16 %v1247
      %v2148 = vunpack.c.l.b16 %v1248
      %v2149 = vunpack.c.h.b16 %v1248
      %v2150 = vunpack.c.l.b16 %v1249
      %v2151 = vunpack.c.h.b16 %v1249
      %v2152 = vunpack.c.l.b16 %v1250
      %v2153 = vunpack.c.h.b16 %v1250
      %v2154 = vunpack.c.l.b16 %v1251
      %v2155 = vunpack.c.h.b16 %v1251
      %v2156 = vunpack.c.l.b16 %v1252
      %v2157 = vunpack.c.h.b16 %v1252
      %v2158 = vunpack.c.l.b16 %v1253
      %v2159 = vunpack.c.h.b16 %v1253
      %v2160 = vunpack.c.l.b16 %v1254
      %v2161 = vunpack.c.h.b16 %v1254
      %v2162 = vunpack.c.l.b16 %v1255
      %v2163 = vunpack.c.h.b16 %v1255
      %v2164 = vunpack.c.l.b16 %v1256
      %v2165 = vunpack.c.h.b16 %v1256
      %v2166 = vunpack.c.l.b16 %v1257
      %v2167 = vunpack.c.h.b16 %v1257
      %v2168 = vunpack.c.l.b16 %v1258
      %v2169 = vunpack.c.h.b16 %v1258
      %v2170 = vunpack.c.l.b16 %v1259
      %v2171 = vunpack.c.h.b16 %v1259
      %v2172 = vunpack.c.l.b16 %v1260
      %v2173 = vunpack.c.h.b16 %v1260
      %v2174 = vunpack.c.l.b16 %v1261
      %v2175 = vunpack.c.h.b16 %v1261
      %v2176 = vunpack.c.l.b16 %v1262
      %v2177 = vunpack.c.h.b16 %v1262
      %v2178 = vunpack.c.l.b16 %v1263
      %v2179 = vunpack.c.h.b16 %v1263
      %v2180 = vunpack.c.l.b16 %v1264
      %v2181 = vunpack.c.h.b16 %v1264
      %v2182 = vunpack.c.l.b16 %v1265
      %v2183 = vunpack.c.h.b16 %v1265
      %v2184 = vunpack.c.l.b16 %v1266
      %v2185 = vunpack.c.h.b16 %v1266
      %v2186 = vunpack.c.l.b16 %v1267
      %v2187 = vunpack.c.h.b16 %v1267
      %v2188 = vunpack.c.l.b16 %v1268
      %v2189 = vunpack.c.h.b16 %v1268
      %v2190 = vunpack.c.l.b16 %v1269
      %v2191 = vunpack.c.h.b16 %v1269
      %v2192 = vunpack.c.l.b16 %v1270
      %v2193 = vunpack.c.h.b16 %v1270
      %v2194 = vunpack.c.l.b16 %v1271
      %v2195 = vunpack.c.h.b16 %v1271
      %v2196 = vunpack.c.l.b16 %v1272
      %v2197 = vunpack.c.h.b16 %v1272
      %v2198 = vunpack.c.l.b16 %v1273
      %v2199 = vunpack.c.h.b16 %v1273
      %v2200 = vunpack.c.l.b16 %v1274
      %v2201 = vunpack.c.h.b16 %v1274
      %v2202 = vunpack.c.l.b16 %v1275
      %v2203 = vunpack.c.h.b16 %v1275
      %v2204 = vunpack.c.l.b16 %v1276
      %v2205 = vunpack.c.h.b16 %v1276
      %v2206 = vunpack.c.l.b16 %v1277
      %v2207 = vunpack.c.h.b16 %v1277
      %v2208 = vunpack.c.l.b16 %v1278
      %v2209 = vunpack.c.h.b16 %v1278
      %v2210 = vunpack.c.l.b16 %v1279
      %v2211 = vunpack.c.h.b16 %v1279
      %v2212 = vunpack.c.l.b16 %v1280
      %v2213 = vunpack.c.h.b16 %v1280
      %v2214 = vunpack.c.l.b16 %v1281
      %v2215 = vunpack.c.h.b16 %v1281
      %v2216 = vunpack.c.l.b16 %v1282
      %v2217 = vunpack.c.h.b16 %v1282
      %v2218 = vunpack.c.l.b16 %v1283
      %v2219 = vunpack.c.h.b16 %v1283
      %v2220 = vunpack.c.l.b16 %v1284
      %v2221 = vunpack.c.h.b16 %v1284
      %v2222 = vunpack.c.l.b16 %v1285
      %v2223 = vunpack.c.h.b16 %v1285
      %v2224 = vunpack.c.l.b16 %v1286
      %v2225 = vunpack.c.h.b16 %v1286
      %v2226 = vunpack.c.l.b16 %v1287
      %v2227 = vunpack.c.h.b16 %v1287
      %v2228 = vunpack.c.l.b16 %v1288
      %v2229 = vunpack.c.h.b16 %v1288
      %v2230 = vunpack.c.l.b16 %v1289
      %v2231 = vunpack.c.h.b16 %v1289
      %v2232 = vunpack.c.l.b16 %v1290
      %v2233 = vunpack.c.h.b16 %v1290
      %v2234 = vunpack.c.l.b16 %v1291
      %v2235 = vunpack.c.h.b16 %v1291
      %v2236 = vunpack.c.l.b16 %v1292
      %v2237 = vunpack.c.h.b16 %v1292
      %v2238 = vunpack.c.l.b16 %v1293
      %v2239 = vunpack.c.h.b16 %v1293
      %v2240 = vunpack.c.l.b16 %v1294
      %v2241 = vunpack.c.h.b16 %v1294
      %v2242 = vunpack.c.l.b16 %v1295
      %v2243 = vunpack.c.h.b16 %v1295
      %v2244 = vunpack.c.l.b16 %v1296
      %v2245 = vunpack.c.h.b16 %v1296
      %v2246 = vunpack.c.l.b16 %v1297
      %v2247 = vunpack.c.h.b16 %v1297
      %v2248 = vunpack.c.l.b16 %v1298
      %v2249 = vunpack.c.h.b16 %v1298
      %v2250 = vunpack.c.l.b16 %v1299
      %v2251 = vunpack.c.h.b16 %v1299
      %v2252 = vunpack.c.l.b16 %v1300
      %v2253 = vunpack.c.h.b16 %v1300
      %v2254 = vunpack.c.l.b16 %v1301
      %v2255 = vunpack.c.h.b16 %v1301
      %v2256 = vunpack.c.l.b16 %v1302
      %v2257 = vunpack.c.h.b16 %v1302
      %v2258 = vunpack.c.l.b16 %v1303
      %v2259 = vunpack.c.h.b16 %v1303
      %v2260 = vunpack.c.l.b16 %v1304
      %v2261 = vunpack.c.h.b16 %v1304
      %v2262 = vunpack.c.l.b16 %v1305
      %v2263 = vunpack.c.h.b16 %v1305
      %v2264 = vunpack.c.l.b16 %v1306
      %v2265 = vunpack.c.h.b16 %v1306
      %v2266 = vunpack.c.l.b16 %v1307
      %v2267 = vunpack.c.h.b16 %v1307
      %v2268 = vunpack.c.l.b16 %v1308
      %v2269 = vunpack.c.h.b16 %v1308
      %v2270 = vunpack.c.l.b16 %v1309
      %v2271 = vunpack.c.h.b16 %v1309
      %v2272 = vunpack.c.l.b16 %v1310
      %v2273 = vunpack.c.h.b16 %v1310
      %v2274 = vunpack.c.l.b16 %v1311
      %v2275 = vunpack.c.h.b16 %v1311
      %v2276 = vunpack.c.l.b16 %v1312
      %v2277 = vunpack.c.h.b16 %v1312
      %v2278 = vunpack.c.l.b16 %v1313
      %v2279 = vunpack.c.h.b16 %v1313
      %v2280 = vunpack.c.l.b16 %v1314
      %v2281 = vunpack.c.h.b16 %v1314
      %v2282 = vunpack.c.l.b16 %v1315
      %v2283 = vunpack.c.h.b16 %v1315
      %v2284 = vunpack.c.l.b16 %v1316
      %v2285 = vunpack.c.h.b16 %v1316
      %v2286 = vunpack.c.l.b16 %v1317
      %v2287 = vunpack.c.h.b16 %v1317
      %v2288 = vunpack.c.l.b16 %v1318
      %v2289 = vunpack.c.h.b16 %v1318
      %v2290 = vunpack.c.l.b16 %v1319
      %v2291 = vunpack.c.h.b16 %v1319
      %v2292 = vpack.c.b16 %v1648, %v1644
      %v2293 = vpack.c.b16 %v1649, %v1645
      %v2294 = vpack.c.b16 %v1650, %v1646
      %v2295 = vpack.c.b16 %v1651, %v1647
      %v2296 = vpack.c.b16 %v1656, %v1652
      %v2297 = vpack.c.b16 %v1657, %v1653
      %v2298 = vpack.c.b16 %v1658, %v1654
      %v2299 = vpack.c.b16 %v1659, %v1655
      %v2300 = vpack.c.b16 %v1664, %v1660
      %v2301 = vpack.c.b16 %v1665, %v1661
      %v2302 = vpack.c.b16 %v1666, %v1662
      %v2303 = vpack.c.b16 %v1667, %v1663
      %v2304 = vpack.c.b16 %v1672, %v1668
      %v2305 = vpack.c.b16 %v1673, %v1669
      %v2306 = vpack.c.b16 %v1674, %v1670
      %v2307 = vpack.c.b16 %v1675, %v1671
      %v2308 = vpack.c.b16 %v1680, %v1676
      %v2309 = vpack.c.b16 %v1681, %v1677
      %v2310 = vpack.c.b16 %v1682, %v1678
      %v2311 = vpack.c.b16 %v1683, %v1679
      %v2312 = vpack.c.b16 %v1688, %v1684
      %v2313 = vpack.c.b16 %v1689, %v1685
      %v2314 = vpack.c.b16 %v1690, %v1686
      %v2315 = vpack.c.b16 %v1691, %v1687
      %v2316 = vpack.c.b16 %v1696, %v1692
      %v2317 = vpack.c.b16 %v1697, %v1693
      %v2318 = vpack.c.b16 %v1698, %v1694
      %v2319 = vpack.c.b16 %v1699, %v1695
      %v2320 = vpack.c.b16 %v1704, %v1700
      %v2321 = vpack.c.b16 %v1705, %v1701
      %v2322 = vpack.c.b16 %v1706, %v1702
      %v2323 = vpack.c.b16 %v1707, %v1703
      %v2324 = vpack.c.b16 %v1712, %v1708
      %v2325 = vpack.c.b16 %v1713, %v1709
      %v2326 = vpack.c.b16 %v1714, %v1710
      %v2327 = vpack.c.b16 %v1715, %v1711
      %v2328 = vpack.c.b16 %v1720, %v1716
      %v2329 = vpack.c.b16 %v1721, %v1717
      %v2330 = vpack.c.b16 %v1722, %v1718
      %v2331 = vpack.c.b16 %v1723, %v1719
      %v2332 = vpack.c.b16 %v1728, %v1724
      %v2333 = vpack.c.b16 %v1729, %v1725
      %v2334 = vpack.c.b16 %v1730, %v1726
      %v2335 = vpack.c.b16 %v1731, %v1727
      %v2336 = vpack.c.b16 %v1736, %v1732
      %v2337 = vpack.c.b16 %v1737, %v1733
      %v2338 = vpack.c.b16 %v1738, %v1734
      %v2339 = vpack.c.b16 %v1739, %v1735
      %v2340 = vpack.c.b16 %v1744, %v1740
      %v2341 = vpack.c.b16 %v1745, %v1741
      %v2342 = vpack.c.b16 %v1746, %v1742
      %v2343 = vpack.c.b16 %v1747, %v1743
      %v2344 = vpack.c.b16 %v1752, %v1748
      %v2345 = vpack.c.b16 %v1753, %v1749
      %v2346 = vpack.c.b16 %v1754, %v1750
      %v2347 = vpack.c.b16 %v1755, %v1751
      %v2348 = vpack.c.b16 %v1760, %v1756
      %v2349 = vpack.c.b16 %v1761, %v1757
      %v2350 = vpack.c.b16 %v1762, %v1758
      %v2351 = vpack.c.b16 %v1763, %v1759
      %v2352 = vpack.c.b16 %v1768, %v1764
      %v2353 = vpack.c.b16 %v1769, %v1765
      %v2354 = vpack.c.b16 %v1770, %v1766
      %v2355 = vpack.c.b16 %v1771, %v1767
      %v2356 = vpack.c.b16 %v1776, %v1772
      %v2357 = vpack.c.b16 %v1777, %v1773
      %v2358 = vpack.c.b16 %v1778, %v1774
      %v2359 = vpack.c.b16 %v1779, %v1775
      %v2360 = vpack.c.b16 %v1784, %v1780
      %v2361 = vpack.c.b16 %v1785, %v1781
      %v2362 = vpack.c.b16 %v1786, %v1782
      %v2363 = vpack.c.b16 %v1787, %v1783
      %v2364 = vpack.c.b16 %v1792, %v1788
      %v2365 = vpack.c.b16 %v1793, %v1789
      %v2366 = vpack.c.b16 %v1794, %v1790
      %v2367 = vpack.c.b16 %v1795, %v1791
      %v2368 = vpack.c.b16 %v1800, %v1796
      %v2369 = vpack.c.b16 %v1801, %v1797
      %v2370 = vpack.c.b16 %v1802, %v1798
      %v2371 = vpack.c.b16 %v1803, %v1799
      %v2372 = vpack.c.b16 %v1808, %v1804
      %v2373 = vpack.c.b16 %v1809, %v1805
      %v2374 = vpack.c.b16 %v1810, %v1806
      %v2375 = vpack.c.b16 %v1811, %v1807
      %v2376 = vpack.c.b16 %v1816, %v1812
      %v2377 = vpack.c.b16 %v1817, %v1813
      %v2378 = vpack.c.b16 %v1818, %v1814
      %v2379 = vpack.c.b16 %v1819, %v1815
      %v2380 = vpack.c.b16 %v1824, %v1820
      %v2381 = vpack.c.b16 %v1825, %v1821
      %v2382 = vpack.c.b16 %v1826, %v1822
      %v2383 = vpack.c.b16 %v1827, %v1823
      %v2384 = vpack.c.b16 %v1832, %v1828
      %v2385 = vpack.c.b16 %v1833, %v1829
      %v2386 = vpack.c.b16 %v1834, %v1830
      %v2387 = vpack.c.b16 %v1835, %v1831
      %v2388 = vpack.c.b16 %v1840, %v1836
      %v2389 = vpack.c.b16 %v1841, %v1837
      %v2390 = vpack.c.b16 %v1842, %v1838
      %v2391 = vpack.c.b16 %v1843, %v1839
      %v2392 = vpack.c.b16 %v1848, %v1844
      %v2393 = vpack.c.b16 %v1849, %v1845
      %v2394 = vpack.c.b16 %v1850, %v1846
      %v2395 = vpack.c.b16 %v1851, %v1847
      %v2396 = vpack.c.b16 %v1856, %v1852
      %v2397 = vpack.c.b16 %v1857, %v1853
      %v2398 = vpack.c.b16 %v1858, %v1854
      %v2399 = vpack.c.b16 %v1859, %v1855
      %v2400 = vpack.c.b16 %v1864, %v1860
      %v2401 = vpack.c.b16 %v1865, %v1861
      %v2402 = vpack.c.b16 %v1866, %v1862
      %v2403 = vpack.c.b16 %v1867, %v1863
      %v2404 = vpack.c.b16 %v1872, %v1868
      %v2405 = vpack.c.b16 %v1873, %v1869
      %v2406 = vpack.c.b16 %v1874, %v1870
      %v2407 = vpack.c.b16 %v1875, %v1871
      %v2408 = vpack.c.b16 %v1880, %v1876
      %v2409 = vpack.c.b16 %v1881, %v1877
      %v2410 = vpack.c.b16 %v1882, %v1878
      %v2411 = vpack.c.b16 %v1883, %v1879
      %v2412 = vpack.c.b16 %v1888, %v1884
      %v2413 = vpack.c.b16 %v1889, %v1885
      %v2414 = vpack.c.b16 %v1890, %v1886
      %v2415 = vpack.c.b16 %v1891, %v1887
      %v2416 = vpack.c.b16 %v1896, %v1892
      %v2417 = vpack.c.b16 %v1897, %v1893
      %v2418 = vpack.c.b16 %v1898, %v1894
      %v2419 = vpack.c.b16 %v1899, %v1895
      %v2420 = vpack.c.b16 %v1904, %v1900
      %v2421 = vpack.c.b16 %v1905, %v1901
      %v2422 = vpack.c.b16 %v1906, %v1902
      %v2423 = vpack.c.b16 %v1907, %v1903
      %v2424 = vpack.c.b16 %v1912, %v1908
      %v2425 = vpack.c.b16 %v1913, %v1909
      %v2426 = vpack.c.b16 %v1914, %v1910
      %v2427 = vpack.c.b16 %v1915, %v1911
      %v2428 = vpack.c.b16 %v1920, %v1916
      %v2429 = vpack.c.b16 %v1921, %v1917
      %v2430 = vpack.c.b16 %v1922, %v1918
      %v2431 = vpack.c.b16 %v1923, %v1919
      %v2432 = vpack.c.b16 %v1928, %v1924
      %v2433 = vpack.c.b16 %v1929, %v1925
      %v2434 = vpack.c.b16 %v1930, %v1926
      %v2435 = vpack.c.b16 %v1931, %v1927
      %v2436 = vpack.c.b16 %v1936, %v1932
      %v2437 = vpack.c.b16 %v1937, %v1933
      %v2438 = vpack.c.b16 %v1938, %v1934
      %v2439 = vpack.c.b16 %v1939, %v1935
      %v2440 = vpack.c.b16 %v1944, %v1940
      %v2441 = vpack.c.b16 %v1945, %v1941
      %v2442 = vpack.c.b16 %v1946, %v1942
      %v2443 = vpack.c.b16 %v1947, %v1943
      %v2444 = vpack.c.b16 %v1952, %v1948
      %v2445 = vpack.c.b16 %v1953, %v1949
      %v2446 = vpack.c.b16 %v1954, %v1950
      %v2447 = vpack.c.b16 %v1955, %v1951
      %v2448 = vpack.c.b16 %v1960, %v1956
      %v2449 = vpack.c.b16 %v1961, %v1957
      %v2450 = vpack.c.b16 %v1962, %v1958
      %v2451 = vpack.c.b16 %v1963, %v1959
      %v2452 = vpack.c.b16 %v1968, %v1964
      %v2453 = vpack.c.b16 %v1969, %v1965
      %v2454 = vpack.c.b16 %v1970, %v1966
      %v2455 = vpack.c.b16 %v1971, %v1967
      %v2456 = vpack.c.b16 %v1976, %v1972
      %v2457 = vpack.c.b16 %v1977, %v1973
      %v2458 = vpack.c.b16 %v1978, %v1974
      %v2459 = vpack.c.b16 %v1979, %v1975
      %v2460 = vpack.c.b16 %v1984, %v1980
      %v2461 = vpack.c.b16 %v1985, %v1981
      %v2462 = vpack.c.b16 %v1986, %v1982
      %v2463 = vpack.c.b16 %v1987, %v1983
      %v2464 = vpack.c.b16 %v1992, %v1988
      %v2465 = vpack.c.b16 %v1993, %v1989
      %v2466 = vpack.c.b16 %v1994, %v1990
      %v2467 = vpack.c.b16 %v1995, %v1991
      %v2468 = vpack.c.b16 %v2000, %v1996
      %v2469 = vpack.c.b16 %v2001, %v1997
      %v2470 = vpack.c.b16 %v2002, %v1998
      %v2471 = vpack.c.b16 %v2003, %v1999
      %v2472 = vpack.c.b16 %v2008, %v2004
      %v2473 = vpack.c.b16 %v2009, %v2005
      %v2474 = vpack.c.b16 %v2010, %v2006
      %v2475 = vpack.c.b16 %v2011, %v2007
      %v2476 = vpack.c.b16 %v2016, %v2012
      %v2477 = vpack.c.b16 %v2017, %v2013
      %v2478 = vpack.c.b16 %v2018, %v2014
      %v2479 = vpack.c.b16 %v2019, %v2015
      %v2480 = vpack.c.b16 %v2024, %v2020
      %v2481 = vpack.c.b16 %v2025, %v2021
      %v2482 = vpack.c.b16 %v2026, %v2022
      %v2483 = vpack.c.b16 %v2027, %v2023
      %v2484 = vpack.c.b16 %v2032, %v2028
      %v2485 = vpack.c.b16 %v2033, %v2029
      %v2486 = vpack.c.b16 %v2034, %v2030
      %v2487 = vpack.c.b16 %v2035, %v2031
      %v2488 = vpack.c.b16 %v2040, %v2036
      %v2489 = vpack.c.b16 %v2041, %v2037
      %v2490 = vpack.c.b16 %v2042, %v2038
      %v2491 = vpack.c.b16 %v2043, %v2039
      %v2492 = vpack.c.b16 %v2048, %v2044
      %v2493 = vpack.c.b16 %v2049, %v2045
      %v2494 = vpack.c.b16 %v2050, %v2046
      %v2495 = vpack.c.b16 %v2051, %v2047
      %v2496 = vpack.c.b16 %v2056, %v2052
      %v2497 = vpack.c.b16 %v2057, %v2053
      %v2498 = vpack.c.b16 %v2058, %v2054
      %v2499 = vpack.c.b16 %v2059, %v2055
      %v2500 = vpack.c.b16 %v2064, %v2060
      %v2501 = vpack.c.b16 %v2065, %v2061
      %v2502 = vpack.c.b16 %v2066, %v2062
      %v2503 = vpack.c.b16 %v2067, %v2063
      %v2504 = vpack.c.b16 %v2072, %v2068
      %v2505 = vpack.c.b16 %v2073, %v2069
      %v2506 = vpack.c.b16 %v2074, %v2070
      %v2507 = vpack.c.b16 %v2075, %v2071
      %v2508 = vpack.c.b16 %v2080, %v2076
      %v2509 = vpack.c.b16 %v2081, %v2077
      %v2510 = vpack.c.b16 %v2082, %v2078
      %v2511 = vpack.c.b16 %v2083, %v2079
      %v2512 = vpack.c.b16 %v2088, %v2084
      %v2513 = vpack.c.b16 %v2089, %v2085
      %v2514 = vpack.c.b16 %v2090, %v2086
      %v2515 = vpack.c.b16 %v2091, %v2087
      %v2516 = vpack.c.b16 %v2096, %v2092
      %v2517 = vpack.c.b16 %v2097, %v2093
      %v2518 = vpack.c.b16 %v2098, %v2094
      %v2519 = vpack.c.b16 %v2099, %v2095
      %v2520 = vpack.c.b16 %v2104, %v2100
      %v2521 = vpack.c.b16 %v2105, %v2101
      %v2522 = vpack.c.b16 %v2106, %v2102
      %v2523 = vpack.c.b16 %v2107, %v2103
      %v2524 = vpack.c.b16 %v2112, %v2108
      %v2525 = vpack.c.b16 %v2113, %v2109
      %v2526 = vpack.c.b16 %v2114, %v2110
      %v2527 = vpack.c.b16 %v2115, %v2111
      %v2528 = vpack.c.b16 %v2120, %v2116
      %v2529 = vpack.c.b16 %v2121, %v2117
      %v2530 = vpack.c.b16 %v2122, %v2118
      %v2531 = vpack.c.b16 %v2123, %v2119
      %v2532 = vpack.c.b16 %v2128, %v2124
      %v2533 = vpack.c.b16 %v2129, %v2125
      %v2534 = vpack.c.b16 %v2130, %v2126
      %v2535 = vpack.c.b16 %v2131, %v2127
      %v2536 = vpack.c.b16 %v2136, %v2132
      %v2537 = vpack.c.b16 %v2137, %v2133
      %v2538 = vpack.c.b16 %v2138, %v2134
      %v2539 = vpack.c.b16 %v2139, %v2135
      %v2540 = vpack.c.b16 %v2144, %v2140
      %v2541 = vpack.c.b16 %v2145, %v2141
      %v2542 = vpack.c.b16 %v2146, %v2142
      %v2543 = vpack.c.b16 %v2147, %v2143
      %v2544 = vpack.c.b16 %v2152, %v2148
      %v2545 = vpack.c.b16 %v2153, %v2149
      %v2546 = vpack.c.b16 %v2154, %v2150
      %v2547 = vpack.c.b16 %v2155, %v2151
      %v2548 = vpack.c.b16 %v2160, %v2156
      %v2549 = vpack.c.b16 %v2161, %v2157
      %v2550 = vpack.c.b16 %v2162, %v2158
      %v2551 = vpack.c.b16 %v2163, %v2159
      %v2552 = vpack.c.b16 %v2168, %v2164
      %v2553 = vpack.c.b16 %v2169, %v2165
      %v2554 = vpack.c.b16 %v2170, %v2166
      %v2555 = vpack.c.b16 %v2171, %v2167
      %v2556 = vpack.c.b16 %v2176, %v2172
      %v2557 = vpack.c.b16 %v2177, %v2173
      %v2558 = vpack.c.b16 %v2178, %v2174
      %v2559 = vpack.c.b16 %v2179, %v2175
      %v2560 = vpack.c.b16 %v2184, %v2180
      %v2561 = vpack.c.b16 %v2185, %v2181
      %v2562 = vpack.c.b16 %v2186, %v2182
      %v2563 = vpack.c.b16 %v2187, %v2183
      %v2564 = vpack.c.b16 %v2192, %v2188
      %v2565 = vpack.c.b16 %v2193, %v2189
      %v2566 = vpack.c.b16 %v2194, %v2190
      %v2567 = vpack.c.b16 %v2195, %v2191
      %v2568 = vpack.c.b16 %v2200, %v2196
      %v2569 = vpack.c.b16 %v2201, %v2197
      %v2570 = vpack.c.b16 %v2202, %v2198
      %v2571 = vpack.c.b16 %v2203, %v2199
      %v2572 = vpack.c.b16 %v2208, %v2204
      %v2573 = vpack.c.b16 %v2209, %v2205
      %v2574 = vpack.c.b16 %v2210, %v2206
      %v2575 = vpack.c.b16 %v2211, %v2207
      %v2576 = vpack.c.b16 %v2216, %v2212
      %v2577 = vpack.c.b16 %v2217, %v2213
      %v2578 = vpack.c.b16 %v2218, %v2214
      %v2579 = vpack.c.b16 %v2219, %v2215
      %v2580 = vpack.c.b16 %v2224, %v2220
      %v2581 = vpack.c.b16 %v2225, %v2221
      %v2582 = vpack.c.b16 %v2226, %v2222
      %v2583 = vpack.c.b16 %v2227, %v2223
      %v2584 = vpack.c.b16 %v2232, %v2228
      %v2585 = vpack.c.b16 %v2233, %v2229
      %v2586 = vpack.c.b16 %v2234, %v2230
      %v2587 = vpack.c.b16 %v2235, %v2231
      %v2588 = vpack.c.b16 %v2240, %v2236
      %v2589 = vpack.c.b16 %v2241, %v2237
      %v2590 = vpack.c.b16 %v2242, %v2238
      %v2591 = vpack.c.b16 %v2243, %v2239
      %v2592 = vpack.c.b16 %v2248, %v2244
      %v2593 = vpack.c.b16 %v2249, %v2245
      %v2594 = vpack.c.b16 %v2250, %v2246
      %v2595 = vpack.c.b16 %v2251, %v2247
      %v2596 = vpack.c.b16 %v2256, %v2252
      %v2597 = vpack.c.b16 %v2257, %v2253
      %v2598 = vpack.c.b16 %v2258, %v2254
      %v2599 = vpack.c.b16 %v2259, %v2255
      %v2600 = vpack.c.b16 %v2264, %v2260
      %v2601 = vpack.c.b16 %v2265, %v2261
      %v2602 = vpack.c.b16 %v2266, %v2262
      %v2603 = vpack.c.b16 %v2267, %v2263
      %v2604 = vpack.c.b16 %v2272, %v2268
      %v2605 = vpack.c.b16 %v2273, %v2269
      %v2606 = vpack.c.b16 %v2274, %v2270
      %v2607 = vpack.c.b16 %v2275, %v2271
      %v2608 = vpack.c.b16 %v2280, %v2276
      %v2609 = vpack.c.b16 %v2281, %v2277
      %v2610 = vpack.c.b16 %v2282, %v2278
      %v2611 = vpack.c.b16 %v2283, %v2279
      %v2612 = vpack.c.b16 %v2288, %v2284
      %v2613 = vpack.c.b16 %v2289, %v2285
      %v2614 = vpack.c.b16 %v2290, %v2286
      %v2615 = vpack.c.b16 %v2291, %v2287
      %vm2859 = vcmask 130048
      %v2861 = vsel %vm2859, %v2295, 0
      %v2864 = vsel %vm2859, %v2299, 0
      %v2867 = vsel %vm2859, %v2303, 0
      %v2870 = vsel %vm2859, %v2307, 0
      %v2873 = vsel %vm2859, %v2311, 0
      %v2876 = vsel %vm2859, %v2315, 0
      %v2879 = vsel %vm2859, %v2319, 0
      %v2882 = vsel %vm2859, %v2323, 0
      %v2885 = vsel %vm2859, %v2327, 0
      %v2888 = vsel %vm2859, %v2331, 0
      %v2891 = vsel %vm2859, %v2335, 0
      %v2894 = vsel %vm2859, %v2339, 0
      %v2897 = vsel %vm2859, %v2343, 0
      %v2900 = vsel %vm2859, %v2347, 0
      %v2903 = vsel %vm2859, %v2351, 0
      %v2906 = vsel %vm2859, %v2355, 0
      %v2909 = vsel %vm2859, %v2359, 0
      %v2912 = vsel %vm2859, %v2363, 0
      %v2915 = vsel %vm2859, %v2367, 0
      %v2918 = vsel %vm2859, %v2371, 0
      %v2921 = vsel %vm2859, %v2375, 0
      %v2924 = vsel %vm2859, %v2379, 0
      %v2927 = vsel %vm2859, %v2383, 0
      %v2930 = vsel %vm2859, %v2387, 0
      %v2933 = vsel %vm2859, %v2391, 0
      %v2936 = vsel %vm2859, %v2395, 0
      %v2939 = vsel %vm2859, %v2399, 0
      %v2942 = vsel %vm2859, %v2403, 0
      %v2945 = vsel %vm2859, %v2407, 0
      %v2948 = vsel %vm2859, %v2411, 0
      %v2951 = vsel %vm2859, %v2415, 0
      %v2954 = vsel %vm2859, %v2419, 0
      %v2957 = vsel %vm2859, %v2423, 0
      %v2960 = vsel %vm2859, %v2427, 0
      %v2963 = vsel %vm2859, %v2431, 0
      %v2966 = vsel %vm2859, %v2435, 0
      %v2969 = vsel %vm2859, %v2439, 0
      %v2972 = vsel %vm2859, %v2443, 0
      %v2975 = vsel %vm2859, %v2447, 0
      %v2978 = vsel %vm2859, %v2451, 0
      %v2981 = vsel %vm2859, %v2455, 0
      %v2984 = vsel %vm2859, %v2459, 0
      %v2987 = vsel %vm2859, %v2463, 0
      %v2990 = vsel %vm2859, %v2467, 0
      %v2993 = vsel %vm2859, %v2471, 0
      %v2996 = vsel %vm2859, %v2475, 0
      %v2999 = vsel %vm2859, %v2479, 0
      %v3002 = vsel %vm2859, %v2483, 0
      %v3005 = vsel %vm2859, %v2487, 0
      %v3008 = vsel %vm2859, %v2491, 0
      %v3011 = vsel %vm2859, %v2495, 0
      %v3014 = vsel %vm2859, %v2499, 0
      %v3017 = vsel %vm2859, %v2503, 0
      %v3020 = vsel %vm2859, %v2507, 0
      %v3023 = vsel %vm2859, %v2511, 0
      %v3026 = vsel %vm2859, %v2515, 0
      %v3029 = vsel %vm2859, %v2519, 0
      %v3032 = vsel %vm2859, %v2523, 0
      %v3035 = vsel %vm2859, %v2527, 0
      %v3038 = vsel %vm2859, %v2531, 0
      %v3041 = vsel %vm2859, %v2535, 0
      %v3044 = vsel %vm2859, %v2539, 0
      %v3047 = vsel %vm2859, %v2543, 0
      %v3050 = vsel %vm2859, %v2547, 0
      %v3053 = vsel %vm2859, %v2551, 0
      %v3056 = vsel %vm2859, %v2555, 0
      %v3059 = vsel %vm2859, %v2559, 0
      %v3062 = vsel %vm2859, %v2563, 0
      %v3065 = vsel %vm2859, %v2567, 0
      %v3068 = vsel %vm2859, %v2571, 0
      %v3071 = vsel %vm2859, %v2575, 0
      %v3074 = vsel %vm2859, %v2579, 0
      %v3077 = vsel %vm2859, %v2583, 0
      %v3080 = vsel %vm2859, %v2587, 0
      %v3083 = vsel %vm2859, %v2591, 0
      %v3086 = vsel %vm2859, %v2595, 0
      %v3089 = vsel %vm2859, %v2599, 0
      %v3092 = vsel %vm2859, %v2603, 0
      %v3095 = vsel %vm2859, %v2607, 0
      %v3098 = vsel %vm2859, %v2611, 0
      %v3101 = vsel %vm2859, %v2615, 0
      %3103 = vmatprep.subr.bf16.mxu0 0
      %3104 = vmatpush1.bf16.msra.mxu0 %v971
      %3105 = vmatprep.subr.bf16.mxu0 0
      %3106 = vmatpush1.bf16.msra.mxu0 %v972
      %3107 = vmatprep.subr.bf16.mxu0 0
      %3108 = vmatpush1.bf16.msra.mxu0 %v973
      %3109 = vmatprep.subr.bf16.mxu0 0
      %3110 = vmatpush1.bf16.msra.mxu0 %v974
      %3111 = vmatprep.subr.bf16.mxu0 0
      %3112 = vmatpush1.bf16.msra.mxu0 %v975
      %3113 = vmatprep.subr.bf16.mxu0 0
      %3114 = vmatpush1.bf16.msra.mxu0 %v976
      %3115 = vmatprep.subr.bf16.mxu0 0
      %3116 = vmatpush1.bf16.msra.mxu0 %v977
      %3117 = vmatprep.subr.bf16.mxu0 0
      %3118 = vmatpush1.bf16.msra.mxu0 %v978
      %3119 = vmatprep.subr.bf16.mxu0 0
      %3120 = vmatpush1.bf16.msra.mxu0 %v979
      %3121 = vmatprep.subr.bf16.mxu0 0
      %3122 = vmatpush1.bf16.msra.mxu0 %v980
      %3123 = vmatprep.subr.bf16.mxu0 0
      %3124 = vmatpush1.bf16.msra.mxu0 %v981
      %3125 = vmatprep.subr.bf16.mxu0 0
      %3126 = vmatpush1.bf16.msra.mxu0 %v982
      %3127 = vmatprep.subr.bf16.mxu0 0
      %3128 = vmatpush1.bf16.msra.mxu0 %v983
      %3129 = vmatprep.subr.bf16.mxu0 0
      %3130 = vmatpush1.bf16.msra.mxu0 %v984
      %3131 = vmatprep.subr.bf16.mxu0 0
      %3132 = vmatpush1.bf16.msra.mxu0 %v985
      %3133 = vmatprep.subr.bf16.mxu0 0
      %3134 = vmatpush1.bf16.msra.mxu0 %v986
      %3135 = vmatprep.mubr.bf16.mxu0 %v2293
      %3136 = vmatmul.mubr.bf16.gmra.mrb[0].mxu0 %v2292
      %v3137 = vpop.f32.mrb[0].mxu0
      %v3138 = vadd.f32 0.0, %v3137
      %v3139 = vpop.f32.mrb[0].mxu0
      %v3140 = vpop.f32.mrb[0].mxu0
      %v3141 = vadd.f32 0.0, %v3140
      %v3142 = vpop.f32.mrb[0].mxu0
      %3143 = vmatprep.mubr.bf16.mxu0 %v2297
      %3144 = vmatmul.mubr.bf16.gmra.mrb[0].mxu0 %v2296
      %v3145 = vpop.f32.mrb[0].mxu0
      %v3146 = vadd.f32 0.0, %v3145
      %v3147 = vpop.f32.mrb[0].mxu0
      %v3148 = vpop.f32.mrb[0].mxu0
      %v3149 = vadd.f32 0.0, %v3148
      %v3150 = vpop.f32.mrb[0].mxu0
      %3151 = vmatprep.mubr.bf16.mxu0 %v2301
      %3152 = vmatmul.mubr.bf16.gmra.mrb[0].mxu0 %v2300
      %v3153 = vpop.f32.mrb[0].mxu0
      %v3154 = vadd.f32 0.0, %v3153
      %v3155 = vpop.f32.mrb[0].mxu0
      %v3156 = vpop.f32.mrb[0].mxu0
      %v3157 = vadd.f32 0.0, %v3156
      %v3158 = vpop.f32.mrb[0].mxu0
      %3159 = vmatprep.mubr.bf16.mxu0 %v2305
      %3160 = vmatmul.mubr.bf16.gmra.mrb[0].mxu0 %v2304
      %v3161 = vpop.f32.mrb[0].mxu0
      %v3162 = vadd.f32 0.0, %v3161
      %v3163 = vpop.f32.mrb[0].mxu0
      %v3164 = vpop.f32.mrb[0].mxu0
      %v3165 = vadd.f32 0.0, %v3164
      %v3166 = vpop.f32.mrb[0].mxu0
      %3167 = vmatprep.mubr.bf16.mxu0 %v2309
      %3168 = vmatmul.mubr.bf16.gmra.mrb[0].mxu0 %v2308
      %v3169 = vpop.f32.mrb[0].mxu0
      %v3170 = vadd.f32 0.0, %v3169
      %v3171 = vpop.f32.mrb[0].mxu0
      %v3172 = vpop.f32.mrb[0].mxu0
      %v3173 = vadd.f32 0.0, %v3172
      %v3174 = vpop.f32.mrb[0].mxu0
      %3175 = vmatprep.mubr.bf16.mxu0 %v2313
      %3176 = vmatmul.mubr.bf16.gmra.mrb[0].mxu0 %v2312
      %v3177 = vpop.f32.mrb[0].mxu0
      %v3178 = vadd.f32 0.0, %v3177
      %v3179 = vpop.f32.mrb[0].mxu0
      %v3180 = vpop.f32.mrb[0].mxu0
      %v3181 = vadd.f32 0.0, %v3180
      %v3182 = vpop.f32.mrb[0].mxu0
      %3183 = vmatprep.mubr.bf16.mxu0 %v2317
      %3184 = vmatmul.mubr.bf16.gmra.mrb[0].mxu0 %v2316
      %v3185 = vpop.f32.mrb[0].mxu0
      %v3186 = vadd.f32 0.0, %v3185
      %v3187 = vpop.f32.mrb[0].mxu0
      %v3188 = vpop.f32.mrb[0].mxu0
      %v3189 = vadd.f32 0.0, %v3188
      %v3190 = vpop.f32.mrb[0].mxu0
      %3191 = vmatprep.mubr.bf16.mxu0 %v2321
      %3192 = vmatmul.mubr.bf16.gmra.mrb[0].mxu0 %v2320
      %v3193 = vpop.f32.mrb[0].mxu0
      %v3194 = vadd.f32 0.0, %v3193
      %v3195 = vpop.f32.mrb[0].mxu0
      %v3196 = vpop.f32.mrb[0].mxu0
      %v3197 = vadd.f32 0.0, %v3196
      %v3198 = vpop.f32.mrb[0].mxu0
      %3199 = vmatprep.mubr.bf16.mxu0 %v2325
      %3200 = vmatmul.mubr.bf16.gmra.mrb[0].mxu0 %v2324
      %v3201 = vpop.f32.mrb[0].mxu0
      %v3202 = vadd.f32 0.0, %v3201
      %v3203 = vpop.f32.mrb[0].mxu0
      %v3204 = vpop.f32.mrb[0].mxu0
      %v3205 = vadd.f32 0.0, %v3204
      %v3206 = vpop.f32.mrb[0].mxu0
      %3207 = vmatprep.mubr.bf16.mxu0 %v2329
      %3208 = vmatmul.mubr.bf16.gmra.mrb[0].mxu0 %v2328
      %v3209 = vpop.f32.mrb[0].mxu0
      %v3210 = vadd.f32 0.0, %v3209
      %v3211 = vpop.f32.mrb[0].mxu0
      %v3212 = vpop.f32.mrb[0].mxu0
      %v3213 = vadd.f32 0.0, %v3212
      %v3214 = vpop.f32.mrb[0].mxu0
      %3215 = vmatprep.mubr.bf16.mxu0 %v2333
      %3216 = vmatmul.mubr.bf16.gmra.mrb[0].mxu0 %v2332
      %v3217 = vpop.f32.mrb[0].mxu0
      %v3218 = vadd.f32 0.0, %v3217
      %v3219 = vpop.f32.mrb[0].mxu0
      %v3220 = vpop.f32.mrb[0].mxu0
      %v3221 = vadd.f32 0.0, %v3220
      %v3222 = vpop.f32.mrb[0].mxu0
      %3223 = vmatprep.mubr.bf16.mxu0 %v2337
      %3224 = vmatmul.mubr.bf16.gmra.mrb[0].mxu0 %v2336
      %v3225 = vpop.f32.mrb[0].mxu0
      %v3226 = vadd.f32 0.0, %v3225
      %v3227 = vpop.f32.mrb[0].mxu0
      %v3228 = vpop.f32.mrb[0].mxu0
      %v3229 = vadd.f32 0.0, %v3228
      %v3230 = vpop.f32.mrb[0].mxu0
      %3231 = vmatprep.mubr.bf16.mxu0 %v2341
      %3232 = vmatmul.mubr.bf16.gmra.mrb[0].mxu0 %v2340
      %v3233 = vpop.f32.mrb[0].mxu0
      %v3234 = vadd.f32 0.0, %v3233
      %v3235 = vpop.f32.mrb[0].mxu0
      %v3236 = vpop.f32.mrb[0].mxu0
      %v3237 = vadd.f32 0.0, %v3236
      %v3238 = vpop.f32.mrb[0].mxu0
      %3239 = vmatprep.mubr.bf16.mxu0 %v2345
      %3240 = vmatmul.mubr.bf16.gmra.mrb[0].mxu0 %v2344
      %v3241 = vpop.f32.mrb[0].mxu0
      %v3242 = vadd.f32 0.0, %v3241
      %v3243 = vpop.f32.mrb[0].mxu0
      %v3244 = vpop.f32.mrb[0].mxu0
      %v3245 = vadd.f32 0.0, %v3244
      %v3246 = vpop.f32.mrb[0].mxu0
      %3247 = vmatprep.mubr.bf16.mxu0 %v2349
      %3248 = vmatmul.mubr.bf16.gmra.mrb[0].mxu0 %v2348
      %v3249 = vpop.f32.mrb[0].mxu0
      %v3250 = vadd.f32 0.0, %v3249
      %v3251 = vpop.f32.mrb[0].mxu0
      %v3252 = vpop.f32.mrb[0].mxu0
      %v3253 = vadd.f32 0.0, %v3252
      %v3254 = vpop.f32.mrb[0].mxu0
      %3255 = vmatprep.mubr.bf16.mxu0 %v2353
      %3256 = vmatmul.mubr.bf16.gmra.mrb[0].mxu0 %v2352
      %v3257 = vpop.f32.mrb[0].mxu0
      %v3258 = vadd.f32 0.0, %v3257
      %v3259 = vpop.f32.mrb[0].mxu0
      %v3260 = vpop.f32.mrb[0].mxu0
      %v3261 = vadd.f32 0.0, %v3260
      %v3262 = vpop.f32.mrb[0].mxu0
      %3263 = vmatprep.mubr.bf16.mxu0 %v2357
      %3264 = vmatmul.mubr.bf16.gmra.mrb[0].mxu0 %v2356
      %v3265 = vpop.f32.mrb[0].mxu0
      %v3266 = vadd.f32 0.0, %v3265
      %v3267 = vpop.f32.mrb[0].mxu0
      %v3268 = vpop.f32.mrb[0].mxu0
      %v3269 = vadd.f32 0.0, %v3268
      %v3270 = vpop.f32.mrb[0].mxu0
      %3271 = vmatprep.mubr.bf16.mxu0 %v2361
      %3272 = vmatmul.mubr.bf16.gmra.mrb[0].mxu0 %v2360
      %v3273 = vpop.f32.mrb[0].mxu0
      %v3274 = vadd.f32 0.0, %v3273
      %v3275 = vpop.f32.mrb[0].mxu0
      %v3276 = vpop.f32.mrb[0].mxu0
      %v3277 = vadd.f32 0.0, %v3276
      %v3278 = vpop.f32.mrb[0].mxu0
      %3279 = vmatprep.mubr.bf16.mxu0 %v2365
      %3280 = vmatmul.mubr.bf16.gmra.mrb[0].mxu0 %v2364
      %v3281 = vpop.f32.mrb[0].mxu0
      %v3282 = vadd.f32 0.0, %v3281
      %v3283 = vpop.f32.mrb[0].mxu0
      %v3284 = vpop.f32.mrb[0].mxu0
      %v3285 = vadd.f32 0.0, %v3284
      %v3286 = vpop.f32.mrb[0].mxu0
      %3287 = vmatprep.mubr.bf16.mxu0 %v2369
      %3288 = vmatmul.mubr.bf16.gmra.mrb[0].mxu0 %v2368
      %v3289 = vpop.f32.mrb[0].mxu0
      %v3290 = vadd.f32 0.0, %v3289
      %v3291 = vpop.f32.mrb[0].mxu0
      %v3292 = vpop.f32.mrb[0].mxu0
      %v3293 = vadd.f32 0.0, %v3292
      %v3294 = vpop.f32.mrb[0].mxu0
      %3295 = vmatprep.mubr.bf16.mxu0 %v2373
      %3296 = vmatmul.mubr.bf16.gmra.mrb[0].mxu0 %v2372
      %v3297 = vpop.f32.mrb[0].mxu0
      %v3298 = vadd.f32 0.0, %v3297
      %v3299 = vpop.f32.mrb[0].mxu0
      %v3300 = vpop.f32.mrb[0].mxu0
      %v3301 = vadd.f32 0.0, %v3300
      %v3302 = vpop.f32.mrb[0].mxu0
      %3303 = vmatprep.mubr.bf16.mxu0 %v2377
      %3304 = vmatmul.mubr.bf16.gmra.mrb[0].mxu0 %v2376
      %v3305 = vpop.f32.mrb[0].mxu0
      %v3306 = vadd.f32 0.0, %v3305
      %v3307 = vpop.f32.mrb[0].mxu0
      %v3308 = vpop.f32.mrb[0].mxu0
      %v3309 = vadd.f32 0.0, %v3308
      %v3310 = vpop.f32.mrb[0].mxu0
      %3311 = vmatprep.mubr.bf16.mxu0 %v2381
      %3312 = vmatmul.mubr.bf16.gmra.mrb[0].mxu0 %v2380
      %v3313 = vpop.f32.mrb[0].mxu0
      %v3314 = vadd.f32 0.0, %v3313
      %v3315 = vpop.f32.mrb[0].mxu0
      %v3316 = vpop.f32.mrb[0].mxu0
      %v3317 = vadd.f32 0.0, %v3316
      %v3318 = vpop.f32.mrb[0].mxu0
      %3319 = vmatprep.mubr.bf16.mxu0 %v2385
      %3320 = vmatmul.mubr.bf16.gmra.mrb[0].mxu0 %v2384
      %v3321 = vpop.f32.mrb[0].mxu0
      %v3322 = vadd.f32 0.0, %v3321
      %v3323 = vpop.f32.mrb[0].mxu0
      %v3324 = vpop.f32.mrb[0].mxu0
      %v3325 = vadd.f32 0.0, %v3324
      %v3326 = vpop.f32.mrb[0].mxu0
      %3327 = vmatprep.mubr.bf16.mxu0 %v2389
      %3328 = vmatmul.mubr.bf16.gmra.mrb[0].mxu0 %v2388
      %v3329 = vpop.f32.mrb[0].mxu0
      %v3330 = vadd.f32 0.0, %v3329
      %v3331 = vpop.f32.mrb[0].mxu0
      %v3332 = vpop.f32.mrb[0].mxu0
      %v3333 = vadd.f32 0.0, %v3332
      %v3334 = vpop.f32.mrb[0].mxu0
      %3335 = vmatprep.mubr.bf16.mxu0 %v2393
      %3336 = vmatmul.mubr.bf16.gmra.mrb[0].mxu0 %v2392
      %v3337 = vpop.f32.mrb[0].mxu0
      %v3338 = vadd.f32 0.0, %v3337
      %v3339 = vpop.f32.mrb[0].mxu0
      %v3340 = vpop.f32.mrb[0].mxu0
      %v3341 = vadd.f32 0.0, %v3340
      %v3342 = vpop.f32.mrb[0].mxu0
      %3343 = vmatprep.mubr.bf16.mxu0 %v2397
      %3344 = vmatmul.mubr.bf16.gmra.mrb[0].mxu0 %v2396
      %v3345 = vpop.f32.mrb[0].mxu0
      %v3346 = vadd.f32 0.0, %v3345
      %v3347 = vpop.f32.mrb[0].mxu0
      %v3348 = vpop.f32.mrb[0].mxu0
      %v3349 = vadd.f32 0.0, %v3348
      %v3350 = vpop.f32.mrb[0].mxu0
      %3351 = vmatprep.mubr.bf16.mxu0 %v2401
      %3352 = vmatmul.mubr.bf16.gmra.mrb[0].mxu0 %v2400
      %v3353 = vpop.f32.mrb[0].mxu0
      %v3354 = vadd.f32 0.0, %v3353
      %v3355 = vpop.f32.mrb[0].mxu0
      %v3356 = vpop.f32.mrb[0].mxu0
      %v3357 = vadd.f32 0.0, %v3356
      %v3358 = vpop.f32.mrb[0].mxu0
      %3359 = vmatprep.mubr.bf16.mxu0 %v2405
      %3360 = vmatmul.mubr.bf16.gmra.mrb[0].mxu0 %v2404
      %v3361 = vpop.f32.mrb[0].mxu0
      %v3362 = vadd.f32 0.0, %v3361
      %v3363 = vpop.f32.mrb[0].mxu0
      %v3364 = vpop.f32.mrb[0].mxu0
      %v3365 = vadd.f32 0.0, %v3364
      %v3366 = vpop.f32.mrb[0].mxu0
      %3367 = vmatprep.mubr.bf16.mxu0 %v2409
      %3368 = vmatmul.mubr.bf16.gmra.mrb[0].mxu0 %v2408
      %v3369 = vpop.f32.mrb[0].mxu0
      %v3370 = vadd.f32 0.0, %v3369
      %v3371 = vpop.f32.mrb[0].mxu0
      %v3372 = vpop.f32.mrb[0].mxu0
      %v3373 = vadd.f32 0.0, %v3372
      %v3374 = vpop.f32.mrb[0].mxu0
      %3375 = vmatprep.mubr.bf16.mxu0 %v2413
      %3376 = vmatmul.mubr.bf16.gmra.mrb[0].mxu0 %v2412
      %v3377 = vpop.f32.mrb[0].mxu0
      %v3378 = vadd.f32 0.0, %v3377
      %v3379 = vpop.f32.mrb[0].mxu0
      %v3380 = vpop.f32.mrb[0].mxu0
      %v3381 = vadd.f32 0.0, %v3380
      %v3382 = vpop.f32.mrb[0].mxu0
      %3383 = vmatprep.mubr.bf16.mxu0 %v2417
      %3384 = vmatmul.mubr.bf16.gmra.mrb[0].mxu0 %v2416
      %v3385 = vpop.f32.mrb[0].mxu0
      %v3386 = vadd.f32 0.0, %v3385
      %v3387 = vpop.f32.mrb[0].mxu0
      %v3388 = vpop.f32.mrb[0].mxu0
      %v3389 = vadd.f32 0.0, %v3388
      %v3390 = vpop.f32.mrb[0].mxu0
      %3391 = vmatprep.mubr.bf16.mxu0 %v2421
      %3392 = vmatmul.mubr.bf16.gmra.mrb[0].mxu0 %v2420
      %v3393 = vpop.f32.mrb[0].mxu0
      %v3394 = vadd.f32 0.0, %v3393
      %v3395 = vpop.f32.mrb[0].mxu0
      %v3396 = vpop.f32.mrb[0].mxu0
      %v3397 = vadd.f32 0.0, %v3396
      %v3398 = vpop.f32.mrb[0].mxu0
      %3399 = vmatprep.mubr.bf16.mxu0 %v2425
      %3400 = vmatmul.mubr.bf16.gmra.mrb[0].mxu0 %v2424
      %v3401 = vpop.f32.mrb[0].mxu0
      %v3402 = vadd.f32 0.0, %v3401
      %v3403 = vpop.f32.mrb[0].mxu0
      %v3404 = vpop.f32.mrb[0].mxu0
      %v3405 = vadd.f32 0.0, %v3404
      %v3406 = vpop.f32.mrb[0].mxu0
      %3407 = vmatprep.mubr.bf16.mxu0 %v2429
      %3408 = vmatmul.mubr.bf16.gmra.mrb[0].mxu0 %v2428
      %v3409 = vpop.f32.mrb[0].mxu0
      %v3410 = vadd.f32 0.0, %v3409
      %v3411 = vpop.f32.mrb[0].mxu0
      %v3412 = vpop.f32.mrb[0].mxu0
      %v3413 = vadd.f32 0.0, %v3412
      %v3414 = vpop.f32.mrb[0].mxu0
      %3415 = vmatprep.mubr.bf16.mxu0 %v2433
      %3416 = vmatmul.mubr.bf16.gmra.mrb[0].mxu0 %v2432
      %v3417 = vpop.f32.mrb[0].mxu0
      %v3418 = vadd.f32 0.0, %v3417
      %v3419 = vpop.f32.mrb[0].mxu0
      %v3420 = vpop.f32.mrb[0].mxu0
      %v3421 = vadd.f32 0.0, %v3420
      %v3422 = vpop.f32.mrb[0].mxu0
      %3423 = vmatprep.mubr.bf16.mxu0 %v2437
      %3424 = vmatmul.mubr.bf16.gmra.mrb[0].mxu0 %v2436
      %v3425 = vpop.f32.mrb[0].mxu0
      %v3426 = vadd.f32 0.0, %v3425
      %v3427 = vpop.f32.mrb[0].mxu0
      %v3428 = vpop.f32.mrb[0].mxu0
      %v3429 = vadd.f32 0.0, %v3428
      %v3430 = vpop.f32.mrb[0].mxu0
      %3431 = vmatprep.mubr.bf16.mxu0 %v2441
      %3432 = vmatmul.mubr.bf16.gmra.mrb[0].mxu0 %v2440
      %v3433 = vpop.f32.mrb[0].mxu0
      %v3434 = vadd.f32 0.0, %v3433
      %v3435 = vpop.f32.mrb[0].mxu0
      %v3436 = vpop.f32.mrb[0].mxu0
      %v3437 = vadd.f32 0.0, %v3436
      %v3438 = vpop.f32.mrb[0].mxu0
      %3439 = vmatprep.mubr.bf16.mxu0 %v2445
      %3440 = vmatmul.mubr.bf16.gmra.mrb[0].mxu0 %v2444
      %v3441 = vpop.f32.mrb[0].mxu0
      %v3442 = vadd.f32 0.0, %v3441
      %v3443 = vpop.f32.mrb[0].mxu0
      %v3444 = vpop.f32.mrb[0].mxu0
      %v3445 = vadd.f32 0.0, %v3444
      %v3446 = vpop.f32.mrb[0].mxu0
      %3447 = vmatprep.mubr.bf16.mxu0 %v2449
      %3448 = vmatmul.mubr.bf16.gmra.mrb[0].mxu0 %v2448
      %v3449 = vpop.f32.mrb[0].mxu0
      %v3450 = vadd.f32 0.0, %v3449
      %v3451 = vpop.f32.mrb[0].mxu0
      %v3452 = vpop.f32.mrb[0].mxu0
      %v3453 = vadd.f32 0.0, %v3452
      %v3454 = vpop.f32.mrb[0].mxu0
      %3455 = vmatprep.mubr.bf16.mxu0 %v2453
      %3456 = vmatmul.mubr.bf16.gmra.mrb[0].mxu0 %v2452
      %v3457 = vpop.f32.mrb[0].mxu0
      %v3458 = vadd.f32 0.0, %v3457
      %v3459 = vpop.f32.mrb[0].mxu0
      %v3460 = vpop.f32.mrb[0].mxu0
      %v3461 = vadd.f32 0.0, %v3460
      %v3462 = vpop.f32.mrb[0].mxu0
      %3463 = vmatprep.mubr.bf16.mxu0 %v2457
      %3464 = vmatmul.mubr.bf16.gmra.mrb[0].mxu0 %v2456
      %v3465 = vpop.f32.mrb[0].mxu0
      %v3466 = vadd.f32 0.0, %v3465
      %v3467 = vpop.f32.mrb[0].mxu0
      %v3468 = vpop.f32.mrb[0].mxu0
      %v3469 = vadd.f32 0.0, %v3468
      %v3470 = vpop.f32.mrb[0].mxu0
      %3471 = vmatprep.mubr.bf16.mxu0 %v2461
      %3472 = vmatmul.mubr.bf16.gmra.mrb[0].mxu0 %v2460
      %v3473 = vpop.f32.mrb[0].mxu0
      %v3474 = vadd.f32 0.0, %v3473
      %v3475 = vpop.f32.mrb[0].mxu0
      %v3476 = vpop.f32.mrb[0].mxu0
      %v3477 = vadd.f32 0.0, %v3476
      %v3478 = vpop.f32.mrb[0].mxu0
      %3479 = vmatprep.mubr.bf16.mxu0 %v2465
      %3480 = vmatmul.mubr.bf16.gmra.mrb[0].mxu0 %v2464
      %v3481 = vpop.f32.mrb[0].mxu0
      %v3482 = vadd.f32 0.0, %v3481
      %v3483 = vpop.f32.mrb[0].mxu0
      %v3484 = vpop.f32.mrb[0].mxu0
      %v3485 = vadd.f32 0.0, %v3484
      %v3486 = vpop.f32.mrb[0].mxu0
      %3487 = vmatprep.mubr.bf16.mxu0 %v2469
      %3488 = vmatmul.mubr.bf16.gmra.mrb[0].mxu0 %v2468
      %v3489 = vpop.f32.mrb[0].mxu0
      %v3490 = vadd.f32 0.0, %v3489
      %v3491 = vpop.f32.mrb[0].mxu0
      %v3492 = vpop.f32.mrb[0].mxu0
      %v3493 = vadd.f32 0.0, %v3492
      %v3494 = vpop.f32.mrb[0].mxu0
      %3495 = vmatprep.mubr.bf16.mxu0 %v2473
      %3496 = vmatmul.mubr.bf16.gmra.mrb[0].mxu0 %v2472
      %v3497 = vpop.f32.mrb[0].mxu0
      %v3498 = vadd.f32 0.0, %v3497
      %v3499 = vpop.f32.mrb[0].mxu0
      %v3500 = vpop.f32.mrb[0].mxu0
      %v3501 = vadd.f32 0.0, %v3500
      %v3502 = vpop.f32.mrb[0].mxu0
      %3503 = vmatprep.mubr.bf16.mxu0 %v2477
      %3504 = vmatmul.mubr.bf16.gmra.mrb[0].mxu0 %v2476
      %v3505 = vpop.f32.mrb[0].mxu0
      %v3506 = vadd.f32 0.0, %v3505
      %v3507 = vpop.f32.mrb[0].mxu0
      %v3508 = vpop.f32.mrb[0].mxu0
      %v3509 = vadd.f32 0.0, %v3508
      %v3510 = vpop.f32.mrb[0].mxu0
      %3511 = vmatprep.mubr.bf16.mxu0 %v2481
      %3512 = vmatmul.mubr.bf16.gmra.mrb[0].mxu0 %v2480
      %v3513 = vpop.f32.mrb[0].mxu0
      %v3514 = vadd.f32 0.0, %v3513
      %v3515 = vpop.f32.mrb[0].mxu0
      %v3516 = vpop.f32.mrb[0].mxu0
      %v3517 = vadd.f32 0.0, %v3516
      %v3518 = vpop.f32.mrb[0].mxu0
      %3519 = vmatprep.mubr.bf16.mxu0 %v2485
      %3520 = vmatmul.mubr.bf16.gmra.mrb[0].mxu0 %v2484
      %v3521 = vpop.f32.mrb[0].mxu0
      %v3522 = vadd.f32 0.0, %v3521
      %v3523 = vpop.f32.mrb[0].mxu0
      %v3524 = vpop.f32.mrb[0].mxu0
      %v3525 = vadd.f32 0.0, %v3524
      %v3526 = vpop.f32.mrb[0].mxu0
      %3527 = vmatprep.mubr.bf16.mxu0 %v2489
      %3528 = vmatmul.mubr.bf16.gmra.mrb[0].mxu0 %v2488
      %v3529 = vpop.f32.mrb[0].mxu0
      %v3530 = vadd.f32 0.0, %v3529
      %v3531 = vpop.f32.mrb[0].mxu0
      %v3532 = vpop.f32.mrb[0].mxu0
      %v3533 = vadd.f32 0.0, %v3532
      %v3534 = vpop.f32.mrb[0].mxu0
      %3535 = vmatprep.mubr.bf16.mxu0 %v2493
      %3536 = vmatmul.mubr.bf16.gmra.mrb[0].mxu0 %v2492
      %v3537 = vpop.f32.mrb[0].mxu0
      %v3538 = vadd.f32 0.0, %v3537
      %v3539 = vpop.f32.mrb[0].mxu0
      %v3540 = vpop.f32.mrb[0].mxu0
      %v3541 = vadd.f32 0.0, %v3540
      %v3542 = vpop.f32.mrb[0].mxu0
      %3543 = vmatprep.mubr.bf16.mxu0 %v2497
      %3544 = vmatmul.mubr.bf16.gmra.mrb[0].mxu0 %v2496
      %v3545 = vpop.f32.mrb[0].mxu0
      %v3546 = vadd.f32 0.0, %v3545
      %v3547 = vpop.f32.mrb[0].mxu0
      %v3548 = vpop.f32.mrb[0].mxu0
      %v3549 = vadd.f32 0.0, %v3548
      %v3550 = vpop.f32.mrb[0].mxu0
      %3551 = vmatprep.mubr.bf16.mxu0 %v2501
      %3552 = vmatmul.mubr.bf16.gmra.mrb[0].mxu0 %v2500
      %v3553 = vpop.f32.mrb[0].mxu0
      %v3554 = vadd.f32 0.0, %v3553
      %v3555 = vpop.f32.mrb[0].mxu0
      %v3556 = vpop.f32.mrb[0].mxu0
      %v3557 = vadd.f32 0.0, %v3556
      %v3558 = vpop.f32.mrb[0].mxu0
      %3559 = vmatprep.mubr.bf16.mxu0 %v2505
      %3560 = vmatmul.mubr.bf16.gmra.mrb[0].mxu0 %v2504
      %v3561 = vpop.f32.mrb[0].mxu0
      %v3562 = vadd.f32 0.0, %v3561
      %v3563 = vpop.f32.mrb[0].mxu0
      %v3564 = vpop.f32.mrb[0].mxu0
      %v3565 = vadd.f32 0.0, %v3564
      %v3566 = vpop.f32.mrb[0].mxu0
      %3567 = vmatprep.mubr.bf16.mxu0 %v2509
      %3568 = vmatmul.mubr.bf16.gmra.mrb[0].mxu0 %v2508
      %v3569 = vpop.f32.mrb[0].mxu0
      %v3570 = vadd.f32 0.0, %v3569
      %v3571 = vpop.f32.mrb[0].mxu0
      %v3572 = vpop.f32.mrb[0].mxu0
      %v3573 = vadd.f32 0.0, %v3572
      %v3574 = vpop.f32.mrb[0].mxu0
      %3575 = vmatprep.mubr.bf16.mxu0 %v2513
      %3576 = vmatmul.mubr.bf16.gmra.mrb[0].mxu0 %v2512
      %v3577 = vpop.f32.mrb[0].mxu0
      %v3578 = vadd.f32 0.0, %v3577
      %v3579 = vpop.f32.mrb[0].mxu0
      %v3580 = vpop.f32.mrb[0].mxu0
      %v3581 = vadd.f32 0.0, %v3580
      %v3582 = vpop.f32.mrb[0].mxu0
      %3583 = vmatprep.mubr.bf16.mxu0 %v2517
      %3584 = vmatmul.mubr.bf16.gmra.mrb[0].mxu0 %v2516
      %v3585 = vpop.f32.mrb[0].mxu0
      %v3586 = vadd.f32 0.0, %v3585
      %v3587 = vpop.f32.mrb[0].mxu0
      %v3588 = vpop.f32.mrb[0].mxu0
      %v3589 = vadd.f32 0.0, %v3588
      %v3590 = vpop.f32.mrb[0].mxu0
      %3591 = vmatprep.mubr.bf16.mxu0 %v2521
      %3592 = vmatmul.mubr.bf16.gmra.mrb[0].mxu0 %v2520
      %v3593 = vpop.f32.mrb[0].mxu0
      %v3594 = vadd.f32 0.0, %v3593
      %v3595 = vpop.f32.mrb[0].mxu0
      %v3596 = vpop.f32.mrb[0].mxu0
      %v3597 = vadd.f32 0.0, %v3596
      %v3598 = vpop.f32.mrb[0].mxu0
      %3599 = vmatprep.mubr.bf16.mxu0 %v2525
      %3600 = vmatmul.mubr.bf16.gmra.mrb[0].mxu0 %v2524
      %v3601 = vpop.f32.mrb[0].mxu0
      %v3602 = vadd.f32 0.0, %v3601
      %v3603 = vpop.f32.mrb[0].mxu0
      %v3604 = vpop.f32.mrb[0].mxu0
      %v3605 = vadd.f32 0.0, %v3604
      %v3606 = vpop.f32.mrb[0].mxu0
      %3607 = vmatprep.mubr.bf16.mxu0 %v2529
      %3608 = vmatmul.mubr.bf16.gmra.mrb[0].mxu0 %v2528
      %v3609 = vpop.f32.mrb[0].mxu0
      %v3610 = vadd.f32 0.0, %v3609
      %v3611 = vpop.f32.mrb[0].mxu0
      %v3612 = vpop.f32.mrb[0].mxu0
      %v3613 = vadd.f32 0.0, %v3612
      %v3614 = vpop.f32.mrb[0].mxu0
      %3615 = vmatprep.mubr.bf16.mxu0 %v2533
      %3616 = vmatmul.mubr.bf16.gmra.mrb[0].mxu0 %v2532
      %v3617 = vpop.f32.mrb[0].mxu0
      %v3618 = vadd.f32 0.0, %v3617
      %v3619 = vpop.f32.mrb[0].mxu0
      %v3620 = vpop.f32.mrb[0].mxu0
      %v3621 = vadd.f32 0.0, %v3620
      %v3622 = vpop.f32.mrb[0].mxu0
      %3623 = vmatprep.mubr.bf16.mxu0 %v2537
      %3624 = vmatmul.mubr.bf16.gmra.mrb[0].mxu0 %v2536
      %v3625 = vpop.f32.mrb[0].mxu0
      %v3626 = vadd.f32 0.0, %v3625
      %v3627 = vpop.f32.mrb[0].mxu0
      %v3628 = vpop.f32.mrb[0].mxu0
      %v3629 = vadd.f32 0.0, %v3628
      %v3630 = vpop.f32.mrb[0].mxu0
      %3631 = vmatprep.mubr.bf16.mxu0 %v2541
      %3632 = vmatmul.mubr.bf16.gmra.mrb[0].mxu0 %v2540
      %v3633 = vpop.f32.mrb[0].mxu0
      %v3634 = vadd.f32 0.0, %v3633
      %v3635 = vpop.f32.mrb[0].mxu0
      %v3636 = vpop.f32.mrb[0].mxu0
      %v3637 = vadd.f32 0.0, %v3636
      %v3638 = vpop.f32.mrb[0].mxu0
      %3639 = vmatprep.mubr.bf16.mxu0 %v2545
      %3640 = vmatmul.mubr.bf16.gmra.mrb[0].mxu0 %v2544
      %v3641 = vpop.f32.mrb[0].mxu0
      %v3642 = vadd.f32 0.0, %v3641
      %v3643 = vpop.f32.mrb[0].mxu0
      %v3644 = vpop.f32.mrb[0].mxu0
      %v3645 = vadd.f32 0.0, %v3644
      %v3646 = vpop.f32.mrb[0].mxu0
      %3647 = vmatprep.mubr.bf16.mxu0 %v2549
      %3648 = vmatmul.mubr.bf16.gmra.mrb[0].mxu0 %v2548
      %v3649 = vpop.f32.mrb[0].mxu0
      %v3650 = vadd.f32 0.0, %v3649
      %v3651 = vpop.f32.mrb[0].mxu0
      %v3652 = vpop.f32.mrb[0].mxu0
      %v3653 = vadd.f32 0.0, %v3652
      %v3654 = vpop.f32.mrb[0].mxu0
      %3655 = vmatprep.mubr.bf16.mxu0 %v2553
      %3656 = vmatmul.mubr.bf16.gmra.mrb[0].mxu0 %v2552
      %v3657 = vpop.f32.mrb[0].mxu0
      %v3658 = vadd.f32 0.0, %v3657
      %v3659 = vpop.f32.mrb[0].mxu0
      %v3660 = vpop.f32.mrb[0].mxu0
      %v3661 = vadd.f32 0.0, %v3660
      %v3662 = vpop.f32.mrb[0].mxu0
      %3663 = vmatprep.mubr.bf16.mxu0 %v2557
      %3664 = vmatmul.mubr.bf16.gmra.mrb[0].mxu0 %v2556
      %v3665 = vpop.f32.mrb[0].mxu0
      %v3666 = vadd.f32 0.0, %v3665
      %v3667 = vpop.f32.mrb[0].mxu0
      %v3668 = vpop.f32.mrb[0].mxu0
      %v3669 = vadd.f32 0.0, %v3668
      %v3670 = vpop.f32.mrb[0].mxu0
      %3671 = vmatprep.mubr.bf16.mxu0 %v2561
      %3672 = vmatmul.mubr.bf16.gmra.mrb[0].mxu0 %v2560
      %v3673 = vpop.f32.mrb[0].mxu0
      %v3674 = vadd.f32 0.0, %v3673
      %v3675 = vpop.f32.mrb[0].mxu0
      %v3676 = vpop.f32.mrb[0].mxu0
      %v3677 = vadd.f32 0.0, %v3676
      %v3678 = vpop.f32.mrb[0].mxu0
      %3679 = vmatprep.mubr.bf16.mxu0 %v2565
      %3680 = vmatmul.mubr.bf16.gmra.mrb[0].mxu0 %v2564
      %v3681 = vpop.f32.mrb[0].mxu0
      %v3682 = vadd.f32 0.0, %v3681
      %v3683 = vpop.f32.mrb[0].mxu0
      %v3684 = vpop.f32.mrb[0].mxu0
      %v3685 = vadd.f32 0.0, %v3684
      %v3686 = vpop.f32.mrb[0].mxu0
      %3687 = vmatprep.mubr.bf16.mxu0 %v2569
      %3688 = vmatmul.mubr.bf16.gmra.mrb[0].mxu0 %v2568
      %v3689 = vpop.f32.mrb[0].mxu0
      %v3690 = vadd.f32 0.0, %v3689
      %v3691 = vpop.f32.mrb[0].mxu0
      %v3692 = vpop.f32.mrb[0].mxu0
      %v3693 = vadd.f32 0.0, %v3692
      %v3694 = vpop.f32.mrb[0].mxu0
      %3695 = vmatprep.mubr.bf16.mxu0 %v2573
      %3696 = vmatmul.mubr.bf16.gmra.mrb[0].mxu0 %v2572
      %v3697 = vpop.f32.mrb[0].mxu0
      %v3698 = vadd.f32 0.0, %v3697
      %v3699 = vpop.f32.mrb[0].mxu0
      %v3700 = vpop.f32.mrb[0].mxu0
      %v3701 = vadd.f32 0.0, %v3700
      %v3702 = vpop.f32.mrb[0].mxu0
      %3703 = vmatprep.mubr.bf16.mxu0 %v2577
      %3704 = vmatmul.mubr.bf16.gmra.mrb[0].mxu0 %v2576
      %v3705 = vpop.f32.mrb[0].mxu0
      %v3706 = vadd.f32 0.0, %v3705
      %v3707 = vpop.f32.mrb[0].mxu0
      %v3708 = vpop.f32.mrb[0].mxu0
      %v3709 = vadd.f32 0.0, %v3708
      %v3710 = vpop.f32.mrb[0].mxu0
      %3711 = vmatprep.mubr.bf16.mxu0 %v2581
      %3712 = vmatmul.mubr.bf16.gmra.mrb[0].mxu0 %v2580
      %v3713 = vpop.f32.mrb[0].mxu0
      %v3714 = vadd.f32 0.0, %v3713
      %v3715 = vpop.f32.mrb[0].mxu0
      %v3716 = vpop.f32.mrb[0].mxu0
      %v3717 = vadd.f32 0.0, %v3716
      %v3718 = vpop.f32.mrb[0].mxu0
      %3719 = vmatprep.mubr.bf16.mxu0 %v2585
      %3720 = vmatmul.mubr.bf16.gmra.mrb[0].mxu0 %v2584
      %v3721 = vpop.f32.mrb[0].mxu0
      %v3722 = vadd.f32 0.0, %v3721
      %v3723 = vpop.f32.mrb[0].mxu0
      %v3724 = vpop.f32.mrb[0].mxu0
      %v3725 = vadd.f32 0.0, %v3724
      %v3726 = vpop.f32.mrb[0].mxu0
      %3727 = vmatprep.mubr.bf16.mxu0 %v2589
      %3728 = vmatmul.mubr.bf16.gmra.mrb[0].mxu0 %v2588
      %v3729 = vpop.f32.mrb[0].mxu0
      %v3730 = vadd.f32 0.0, %v3729
      %v3731 = vpop.f32.mrb[0].mxu0
      %v3732 = vpop.f32.mrb[0].mxu0
      %v3733 = vadd.f32 0.0, %v3732
      %v3734 = vpop.f32.mrb[0].mxu0
      %3735 = vmatprep.mubr.bf16.mxu0 %v2593
      %3736 = vmatmul.mubr.bf16.gmra.mrb[0].mxu0 %v2592
      %v3737 = vpop.f32.mrb[0].mxu0
      %v3738 = vadd.f32 0.0, %v3737
      %v3739 = vpop.f32.mrb[0].mxu0
      %v3740 = vpop.f32.mrb[0].mxu0
      %v3741 = vadd.f32 0.0, %v3740
      %v3742 = vpop.f32.mrb[0].mxu0
      %3743 = vmatprep.mubr.bf16.mxu0 %v2597
      %3744 = vmatmul.mubr.bf16.gmra.mrb[0].mxu0 %v2596
      %v3745 = vpop.f32.mrb[0].mxu0
      %v3746 = vadd.f32 0.0, %v3745
      %v3747 = vpop.f32.mrb[0].mxu0
      %v3748 = vpop.f32.mrb[0].mxu0
      %v3749 = vadd.f32 0.0, %v3748
      %v3750 = vpop.f32.mrb[0].mxu0
      %3751 = vmatprep.mubr.bf16.mxu0 %v2601
      %3752 = vmatmul.mubr.bf16.gmra.mrb[0].mxu0 %v2600
      %v3753 = vpop.f32.mrb[0].mxu0
      %v3754 = vadd.f32 0.0, %v3753
      %v3755 = vpop.f32.mrb[0].mxu0
      %v3756 = vpop.f32.mrb[0].mxu0
      %v3757 = vadd.f32 0.0, %v3756
      %v3758 = vpop.f32.mrb[0].mxu0
      %3759 = vmatprep.mubr.bf16.mxu0 %v2605
      %3760 = vmatmul.mubr.bf16.gmra.mrb[0].mxu0 %v2604
      %v3761 = vpop.f32.mrb[0].mxu0
      %v3762 = vadd.f32 0.0, %v3761
      %v3763 = vpop.f32.mrb[0].mxu0
      %v3764 = vpop.f32.mrb[0].mxu0
      %v3765 = vadd.f32 0.0, %v3764
      %v3766 = vpop.f32.mrb[0].mxu0
      %3767 = vmatprep.mubr.bf16.mxu0 %v2609
      %3768 = vmatmul.mubr.bf16.gmra.mrb[0].mxu0 %v2608
      %v3769 = vpop.f32.mrb[0].mxu0
      %v3770 = vadd.f32 0.0, %v3769
      %v3771 = vpop.f32.mrb[0].mxu0
      %v3772 = vpop.f32.mrb[0].mxu0
      %v3773 = vadd.f32 0.0, %v3772
      %v3774 = vpop.f32.mrb[0].mxu0
      %3775 = vmatprep.mubr.bf16.mxu0 %v2613
      %3776 = vmatmul.mubr.bf16.gmra.mrb[0].mxu0 %v2612
      %v3777 = vpop.f32.mrb[0].mxu0
      %v3778 = vadd.f32 0.0, %v3777
      %v3779 = vpop.f32.mrb[0].mxu0
      %v3780 = vpop.f32.mrb[0].mxu0
      %v3781 = vadd.f32 0.0, %v3780
      %v3782 = vpop.f32.mrb[0].mxu0
      %3783 = vdwg.mxu0
      %3784 = vmatprep.subr.bf16.mxu0 0
      %3785 = vmatpush1.bf16.msra.mxu0 %v987
      %3786 = vmatprep.subr.bf16.mxu0 0
      %3787 = vmatpush1.bf16.msra.mxu0 %v988
      %3788 = vmatprep.subr.bf16.mxu0 0
      %3789 = vmatpush1.bf16.msra.mxu0 %v989
      %3790 = vmatprep.subr.bf16.mxu0 0
      %3791 = vmatpush1.bf16.msra.mxu0 %v990
      %3792 = vmatprep.subr.bf16.mxu0 0
      %3793 = vmatpush1.bf16.msra.mxu0 %v991
      %3794 = vmatprep.subr.bf16.mxu0 0
      %3795 = vmatpush1.bf16.msra.mxu0 %v992
      %3796 = vmatprep.subr.bf16.mxu0 0
      %3797 = vmatpush1.bf16.msra.mxu0 %v993
      %3798 = vmatprep.subr.bf16.mxu0 0
      %3799 = vmatpush1.bf16.msra.mxu0 %v994
      %3800 = vmatprep.subr.bf16.mxu0 0
      %3801 = vmatpush1.bf16.msra.mxu0 %v995
      %3802 = vmatprep.subr.bf16.mxu0 0
      %3803 = vmatpush1.bf16.msra.mxu0 0
      %3804 = vmatprep.subr.bf16.mxu0 0
      %3805 = vmatpush1.bf16.msra.mxu0 0
      %3806 = vmatprep.subr.bf16.mxu0 0
      %3807 = vmatpush1.bf16.msra.mxu0 0
      %3808 = vmatprep.subr.bf16.mxu0 0
      %3809 = vmatpush1.bf16.msra.mxu0 0
      %3810 = vmatprep.subr.bf16.mxu0 0
      %3811 = vmatpush1.bf16.msra.mxu0 0
      %3812 = vmatprep.subr.bf16.mxu0 0
      %3813 = vmatpush1.bf16.msra.mxu0 0
      %3814 = vmatprep.subr.bf16.mxu0 0
      %3815 = vmatpush1.bf16.msra.mxu0 0
      %3816 = vmatprep.mubr.bf16.mxu0 %v2861
      %3817 = vmatmul.mubr.bf16.gmra.mrb[0].mxu0 %v2294
      %v3818 = vpop.f32.mrb[0].mxu0
      %v3819 = vadd.f32 %v3138, %v3818
      %v3820 = vpop.f32.mrb[0].mxu0
      %v3821 = vpop.f32.mrb[0].mxu0
      %v3822 = vadd.f32 %v3141, %v3821
      %v3823 = vpop.f32.mrb[0].mxu0
      %3824 = vmatprep.mubr.bf16.mxu0 %v2864
      %3825 = vmatmul.mubr.bf16.gmra.mrb[0].mxu0 %v2298
      %v3826 = vpop.f32.mrb[0].mxu0
      %v3827 = vadd.f32 %v3146, %v3826
      %v3828 = vpop.f32.mrb[0].mxu0
      %v3829 = vpop.f32.mrb[0].mxu0
      %v3830 = vadd.f32 %v3149, %v3829
      %v3831 = vpop.f32.mrb[0].mxu0
      %3832 = vmatprep.mubr.bf16.mxu0 %v2867
      %3833 = vmatmul.mubr.bf16.gmra.mrb[0].mxu0 %v2302
      %v3834 = vpop.f32.mrb[0].mxu0
      %v3835 = vadd.f32 %v3154, %v3834
      %v3836 = vpop.f32.mrb[0].mxu0
      %v3837 = vpop.f32.mrb[0].mxu0
      %v3838 = vadd.f32 %v3157, %v3837
      %v3839 = vpop.f32.mrb[0].mxu0
      %3840 = vmatprep.mubr.bf16.mxu0 %v2870
      %3841 = vmatmul.mubr.bf16.gmra.mrb[0].mxu0 %v2306
      %v3842 = vpop.f32.mrb[0].mxu0
      %v3843 = vadd.f32 %v3162, %v3842
      %v3844 = vpop.f32.mrb[0].mxu0
      %v3845 = vpop.f32.mrb[0].mxu0
      %v3846 = vadd.f32 %v3165, %v3845
      %v3847 = vpop.f32.mrb[0].mxu0
      %3848 = vmatprep.mubr.bf16.mxu0 %v2873
      %3849 = vmatmul.mubr.bf16.gmra.mrb[0].mxu0 %v2310
      %v3850 = vpop.f32.mrb[0].mxu0
      %v3851 = vadd.f32 %v3170, %v3850
      %v3852 = vpop.f32.mrb[0].mxu0
      %v3853 = vpop.f32.mrb[0].mxu0
      %v3854 = vadd.f32 %v3173, %v3853
      %v3855 = vpop.f32.mrb[0].mxu0
      %3856 = vmatprep.mubr.bf16.mxu0 %v2876
      %3857 = vmatmul.mubr.bf16.gmra.mrb[0].mxu0 %v2314
      %v3858 = vpop.f32.mrb[0].mxu0
      %v3859 = vadd.f32 %v3178, %v3858
      %v3860 = vpop.f32.mrb[0].mxu0
      %v3861 = vpop.f32.mrb[0].mxu0
      %v3862 = vadd.f32 %v3181, %v3861
      %v3863 = vpop.f32.mrb[0].mxu0
      %3864 = vmatprep.mubr.bf16.mxu0 %v2879
      %3865 = vmatmul.mubr.bf16.gmra.mrb[0].mxu0 %v2318
      %v3866 = vpop.f32.mrb[0].mxu0
      %v3867 = vadd.f32 %v3186, %v3866
      %v3868 = vpop.f32.mrb[0].mxu0
      %v3869 = vpop.f32.mrb[0].mxu0
      %v3870 = vadd.f32 %v3189, %v3869
      %v3871 = vpop.f32.mrb[0].mxu0
      %3872 = vmatprep.mubr.bf16.mxu0 %v2882
      %3873 = vmatmul.mubr.bf16.gmra.mrb[0].mxu0 %v2322
      %v3874 = vpop.f32.mrb[0].mxu0
      %v3875 = vadd.f32 %v3194, %v3874
      %v3876 = vpop.f32.mrb[0].mxu0
      %v3877 = vpop.f32.mrb[0].mxu0
      %v3878 = vadd.f32 %v3197, %v3877
      %v3879 = vpop.f32.mrb[0].mxu0
      %3880 = vmatprep.mubr.bf16.mxu0 %v2885
      %3881 = vmatmul.mubr.bf16.gmra.mrb[0].mxu0 %v2326
      %v3882 = vpop.f32.mrb[0].mxu0
      %v3883 = vadd.f32 %v3202, %v3882
      %v3884 = vpop.f32.mrb[0].mxu0
      %v3885 = vpop.f32.mrb[0].mxu0
      %v3886 = vadd.f32 %v3205, %v3885
      %v3887 = vpop.f32.mrb[0].mxu0
      %3888 = vmatprep.mubr.bf16.mxu0 %v2888
      %3889 = vmatmul.mubr.bf16.gmra.mrb[0].mxu0 %v2330
      %v3890 = vpop.f32.mrb[0].mxu0
      %v3891 = vadd.f32 %v3210, %v3890
      %v3892 = vpop.f32.mrb[0].mxu0
      %v3893 = vpop.f32.mrb[0].mxu0
      %v3894 = vadd.f32 %v3213, %v3893
      %v3895 = vpop.f32.mrb[0].mxu0
      %3896 = vmatprep.mubr.bf16.mxu0 %v2891
      %3897 = vmatmul.mubr.bf16.gmra.mrb[0].mxu0 %v2334
      %v3898 = vpop.f32.mrb[0].mxu0
      %v3899 = vadd.f32 %v3218, %v3898
      %v3900 = vpop.f32.mrb[0].mxu0
      %v3901 = vpop.f32.mrb[0].mxu0
      %v3902 = vadd.f32 %v3221, %v3901
      %v3903 = vpop.f32.mrb[0].mxu0
      %3904 = vmatprep.mubr.bf16.mxu0 %v2894
      %3905 = vmatmul.mubr.bf16.gmra.mrb[0].mxu0 %v2338
      %v3906 = vpop.f32.mrb[0].mxu0
      %v3907 = vadd.f32 %v3226, %v3906
      %v3908 = vpop.f32.mrb[0].mxu0
      %v3909 = vpop.f32.mrb[0].mxu0
      %v3910 = vadd.f32 %v3229, %v3909
      %v3911 = vpop.f32.mrb[0].mxu0
      %3912 = vmatprep.mubr.bf16.mxu0 %v2897
      %3913 = vmatmul.mubr.bf16.gmra.mrb[0].mxu0 %v2342
      %v3914 = vpop.f32.mrb[0].mxu0
      %v3915 = vadd.f32 %v3234, %v3914
      %v3916 = vpop.f32.mrb[0].mxu0
      %v3917 = vpop.f32.mrb[0].mxu0
      %v3918 = vadd.f32 %v3237, %v3917
      %v3919 = vpop.f32.mrb[0].mxu0
      %3920 = vmatprep.mubr.bf16.mxu0 %v2900
      %3921 = vmatmul.mubr.bf16.gmra.mrb[0].mxu0 %v2346
      %v3922 = vpop.f32.mrb[0].mxu0
      %v3923 = vadd.f32 %v3242, %v3922
      %v3924 = vpop.f32.mrb[0].mxu0
      %v3925 = vpop.f32.mrb[0].mxu0
      %v3926 = vadd.f32 %v3245, %v3925
      %v3927 = vpop.f32.mrb[0].mxu0
      %3928 = vmatprep.mubr.bf16.mxu0 %v2903
      %3929 = vmatmul.mubr.bf16.gmra.mrb[0].mxu0 %v2350
      %v3930 = vpop.f32.mrb[0].mxu0
      %v3931 = vadd.f32 %v3250, %v3930
      %v3932 = vpop.f32.mrb[0].mxu0
      %v3933 = vpop.f32.mrb[0].mxu0
      %v3934 = vadd.f32 %v3253, %v3933
      %v3935 = vpop.f32.mrb[0].mxu0
      %3936 = vmatprep.mubr.bf16.mxu0 %v2906
      %3937 = vmatmul.mubr.bf16.gmra.mrb[0].mxu0 %v2354
      %v3938 = vpop.f32.mrb[0].mxu0
      %v3939 = vadd.f32 %v3258, %v3938
      %v3940 = vpop.f32.mrb[0].mxu0
      %v3941 = vpop.f32.mrb[0].mxu0
      %v3942 = vadd.f32 %v3261, %v3941
      %v3943 = vpop.f32.mrb[0].mxu0
      %3944 = vmatprep.mubr.bf16.mxu0 %v2909
      %3945 = vmatmul.mubr.bf16.gmra.mrb[0].mxu0 %v2358
      %v3946 = vpop.f32.mrb[0].mxu0
      %v3947 = vadd.f32 %v3266, %v3946
      %v3948 = vpop.f32.mrb[0].mxu0
      %v3949 = vpop.f32.mrb[0].mxu0
      %v3950 = vadd.f32 %v3269, %v3949
      %v3951 = vpop.f32.mrb[0].mxu0
      %3952 = vmatprep.mubr.bf16.mxu0 %v2912
      %3953 = vmatmul.mubr.bf16.gmra.mrb[0].mxu0 %v2362
      %v3954 = vpop.f32.mrb[0].mxu0
      %v3955 = vadd.f32 %v3274, %v3954
      %v3956 = vpop.f32.mrb[0].mxu0
      %v3957 = vpop.f32.mrb[0].mxu0
      %v3958 = vadd.f32 %v3277, %v3957
      %v3959 = vpop.f32.mrb[0].mxu0
      %3960 = vmatprep.mubr.bf16.mxu0 %v2915
      %3961 = vmatmul.mubr.bf16.gmra.mrb[0].mxu0 %v2366
      %v3962 = vpop.f32.mrb[0].mxu0
      %v3963 = vadd.f32 %v3282, %v3962
      %v3964 = vpop.f32.mrb[0].mxu0
      %v3965 = vpop.f32.mrb[0].mxu0
      %v3966 = vadd.f32 %v3285, %v3965
      %v3967 = vpop.f32.mrb[0].mxu0
      %3968 = vmatprep.mubr.bf16.mxu0 %v2918
      %3969 = vmatmul.mubr.bf16.gmra.mrb[0].mxu0 %v2370
      %v3970 = vpop.f32.mrb[0].mxu0
      %v3971 = vadd.f32 %v3290, %v3970
      %v3972 = vpop.f32.mrb[0].mxu0
      %v3973 = vpop.f32.mrb[0].mxu0
      %v3974 = vadd.f32 %v3293, %v3973
      %v3975 = vpop.f32.mrb[0].mxu0
      %3976 = vmatprep.mubr.bf16.mxu0 %v2921
      %3977 = vmatmul.mubr.bf16.gmra.mrb[0].mxu0 %v2374
      %v3978 = vpop.f32.mrb[0].mxu0
      %v3979 = vadd.f32 %v3298, %v3978
      %v3980 = vpop.f32.mrb[0].mxu0
      %v3981 = vpop.f32.mrb[0].mxu0
      %v3982 = vadd.f32 %v3301, %v3981
      %v3983 = vpop.f32.mrb[0].mxu0
      %3984 = vmatprep.mubr.bf16.mxu0 %v2924
      %3985 = vmatmul.mubr.bf16.gmra.mrb[0].mxu0 %v2378
      %v3986 = vpop.f32.mrb[0].mxu0
      %v3987 = vadd.f32 %v3306, %v3986
      %v3988 = vpop.f32.mrb[0].mxu0
      %v3989 = vpop.f32.mrb[0].mxu0
      %v3990 = vadd.f32 %v3309, %v3989
      %v3991 = vpop.f32.mrb[0].mxu0
      %3992 = vmatprep.mubr.bf16.mxu0 %v2927
      %3993 = vmatmul.mubr.bf16.gmra.mrb[0].mxu0 %v2382
      %v3994 = vpop.f32.mrb[0].mxu0
      %v3995 = vadd.f32 %v3314, %v3994
      %v3996 = vpop.f32.mrb[0].mxu0
      %v3997 = vpop.f32.mrb[0].mxu0
      %v3998 = vadd.f32 %v3317, %v3997
      %v3999 = vpop.f32.mrb[0].mxu0
      %4000 = vmatprep.mubr.bf16.mxu0 %v2930
      %4001 = vmatmul.mubr.bf16.gmra.mrb[0].mxu0 %v2386
      %v4002 = vpop.f32.mrb[0].mxu0
      %v4003 = vadd.f32 %v3322, %v4002
      %v4004 = vpop.f32.mrb[0].mxu0
      %v4005 = vpop.f32.mrb[0].mxu0
      %v4006 = vadd.f32 %v3325, %v4005
      %v4007 = vpop.f32.mrb[0].mxu0
      %4008 = vmatprep.mubr.bf16.mxu0 %v2933
      %4009 = vmatmul.mubr.bf16.gmra.mrb[0].mxu0 %v2390
      %v4010 = vpop.f32.mrb[0].mxu0
      %v4011 = vadd.f32 %v3330, %v4010
      %v4012 = vpop.f32.mrb[0].mxu0
      %v4013 = vpop.f32.mrb[0].mxu0
      %v4014 = vadd.f32 %v3333, %v4013
      %v4015 = vpop.f32.mrb[0].mxu0
      %4016 = vmatprep.mubr.bf16.mxu0 %v2936
      %4017 = vmatmul.mubr.bf16.gmra.mrb[0].mxu0 %v2394
      %v4018 = vpop.f32.mrb[0].mxu0
      %v4019 = vadd.f32 %v3338, %v4018
      %v4020 = vpop.f32.mrb[0].mxu0
      %v4021 = vpop.f32.mrb[0].mxu0
      %v4022 = vadd.f32 %v3341, %v4021
      %v4023 = vpop.f32.mrb[0].mxu0
      %4024 = vmatprep.mubr.bf16.mxu0 %v2939
      %4025 = vmatmul.mubr.bf16.gmra.mrb[0].mxu0 %v2398
      %v4026 = vpop.f32.mrb[0].mxu0
      %v4027 = vadd.f32 %v3346, %v4026
      %v4028 = vpop.f32.mrb[0].mxu0
      %v4029 = vpop.f32.mrb[0].mxu0
      %v4030 = vadd.f32 %v3349, %v4029
      %v4031 = vpop.f32.mrb[0].mxu0
      %4032 = vmatprep.mubr.bf16.mxu0 %v2942
      %4033 = vmatmul.mubr.bf16.gmra.mrb[0].mxu0 %v2402
      %v4034 = vpop.f32.mrb[0].mxu0
      %v4035 = vadd.f32 %v3354, %v4034
      %v4036 = vpop.f32.mrb[0].mxu0
      %v4037 = vpop.f32.mrb[0].mxu0
      %v4038 = vadd.f32 %v3357, %v4037
      %v4039 = vpop.f32.mrb[0].mxu0
      %4040 = vmatprep.mubr.bf16.mxu0 %v2945
      %4041 = vmatmul.mubr.bf16.gmra.mrb[0].mxu0 %v2406
      %v4042 = vpop.f32.mrb[0].mxu0
      %v4043 = vadd.f32 %v3362, %v4042
      %v4044 = vpop.f32.mrb[0].mxu0
      %v4045 = vpop.f32.mrb[0].mxu0
      %v4046 = vadd.f32 %v3365, %v4045
      %v4047 = vpop.f32.mrb[0].mxu0
      %4048 = vmatprep.mubr.bf16.mxu0 %v2948
      %4049 = vmatmul.mubr.bf16.gmra.mrb[0].mxu0 %v2410
      %v4050 = vpop.f32.mrb[0].mxu0
      %v4051 = vadd.f32 %v3370, %v4050
      %v4052 = vpop.f32.mrb[0].mxu0
      %v4053 = vpop.f32.mrb[0].mxu0
      %v4054 = vadd.f32 %v3373, %v4053
      %v4055 = vpop.f32.mrb[0].mxu0
      %4056 = vmatprep.mubr.bf16.mxu0 %v2951
      %4057 = vmatmul.mubr.bf16.gmra.mrb[0].mxu0 %v2414
      %v4058 = vpop.f32.mrb[0].mxu0
      %v4059 = vadd.f32 %v3378, %v4058
      %v4060 = vpop.f32.mrb[0].mxu0
      %v4061 = vpop.f32.mrb[0].mxu0
      %v4062 = vadd.f32 %v3381, %v4061
      %v4063 = vpop.f32.mrb[0].mxu0
      %4064 = vmatprep.mubr.bf16.mxu0 %v2954
      %4065 = vmatmul.mubr.bf16.gmra.mrb[0].mxu0 %v2418
      %v4066 = vpop.f32.mrb[0].mxu0
      %v4067 = vadd.f32 %v3386, %v4066
      %v4068 = vpop.f32.mrb[0].mxu0
      %v4069 = vpop.f32.mrb[0].mxu0
      %v4070 = vadd.f32 %v3389, %v4069
      %v4071 = vpop.f32.mrb[0].mxu0
      %4072 = vmatprep.mubr.bf16.mxu0 %v2957
      %4073 = vmatmul.mubr.bf16.gmra.mrb[0].mxu0 %v2422
      %v4074 = vpop.f32.mrb[0].mxu0
      %v4075 = vadd.f32 %v3394, %v4074
      %v4076 = vpop.f32.mrb[0].mxu0
      %v4077 = vpop.f32.mrb[0].mxu0
      %v4078 = vadd.f32 %v3397, %v4077
      %v4079 = vpop.f32.mrb[0].mxu0
      %4080 = vmatprep.mubr.bf16.mxu0 %v2960
      %4081 = vmatmul.mubr.bf16.gmra.mrb[0].mxu0 %v2426
      %v4082 = vpop.f32.mrb[0].mxu0
      %v4083 = vadd.f32 %v3402, %v4082
      %v4084 = vpop.f32.mrb[0].mxu0
      %v4085 = vpop.f32.mrb[0].mxu0
      %v4086 = vadd.f32 %v3405, %v4085
      %v4087 = vpop.f32.mrb[0].mxu0
      %4088 = vmatprep.mubr.bf16.mxu0 %v2963
      %4089 = vmatmul.mubr.bf16.gmra.mrb[0].mxu0 %v2430
      %v4090 = vpop.f32.mrb[0].mxu0
      %v4091 = vadd.f32 %v3410, %v4090
      %v4092 = vpop.f32.mrb[0].mxu0
      %v4093 = vpop.f32.mrb[0].mxu0
      %v4094 = vadd.f32 %v3413, %v4093
      %v4095 = vpop.f32.mrb[0].mxu0
      %4096 = vmatprep.mubr.bf16.mxu0 %v2966
      %4097 = vmatmul.mubr.bf16.gmra.mrb[0].mxu0 %v2434
      %v4098 = vpop.f32.mrb[0].mxu0
      %v4099 = vadd.f32 %v3418, %v4098
      %v4100 = vpop.f32.mrb[0].mxu0
      %v4101 = vpop.f32.mrb[0].mxu0
      %v4102 = vadd.f32 %v3421, %v4101
      %v4103 = vpop.f32.mrb[0].mxu0
      %4104 = vmatprep.mubr.bf16.mxu0 %v2969
      %4105 = vmatmul.mubr.bf16.gmra.mrb[0].mxu0 %v2438
      %v4106 = vpop.f32.mrb[0].mxu0
      %v4107 = vadd.f32 %v3426, %v4106
      %v4108 = vpop.f32.mrb[0].mxu0
      %v4109 = vpop.f32.mrb[0].mxu0
      %v4110 = vadd.f32 %v3429, %v4109
      %v4111 = vpop.f32.mrb[0].mxu0
      %4112 = vmatprep.mubr.bf16.mxu0 %v2972
      %4113 = vmatmul.mubr.bf16.gmra.mrb[0].mxu0 %v2442
      %v4114 = vpop.f32.mrb[0].mxu0
      %v4115 = vadd.f32 %v3434, %v4114
      %v4116 = vpop.f32.mrb[0].mxu0
      %v4117 = vpop.f32.mrb[0].mxu0
      %v4118 = vadd.f32 %v3437, %v4117
      %v4119 = vpop.f32.mrb[0].mxu0
      %4120 = vmatprep.mubr.bf16.mxu0 %v2975
      %4121 = vmatmul.mubr.bf16.gmra.mrb[0].mxu0 %v2446
      %v4122 = vpop.f32.mrb[0].mxu0
      %v4123 = vadd.f32 %v3442, %v4122
      %v4124 = vpop.f32.mrb[0].mxu0
      %v4125 = vpop.f32.mrb[0].mxu0
      %v4126 = vadd.f32 %v3445, %v4125
      %v4127 = vpop.f32.mrb[0].mxu0
      %4128 = vmatprep.mubr.bf16.mxu0 %v2978
      %4129 = vmatmul.mubr.bf16.gmra.mrb[0].mxu0 %v2450
      %v4130 = vpop.f32.mrb[0].mxu0
      %v4131 = vadd.f32 %v3450, %v4130
      %v4132 = vpop.f32.mrb[0].mxu0
      %v4133 = vpop.f32.mrb[0].mxu0
      %v4134 = vadd.f32 %v3453, %v4133
      %v4135 = vpop.f32.mrb[0].mxu0
      %4136 = vmatprep.mubr.bf16.mxu0 %v2981
      %4137 = vmatmul.mubr.bf16.gmra.mrb[0].mxu0 %v2454
      %v4138 = vpop.f32.mrb[0].mxu0
      %v4139 = vadd.f32 %v3458, %v4138
      %v4140 = vpop.f32.mrb[0].mxu0
      %v4141 = vpop.f32.mrb[0].mxu0
      %v4142 = vadd.f32 %v3461, %v4141
      %v4143 = vpop.f32.mrb[0].mxu0
      %4144 = vmatprep.mubr.bf16.mxu0 %v2984
      %4145 = vmatmul.mubr.bf16.gmra.mrb[0].mxu0 %v2458
      %v4146 = vpop.f32.mrb[0].mxu0
      %v4147 = vadd.f32 %v3466, %v4146
      %v4148 = vpop.f32.mrb[0].mxu0
      %v4149 = vpop.f32.mrb[0].mxu0
      %v4150 = vadd.f32 %v3469, %v4149
      %v4151 = vpop.f32.mrb[0].mxu0
      %4152 = vmatprep.mubr.bf16.mxu0 %v2987
      %4153 = vmatmul.mubr.bf16.gmra.mrb[0].mxu0 %v2462
      %v4154 = vpop.f32.mrb[0].mxu0
      %v4155 = vadd.f32 %v3474, %v4154
      %v4156 = vpop.f32.mrb[0].mxu0
      %v4157 = vpop.f32.mrb[0].mxu0
      %v4158 = vadd.f32 %v3477, %v4157
      %v4159 = vpop.f32.mrb[0].mxu0
      %4160 = vmatprep.mubr.bf16.mxu0 %v2990
      %4161 = vmatmul.mubr.bf16.gmra.mrb[0].mxu0 %v2466
      %v4162 = vpop.f32.mrb[0].mxu0
      %v4163 = vadd.f32 %v3482, %v4162
      %v4164 = vpop.f32.mrb[0].mxu0
      %v4165 = vpop.f32.mrb[0].mxu0
      %v4166 = vadd.f32 %v3485, %v4165
      %v4167 = vpop.f32.mrb[0].mxu0
      %4168 = vmatprep.mubr.bf16.mxu0 %v2993
      %4169 = vmatmul.mubr.bf16.gmra.mrb[0].mxu0 %v2470
      %v4170 = vpop.f32.mrb[0].mxu0
      %v4171 = vadd.f32 %v3490, %v4170
      %v4172 = vpop.f32.mrb[0].mxu0
      %v4173 = vpop.f32.mrb[0].mxu0
      %v4174 = vadd.f32 %v3493, %v4173
      %v4175 = vpop.f32.mrb[0].mxu0
      %4176 = vmatprep.mubr.bf16.mxu0 %v2996
      %4177 = vmatmul.mubr.bf16.gmra.mrb[0].mxu0 %v2474
      %v4178 = vpop.f32.mrb[0].mxu0
      %v4179 = vadd.f32 %v3498, %v4178
      %v4180 = vpop.f32.mrb[0].mxu0
      %v4181 = vpop.f32.mrb[0].mxu0
      %v4182 = vadd.f32 %v3501, %v4181
      %v4183 = vpop.f32.mrb[0].mxu0
      %4184 = vmatprep.mubr.bf16.mxu0 %v2999
      %4185 = vmatmul.mubr.bf16.gmra.mrb[0].mxu0 %v2478
      %v4186 = vpop.f32.mrb[0].mxu0
      %v4187 = vadd.f32 %v3506, %v4186
      %v4188 = vpop.f32.mrb[0].mxu0
      %v4189 = vpop.f32.mrb[0].mxu0
      %v4190 = vadd.f32 %v3509, %v4189
      %v4191 = vpop.f32.mrb[0].mxu0
      %4192 = vmatprep.mubr.bf16.mxu0 %v3002
      %4193 = vmatmul.mubr.bf16.gmra.mrb[0].mxu0 %v2482
      %v4194 = vpop.f32.mrb[0].mxu0
      %v4195 = vadd.f32 %v3514, %v4194
      %v4196 = vpop.f32.mrb[0].mxu0
      %v4197 = vpop.f32.mrb[0].mxu0
      %v4198 = vadd.f32 %v3517, %v4197
      %v4199 = vpop.f32.mrb[0].mxu0
      %4200 = vmatprep.mubr.bf16.mxu0 %v3005
      %4201 = vmatmul.mubr.bf16.gmra.mrb[0].mxu0 %v2486
      %v4202 = vpop.f32.mrb[0].mxu0
      %v4203 = vadd.f32 %v3522, %v4202
      %v4204 = vpop.f32.mrb[0].mxu0
      %v4205 = vpop.f32.mrb[0].mxu0
      %v4206 = vadd.f32 %v3525, %v4205
      %v4207 = vpop.f32.mrb[0].mxu0
      %4208 = vmatprep.mubr.bf16.mxu0 %v3008
      %4209 = vmatmul.mubr.bf16.gmra.mrb[0].mxu0 %v2490
      %v4210 = vpop.f32.mrb[0].mxu0
      %v4211 = vadd.f32 %v3530, %v4210
      %v4212 = vpop.f32.mrb[0].mxu0
      %v4213 = vpop.f32.mrb[0].mxu0
      %v4214 = vadd.f32 %v3533, %v4213
      %v4215 = vpop.f32.mrb[0].mxu0
      %4216 = vmatprep.mubr.bf16.mxu0 %v3011
      %4217 = vmatmul.mubr.bf16.gmra.mrb[0].mxu0 %v2494
      %v4218 = vpop.f32.mrb[0].mxu0
      %v4219 = vadd.f32 %v3538, %v4218
      %v4220 = vpop.f32.mrb[0].mxu0
      %v4221 = vpop.f32.mrb[0].mxu0
      %v4222 = vadd.f32 %v3541, %v4221
      %v4223 = vpop.f32.mrb[0].mxu0
      %4224 = vmatprep.mubr.bf16.mxu0 %v3014
      %4225 = vmatmul.mubr.bf16.gmra.mrb[0].mxu0 %v2498
      %v4226 = vpop.f32.mrb[0].mxu0
      %v4227 = vadd.f32 %v3546, %v4226
      %v4228 = vpop.f32.mrb[0].mxu0
      %v4229 = vpop.f32.mrb[0].mxu0
      %v4230 = vadd.f32 %v3549, %v4229
      %v4231 = vpop.f32.mrb[0].mxu0
      %4232 = vmatprep.mubr.bf16.mxu0 %v3017
      %4233 = vmatmul.mubr.bf16.gmra.mrb[0].mxu0 %v2502
      %v4234 = vpop.f32.mrb[0].mxu0
      %v4235 = vadd.f32 %v3554, %v4234
      %v4236 = vpop.f32.mrb[0].mxu0
      %v4237 = vpop.f32.mrb[0].mxu0
      %v4238 = vadd.f32 %v3557, %v4237
      %v4239 = vpop.f32.mrb[0].mxu0
      %4240 = vmatprep.mubr.bf16.mxu0 %v3020
      %4241 = vmatmul.mubr.bf16.gmra.mrb[0].mxu0 %v2506
      %v4242 = vpop.f32.mrb[0].mxu0
      %v4243 = vadd.f32 %v3562, %v4242
      %v4244 = vpop.f32.mrb[0].mxu0
      %v4245 = vpop.f32.mrb[0].mxu0
      %v4246 = vadd.f32 %v3565, %v4245
      %v4247 = vpop.f32.mrb[0].mxu0
      %4248 = vmatprep.mubr.bf16.mxu0 %v3023
      %4249 = vmatmul.mubr.bf16.gmra.mrb[0].mxu0 %v2510
      %v4250 = vpop.f32.mrb[0].mxu0
      %v4251 = vadd.f32 %v3570, %v4250
      %v4252 = vpop.f32.mrb[0].mxu0
      %v4253 = vpop.f32.mrb[0].mxu0
      %v4254 = vadd.f32 %v3573, %v4253
      %v4255 = vpop.f32.mrb[0].mxu0
      %4256 = vmatprep.mubr.bf16.mxu0 %v3026
      %4257 = vmatmul.mubr.bf16.gmra.mrb[0].mxu0 %v2514
      %v4258 = vpop.f32.mrb[0].mxu0
      %v4259 = vadd.f32 %v3578, %v4258
      %v4260 = vpop.f32.mrb[0].mxu0
      %v4261 = vpop.f32.mrb[0].mxu0
      %v4262 = vadd.f32 %v3581, %v4261
      %v4263 = vpop.f32.mrb[0].mxu0
      %4264 = vmatprep.mubr.bf16.mxu0 %v3029
      %4265 = vmatmul.mubr.bf16.gmra.mrb[0].mxu0 %v2518
      %v4266 = vpop.f32.mrb[0].mxu0
      %v4267 = vadd.f32 %v3586, %v4266
      %v4268 = vpop.f32.mrb[0].mxu0
      %v4269 = vpop.f32.mrb[0].mxu0
      %v4270 = vadd.f32 %v3589, %v4269
      %v4271 = vpop.f32.mrb[0].mxu0
      %4272 = vmatprep.mubr.bf16.mxu0 %v3032
      %4273 = vmatmul.mubr.bf16.gmra.mrb[0].mxu0 %v2522
      %v4274 = vpop.f32.mrb[0].mxu0
      %v4275 = vadd.f32 %v3594, %v4274
      %v4276 = vpop.f32.mrb[0].mxu0
      %v4277 = vpop.f32.mrb[0].mxu0
      %v4278 = vadd.f32 %v3597, %v4277
      %v4279 = vpop.f32.mrb[0].mxu0
      %4280 = vmatprep.mubr.bf16.mxu0 %v3035
      %4281 = vmatmul.mubr.bf16.gmra.mrb[0].mxu0 %v2526
      %v4282 = vpop.f32.mrb[0].mxu0
      %v4283 = vadd.f32 %v3602, %v4282
      %v4284 = vpop.f32.mrb[0].mxu0
      %v4285 = vpop.f32.mrb[0].mxu0
      %v4286 = vadd.f32 %v3605, %v4285
      %v4287 = vpop.f32.mrb[0].mxu0
      %4288 = vmatprep.mubr.bf16.mxu0 %v3038
      %4289 = vmatmul.mubr.bf16.gmra.mrb[0].mxu0 %v2530
      %v4290 = vpop.f32.mrb[0].mxu0
      %v4291 = vadd.f32 %v3610, %v4290
      %v4292 = vpop.f32.mrb[0].mxu0
      %v4293 = vpop.f32.mrb[0].mxu0
      %v4294 = vadd.f32 %v3613, %v4293
      %v4295 = vpop.f32.mrb[0].mxu0
      %4296 = vmatprep.mubr.bf16.mxu0 %v3041
      %4297 = vmatmul.mubr.bf16.gmra.mrb[0].mxu0 %v2534
      %v4298 = vpop.f32.mrb[0].mxu0
      %v4299 = vadd.f32 %v3618, %v4298
      %v4300 = vpop.f32.mrb[0].mxu0
      %v4301 = vpop.f32.mrb[0].mxu0
      %v4302 = vadd.f32 %v3621, %v4301
      %v4303 = vpop.f32.mrb[0].mxu0
      %4304 = vmatprep.mubr.bf16.mxu0 %v3044
      %4305 = vmatmul.mubr.bf16.gmra.mrb[0].mxu0 %v2538
      %v4306 = vpop.f32.mrb[0].mxu0
      %v4307 = vadd.f32 %v3626, %v4306
      %v4308 = vpop.f32.mrb[0].mxu0
      %v4309 = vpop.f32.mrb[0].mxu0
      %v4310 = vadd.f32 %v3629, %v4309
      %v4311 = vpop.f32.mrb[0].mxu0
      %4312 = vmatprep.mubr.bf16.mxu0 %v3047
      %4313 = vmatmul.mubr.bf16.gmra.mrb[0].mxu0 %v2542
      %v4314 = vpop.f32.mrb[0].mxu0
      %v4315 = vadd.f32 %v3634, %v4314
      %v4316 = vpop.f32.mrb[0].mxu0
      %v4317 = vpop.f32.mrb[0].mxu0
      %v4318 = vadd.f32 %v3637, %v4317
      %v4319 = vpop.f32.mrb[0].mxu0
      %4320 = vmatprep.mubr.bf16.mxu0 %v3050
      %4321 = vmatmul.mubr.bf16.gmra.mrb[0].mxu0 %v2546
      %v4322 = vpop.f32.mrb[0].mxu0
      %v4323 = vadd.f32 %v3642, %v4322
      %v4324 = vpop.f32.mrb[0].mxu0
      %v4325 = vpop.f32.mrb[0].mxu0
      %v4326 = vadd.f32 %v3645, %v4325
      %v4327 = vpop.f32.mrb[0].mxu0
      %4328 = vmatprep.mubr.bf16.mxu0 %v3053
      %4329 = vmatmul.mubr.bf16.gmra.mrb[0].mxu0 %v2550
      %v4330 = vpop.f32.mrb[0].mxu0
      %v4331 = vadd.f32 %v3650, %v4330
      %v4332 = vpop.f32.mrb[0].mxu0
      %v4333 = vpop.f32.mrb[0].mxu0
      %v4334 = vadd.f32 %v3653, %v4333
      %v4335 = vpop.f32.mrb[0].mxu0
      %4336 = vmatprep.mubr.bf16.mxu0 %v3056
      %4337 = vmatmul.mubr.bf16.gmra.mrb[0].mxu0 %v2554
      %v4338 = vpop.f32.mrb[0].mxu0
      %v4339 = vadd.f32 %v3658, %v4338
      %v4340 = vpop.f32.mrb[0].mxu0
      %v4341 = vpop.f32.mrb[0].mxu0
      %v4342 = vadd.f32 %v3661, %v4341
      %v4343 = vpop.f32.mrb[0].mxu0
      %4344 = vmatprep.mubr.bf16.mxu0 %v3059
      %4345 = vmatmul.mubr.bf16.gmra.mrb[0].mxu0 %v2558
      %v4346 = vpop.f32.mrb[0].mxu0
      %v4347 = vadd.f32 %v3666, %v4346
      %v4348 = vpop.f32.mrb[0].mxu0
      %v4349 = vpop.f32.mrb[0].mxu0
      %v4350 = vadd.f32 %v3669, %v4349
      %v4351 = vpop.f32.mrb[0].mxu0
      %4352 = vmatprep.mubr.bf16.mxu0 %v3062
      %4353 = vmatmul.mubr.bf16.gmra.mrb[0].mxu0 %v2562
      %v4354 = vpop.f32.mrb[0].mxu0
      %v4355 = vadd.f32 %v3674, %v4354
      %v4356 = vpop.f32.mrb[0].mxu0
      %v4357 = vpop.f32.mrb[0].mxu0
      %v4358 = vadd.f32 %v3677, %v4357
      %v4359 = vpop.f32.mrb[0].mxu0
      %4360 = vmatprep.mubr.bf16.mxu0 %v3065
      %4361 = vmatmul.mubr.bf16.gmra.mrb[0].mxu0 %v2566
      %v4362 = vpop.f32.mrb[0].mxu0
      %v4363 = vadd.f32 %v3682, %v4362
      %v4364 = vpop.f32.mrb[0].mxu0
      %v4365 = vpop.f32.mrb[0].mxu0
      %v4366 = vadd.f32 %v3685, %v4365
      %v4367 = vpop.f32.mrb[0].mxu0
      %4368 = vmatprep.mubr.bf16.mxu0 %v3068
      %4369 = vmatmul.mubr.bf16.gmra.mrb[0].mxu0 %v2570
      %v4370 = vpop.f32.mrb[0].mxu0
      %v4371 = vadd.f32 %v3690, %v4370
      %v4372 = vpop.f32.mrb[0].mxu0
      %v4373 = vpop.f32.mrb[0].mxu0
      %v4374 = vadd.f32 %v3693, %v4373
      %v4375 = vpop.f32.mrb[0].mxu0
      %4376 = vmatprep.mubr.bf16.mxu0 %v3071
      %4377 = vmatmul.mubr.bf16.gmra.mrb[0].mxu0 %v2574
      %v4378 = vpop.f32.mrb[0].mxu0
      %v4379 = vadd.f32 %v3698, %v4378
      %v4380 = vpop.f32.mrb[0].mxu0
      %v4381 = vpop.f32.mrb[0].mxu0
      %v4382 = vadd.f32 %v3701, %v4381
      %v4383 = vpop.f32.mrb[0].mxu0
      %4384 = vmatprep.mubr.bf16.mxu0 %v3074
      %4385 = vmatmul.mubr.bf16.gmra.mrb[0].mxu0 %v2578
      %v4386 = vpop.f32.mrb[0].mxu0
      %v4387 = vadd.f32 %v3706, %v4386
      %v4388 = vpop.f32.mrb[0].mxu0
      %v4389 = vpop.f32.mrb[0].mxu0
      %v4390 = vadd.f32 %v3709, %v4389
      %v4391 = vpop.f32.mrb[0].mxu0
      %4392 = vmatprep.mubr.bf16.mxu0 %v3077
      %4393 = vmatmul.mubr.bf16.gmra.mrb[0].mxu0 %v2582
      %v4394 = vpop.f32.mrb[0].mxu0
      %v4395 = vadd.f32 %v3714, %v4394
      %v4396 = vpop.f32.mrb[0].mxu0
      %v4397 = vpop.f32.mrb[0].mxu0
      %v4398 = vadd.f32 %v3717, %v4397
      %v4399 = vpop.f32.mrb[0].mxu0
      %4400 = vmatprep.mubr.bf16.mxu0 %v3080
      %4401 = vmatmul.mubr.bf16.gmra.mrb[0].mxu0 %v2586
      %v4402 = vpop.f32.mrb[0].mxu0
      %v4403 = vadd.f32 %v3722, %v4402
      %v4404 = vpop.f32.mrb[0].mxu0
      %v4405 = vpop.f32.mrb[0].mxu0
      %v4406 = vadd.f32 %v3725, %v4405
      %v4407 = vpop.f32.mrb[0].mxu0
      %4408 = vmatprep.mubr.bf16.mxu0 %v3083
      %4409 = vmatmul.mubr.bf16.gmra.mrb[0].mxu0 %v2590
      %v4410 = vpop.f32.mrb[0].mxu0
      %v4411 = vadd.f32 %v3730, %v4410
      %v4412 = vpop.f32.mrb[0].mxu0
      %v4413 = vpop.f32.mrb[0].mxu0
      %v4414 = vadd.f32 %v3733, %v4413
      %v4415 = vpop.f32.mrb[0].mxu0
      %4416 = vmatprep.mubr.bf16.mxu0 %v3086
      %4417 = vmatmul.mubr.bf16.gmra.mrb[0].mxu0 %v2594
      %v4418 = vpop.f32.mrb[0].mxu0
      %v4419 = vadd.f32 %v3738, %v4418
      %v4420 = vpop.f32.mrb[0].mxu0
      %v4421 = vpop.f32.mrb[0].mxu0
      %v4422 = vadd.f32 %v3741, %v4421
      %v4423 = vpop.f32.mrb[0].mxu0
      %4424 = vmatprep.mubr.bf16.mxu0 %v3089
      %4425 = vmatmul.mubr.bf16.gmra.mrb[0].mxu0 %v2598
      %v4426 = vpop.f32.mrb[0].mxu0
      %v4427 = vadd.f32 %v3746, %v4426
      %v4428 = vpop.f32.mrb[0].mxu0
      %v4429 = vpop.f32.mrb[0].mxu0
      %v4430 = vadd.f32 %v3749, %v4429
      %v4431 = vpop.f32.mrb[0].mxu0
      %4432 = vmatprep.mubr.bf16.mxu0 %v3092
      %4433 = vmatmul.mubr.bf16.gmra.mrb[0].mxu0 %v2602
      %v4434 = vpop.f32.mrb[0].mxu0
      %v4435 = vadd.f32 %v3754, %v4434
      %v4436 = vpop.f32.mrb[0].mxu0
      %v4437 = vpop.f32.mrb[0].mxu0
      %v4438 = vadd.f32 %v3757, %v4437
      %v4439 = vpop.f32.mrb[0].mxu0
      %4440 = vmatprep.mubr.bf16.mxu0 %v3095
      %4441 = vmatmul.mubr.bf16.gmra.mrb[0].mxu0 %v2606
      %v4442 = vpop.f32.mrb[0].mxu0
      %v4443 = vadd.f32 %v3762, %v4442
      %v4444 = vpop.f32.mrb[0].mxu0
      %v4445 = vpop.f32.mrb[0].mxu0
      %v4446 = vadd.f32 %v3765, %v4445
      %v4447 = vpop.f32.mrb[0].mxu0
      %4448 = vmatprep.mubr.bf16.mxu0 %v3098
      %4449 = vmatmul.mubr.bf16.gmra.mrb[0].mxu0 %v2610
      %v4450 = vpop.f32.mrb[0].mxu0
      %v4451 = vadd.f32 %v3770, %v4450
      %v4452 = vpop.f32.mrb[0].mxu0
      %v4453 = vpop.f32.mrb[0].mxu0
      %v4454 = vadd.f32 %v3773, %v4453
      %v4455 = vpop.f32.mrb[0].mxu0
      %4456 = vmatprep.mubr.bf16.mxu0 %v3101
      %4457 = vmatmul.mubr.bf16.gmra.mrb[0].mxu0 %v2614
      %v4458 = vpop.f32.mrb[0].mxu0
      %v4459 = vadd.f32 %v3778, %v4458
      %v4460 = vpop.f32.mrb[0].mxu0
      %v4461 = vpop.f32.mrb[0].mxu0
      %v4462 = vadd.f32 %v3781, %v4461
      %v4463 = vpop.f32.mrb[0].mxu0
      %4464 = vdwg.mxu0
      %v4465 = vpack.c.bf16 %v3822, %v3819
      %v4466 = vpack.c.bf16 %v3830, %v3827
      %v4467 = vpack.c.bf16 %v3838, %v3835
      %v4468 = vpack.c.bf16 %v3846, %v3843
      %v4469 = vpack.c.bf16 %v3854, %v3851
      %v4470 = vpack.c.bf16 %v3862, %v3859
      %v4471 = vpack.c.bf16 %v3870, %v3867
      %v4472 = vpack.c.bf16 %v3878, %v3875
      %v4473 = vpack.c.bf16 %v3886, %v3883
      %v4474 = vpack.c.bf16 %v3894, %v3891
      %v4475 = vpack.c.bf16 %v3902, %v3899
      %v4476 = vpack.c.bf16 %v3910, %v3907
      %v4477 = vpack.c.bf16 %v3918, %v3915
      %v4478 = vpack.c.bf16 %v3926, %v3923
      %v4479 = vpack.c.bf16 %v3934, %v3931
      %v4480 = vpack.c.bf16 %v3942, %v3939
      %v4481 = vpack.c.bf16 %v3950, %v3947
      %v4482 = vpack.c.bf16 %v3958, %v3955
      %v4483 = vpack.c.bf16 %v3966, %v3963
      %v4484 = vpack.c.bf16 %v3974, %v3971
      %v4485 = vpack.c.bf16 %v3982, %v3979
      %v4486 = vpack.c.bf16 %v3990, %v3987
      %v4487 = vpack.c.bf16 %v3998, %v3995
      %v4488 = vpack.c.bf16 %v4006, %v4003
      %v4489 = vpack.c.bf16 %v4014, %v4011
      %v4490 = vpack.c.bf16 %v4022, %v4019
      %v4491 = vpack.c.bf16 %v4030, %v4027
      %v4492 = vpack.c.bf16 %v4038, %v4035
      %v4493 = vpack.c.bf16 %v4046, %v4043
      %v4494 = vpack.c.bf16 %v4054, %v4051
      %v4495 = vpack.c.bf16 %v4062, %v4059
      %v4496 = vpack.c.bf16 %v4070, %v4067
      %v4497 = vpack.c.bf16 %v4078, %v4075
      %v4498 = vpack.c.bf16 %v4086, %v4083
      %v4499 = vpack.c.bf16 %v4094, %v4091
      %v4500 = vpack.c.bf16 %v4102, %v4099
      %v4501 = vpack.c.bf16 %v4110, %v4107
      %v4502 = vpack.c.bf16 %v4118, %v4115
      %v4503 = vpack.c.bf16 %v4126, %v4123
      %v4504 = vpack.c.bf16 %v4134, %v4131
      %v4505 = vpack.c.bf16 %v4142, %v4139
      %v4506 = vpack.c.bf16 %v4150, %v4147
      %v4507 = vpack.c.bf16 %v4158, %v4155
      %v4508 = vpack.c.bf16 %v4166, %v4163
      %v4509 = vpack.c.bf16 %v4174, %v4171
      %v4510 = vpack.c.bf16 %v4182, %v4179
      %v4511 = vpack.c.bf16 %v4190, %v4187
      %v4512 = vpack.c.bf16 %v4198, %v4195
      %v4513 = vpack.c.bf16 %v4206, %v4203
      %v4514 = vpack.c.bf16 %v4214, %v4211
      %v4515 = vpack.c.bf16 %v4222, %v4219
      %v4516 = vpack.c.bf16 %v4230, %v4227
      %v4517 = vpack.c.bf16 %v4238, %v4235
      %v4518 = vpack.c.bf16 %v4246, %v4243
      %v4519 = vpack.c.bf16 %v4254, %v4251
      %v4520 = vpack.c.bf16 %v4262, %v4259
      %v4521 = vpack.c.bf16 %v4270, %v4267
      %v4522 = vpack.c.bf16 %v4278, %v4275
      %v4523 = vpack.c.bf16 %v4286, %v4283
      %v4524 = vpack.c.bf16 %v4294, %v4291
      %v4525 = vpack.c.bf16 %v4302, %v4299
      %v4526 = vpack.c.bf16 %v4310, %v4307
      %v4527 = vpack.c.bf16 %v4318, %v4315
      %v4528 = vpack.c.bf16 %v4326, %v4323
      %v4529 = vpack.c.bf16 %v4334, %v4331
      %v4530 = vpack.c.bf16 %v4342, %v4339
      %v4531 = vpack.c.bf16 %v4350, %v4347
      %v4532 = vpack.c.bf16 %v4358, %v4355
      %v4533 = vpack.c.bf16 %v4366, %v4363
      %v4534 = vpack.c.bf16 %v4374, %v4371
      %v4535 = vpack.c.bf16 %v4382, %v4379
      %v4536 = vpack.c.bf16 %v4390, %v4387
      %v4537 = vpack.c.bf16 %v4398, %v4395
      %v4538 = vpack.c.bf16 %v4406, %v4403
      %v4539 = vpack.c.bf16 %v4414, %v4411
      %v4540 = vpack.c.bf16 %v4422, %v4419
      %v4541 = vpack.c.bf16 %v4430, %v4427
      %v4542 = vpack.c.bf16 %v4438, %v4435
      %v4543 = vpack.c.bf16 %v4446, %v4443
      %v4544 = vpack.c.bf16 %v4454, %v4451
      %v4545 = vpack.c.bf16 %v4462, %v4459
      %vm4546 = vsmask.f32 7424
      %v4548 = vshrl.u32 %v4470, 16
      %v4550 = vshll.u32 %v4470, 16
      %v4552 = vrot.slane %v4550, 1
      %v4553 = vor.u32 %v4548, %v4552
      %v4555 = vshll.u32 %v4471, 16
      %v4557 = vrot.slane %v4555, 1
      %v4558 = vsel %vm4546, %v4553, %v4557
      %v4559 = vshrl.u32 %v4471, 16
      %v4561 = vor.u32 %v4559, %v4557
      %v4563 = vshll.u32 %v4472, 16
      %v4565 = vrot.slane %v4563, 1
      %v4566 = vsel %vm4546, %v4561, %v4565
      %v4567 = vshrl.u32 %v4472, 16
      %v4569 = vor.u32 %v4567, %v4565
      %v4571 = vshll.u32 %v4473, 16
      %v4573 = vrot.slane %v4571, 1
      %v4574 = vsel %vm4546, %v4569, %v4573
      %v4575 = vshrl.u32 %v4473, 16
      %v4577 = vor.u32 %v4575, %v4573
      %v4579 = vshll.u32 %v4474, 16
      %v4581 = vrot.slane %v4579, 1
      %v4582 = vsel %vm4546, %v4577, %v4581
      %v4583 = vshrl.u32 %v4474, 16
      %v4585 = vor.u32 %v4583, %v4581
      %v4587 = vshll.u32 %v4475, 16
      %v4589 = vrot.slane %v4587, 1
      %v4590 = vsel %vm4546, %v4585, %v4589
      %v4591 = vshrl.u32 %v4475, 16
      %4593 = vrot.lane.b32.xlu0 %v4558, 16
      %v4594 = vpop.permute.xlu0 %4593
      %4595 = vrot.lane.b32.xlu0 %v4566, 16
      %v4596 = vpop.permute.xlu0 %4595
      %4597 = vrot.lane.b32.xlu0 %v4574, 16
      %v4598 = vpop.permute.xlu0 %4597
      %4599 = vrot.lane.b32.xlu0 %v4582, 16
      %v4600 = vpop.permute.xlu0 %4599
      %4601 = vrot.lane.b32.xlu0 %v4590, 16
      %v4602 = vpop.permute.xlu0 %4601
      %4603 = vrot.lane.b32.xlu0 %v4591, 16
      %v4604 = vpop.permute.xlu0 %4603
      %vm4611 = vcmask 1046528
      %v4612 = vrot.slane %v4475, 1
      %v4613 = vrot.slane %v4476, 1
      %v4614 = vsel %vm4611, %v4612, %v4613
      %v4615 = vrot.slane %v4477, 1
      %v4616 = vsel %vm4611, %v4613, %v4615
      %v4617 = vrot.slane %v4478, 1
      %v4618 = vsel %vm4611, %v4615, %v4617
      %v4619 = vrot.slane %v4479, 1
      %v4620 = vsel %vm4611, %v4617, %v4619
      %v4621 = vrot.slane %v4480, 1
      %v4622 = vsel %vm4611, %v4619, %v4621
      %4623 = vrot.lane.b32.xlu0 %v4614, 32
      %v4624 = vpop.permute.xlu0 %4623
      %4625 = vrot.lane.b32.xlu0 %v4616, 32
      %v4626 = vpop.permute.xlu0 %4625
      %4627 = vrot.lane.b32.xlu0 %v4618, 32
      %v4628 = vpop.permute.xlu0 %4627
      %4629 = vrot.lane.b32.xlu0 %v4620, 32
      %v4630 = vpop.permute.xlu0 %4629
      %4631 = vrot.lane.b32.xlu0 %v4622, 32
      %v4632 = vpop.permute.xlu0 %4631
      %4633 = vrot.lane.b32.xlu0 %v4621, 32
      %v4634 = vpop.permute.xlu0 %4633
      %vm4635 = vsmask.f32 6400
      %v4637 = vshrl.u32 %v4480, 16
      %v4639 = vrot.slane %v4637, 1
      %v4640 = vshll.u32 %v4480, 16
      %v4642 = vrot.slane %v4640, 2
      %v4643 = vor.u32 %v4639, %v4642
      %v4645 = vshrl.u32 %v4481, 16
      %v4647 = vrot.slane %v4645, 1
      %v4648 = vshll.u32 %v4481, 16
      %v4650 = vrot.slane %v4648, 2
      %v4651 = vor.u32 %v4647, %v4650
      %v4652 = vsel %vm4635, %v4643, %v4651
      %v4654 = vshrl.u32 %v4482, 16
      %v4656 = vrot.slane %v4654, 1
      %v4657 = vshll.u32 %v4482, 16
      %v4659 = vrot.slane %v4657, 2
      %v4660 = vor.u32 %v4656, %v4659
      %v4661 = vsel %vm4635, %v4651, %v4660
      %v4663 = vshrl.u32 %v4483, 16
      %v4665 = vrot.slane %v4663, 1
      %v4666 = vshll.u32 %v4483, 16
      %v4668 = vrot.slane %v4666, 2
      %v4669 = vor.u32 %v4665, %v4668
      %v4670 = vsel %vm4635, %v4660, %v4669
      %v4672 = vshrl.u32 %v4484, 16
      %v4674 = vrot.slane %v4672, 1
      %v4675 = vshll.u32 %v4484, 16
      %v4677 = vrot.slane %v4675, 2
      %v4678 = vor.u32 %v4674, %v4677
      %v4679 = vsel %vm4635, %v4669, %v4678
      %v4681 = vshrl.u32 %v4485, 16
      %v4683 = vrot.slane %v4681, 1
      %v4684 = vshll.u32 %v4485, 16
      %v4686 = vrot.slane %v4684, 2
      %v4687 = vor.u32 %v4683, %v4686
      %v4688 = vsel %vm4635, %v4678, %v4687
      %4689 = vrot.lane.b32.xlu0 %v4652, 48
      %v4690 = vpop.permute.xlu0 %4689
      %4691 = vrot.lane.b32.xlu0 %v4661, 48
      %v4692 = vpop.permute.xlu0 %4691
      %4693 = vrot.lane.b32.xlu0 %v4670, 48
      %v4694 = vpop.permute.xlu0 %4693
      %4695 = vrot.lane.b32.xlu0 %v4679, 48
      %v4696 = vpop.permute.xlu0 %4695
      %4697 = vrot.lane.b32.xlu0 %v4688, 48
      %v4698 = vpop.permute.xlu0 %4697
      %4699 = vrot.lane.b32.xlu0 %v4683, 48
      %v4700 = vpop.permute.xlu0 %4699
      %vm4707 = vcmask 1045504
      %v4708 = vrot.slane %v4485, 2
      %v4709 = vrot.slane %v4486, 2
      %v4710 = vsel %vm4707, %v4708, %v4709
      %v4711 = vrot.slane %v4487, 2
      %v4712 = vsel %vm4707, %v4709, %v4711
      %v4713 = vrot.slane %v4488, 2
      %v4714 = vsel %vm4707, %v4711, %v4713
      %v4715 = vrot.slane %v4489, 2
      %v4716 = vsel %vm4707, %v4713, %v4715
      %v4717 = vrot.slane %v4490, 2
      %v4718 = vsel %vm4707, %v4715, %v4717
      %4719 = vrot.lane.b32.xlu0 %v4710, 64
      %v4720 = vpop.permute.xlu0 %4719
      %4721 = vrot.lane.b32.xlu0 %v4712, 64
      %v4722 = vpop.permute.xlu0 %4721
      %4723 = vrot.lane.b32.xlu0 %v4714, 64
      %v4724 = vpop.permute.xlu0 %4723
      %4725 = vrot.lane.b32.xlu0 %v4716, 64
      %v4726 = vpop.permute.xlu0 %4725
      %4727 = vrot.lane.b32.xlu0 %v4718, 64
      %v4728 = vpop.permute.xlu0 %4727
      %4729 = vrot.lane.b32.xlu0 %v4717, 64
      %v4730 = vpop.permute.xlu0 %4729
      %vm4731 = vsmask.f32 5376
      %v4733 = vshrl.u32 %v4490, 16
      %v4735 = vrot.slane %v4733, 2
      %v4736 = vshll.u32 %v4490, 16
      %v4738 = vrot.slane %v4736, 3
      %v4739 = vor.u32 %v4735, %v4738
      %v4741 = vshrl.u32 %v4491, 16
      %v4743 = vrot.slane %v4741, 2
      %v4744 = vshll.u32 %v4491, 16
      %v4746 = vrot.slane %v4744, 3
      %v4747 = vor.u32 %v4743, %v4746
      %v4748 = vsel %vm4731, %v4739, %v4747
      %v4750 = vshrl.u32 %v4492, 16
      %v4752 = vrot.slane %v4750, 2
      %v4753 = vshll.u32 %v4492, 16
      %v4755 = vrot.slane %v4753, 3
      %v4756 = vor.u32 %v4752, %v4755
      %v4757 = vsel %vm4731, %v4747, %v4756
      %v4759 = vshrl.u32 %v4493, 16
      %v4761 = vrot.slane %v4759, 2
      %v4762 = vshll.u32 %v4493, 16
      %v4764 = vrot.slane %v4762, 3
      %v4765 = vor.u32 %v4761, %v4764
      %v4766 = vsel %vm4731, %v4756, %v4765
      %v4768 = vshrl.u32 %v4494, 16
      %v4770 = vrot.slane %v4768, 2
      %v4771 = vshll.u32 %v4494, 16
      %v4773 = vrot.slane %v4771, 3
      %v4774 = vor.u32 %v4770, %v4773
      %v4775 = vsel %vm4731, %v4765, %v4774
      %v4777 = vshrl.u32 %v4495, 16
      %v4779 = vrot.slane %v4777, 2
      %v4780 = vshll.u32 %v4495, 16
      %v4782 = vrot.slane %v4780, 3
      %v4783 = vor.u32 %v4779, %v4782
      %v4784 = vsel %vm4731, %v4774, %v4783
      %4785 = vrot.lane.b32.xlu0 %v4748, 80
      %v4786 = vpop.permute.xlu0 %4785
      %4787 = vrot.lane.b32.xlu0 %v4757, 80
      %v4788 = vpop.permute.xlu0 %4787
      %4789 = vrot.lane.b32.xlu0 %v4766, 80
      %v4790 = vpop.permute.xlu0 %4789
      %4791 = vrot.lane.b32.xlu0 %v4775, 80
      %v4792 = vpop.permute.xlu0 %4791
      %4793 = vrot.lane.b32.xlu0 %v4784, 80
      %v4794 = vpop.permute.xlu0 %4793
      %4795 = vrot.lane.b32.xlu0 %v4779, 80
      %v4796 = vpop.permute.xlu0 %4795
      %vm4803 = vcmask 1044480
      %v4804 = vrot.slane %v4495, 3
      %v4805 = vrot.slane %v4496, 3
      %v4806 = vsel %vm4803, %v4804, %v4805
      %v4807 = vrot.slane %v4497, 3
      %v4808 = vsel %vm4803, %v4805, %v4807
      %v4809 = vrot.slane %v4498, 3
      %v4810 = vsel %vm4803, %v4807, %v4809
      %v4811 = vrot.slane %v4499, 3
      %v4812 = vsel %vm4803, %v4809, %v4811
      %v4813 = vrot.slane %v4500, 3
      %v4814 = vsel %vm4803, %v4811, %v4813
      %4815 = vrot.lane.b32.xlu0 %v4806, 96
      %v4816 = vpop.permute.xlu0 %4815
      %4817 = vrot.lane.b32.xlu0 %v4808, 96
      %v4818 = vpop.permute.xlu0 %4817
      %4819 = vrot.lane.b32.xlu0 %v4810, 96
      %v4820 = vpop.permute.xlu0 %4819
      %4821 = vrot.lane.b32.xlu0 %v4812, 96
      %v4822 = vpop.permute.xlu0 %4821
      %4823 = vrot.lane.b32.xlu0 %v4814, 96
      %v4824 = vpop.permute.xlu0 %4823
      %4825 = vrot.lane.b32.xlu0 %v4813, 96
      %v4826 = vpop.permute.xlu0 %4825
      %vm4827 = vsmask.f32 4352
      %v4829 = vshrl.u32 %v4500, 16
      %v4831 = vrot.slane %v4829, 3
      %v4832 = vshll.u32 %v4500, 16
      %v4834 = vrot.slane %v4832, 4
      %v4835 = vor.u32 %v4831, %v4834
      %v4837 = vshrl.u32 %v4501, 16
      %v4839 = vrot.slane %v4837, 3
      %v4840 = vshll.u32 %v4501, 16
      %v4842 = vrot.slane %v4840, 4
      %v4843 = vor.u32 %v4839, %v4842
      %v4844 = vsel %vm4827, %v4835, %v4843
      %v4846 = vshrl.u32 %v4502, 16
      %v4848 = vrot.slane %v4846, 3
      %v4849 = vshll.u32 %v4502, 16
      %v4851 = vrot.slane %v4849, 4
      %v4852 = vor.u32 %v4848, %v4851
      %v4853 = vsel %vm4827, %v4843, %v4852
      %v4855 = vshrl.u32 %v4503, 16
      %v4857 = vrot.slane %v4855, 3
      %v4858 = vshll.u32 %v4503, 16
      %v4860 = vrot.slane %v4858, 4
      %v4861 = vor.u32 %v4857, %v4860
      %v4862 = vsel %vm4827, %v4852, %v4861
      %v4864 = vshrl.u32 %v4504, 16
      %v4866 = vrot.slane %v4864, 3
      %v4867 = vshll.u32 %v4504, 16
      %v4869 = vrot.slane %v4867, 4
      %v4870 = vor.u32 %v4866, %v4869
      %v4871 = vsel %vm4827, %v4861, %v4870
      %v4873 = vshrl.u32 %v4505, 16
      %v4875 = vrot.slane %v4873, 3
      %v4876 = vshll.u32 %v4505, 16
      %v4878 = vrot.slane %v4876, 4
      %v4879 = vor.u32 %v4875, %v4878
      %v4880 = vsel %vm4827, %v4870, %v4879
      %4881 = vrot.lane.b32.xlu0 %v4844, 112
      %v4882 = vpop.permute.xlu0 %4881
      %4883 = vrot.lane.b32.xlu0 %v4853, 112
      %v4884 = vpop.permute.xlu0 %4883
      %4885 = vrot.lane.b32.xlu0 %v4862, 112
      %v4886 = vpop.permute.xlu0 %4885
      %4887 = vrot.lane.b32.xlu0 %v4871, 112
      %v4888 = vpop.permute.xlu0 %4887
      %4889 = vrot.lane.b32.xlu0 %v4880, 112
      %v4890 = vpop.permute.xlu0 %4889
      %4891 = vrot.lane.b32.xlu0 %v4875, 112
      %v4892 = vpop.permute.xlu0 %4891
      %vm4899 = vcmask 1043456
      %v4900 = vrot.slane %v4505, 4
      %v4901 = vrot.slane %v4506, 4
      %v4902 = vsel %vm4899, %v4900, %v4901
      %v4903 = vrot.slane %v4507, 4
      %v4904 = vsel %vm4899, %v4901, %v4903
      %v4905 = vrot.slane %v4508, 4
      %v4906 = vsel %vm4899, %v4903, %v4905
      %v4907 = vrot.slane %v4509, 4
      %v4908 = vsel %vm4899, %v4905, %v4907
      %v4909 = vrot.slane %v4510, 4
      %v4910 = vsel %vm4899, %v4907, %v4909
      %vm4911 = vsmask.f32 3328
      %v4913 = vshrl.u32 %v4510, 16
      %v4915 = vrot.slane %v4913, 4
      %v4916 = vshll.u32 %v4510, 16
      %v4918 = vrot.slane %v4916, 5
      %v4919 = vor.u32 %v4915, %v4918
      %v4921 = vshrl.u32 %v4511, 16
      %v4923 = vrot.slane %v4921, 4
      %v4924 = vshll.u32 %v4511, 16
      %v4926 = vrot.slane %v4924, 5
      %v4927 = vor.u32 %v4923, %v4926
      %v4928 = vsel %vm4911, %v4919, %v4927
      %v4930 = vshrl.u32 %v4512, 16
      %v4932 = vrot.slane %v4930, 4
      %v4933 = vshll.u32 %v4512, 16
      %v4935 = vrot.slane %v4933, 5
      %v4936 = vor.u32 %v4932, %v4935
      %v4937 = vsel %vm4911, %v4927, %v4936
      %v4939 = vshrl.u32 %v4513, 16
      %v4941 = vrot.slane %v4939, 4
      %v4942 = vshll.u32 %v4513, 16
      %v4944 = vrot.slane %v4942, 5
      %v4945 = vor.u32 %v4941, %v4944
      %v4946 = vsel %vm4911, %v4936, %v4945
      %v4948 = vshrl.u32 %v4514, 16
      %v4950 = vrot.slane %v4948, 4
      %v4951 = vshll.u32 %v4514, 16
      %v4953 = vrot.slane %v4951, 5
      %v4954 = vor.u32 %v4950, %v4953
      %v4955 = vsel %vm4911, %v4945, %v4954
      %v4957 = vshrl.u32 %v4515, 16
      %v4959 = vrot.slane %v4957, 4
      %v4960 = vshll.u32 %v4515, 16
      %v4962 = vrot.slane %v4960, 5
      %v4963 = vor.u32 %v4959, %v4962
      %v4964 = vsel %vm4911, %v4954, %v4963
      %4965 = vrot.lane.b32.xlu0 %v4928, 16
      %v4966 = vpop.permute.xlu0 %4965
      %4967 = vrot.lane.b32.xlu0 %v4937, 16
      %v4968 = vpop.permute.xlu0 %4967
      %4969 = vrot.lane.b32.xlu0 %v4946, 16
      %v4970 = vpop.permute.xlu0 %4969
      %4971 = vrot.lane.b32.xlu0 %v4955, 16
      %v4972 = vpop.permute.xlu0 %4971
      %4973 = vrot.lane.b32.xlu0 %v4964, 16
      %v4974 = vpop.permute.xlu0 %4973
      %4975 = vrot.lane.b32.xlu0 %v4959, 16
      %v4976 = vpop.permute.xlu0 %4975
      %vm4983 = vcmask 1042432
      %v4984 = vrot.slane %v4515, 5
      %v4985 = vrot.slane %v4516, 5
      %v4986 = vsel %vm4983, %v4984, %v4985
      %v4987 = vrot.slane %v4517, 5
      %v4988 = vsel %vm4983, %v4985, %v4987
      %v4989 = vrot.slane %v4518, 5
      %v4990 = vsel %vm4983, %v4987, %v4989
      %v4991 = vrot.slane %v4519, 5
      %v4992 = vsel %vm4983, %v4989, %v4991
      %v4993 = vrot.slane %v4520, 5
      %v4994 = vsel %vm4983, %v4991, %v4993
      %4995 = vrot.lane.b32.xlu0 %v4986, 32
      %v4996 = vpop.permute.xlu0 %4995
      %4997 = vrot.lane.b32.xlu0 %v4988, 32
      %v4998 = vpop.permute.xlu0 %4997
      %4999 = vrot.lane.b32.xlu0 %v4990, 32
      %v5000 = vpop.permute.xlu0 %4999
      %5001 = vrot.lane.b32.xlu0 %v4992, 32
      %v5002 = vpop.permute.xlu0 %5001
      %5003 = vrot.lane.b32.xlu0 %v4994, 32
      %v5004 = vpop.permute.xlu0 %5003
      %5005 = vrot.lane.b32.xlu0 %v4993, 32
      %v5006 = vpop.permute.xlu0 %5005
      %vm5007 = vsmask.f32 2304
      %v5009 = vshrl.u32 %v4520, 16
      %v5011 = vrot.slane %v5009, 5
      %v5012 = vshll.u32 %v4520, 16
      %v5014 = vrot.slane %v5012, 6
      %v5015 = vor.u32 %v5011, %v5014
      %v5017 = vshrl.u32 %v4521, 16
      %v5019 = vrot.slane %v5017, 5
      %v5020 = vshll.u32 %v4521, 16
      %v5022 = vrot.slane %v5020, 6
      %v5023 = vor.u32 %v5019, %v5022
      %v5024 = vsel %vm5007, %v5015, %v5023
      %v5026 = vshrl.u32 %v4522, 16
      %v5028 = vrot.slane %v5026, 5
      %v5029 = vshll.u32 %v4522, 16
      %v5031 = vrot.slane %v5029, 6
      %v5032 = vor.u32 %v5028, %v5031
      %v5033 = vsel %vm5007, %v5023, %v5032
      %v5035 = vshrl.u32 %v4523, 16
      %v5037 = vrot.slane %v5035, 5
      %v5038 = vshll.u32 %v4523, 16
      %v5040 = vrot.slane %v5038, 6
      %v5041 = vor.u32 %v5037, %v5040
      %v5042 = vsel %vm5007, %v5032, %v5041
      %v5044 = vshrl.u32 %v4524, 16
      %v5046 = vrot.slane %v5044, 5
      %v5047 = vshll.u32 %v4524, 16
      %v5049 = vrot.slane %v5047, 6
      %v5050 = vor.u32 %v5046, %v5049
      %v5051 = vsel %vm5007, %v5041, %v5050
      %v5053 = vshrl.u32 %v4525, 16
      %v5055 = vrot.slane %v5053, 5
      %v5056 = vshll.u32 %v4525, 16
      %v5058 = vrot.slane %v5056, 6
      %v5059 = vor.u32 %v5055, %v5058
      %v5060 = vsel %vm5007, %v5050, %v5059
      %5061 = vrot.lane.b32.xlu0 %v5024, 48
      %v5062 = vpop.permute.xlu0 %5061
      %5063 = vrot.lane.b32.xlu0 %v5033, 48
      %v5064 = vpop.permute.xlu0 %5063
      %5065 = vrot.lane.b32.xlu0 %v5042, 48
      %v5066 = vpop.permute.xlu0 %5065
      %5067 = vrot.lane.b32.xlu0 %v5051, 48
      %v5068 = vpop.permute.xlu0 %5067
      %5069 = vrot.lane.b32.xlu0 %v5060, 48
      %v5070 = vpop.permute.xlu0 %5069
      %5071 = vrot.lane.b32.xlu0 %v5055, 48
      %v5072 = vpop.permute.xlu0 %5071
      %vm5079 = vcmask 1041408
      %v5080 = vrot.slane %v4525, 6
      %v5081 = vrot.slane %v4526, 6
      %v5082 = vsel %vm5079, %v5080, %v5081
      %v5083 = vrot.slane %v4527, 6
      %v5084 = vsel %vm5079, %v5081, %v5083
      %v5085 = vrot.slane %v4528, 6
      %v5086 = vsel %vm5079, %v5083, %v5085
      %v5087 = vrot.slane %v4529, 6
      %v5088 = vsel %vm5079, %v5085, %v5087
      %v5089 = vrot.slane %v4530, 6
      %v5090 = vsel %vm5079, %v5087, %v5089
      %5091 = vrot.lane.b32.xlu0 %v5082, 64
      %v5092 = vpop.permute.xlu0 %5091
      %5093 = vrot.lane.b32.xlu0 %v5084, 64
      %v5094 = vpop.permute.xlu0 %5093
      %5095 = vrot.lane.b32.xlu0 %v5086, 64
      %v5096 = vpop.permute.xlu0 %5095
      %5097 = vrot.lane.b32.xlu0 %v5088, 64
      %v5098 = vpop.permute.xlu0 %5097
      %5099 = vrot.lane.b32.xlu0 %v5090, 64
      %v5100 = vpop.permute.xlu0 %5099
      %5101 = vrot.lane.b32.xlu0 %v5089, 64
      %v5102 = vpop.permute.xlu0 %5101
      %vm5103 = vsmask.f32 1280
      %v5105 = vshrl.u32 %v4530, 16
      %v5107 = vrot.slane %v5105, 6
      %v5108 = vshll.u32 %v4530, 16
      %v5110 = vrot.slane %v5108, 7
      %v5111 = vor.u32 %v5107, %v5110
      %v5113 = vshrl.u32 %v4531, 16
      %v5115 = vrot.slane %v5113, 6
      %v5116 = vshll.u32 %v4531, 16
      %v5118 = vrot.slane %v5116, 7
      %v5119 = vor.u32 %v5115, %v5118
      %v5120 = vsel %vm5103, %v5111, %v5119
      %v5122 = vshrl.u32 %v4532, 16
      %v5124 = vrot.slane %v5122, 6
      %v5125 = vshll.u32 %v4532, 16
      %v5127 = vrot.slane %v5125, 7
      %v5128 = vor.u32 %v5124, %v5127
      %v5129 = vsel %vm5103, %v5119, %v5128
      %v5131 = vshrl.u32 %v4533, 16
      %v5133 = vrot.slane %v5131, 6
      %v5134 = vshll.u32 %v4533, 16
      %v5136 = vrot.slane %v5134, 7
      %v5137 = vor.u32 %v5133, %v5136
      %v5138 = vsel %vm5103, %v5128, %v5137
      %v5140 = vshrl.u32 %v4534, 16
      %v5142 = vrot.slane %v5140, 6
      %v5143 = vshll.u32 %v4534, 16
      %v5145 = vrot.slane %v5143, 7
      %v5146 = vor.u32 %v5142, %v5145
      %v5147 = vsel %vm5103, %v5137, %v5146
      %v5149 = vshrl.u32 %v4535, 16
      %v5151 = vrot.slane %v5149, 6
      %v5152 = vshll.u32 %v4535, 16
      %v5154 = vrot.slane %v5152, 7
      %v5155 = vor.u32 %v5151, %v5154
      %v5156 = vsel %vm5103, %v5146, %v5155
      %5157 = vrot.lane.b32.xlu0 %v5120, 80
      %v5158 = vpop.permute.xlu0 %5157
      %5159 = vrot.lane.b32.xlu0 %v5129, 80
      %v5160 = vpop.permute.xlu0 %5159
      %5161 = vrot.lane.b32.xlu0 %v5138, 80
      %v5162 = vpop.permute.xlu0 %5161
      %5163 = vrot.lane.b32.xlu0 %v5147, 80
      %v5164 = vpop.permute.xlu0 %5163
      %5165 = vrot.lane.b32.xlu0 %v5156, 80
      %v5166 = vpop.permute.xlu0 %5165
      %5167 = vrot.lane.b32.xlu0 %v5151, 80
      %v5168 = vpop.permute.xlu0 %5167
      %vm5175 = vcmask 1040384
      %v5176 = vrot.slane %v4535, 7
      %v5177 = vrot.slane %v4536, 7
      %v5178 = vsel %vm5175, %v5176, %v5177
      %v5179 = vrot.slane %v4537, 7
      %v5180 = vsel %vm5175, %v5177, %v5179
      %v5181 = vrot.slane %v4538, 7
      %v5182 = vsel %vm5175, %v5179, %v5181
      %v5183 = vrot.slane %v4539, 7
      %v5184 = vsel %vm5175, %v5181, %v5183
      %v5185 = vrot.slane %v4540, 7
      %v5186 = vsel %vm5175, %v5183, %v5185
      %5187 = vrot.lane.b32.xlu0 %v5178, 96
      %v5188 = vpop.permute.xlu0 %5187
      %5189 = vrot.lane.b32.xlu0 %v5180, 96
      %v5190 = vpop.permute.xlu0 %5189
      %5191 = vrot.lane.b32.xlu0 %v5182, 96
      %v5192 = vpop.permute.xlu0 %5191
      %5193 = vrot.lane.b32.xlu0 %v5184, 96
      %v5194 = vpop.permute.xlu0 %5193
      %5195 = vrot.lane.b32.xlu0 %v5186, 96
      %v5196 = vpop.permute.xlu0 %5195
      %5197 = vrot.lane.b32.xlu0 %v5185, 96
      %v5198 = vpop.permute.xlu0 %5197
      %vm5199 = vsmask.f32 256
      %v5201 = vshrl.u32 %v4540, 16
      %v5203 = vrot.slane %v5201, 7
      %v5205 = vshrl.u32 %v4541, 16
      %v5207 = vrot.slane %v5205, 7
      %v5208 = vshll.u32 %v4541, 16
      %v5210 = vor.u32 %v5207, %v5208
      %v5211 = vsel %vm5199, %v5203, %v5210
      %v5213 = vshrl.u32 %v4542, 16
      %v5215 = vrot.slane %v5213, 7
      %v5216 = vshll.u32 %v4542, 16
      %v5218 = vor.u32 %v5215, %v5216
      %v5219 = vsel %vm5199, %v5207, %v5218
      %v5221 = vshrl.u32 %v4543, 16
      %v5223 = vrot.slane %v5221, 7
      %v5224 = vshll.u32 %v4543, 16
      %v5226 = vor.u32 %v5223, %v5224
      %v5227 = vsel %vm5199, %v5215, %v5226
      %v5229 = vshrl.u32 %v4544, 16
      %v5231 = vrot.slane %v5229, 7
      %v5232 = vshll.u32 %v4544, 16
      %v5234 = vor.u32 %v5231, %v5232
      %v5235 = vsel %vm5199, %v5223, %v5234
      %v5237 = vshrl.u32 %v4545, 16
      %v5239 = vrot.slane %v5237, 7
      %v5240 = vshll.u32 %v4545, 16
      %v5242 = vor.u32 %v5239, %v5240
      %v5243 = vsel %vm5199, %v5231, %v5242
      %5244 = vrot.lane.b32.xlu0 %v5211, 112
      %v5245 = vpop.permute.xlu0 %5244
      %5246 = vrot.lane.b32.xlu0 %v5219, 112
      %v5247 = vpop.permute.xlu0 %5246
      %5248 = vrot.lane.b32.xlu0 %v5227, 112
      %v5249 = vpop.permute.xlu0 %5248
      %5250 = vrot.lane.b32.xlu0 %v5235, 112
      %v5251 = vpop.permute.xlu0 %5250
      %5252 = vrot.lane.b32.xlu0 %v5243, 112
      %v5253 = vpop.permute.xlu0 %5252
      %5254 = vrot.lane.b32.xlu0 %v5239, 112
      %v5255 = vpop.permute.xlu0 %5254
      %v5258 = vsel %vm2859, %v4465, %v4594
      %v5261 = vsel %vm2859, %v4466, %v4596
      %v5264 = vsel %vm2859, %v4467, %v4598
      %v5267 = vsel %vm2859, %v4468, %v4600
      %v5270 = vsel %vm2859, %v4469, %v4602
      %v5272 = vsel %vm2859, %v4470, %v4604
      %vm5273 = vcmask 261120
      %v5275 = vsel %vm5273, %v5258, %v4624
      %v5277 = vsel %vm5273, %v5261, %v4626
      %v5279 = vsel %vm5273, %v5264, %v4628
      %v5281 = vsel %vm5273, %v5267, %v4630
      %v5283 = vsel %vm5273, %v5270, %v4632
      %v5285 = vsel %vm5273, %v5272, %v4634
      %vm5286 = vcmask 392192
      %v5288 = vsel %vm5286, %v5275, %v4690
      %v5290 = vsel %vm5286, %v5277, %v4692
      %v5292 = vsel %vm5286, %v5279, %v4694
      %v5294 = vsel %vm5286, %v5281, %v4696
      %v5296 = vsel %vm5286, %v5283, %v4698
      %v5298 = vsel %vm5286, %v5285, %v4700
      %vm5299 = vcmask 523264
      %v5301 = vsel %vm5299, %v5288, %v4720
      %v5303 = vsel %vm5299, %v5290, %v4722
      %v5305 = vsel %vm5299, %v5292, %v4724
      %v5307 = vsel %vm5299, %v5294, %v4726
      %v5309 = vsel %vm5299, %v5296, %v4728
      %v5311 = vsel %vm5299, %v5298, %v4730
      %vm5312 = vcmask 654336
      %v5314 = vsel %vm5312, %v5301, %v4786
      %v5316 = vsel %vm5312, %v5303, %v4788
      %v5318 = vsel %vm5312, %v5305, %v4790
      %v5320 = vsel %vm5312, %v5307, %v4792
      %v5322 = vsel %vm5312, %v5309, %v4794
      %v5324 = vsel %vm5312, %v5311, %v4796
      %vm5325 = vcmask 785408
      %v5327 = vsel %vm5325, %v5314, %v4816
      %v5329 = vsel %vm5325, %v5316, %v4818
      %v5331 = vsel %vm5325, %v5318, %v4820
      %v5333 = vsel %vm5325, %v5320, %v4822
      %v5335 = vsel %vm5325, %v5322, %v4824
      %v5337 = vsel %vm5325, %v5324, %v4826
      %vm5338 = vcmask 916480
      %v5340 = vsel %vm5338, %v5327, %v4882
      %v5343 = vsel %vm5338, %v5329, %v4884
      %v5346 = vsel %vm5338, %v5331, %v4886
      %v5349 = vsel %vm5338, %v5333, %v4888
      %v5352 = vsel %vm5338, %v5335, %v4890
      %v5355 = vsel %vm5338, %v5337, %v4892
      %v5359 = vsel %vm2859, %v4902, %v4966
      %v5362 = vsel %vm2859, %v4904, %v4968
      %v5365 = vsel %vm2859, %v4906, %v4970
      %v5368 = vsel %vm2859, %v4908, %v4972
      %v5371 = vsel %vm2859, %v4910, %v4974
      %v5374 = vsel %vm2859, %v4909, %v4976
      %v5376 = vsel %vm5273, %v5359, %v4996
      %v5378 = vsel %vm5273, %v5362, %v4998
      %v5380 = vsel %vm5273, %v5365, %v5000
      %v5382 = vsel %vm5273, %v5368, %v5002
      %v5384 = vsel %vm5273, %v5371, %v5004
      %v5386 = vsel %vm5273, %v5374, %v5006
      %v5388 = vsel %vm5286, %v5376, %v5062
      %v5390 = vsel %vm5286, %v5378, %v5064
      %v5392 = vsel %vm5286, %v5380, %v5066
      %v5394 = vsel %vm5286, %v5382, %v5068
      %v5396 = vsel %vm5286, %v5384, %v5070
      %v5398 = vsel %vm5286, %v5386, %v5072
      %v5400 = vsel %vm5299, %v5388, %v5092
      %v5402 = vsel %vm5299, %v5390, %v5094
      %v5404 = vsel %vm5299, %v5392, %v5096
      %v5406 = vsel %vm5299, %v5394, %v5098
      %v5408 = vsel %vm5299, %v5396, %v5100
      %v5410 = vsel %vm5299, %v5398, %v5102
      %v5412 = vsel %vm5312, %v5400, %v5158
      %v5414 = vsel %vm5312, %v5402, %v5160
      %v5416 = vsel %vm5312, %v5404, %v5162
      %v5418 = vsel %vm5312, %v5406, %v5164
      %v5420 = vsel %vm5312, %v5408, %v5166
      %v5422 = vsel %vm5312, %v5410, %v5168
      %v5424 = vsel %vm5325, %v5412, %v5188
      %v5426 = vsel %vm5325, %v5414, %v5190
      %v5428 = vsel %vm5325, %v5416, %v5192
      %v5430 = vsel %vm5325, %v5418, %v5194
      %v5432 = vsel %vm5325, %v5420, %v5196
      %v5434 = vsel %vm5325, %v5422, %v5198
      %v5436 = vsel %vm5338, %v5424, %v5245
      %v5439 = vsel %vm5338, %v5426, %v5247
      %v5442 = vsel %vm5338, %v5428, %v5249
      %v5445 = vsel %vm5338, %v5430, %v5251
      %v5448 = vsel %vm5338, %v5432, %v5253
      %v5451 = vsel %vm5338, %v5434, %v5255
      %v5453 = vld [vmem:[%s4] sm:$0xf]
      %v5454 = vld [vmem:[%s4 + $0x4] sm:$0xf]
      %v5455 = vld [vmem:[%s4 + $0x8] sm:$0xf]
      %v5456 = vld [vmem:[%s4 + $0xc] sm:$0xf]
      %v5457 = vld [vmem:[%s4 + $0x10] sm:$0xf]
      %v5458 = vld [vmem:[%s4 + $0x14] sm:$0xf]
      %v5459 = vld [vmem:[%s4 + $0x18] sm:$0xf]
      %v5460 = vld [vmem:[%s4 + $0x1c] sm:$0xf]
      %v5461 = vld [vmem:[%s4 + $0x20] sm:$0xf]
      %v5462 = vld [vmem:[%s4 + $0x24] sm:$0xf]
      %v5463 = vld [vmem:[%s4 + $0x28] sm:$0xf]
      %v5464 = vld [vmem:[%s4 + $0x2c] sm:$0xf]
      %v5465 = vld [vmem:[%s4 + $0x30] sm:$0xf]
      %v5466 = vld [vmem:[%s4 + $0x34] sm:$0xf]
      %v5467 = vld [vmem:[%s4 + $0x38] sm:$0xf]
      %v5468 = vld [vmem:[%s4 + $0x3c] sm:$0xf]
      %v5469 = vld [vmem:[%s4 + $0x40] sm:$0xf]
      %v5470 = vld [vmem:[%s4 + $0x44] sm:$0xf]
      %v5471 = vld [vmem:[%s4 + $0x48] sm:$0xf]
      %v5472 = vld [vmem:[%s4 + $0x4c] sm:$0xf]
      %v5473 = vld [vmem:[%s4 + $0x50] sm:$0xf]
      %v5474 = vld [vmem:[%s4 + $0x54] sm:$0xf]
      %v5475 = vld [vmem:[%s4 + $0x58] sm:$0xf]
      %v5476 = vld [vmem:[%s4 + $0x5c] sm:$0xf]
      %v5477 = vld [vmem:[%s4 + $0x60] sm:$0xf]
      %v5478 = vld [vmem:[%s4 + $0x64] sm:$0xf]
      %v5479 = vld [vmem:[%s4 + $0x68] sm:$0xf]
      %v5480 = vld [vmem:[%s4 + $0x6c] sm:$0xf]
      %v5481 = vld [vmem:[%s4 + $0x70] sm:$0xf]
      %v5482 = vld [vmem:[%s4 + $0x74] sm:$0xf]
      %v5483 = vld [vmem:[%s4 + $0x78] sm:$0xf]
      %v5484 = vld [vmem:[%s4 + $0x7c] sm:$0xf]
      %v5485 = vld [vmem:[%s5] sm:$0x1]
      %v5487 = vlaneseq
      %v5488 = vshrl.u32 %v5487, 7
      %v5489 = vsub.s32 0, %v5488
      %v5490 = vrot.slane %v5485, %v5489
      %v5524 = vunpack.c.l.b16 %v5453
      %v5525 = vunpack.c.l.b16 %v5454
      %v5526 = vunpack.c.l.b16 %v5455
      %v5527 = vunpack.c.l.b16 %v5456
      %v5528 = vunpack.c.l.b16 %v5457
      %v5529 = vunpack.c.l.b16 %v5458
      %v5530 = vunpack.c.l.b16 %v5459
      %v5531 = vunpack.c.l.b16 %v5460
      %v5532 = vunpack.c.l.b16 %v5461
      %v5533 = vunpack.c.l.b16 %v5462
      %v5534 = vunpack.c.l.b16 %v5463
      %v5535 = vunpack.c.l.b16 %v5464
      %v5536 = vunpack.c.l.b16 %v5465
      %v5537 = vunpack.c.l.b16 %v5466
      %v5538 = vunpack.c.l.b16 %v5467
      %v5539 = vunpack.c.l.b16 %v5468
      %v5540 = vunpack.c.l.b16 %v5469
      %v5541 = vunpack.c.l.b16 %v5470
      %v5542 = vunpack.c.l.b16 %v5471
      %v5543 = vunpack.c.l.b16 %v5472
      %v5544 = vunpack.c.l.b16 %v5473
      %v5545 = vunpack.c.l.b16 %v5474
      %v5546 = vunpack.c.l.b16 %v5475
      %v5547 = vunpack.c.l.b16 %v5476
      %v5548 = vunpack.c.l.b16 %v5477
      %v5549 = vunpack.c.l.b16 %v5478
      %v5550 = vunpack.c.l.b16 %v5479
      %v5551 = vunpack.c.l.b16 %v5480
      %v5552 = vunpack.c.l.b16 %v5481
      %v5553 = vunpack.c.l.b16 %v5482
      %v5554 = vunpack.c.l.b16 %v5483
      %v5555 = vunpack.c.l.b16 %v5484
      %v5556 = vpack.c.b16 %v5525, %v5524
      %v5557 = vpack.c.b16 %v5527, %v5526
      %v5558 = vpack.c.b16 %v5529, %v5528
      %v5559 = vpack.c.b16 %v5531, %v5530
      %v5560 = vpack.c.b16 %v5533, %v5532
      %v5561 = vpack.c.b16 %v5535, %v5534
      %v5562 = vpack.c.b16 %v5537, %v5536
      %v5563 = vpack.c.b16 %v5539, %v5538
      %v5564 = vpack.c.b16 %v5541, %v5540
      %v5565 = vpack.c.b16 %v5543, %v5542
      %v5566 = vpack.c.b16 %v5545, %v5544
      %v5567 = vpack.c.b16 %v5547, %v5546
      %v5568 = vpack.c.b16 %v5549, %v5548
      %v5569 = vpack.c.b16 %v5551, %v5550
      %v5570 = vpack.c.b16 %v5553, %v5552
      %v5571 = vpack.c.b16 %v5555, %v5554
      %5588 = vmatprep.subr.bf16.mxu0 0
      %5589 = vmatpush1.bf16.msra.mxu0 %v5556
      %5590 = vmatprep.subr.bf16.mxu0 0
      %5591 = vmatpush1.bf16.msra.mxu0 %v5557
      %5592 = vmatprep.subr.bf16.mxu0 0
      %5593 = vmatpush1.bf16.msra.mxu0 %v5558
      %5594 = vmatprep.subr.bf16.mxu0 0
      %5595 = vmatpush1.bf16.msra.mxu0 %v5559
      %5596 = vmatprep.subr.bf16.mxu0 0
      %5597 = vmatpush1.bf16.msra.mxu0 %v5560
      %5598 = vmatprep.subr.bf16.mxu0 0
      %5599 = vmatpush1.bf16.msra.mxu0 %v5561
      %5600 = vmatprep.subr.bf16.mxu0 0
      %5601 = vmatpush1.bf16.msra.mxu0 %v5562
      %5602 = vmatprep.subr.bf16.mxu0 0
      %5603 = vmatpush1.bf16.msra.mxu0 %v5563
      %5604 = vmatprep.subr.bf16.mxu0 0
      %5605 = vmatpush1.bf16.msra.mxu0 %v5564
      %5606 = vmatprep.subr.bf16.mxu0 0
      %5607 = vmatpush1.bf16.msra.mxu0 %v5565
      %5608 = vmatprep.subr.bf16.mxu0 0
      %5609 = vmatpush1.bf16.msra.mxu0 %v5566
      %5610 = vmatprep.subr.bf16.mxu0 0
      %5611 = vmatpush1.bf16.msra.mxu0 %v5567
      %5612 = vmatprep.subr.bf16.mxu0 0
      %5613 = vmatpush1.bf16.msra.mxu0 %v5568
      %5614 = vmatprep.subr.bf16.mxu0 0
      %5615 = vmatpush1.bf16.msra.mxu0 %v5569
      %5616 = vmatprep.subr.bf16.mxu0 0
      %5617 = vmatpush1.bf16.msra.mxu0 %v5570
      %5618 = vmatprep.subr.bf16.mxu0 0
      %5619 = vmatpush1.bf16.msra.mxu0 %v5571
      %5620 = vmatprep.mubr.bf16.mxu0 %v5436
      %5621 = vmatmul.mubr.bf16.gmra.mrb[0].mxu0 %v5340
      %v5622 = vpop.f32.mrb[0].mxu0
      %v5623 = vadd.f32 %v5490, %v5622
      %v5624 = vpop.f32.mrb[0].mxu0
      %v5625 = vpop.f32.mrb[0].mxu0
      %v5626 = vadd.f32 %v5490, %v5625
      %v5627 = vpop.f32.mrb[0].mxu0
      %5628 = vmatprep.mubr.bf16.mxu0 %v5439
      %5629 = vmatmul.mubr.bf16.gmra.mrb[0].mxu0 %v5343
      %v5630 = vpop.f32.mrb[0].mxu0
      %v5631 = vadd.f32 %v5490, %v5630
      %v5632 = vpop.f32.mrb[0].mxu0
      %v5633 = vpop.f32.mrb[0].mxu0
      %v5634 = vadd.f32 %v5490, %v5633
      %v5635 = vpop.f32.mrb[0].mxu0
      %5636 = vmatprep.mubr.bf16.mxu0 %v5442
      %5637 = vmatmul.mubr.bf16.gmra.mrb[0].mxu0 %v5346
      %v5638 = vpop.f32.mrb[0].mxu0
      %v5639 = vadd.f32 %v5490, %v5638
      %v5640 = vpop.f32.mrb[0].mxu0
      %v5641 = vpop.f32.mrb[0].mxu0
      %v5642 = vadd.f32 %v5490, %v5641
      %v5643 = vpop.f32.mrb[0].mxu0
      %5644 = vmatprep.mubr.bf16.mxu0 %v5445
      %5645 = vmatmul.mubr.bf16.gmra.mrb[0].mxu0 %v5349
      %v5646 = vpop.f32.mrb[0].mxu0
      %v5647 = vadd.f32 %v5490, %v5646
      %v5648 = vpop.f32.mrb[0].mxu0
      %v5649 = vpop.f32.mrb[0].mxu0
      %v5650 = vadd.f32 %v5490, %v5649
      %v5651 = vpop.f32.mrb[0].mxu0
      %5652 = vmatprep.mubr.bf16.mxu0 %v5448
      %5653 = vmatmul.mubr.bf16.gmra.mrb[0].mxu0 %v5352
      %v5654 = vpop.f32.mrb[0].mxu0
      %v5655 = vadd.f32 %v5490, %v5654
      %v5656 = vpop.f32.mrb[0].mxu0
      %v5657 = vpop.f32.mrb[0].mxu0
      %v5658 = vadd.f32 %v5490, %v5657
      %v5659 = vpop.f32.mrb[0].mxu0
      %5660 = vmatprep.mubr.bf16.mxu0 %v5451
      %5661 = vmatmul.mubr.bf16.gmra.mrb[0].mxu0 %v5355
      %v5662 = vpop.f32.mrb[0].mxu0
      %v5663 = vadd.f32 %v5490, %v5662
      %v5664 = vpop.f32.mrb[0].mxu0
      %v5665 = vpop.f32.mrb[0].mxu0
      %v5666 = vpop.f32.mrb[0].mxu0
      %5667 = vdwg.mxu0
      %v5668 = vmax.f32 %v5623, 0.0
      %v5669 = vmax.f32 %v5626, 0.0
      %v5670 = vmax.f32 %v5631, 0.0
      %v5671 = vmax.f32 %v5634, 0.0
      %v5672 = vmax.f32 %v5639, 0.0
      %v5673 = vmax.f32 %v5642, 0.0
      %v5674 = vmax.f32 %v5647, 0.0
      %v5675 = vmax.f32 %v5650, 0.0
      %v5676 = vmax.f32 %v5655, 0.0
      %v5677 = vmax.f32 %v5658, 0.0
      %v5678 = vmax.f32 %v5663, 0.0
      %v5679 = vpack.c.bf16 %v5669, %v5668
      %v5680 = vpack.c.bf16 %v5671, %v5670
      %v5681 = vpack.c.bf16 %v5673, %v5672
      %v5682 = vpack.c.bf16 %v5675, %v5674
      %v5683 = vpack.c.bf16 %v5677, %v5676
      %v5684 = vpack.c.bf16 %v5678, %v5678
      %v5691 = vunpack.c.l.b16 %v5679
      %v5692 = vunpack.c.h.b16 %v5679
      %v5693 = vunpack.c.l.b16 %v5680
      %v5694 = vunpack.c.h.b16 %v5680
      %v5695 = vunpack.c.l.b16 %v5681
      %v5696 = vunpack.c.h.b16 %v5681
      %v5697 = vunpack.c.l.b16 %v5682
      %v5698 = vunpack.c.h.b16 %v5682
      %v5699 = vunpack.c.l.b16 %v5683
      %v5700 = vunpack.c.h.b16 %v5683
      %v5701 = vunpack.c.l.b16 %v5684
      %v5702 = vpack.c.b16 %v5691, %v5691
      %v5703 = vpack.c.b16 %v5692, %v5692
      %v5704 = vpack.c.b16 %v5693, %v5693
      %v5705 = vpack.c.b16 %v5694, %v5694
      %v5706 = vpack.c.b16 %v5695, %v5695
      %v5707 = vpack.c.b16 %v5696, %v5696
      %v5708 = vpack.c.b16 %v5697, %v5697
      %v5709 = vpack.c.b16 %v5698, %v5698
      %v5710 = vpack.c.b16 %v5699, %v5699
      %v5711 = vpack.c.b16 %v5700, %v5700
      %v5712 = vpack.c.b16 %v5701, %v5701
      %vm5724 = vcmask 257024
      %5725 = vst.msk [vmem:[%s251] sm:$0xf] %vm5724, %v5702
      %5726 = vst.msk [vmem:[%s251 + $0x4] sm:$0xf] %vm5724, %v5703
      %5727 = vst.msk [vmem:[%s251 + $0x8] sm:$0xf] %vm5724, %v5704
      %5728 = vst.msk [vmem:[%s251 + $0xc] sm:$0xf] %vm5724, %v5705
      %5729 = vst.msk [vmem:[%s251 + $0x10] sm:$0xf] %vm5724, %v5706
      %5730 = vst.msk [vmem:[%s251 + $0x14] sm:$0xf] %vm5724, %v5707
      %5731 = vst.msk [vmem:[%s251 + $0x18] sm:$0xf] %vm5724, %v5708
      %5732 = vst.msk [vmem:[%s251 + $0x1c] sm:$0xf] %vm5724, %v5709
      %5733 = vst.msk [vmem:[%s251 + $0x20] sm:$0xf] %vm5724, %v5710
      %5734 = vst.msk [vmem:[%s251 + $0x24] sm:$0xf] %vm5724, %v5711
      %vm5735 = vcmask 253952
      %vm5736 = vmand %vm5735, %vm5199
      %v5737 = vld [vmem:[%s251 + $0x28] sm:$0x1]
      %v5738 = vsel %vm5736, %v5712, %v5737
      %5739 = vst [vmem:[%s251 + $0x28] sm:$0x1] %v5738
      %p5740 = scmp.lt.s32.totalorder %s17, 1
      %s5741 = scalar_select %p5740, %s17, 1
      %s5742 = smul.addr %s5741, 11
      %s5743 = smul.addr %s5742, 4
      %s5744 = scalar_lea.vmem %s6, %s5743
      // Predicated region
      $region45: #{dqn_forward.2} parent=43 // pred_check
        %p5745 = pneg %p166
      $region46: #{dqn_forward.2} parent=43 // pred_check_branch
        %5747 = sbr.rel (%p5745) target = $region48
      $region47: #{dqn_forward.2} parent=43 // pred_region
        _
      $region48: #{dqn_forward.2} parent=43 // pred_fallthru
        _
    $region44: #{dqn_forward.2} parent=5 // pred_fallthru
      _
    %p5748 = scmp.le.s32.totalorder 2, %s12
    // Predicated region
    $region49: #{dqn_forward.2} parent=5 // pred_check
      %p5749 = pneg %p5748
    $region50: #{dqn_forward.2} parent=5 // pred_check_branch
      %5751 = sbr.rel (%p5749) target = $region52
    $region51: #{dqn_forward.2} parent=5 // pred_region
      %s5752 = ssub.s32 %s12, 2
      // Predicated region
      $region53: #{dqn_forward.2} parent=51 // pred_check
        %p5753 = pneg %p172
      $region54: #{dqn_forward.2} parent=51 // pred_check_branch
        %5755 = sbr.rel (%p5753) target = $region56
      $region55: #{dqn_forward.2} parent=51 // pred_region
        %p5756 = scmp.lt.s32.totalorder %s18, 1
        %s5757 = scalar_select %p5756, %s18, 1
        %s5758 = smul.addr %s5757, 11
        %s5759 = smul.addr %s5758, 4
        %s5760 = scalar_lea.vmem %s6, %s5759
      $region56: #{dqn_forward.2} parent=51 // pred_fallthru
        _
    $region52: #{dqn_forward.2} parent=5 // pred_fallthru
      _
  $region6: #{dqn_forward.2} parent=0 // loop_footer
    %s16 = sadd.s32 1, %s12
  $region7: #{dqn_forward.2} parent=0 // loop_footer_branch
    %11 = sbr.rel target = $region3
  $region8: #{dqn_forward.2} parent=0 // loop_exit
    _

// kernel: dqn_forward.3
$region0: #{dqn_forward.3}
  #allocation0 [shape = 'u32[]', space=smem, size = 0x4, offset = 0x4, fixed_abs, tag = 'smem constant byte address 0x4 - core index']
  #allocation1 [shape = 'u32[144,128]{1,0:T(1,128)}', space=vmem, size = 0x12000, scoped, tag = 'internal scratch']
  %s0 = inlined_call_operand.vmem [shape: bf16[2,2592], index: 0, kind: input, shape index: {}]
  %s1 = inlined_call_operand.vmem [shape: bf16[2592,256], index: 1, kind: input, shape index: {}]
  %s2 = inlined_call_operand.vmem [shape: f32[1,256], index: 2, kind: input, shape index: {}]
  %s3 = inlined_call_operand.vmem [shape: bf16[256,128], index: 3, kind: input, shape index: {}]
  %s4 = inlined_call_operand.vmem [shape: f32[1,128], index: 4, kind: input, shape index: {}]
  %s5 = inlined_call_operand.hbm [shape: f32[2,128], index: 5, kind: output, shape index: {}]
  %s6 = sld [smem:[#allocation0]]
  $region30: #{dqn_forward.3} parent=0
    _
  %s8 = ssub.s32 1, %s6
  %s9 = scalar_select 0, %s8, %s6
  $region1: #{dqn_forward.3} parent=0
    #allocation2 [shape = 'u8[1024]{0}', space=vmem, size = 0x400, scoped, tag = 'output window, operand 0, single buffered']
    #allocation3 [shape = 's32[1]{0}', space=sflag, size = 0x4, scoped, tag = 'scoped memory for dqn_forward.3']
    %10 = vsyncpa [#allocation3], 0
    // Predicated region
    $region2: #{dqn_forward.3} parent=1 // pred_check
      _
    $region3: #{dqn_forward.3} parent=1 // pred_check_branch
      %12 = sbr.rel (0) target = $region5
    $region4: #{dqn_forward.3} parent=1 // pred_region
      _
    $region5: #{dqn_forward.3} parent=1 // pred_fallthru
      _
    // Predicated region
    $region6: #{dqn_forward.3} parent=1 // pred_check
      _
    $region7: #{dqn_forward.3} parent=1 // pred_check_branch
      %14 = sbr.rel (0) target = $region9
    $region8: #{dqn_forward.3} parent=1 // pred_region
      _
    $region9: #{dqn_forward.3} parent=1 // pred_fallthru
      _
    // Predicated region
    $region10: #{dqn_forward.3} parent=1 // pred_check
      _
    $region11: #{dqn_forward.3} parent=1 // pred_check_branch
      %16 = sbr.rel (0) target = $region13
    $region12: #{dqn_forward.3} parent=1 // pred_region
      _
    $region13: #{dqn_forward.3} parent=1 // pred_fallthru
      _
    // Predicated region
    $region14: #{dqn_forward.3} parent=1 // pred_check
      _
    $region15: #{dqn_forward.3} parent=1 // pred_check_branch
      %18 = sbr.rel (0) target = $region17
    $region16: #{dqn_forward.3} parent=1 // pred_region
      _
    $region17: #{dqn_forward.3} parent=1 // pred_fallthru
      _
    // Predicated region
    $region18: #{dqn_forward.3} parent=1 // pred_check
      _
    $region19: #{dqn_forward.3} parent=1 // pred_check_branch
      %20 = sbr.rel (0) target = $region21
    $region20: #{dqn_forward.3} parent=1 // pred_region
      _
    $region21: #{dqn_forward.3} parent=1 // pred_fallthru
      _
    %v22 = vld [vmem:[%s0] sm:$0xff]
    %v23 = vld [vmem:[%s0 + $0x8] sm:$0xff]
    %v24 = vld [vmem:[%s0 + $0x10] sm:$0x1f]
    %v25 = vld [vmem:[%s1] sm:$0xff]
    %v26 = vld [vmem:[%s1 + $0x8] sm:$0xff]
    %v27 = vld [vmem:[%s1 + $0x10] sm:$0xff]
    %v28 = vld [vmem:[%s1 + $0x18] sm:$0xff]
    %v29 = vld [vmem:[%s1 + $0x20] sm:$0xff]
    %v30 = vld [vmem:[%s1 + $0x28] sm:$0xff]
    %v31 = vld [vmem:[%s1 + $0x30] sm:$0xff]
    %v32 = vld [vmem:[%s1 + $0x38] sm:$0xff]
    %v33 = vld [vmem:[%s1 + $0x40] sm:$0xff]
    %v34 = vld [vmem:[%s1 + $0x48] sm:$0xff]
    %v35 = vld [vmem:[%s1 + $0x50] sm:$0xff]
    %v36 = vld [vmem:[%s1 + $0x58] sm:$0xff]
    %v37 = vld [vmem:[%s1 + $0x60] sm:$0xff]
    %v38 = vld [vmem:[%s1 + $0x68] sm:$0xff]
    %v39 = vld [vmem:[%s1 + $0x70] sm:$0xff]
    %v40 = vld [vmem:[%s1 + $0x78] sm:$0xff]
    %v41 = vld [vmem:[%s1 + $0x80] sm:$0xff]
    %v42 = vld [vmem:[%s1 + $0x88] sm:$0xff]
    %v43 = vld [vmem:[%s1 + $0x90] sm:$0xff]
    %v44 = vld [vmem:[%s1 + $0x98] sm:$0xff]
    %v45 = vld [vmem:[%s1 + $0xa0] sm:$0xff]
    %v46 = vld [vmem:[%s1 + $0xa8] sm:$0xff]
    %v47 = vld [vmem:[%s1 + $0xb0] sm:$0xff]
    %v48 = vld [vmem:[%s1 + $0xb8] sm:$0xff]
    %v49 = vld [vmem:[%s1 + $0xc0] sm:$0xff]
    %v50 = vld [vmem:[%s1 + $0xc8] sm:$0xff]
    %v51 = vld [vmem:[%s1 + $0xd0] sm:$0xff]
    %v52 = vld [vmem:[%s1 + $0xd8] sm:$0xff]
    %v53 = vld [vmem:[%s1 + $0xe0] sm:$0xff]
    %v54 = vld [vmem:[%s1 + $0xe8] sm:$0xff]
    %v55 = vld [vmem:[%s1 + $0xf0] sm:$0xff]
    %v56 = vld [vmem:[%s1 + $0xf8] sm:$0xff]
    %v57 = vld [vmem:[%s1 + $0x100] sm:$0xff]
    %v58 = vld [vmem:[%s1 + $0x108] sm:$0xff]
    %v59 = vld [vmem:[%s1 + $0x110] sm:$0xff]
    %v60 = vld [vmem:[%s1 + $0x118] sm:$0xff]
    %v61 = vld [vmem:[%s1 + $0x120] sm:$0xff]
    %v62 = vld [vmem:[%s1 + $0x128] sm:$0xff]
    %v63 = vld [vmem:[%s1 + $0x130] sm:$0xff]
    %v64 = vld [vmem:[%s1 + $0x138] sm:$0xff]
    %v65 = vld [vmem:[%s1 + $0x140] sm:$0xff]
    %v66 = vld [vmem:[%s1 + $0x148] sm:$0xff]
    %v67 = vld [vmem:[%s1 + $0x150] sm:$0xff]
    %v68 = vld [vmem:[%s1 + $0x158] sm:$0xff]
    %v69 = vld [vmem:[%s1 + $0x160] sm:$0xff]
    %v70 = vld [vmem:[%s1 + $0x168] sm:$0xff]
    %v71 = vld [vmem:[%s1 + $0x170] sm:$0xff]
    %v72 = vld [vmem:[%s1 + $0x178] sm:$0xff]
    %v73 = vld [vmem:[%s1 + $0x180] sm:$0xff]
    %v74 = vld [vmem:[%s1 + $0x188] sm:$0xff]
    %v75 = vld [vmem:[%s1 + $0x190] sm:$0xff]
    %v76 = vld [vmem:[%s1 + $0x198] sm:$0xff]
    %v77 = vld [vmem:[%s1 + $0x1a0] sm:$0xff]
    %v78 = vld [vmem:[%s1 + $0x1a8] sm:$0xff]
    %v79 = vld [vmem:[%s1 + $0x1b0] sm:$0xff]
    %v80 = vld [vmem:[%s1 + $0x1b8] sm:$0xff]
    %v81 = vld [vmem:[%s1 + $0x1c0] sm:$0xff]
    %v82 = vld [vmem:[%s1 + $0x1c8] sm:$0xff]
    %v83 = vld [vmem:[%s1 + $0x1d0] sm:$0xff]
    %v84 = vld [vmem:[%s1 + $0x1d8] sm:$0xff]
    %v85 = vld [vmem:[%s1 + $0x1e0] sm:$0xff]
    %v86 = vld [vmem:[%s1 + $0x1e8] sm:$0xff]
    %v87 = vld [vmem:[%s1 + $0x1f0] sm:$0xff]
    %v88 = vld [vmem:[%s1 + $0x1f8] sm:$0xff]
    %v89 = vld [vmem:[%s1 + $0x200] sm:$0xff]
    %v90 = vld [vmem:[%s1 + $0x208] sm:$0xff]
    %v91 = vld [vmem:[%s1 + $0x210] sm:$0xff]
    %v92 = vld [vmem:[%s1 + $0x218] sm:$0xff]
    %v93 = vld [vmem:[%s1 + $0x220] sm:$0xff]
    %v94 = vld [vmem:[%s1 + $0x228] sm:$0xff]
    %v95 = vld [vmem:[%s1 + $0x230] sm:$0xff]
    %v96 = vld [vmem:[%s1 + $0x238] sm:$0xff]
    %v97 = vld [vmem:[%s1 + $0x240] sm:$0xff]
    %v98 = vld [vmem:[%s1 + $0x248] sm:$0xff]
    %v99 = vld [vmem:[%s1 + $0x250] sm:$0xff]
    %v100 = vld [vmem:[%s1 + $0x258] sm:$0xff]
    %v101 = vld [vmem:[%s1 + $0x260] sm:$0xff]
    %v102 = vld [vmem:[%s1 + $0x268] sm:$0xff]
    %v103 = vld [vmem:[%s1 + $0x270] sm:$0xff]
    %v104 = vld [vmem:[%s1 + $0x278] sm:$0xff]
    %v105 = vld [vmem:[%s1 + $0x280] sm:$0xff]
    %v106 = vld [vmem:[%s1 + $0x288] sm:$0xff]
    %v107 = vld [vmem:[%s1 + $0x290] sm:$0xff]
    %v108 = vld [vmem:[%s1 + $0x298] sm:$0xff]
    %v109 = vld [vmem:[%s1 + $0x2a0] sm:$0xff]
    %v110 = vld [vmem:[%s1 + $0x2a8] sm:$0xff]
    %v111 = vld [vmem:[%s1 + $0x2b0] sm:$0xff]
    %v112 = vld [vmem:[%s1 + $0x2b8] sm:$0xff]
    %v113 = vld [vmem:[%s1 + $0x2c0] sm:$0xff]
    %v114 = vld [vmem:[%s1 + $0x2c8] sm:$0xff]
    %v115 = vld [vmem:[%s1 + $0x2d0] sm:$0xff]
    %v116 = vld [vmem:[%s1 + $0x2d8] sm:$0xff]
    %v117 = vld [vmem:[%s1 + $0x2e0] sm:$0xff]
    %v118 = vld [vmem:[%s1 + $0x2e8] sm:$0xff]
    %v119 = vld [vmem:[%s1 + $0x2f0] sm:$0xff]
    %v120 = vld [vmem:[%s1 + $0x2f8] sm:$0xff]
    %v121 = vld [vmem:[%s1 + $0x300] sm:$0xff]
    %v122 = vld [vmem:[%s1 + $0x308] sm:$0xff]
    %v123 = vld [vmem:[%s1 + $0x310] sm:$0xff]
    %v124 = vld [vmem:[%s1 + $0x318] sm:$0xff]
    %v125 = vld [vmem:[%s1 + $0x320] sm:$0xff]
    %v126 = vld [vmem:[%s1 + $0x328] sm:$0xff]
    %v127 = vld [vmem:[%s1 + $0x330] sm:$0xff]
    %v128 = vld [vmem:[%s1 + $0x338] sm:$0xff]
    %v129 = vld [vmem:[%s1 + $0x340] sm:$0xff]
    %v130 = vld [vmem:[%s1 + $0x348] sm:$0xff]
    %v131 = vld [vmem:[%s1 + $0x350] sm:$0xff]
    %v132 = vld [vmem:[%s1 + $0x358] sm:$0xff]
    %v133 = vld [vmem:[%s1 + $0x360] sm:$0xff]
    %v134 = vld [vmem:[%s1 + $0x368] sm:$0xff]
    %v135 = vld [vmem:[%s1 + $0x370] sm:$0xff]
    %v136 = vld [vmem:[%s1 + $0x378] sm:$0xff]
    %v137 = vld [vmem:[%s1 + $0x380] sm:$0xff]
    %v138 = vld [vmem:[%s1 + $0x388] sm:$0xff]
    %v139 = vld [vmem:[%s1 + $0x390] sm:$0xff]
    %v140 = vld [vmem:[%s1 + $0x398] sm:$0xff]
    %v141 = vld [vmem:[%s1 + $0x3a0] sm:$0xff]
    %v142 = vld [vmem:[%s1 + $0x3a8] sm:$0xff]
    %v143 = vld [vmem:[%s1 + $0x3b0] sm:$0xff]
    %v144 = vld [vmem:[%s1 + $0x3b8] sm:$0xff]
    %v145 = vld [vmem:[%s1 + $0x3c0] sm:$0xff]
    %v146 = vld [vmem:[%s1 + $0x3c8] sm:$0xff]
    %v147 = vld [vmem:[%s1 + $0x3d0] sm:$0xff]
    %v148 = vld [vmem:[%s1 + $0x3d8] sm:$0xff]
    %v149 = vld [vmem:[%s1 + $0x3e0] sm:$0xff]
    %v150 = vld [vmem:[%s1 + $0x3e8] sm:$0xff]
    %v151 = vld [vmem:[%s1 + $0x3f0] sm:$0xff]
    %v152 = vld [vmem:[%s1 + $0x3f8] sm:$0xff]
    %v153 = vld [vmem:[%s1 + $0x400] sm:$0xff]
    %v154 = vld [vmem:[%s1 + $0x408] sm:$0xff]
    %v155 = vld [vmem:[%s1 + $0x410] sm:$0xff]
    %v156 = vld [vmem:[%s1 + $0x418] sm:$0xff]
    %v157 = vld [vmem:[%s1 + $0x420] sm:$0xff]
    %v158 = vld [vmem:[%s1 + $0x428] sm:$0xff]
    %v159 = vld [vmem:[%s1 + $0x430] sm:$0xff]
    %v160 = vld [vmem:[%s1 + $0x438] sm:$0xff]
    %v161 = vld [vmem:[%s1 + $0x440] sm:$0xff]
    %v162 = vld [vmem:[%s1 + $0x448] sm:$0xff]
    %v163 = vld [vmem:[%s1 + $0x450] sm:$0xff]
    %v164 = vld [vmem:[%s1 + $0x458] sm:$0xff]
    %v165 = vld [vmem:[%s1 + $0x460] sm:$0xff]
    %v166 = vld [vmem:[%s1 + $0x468] sm:$0xff]
    %v167 = vld [vmem:[%s1 + $0x470] sm:$0xff]
    %v168 = vld [vmem:[%s1 + $0x478] sm:$0xff]
    %v169 = vld [vmem:[%s1 + $0x480] sm:$0xff]
    %v170 = vld [vmem:[%s1 + $0x488] sm:$0xff]
    %v171 = vld [vmem:[%s1 + $0x490] sm:$0xff]
    %v172 = vld [vmem:[%s1 + $0x498] sm:$0xff]
    %v173 = vld [vmem:[%s1 + $0x4a0] sm:$0xff]
    %v174 = vld [vmem:[%s1 + $0x4a8] sm:$0xff]
    %v175 = vld [vmem:[%s1 + $0x4b0] sm:$0xff]
    %v176 = vld [vmem:[%s1 + $0x4b8] sm:$0xff]
    %v177 = vld [vmem:[%s1 + $0x4c0] sm:$0xff]
    %v178 = vld [vmem:[%s1 + $0x4c8] sm:$0xff]
    %v179 = vld [vmem:[%s1 + $0x4d0] sm:$0xff]
    %v180 = vld [vmem:[%s1 + $0x4d8] sm:$0xff]
    %v181 = vld [vmem:[%s1 + $0x4e0] sm:$0xff]
    %v182 = vld [vmem:[%s1 + $0x4e8] sm:$0xff]
    %v183 = vld [vmem:[%s1 + $0x4f0] sm:$0xff]
    %v184 = vld [vmem:[%s1 + $0x4f8] sm:$0xff]
    %v185 = vld [vmem:[%s1 + $0x500] sm:$0xff]
    %v186 = vld [vmem:[%s1 + $0x508] sm:$0xff]
    %v187 = vld [vmem:[%s1 + $0x510] sm:$0xff]
    %v188 = vld [vmem:[%s1 + $0x518] sm:$0xff]
    %v189 = vld [vmem:[%s1 + $0x520] sm:$0xff]
    %v190 = vld [vmem:[%s1 + $0x528] sm:$0xff]
    %v191 = vld [vmem:[%s1 + $0x530] sm:$0xff]
    %v192 = vld [vmem:[%s1 + $0x538] sm:$0xff]
    %v193 = vld [vmem:[%s1 + $0x540] sm:$0xff]
    %v194 = vld [vmem:[%s1 + $0x548] sm:$0xff]
    %v195 = vld [vmem:[%s1 + $0x550] sm:$0xff]
    %v196 = vld [vmem:[%s1 + $0x558] sm:$0xff]
    %v197 = vld [vmem:[%s1 + $0x560] sm:$0xff]
    %v198 = vld [vmem:[%s1 + $0x568] sm:$0xff]
    %v199 = vld [vmem:[%s1 + $0x570] sm:$0xff]
    %v200 = vld [vmem:[%s1 + $0x578] sm:$0xff]
    %v201 = vld [vmem:[%s1 + $0x580] sm:$0xff]
    %v202 = vld [vmem:[%s1 + $0x588] sm:$0xff]
    %v203 = vld [vmem:[%s1 + $0x590] sm:$0xff]
    %v204 = vld [vmem:[%s1 + $0x598] sm:$0xff]
    %v205 = vld [vmem:[%s1 + $0x5a0] sm:$0xff]
    %v206 = vld [vmem:[%s1 + $0x5a8] sm:$0xff]
    %v207 = vld [vmem:[%s1 + $0x5b0] sm:$0xff]
    %v208 = vld [vmem:[%s1 + $0x5b8] sm:$0xff]
    %v209 = vld [vmem:[%s1 + $0x5c0] sm:$0xff]
    %v210 = vld [vmem:[%s1 + $0x5c8] sm:$0xff]
    %v211 = vld [vmem:[%s1 + $0x5d0] sm:$0xff]
    %v212 = vld [vmem:[%s1 + $0x5d8] sm:$0xff]
    %v213 = vld [vmem:[%s1 + $0x5e0] sm:$0xff]
    %v214 = vld [vmem:[%s1 + $0x5e8] sm:$0xff]
    %v215 = vld [vmem:[%s1 + $0x5f0] sm:$0xff]
    %v216 = vld [vmem:[%s1 + $0x5f8] sm:$0xff]
    %v217 = vld [vmem:[%s1 + $0x600] sm:$0xff]
    %v218 = vld [vmem:[%s1 + $0x608] sm:$0xff]
    %v219 = vld [vmem:[%s1 + $0x610] sm:$0xff]
    %v220 = vld [vmem:[%s1 + $0x618] sm:$0xff]
    %v221 = vld [vmem:[%s1 + $0x620] sm:$0xff]
    %v222 = vld [vmem:[%s1 + $0x628] sm:$0xff]
    %v223 = vld [vmem:[%s1 + $0x630] sm:$0xff]
    %v224 = vld [vmem:[%s1 + $0x638] sm:$0xff]
    %v225 = vld [vmem:[%s1 + $0x640] sm:$0xff]
    %v226 = vld [vmem:[%s1 + $0x648] sm:$0xff]
    %v227 = vld [vmem:[%s1 + $0x650] sm:$0xff]
    %v228 = vld [vmem:[%s1 + $0x658] sm:$0xff]
    %v229 = vld [vmem:[%s1 + $0x660] sm:$0xff]
    %v230 = vld [vmem:[%s1 + $0x668] sm:$0xff]
    %v231 = vld [vmem:[%s1 + $0x670] sm:$0xff]
    %v232 = vld [vmem:[%s1 + $0x678] sm:$0xff]
    %v233 = vld [vmem:[%s1 + $0x680] sm:$0xff]
    %v234 = vld [vmem:[%s1 + $0x688] sm:$0xff]
    %v235 = vld [vmem:[%s1 + $0x690] sm:$0xff]
    %v236 = vld [vmem:[%s1 + $0x698] sm:$0xff]
    %v237 = vld [vmem:[%s1 + $0x6a0] sm:$0xff]
    %v238 = vld [vmem:[%s1 + $0x6a8] sm:$0xff]
    %v239 = vld [vmem:[%s1 + $0x6b0] sm:$0xff]
    %v240 = vld [vmem:[%s1 + $0x6b8] sm:$0xff]
    %v241 = vld [vmem:[%s1 + $0x6c0] sm:$0xff]
    %v242 = vld [vmem:[%s1 + $0x6c8] sm:$0xff]
    %v243 = vld [vmem:[%s1 + $0x6d0] sm:$0xff]
    %v244 = vld [vmem:[%s1 + $0x6d8] sm:$0xff]
    %v245 = vld [vmem:[%s1 + $0x6e0] sm:$0xff]
    %v246 = vld [vmem:[%s1 + $0x6e8] sm:$0xff]
    %v247 = vld [vmem:[%s1 + $0x6f0] sm:$0xff]
    %v248 = vld [vmem:[%s1 + $0x6f8] sm:$0xff]
    %v249 = vld [vmem:[%s1 + $0x700] sm:$0xff]
    %v250 = vld [vmem:[%s1 + $0x708] sm:$0xff]
    %v251 = vld [vmem:[%s1 + $0x710] sm:$0xff]
    %v252 = vld [vmem:[%s1 + $0x718] sm:$0xff]
    %v253 = vld [vmem:[%s1 + $0x720] sm:$0xff]
    %v254 = vld [vmem:[%s1 + $0x728] sm:$0xff]
    %v255 = vld [vmem:[%s1 + $0x730] sm:$0xff]
    %v256 = vld [vmem:[%s1 + $0x738] sm:$0xff]
    %v257 = vld [vmem:[%s1 + $0x740] sm:$0xff]
    %v258 = vld [vmem:[%s1 + $0x748] sm:$0xff]
    %v259 = vld [vmem:[%s1 + $0x750] sm:$0xff]
    %v260 = vld [vmem:[%s1 + $0x758] sm:$0xff]
    %v261 = vld [vmem:[%s1 + $0x760] sm:$0xff]
    %v262 = vld [vmem:[%s1 + $0x768] sm:$0xff]
    %v263 = vld [vmem:[%s1 + $0x770] sm:$0xff]
    %v264 = vld [vmem:[%s1 + $0x778] sm:$0xff]
    %v265 = vld [vmem:[%s1 + $0x780] sm:$0xff]
    %v266 = vld [vmem:[%s1 + $0x788] sm:$0xff]
    %v267 = vld [vmem:[%s1 + $0x790] sm:$0xff]
    %v268 = vld [vmem:[%s1 + $0x798] sm:$0xff]
    %v269 = vld [vmem:[%s1 + $0x7a0] sm:$0xff]
    %v270 = vld [vmem:[%s1 + $0x7a8] sm:$0xff]
    %v271 = vld [vmem:[%s1 + $0x7b0] sm:$0xff]
    %v272 = vld [vmem:[%s1 + $0x7b8] sm:$0xff]
    %v273 = vld [vmem:[%s1 + $0x7c0] sm:$0xff]
    %v274 = vld [vmem:[%s1 + $0x7c8] sm:$0xff]
    %v275 = vld [vmem:[%s1 + $0x7d0] sm:$0xff]
    %v276 = vld [vmem:[%s1 + $0x7d8] sm:$0xff]
    %v277 = vld [vmem:[%s1 + $0x7e0] sm:$0xff]
    %v278 = vld [vmem:[%s1 + $0x7e8] sm:$0xff]
    %v279 = vld [vmem:[%s1 + $0x7f0] sm:$0xff]
    %v280 = vld [vmem:[%s1 + $0x7f8] sm:$0xff]
    %v281 = vld [vmem:[%s1 + $0x800] sm:$0xff]
    %v282 = vld [vmem:[%s1 + $0x808] sm:$0xff]
    %v283 = vld [vmem:[%s1 + $0x810] sm:$0xff]
    %v284 = vld [vmem:[%s1 + $0x818] sm:$0xff]
    %v285 = vld [vmem:[%s1 + $0x820] sm:$0xff]
    %v286 = vld [vmem:[%s1 + $0x828] sm:$0xff]
    %v287 = vld [vmem:[%s1 + $0x830] sm:$0xff]
    %v288 = vld [vmem:[%s1 + $0x838] sm:$0xff]
    %v289 = vld [vmem:[%s1 + $0x840] sm:$0xff]
    %v290 = vld [vmem:[%s1 + $0x848] sm:$0xff]
    %v291 = vld [vmem:[%s1 + $0x850] sm:$0xff]
    %v292 = vld [vmem:[%s1 + $0x858] sm:$0xff]
    %v293 = vld [vmem:[%s1 + $0x860] sm:$0xff]
    %v294 = vld [vmem:[%s1 + $0x868] sm:$0xff]
    %v295 = vld [vmem:[%s1 + $0x870] sm:$0xff]
    %v296 = vld [vmem:[%s1 + $0x878] sm:$0xff]
    %v297 = vld [vmem:[%s1 + $0x880] sm:$0xff]
    %v298 = vld [vmem:[%s1 + $0x888] sm:$0xff]
    %v299 = vld [vmem:[%s1 + $0x890] sm:$0xff]
    %v300 = vld [vmem:[%s1 + $0x898] sm:$0xff]
    %v301 = vld [vmem:[%s1 + $0x8a0] sm:$0xff]
    %v302 = vld [vmem:[%s1 + $0x8a8] sm:$0xff]
    %v303 = vld [vmem:[%s1 + $0x8b0] sm:$0xff]
    %v304 = vld [vmem:[%s1 + $0x8b8] sm:$0xff]
    %v305 = vld [vmem:[%s1 + $0x8c0] sm:$0xff]
    %v306 = vld [vmem:[%s1 + $0x8c8] sm:$0xff]
    %v307 = vld [vmem:[%s1 + $0x8d0] sm:$0xff]
    %v308 = vld [vmem:[%s1 + $0x8d8] sm:$0xff]
    %v309 = vld [vmem:[%s1 + $0x8e0] sm:$0xff]
    %v310 = vld [vmem:[%s1 + $0x8e8] sm:$0xff]
    %v311 = vld [vmem:[%s1 + $0x8f0] sm:$0xff]
    %v312 = vld [vmem:[%s1 + $0x8f8] sm:$0xff]
    %v313 = vld [vmem:[%s1 + $0x900] sm:$0xff]
    %v314 = vld [vmem:[%s1 + $0x908] sm:$0xff]
    %v315 = vld [vmem:[%s1 + $0x910] sm:$0xff]
    %v316 = vld [vmem:[%s1 + $0x918] sm:$0xff]
    %v317 = vld [vmem:[%s1 + $0x920] sm:$0xff]
    %v318 = vld [vmem:[%s1 + $0x928] sm:$0xff]
    %v319 = vld [vmem:[%s1 + $0x930] sm:$0xff]
    %v320 = vld [vmem:[%s1 + $0x938] sm:$0xff]
    %v321 = vld [vmem:[%s1 + $0x940] sm:$0xff]
    %v322 = vld [vmem:[%s1 + $0x948] sm:$0xff]
    %v323 = vld [vmem:[%s1 + $0x950] sm:$0xff]
    %v324 = vld [vmem:[%s1 + $0x958] sm:$0xff]
    %v325 = vld [vmem:[%s1 + $0x960] sm:$0xff]
    %v326 = vld [vmem:[%s1 + $0x968] sm:$0xff]
    %v327 = vld [vmem:[%s1 + $0x970] sm:$0xff]
    %v328 = vld [vmem:[%s1 + $0x978] sm:$0xff]
    %v329 = vld [vmem:[%s1 + $0x980] sm:$0xff]
    %v330 = vld [vmem:[%s1 + $0x988] sm:$0xff]
    %v331 = vld [vmem:[%s1 + $0x990] sm:$0xff]
    %v332 = vld [vmem:[%s1 + $0x998] sm:$0xff]
    %v333 = vld [vmem:[%s1 + $0x9a0] sm:$0xff]
    %v334 = vld [vmem:[%s1 + $0x9a8] sm:$0xff]
    %v335 = vld [vmem:[%s1 + $0x9b0] sm:$0xff]
    %v336 = vld [vmem:[%s1 + $0x9b8] sm:$0xff]
    %v337 = vld [vmem:[%s1 + $0x9c0] sm:$0xff]
    %v338 = vld [vmem:[%s1 + $0x9c8] sm:$0xff]
    %v339 = vld [vmem:[%s1 + $0x9d0] sm:$0xff]
    %v340 = vld [vmem:[%s1 + $0x9d8] sm:$0xff]
    %v341 = vld [vmem:[%s1 + $0x9e0] sm:$0xff]
    %v342 = vld [vmem:[%s1 + $0x9e8] sm:$0xff]
    %v343 = vld [vmem:[%s1 + $0x9f0] sm:$0xff]
    %v344 = vld [vmem:[%s1 + $0x9f8] sm:$0xff]
    %v345 = vld [vmem:[%s1 + $0xa00] sm:$0xff]
    %v346 = vld [vmem:[%s1 + $0xa08] sm:$0xff]
    %v347 = vld [vmem:[%s1 + $0xa10] sm:$0xff]
    %v348 = vld [vmem:[%s1 + $0xa18] sm:$0xff]
    %v349 = vld [vmem:[%s2] sm:$0x3]
    %v351 = vlaneseq
    %v352 = vshrl.u32 %v351, 7
    %v353 = vsub.s32 0, %v352
    %v354 = vrot.slane %v349, %v353
    %v355 = vlaneseq
    %v356 = vshrl.u32 %v355, 7
    %v357 = vsub.s32 1, %v356
    %v358 = vrot.slane %v349, %v357
    %v364 = vcombine.high %v22, %v22
    %v366 = vunpack.c.l.s4 1966171168
    %v367 = vunpack.c.0.s8 %v366
    %v368 = vlaneseq
    %v369 = vshrl.u32 %v368, 7
    %v370 = vsub.s32 %v367, %v369
    %v371 = vrot.slane %v22, %v370
    %v373 = vunpack.c.l.s4 1966171168
    %v374 = vunpack.c.0.s8 %v373
    %v375 = vlaneseq
    %v376 = vshrl.u32 %v375, 7
    %v377 = vsub.s32 %v374, %v376
    %v378 = vrot.slane %v364, %v377
    %v379 = vcombine.high %v371, %v371
    %v380 = vcombine.high %v378, %v378
    %v382 = vunpack.c.l.s4 1966171168
    %v383 = vunpack.c.0.s8 %v382
    %v384 = vlaneseq
    %v385 = vshrl.u32 %v384, 7
    %v386 = vsub.s32 %v383, %v385
    %v387 = vrot.slane %v371, %v386
    %v389 = vunpack.c.l.s4 1966171168
    %v390 = vunpack.c.0.s8 %v389
    %v391 = vlaneseq
    %v392 = vshrl.u32 %v391, 7
    %v393 = vsub.s32 %v390, %v392
    %v394 = vrot.slane %v378, %v393
    %v396 = vunpack.c.l.s4 1966171168
    %v397 = vunpack.c.0.s8 %v396
    %v398 = vlaneseq
    %v399 = vshrl.u32 %v398, 7
    %v400 = vsub.s32 %v397, %v399
    %v401 = vrot.slane %v379, %v400
    %v403 = vunpack.c.l.s4 1966171168
    %v404 = vunpack.c.0.s8 %v403
    %v405 = vlaneseq
    %v406 = vshrl.u32 %v405, 7
    %v407 = vsub.s32 %v404, %v406
    %v408 = vrot.slane %v380, %v407
    %v409 = vcombine.high %v387, %v387
    %v410 = vcombine.high %v394, %v394
    %v411 = vcombine.high %v401, %v401
    %v412 = vcombine.high %v408, %v408
    %v413 = vcombine.high %v23, %v23
    %v415 = vunpack.c.l.s4 1966171168
    %v416 = vunpack.c.0.s8 %v415
    %v417 = vlaneseq
    %v418 = vshrl.u32 %v417, 7
    %v419 = vsub.s32 %v416, %v418
    %v420 = vrot.slane %v23, %v419
    %v422 = vunpack.c.l.s4 1966171168
    %v423 = vunpack.c.0.s8 %v422
    %v424 = vlaneseq
    %v425 = vshrl.u32 %v424, 7
    %v426 = vsub.s32 %v423, %v425
    %v427 = vrot.slane %v413, %v426
    %v428 = vcombine.high %v420, %v420
    %v429 = vcombine.high %v427, %v427
    %v431 = vunpack.c.l.s4 1966171168
    %v432 = vunpack.c.0.s8 %v431
    %v433 = vlaneseq
    %v434 = vshrl.u32 %v433, 7
    %v435 = vsub.s32 %v432, %v434
    %v436 = vrot.slane %v420, %v435
    %v438 = vunpack.c.l.s4 1966171168
    %v439 = vunpack.c.0.s8 %v438
    %v440 = vlaneseq
    %v441 = vshrl.u32 %v440, 7
    %v442 = vsub.s32 %v439, %v441
    %v443 = vrot.slane %v427, %v442
    %v445 = vunpack.c.l.s4 1966171168
    %v446 = vunpack.c.0.s8 %v445
    %v447 = vlaneseq
    %v448 = vshrl.u32 %v447, 7
    %v449 = vsub.s32 %v446, %v448
    %v450 = vrot.slane %v428, %v449
    %v452 = vunpack.c.l.s4 1966171168
    %v453 = vunpack.c.0.s8 %v452
    %v454 = vlaneseq
    %v455 = vshrl.u32 %v454, 7
    %v456 = vsub.s32 %v453, %v455
    %v457 = vrot.slane %v429, %v456
    %v458 = vcombine.high %v436, %v436
    %v459 = vcombine.high %v443, %v443
    %v460 = vcombine.high %v450, %v450
    %v461 = vcombine.high %v457, %v457
    %v462 = vcombine.high %v24, %v24
    %v464 = vunpack.c.l.s4 1966171168
    %v465 = vunpack.c.0.s8 %v464
    %v466 = vlaneseq
    %v467 = vshrl.u32 %v466, 7
    %v468 = vsub.s32 %v465, %v467
    %v469 = vrot.slane %v24, %v468
    %v471 = vunpack.c.l.s4 1966171168
    %v472 = vunpack.c.0.s8 %v471
    %v473 = vlaneseq
    %v474 = vshrl.u32 %v473, 7
    %v475 = vsub.s32 %v472, %v474
    %v476 = vrot.slane %v462, %v475
    %v477 = vcombine.high %v469, %v469
    %v479 = vunpack.c.l.s4 1966171168
    %v480 = vunpack.c.0.s8 %v479
    %v481 = vlaneseq
    %v482 = vshrl.u32 %v481, 7
    %v483 = vsub.s32 %v480, %v482
    %v484 = vrot.slane %v469, %v483
    %v486 = vunpack.c.l.s4 1966171168
    %v487 = vunpack.c.0.s8 %v486
    %v488 = vlaneseq
    %v489 = vshrl.u32 %v488, 7
    %v490 = vsub.s32 %v487, %v489
    %v491 = vrot.slane %v476, %v490
    %v493 = vunpack.c.l.s4 1966171168
    %v494 = vunpack.c.0.s8 %v493
    %v495 = vlaneseq
    %v496 = vshrl.u32 %v495, 7
    %v497 = vsub.s32 %v494, %v496
    %v498 = vrot.slane %v477, %v497
    %v499 = vcombine.high %v484, %v484
    %v500 = vcombine.high %v498, %v498
    %v845 = vunpack.c.l.b16 %v25
    %v846 = vunpack.c.h.b16 %v25
    %v847 = vunpack.c.l.b16 %v26
    %v848 = vunpack.c.h.b16 %v26
    %v849 = vunpack.c.l.b16 %v27
    %v850 = vunpack.c.h.b16 %v27
    %v851 = vunpack.c.l.b16 %v28
    %v852 = vunpack.c.h.b16 %v28
    %v853 = vunpack.c.l.b16 %v29
    %v854 = vunpack.c.h.b16 %v29
    %v855 = vunpack.c.l.b16 %v30
    %v856 = vunpack.c.h.b16 %v30
    %v857 = vunpack.c.l.b16 %v31
    %v858 = vunpack.c.h.b16 %v31
    %v859 = vunpack.c.l.b16 %v32
    %v860 = vunpack.c.h.b16 %v32
    %v861 = vunpack.c.l.b16 %v33
    %v862 = vunpack.c.h.b16 %v33
    %v863 = vunpack.c.l.b16 %v34
    %v864 = vunpack.c.h.b16 %v34
    %v865 = vunpack.c.l.b16 %v35
    %v866 = vunpack.c.h.b16 %v35
    %v867 = vunpack.c.l.b16 %v36
    %v868 = vunpack.c.h.b16 %v36
    %v869 = vunpack.c.l.b16 %v37
    %v870 = vunpack.c.h.b16 %v37
    %v871 = vunpack.c.l.b16 %v38
    %v872 = vunpack.c.h.b16 %v38
    %v873 = vunpack.c.l.b16 %v39
    %v874 = vunpack.c.h.b16 %v39
    %v875 = vunpack.c.l.b16 %v40
    %v876 = vunpack.c.h.b16 %v40
    %v877 = vunpack.c.l.b16 %v41
    %v878 = vunpack.c.h.b16 %v41
    %v879 = vunpack.c.l.b16 %v42
    %v880 = vunpack.c.h.b16 %v42
    %v881 = vunpack.c.l.b16 %v43
    %v882 = vunpack.c.h.b16 %v43
    %v883 = vunpack.c.l.b16 %v44
    %v884 = vunpack.c.h.b16 %v44
    %v885 = vunpack.c.l.b16 %v45
    %v886 = vunpack.c.h.b16 %v45
    %v887 = vunpack.c.l.b16 %v46
    %v888 = vunpack.c.h.b16 %v46
    %v889 = vunpack.c.l.b16 %v47
    %v890 = vunpack.c.h.b16 %v47
    %v891 = vunpack.c.l.b16 %v48
    %v892 = vunpack.c.h.b16 %v48
    %v893 = vunpack.c.l.b16 %v49
    %v894 = vunpack.c.h.b16 %v49
    %v895 = vunpack.c.l.b16 %v50
    %v896 = vunpack.c.h.b16 %v50
    %v897 = vunpack.c.l.b16 %v51
    %v898 = vunpack.c.h.b16 %v51
    %v899 = vunpack.c.l.b16 %v52
    %v900 = vunpack.c.h.b16 %v52
    %v901 = vunpack.c.l.b16 %v53
    %v902 = vunpack.c.h.b16 %v53
    %v903 = vunpack.c.l.b16 %v54
    %v904 = vunpack.c.h.b16 %v54
    %v905 = vunpack.c.l.b16 %v55
    %v906 = vunpack.c.h.b16 %v55
    %v907 = vunpack.c.l.b16 %v56
    %v908 = vunpack.c.h.b16 %v56
    %v909 = vunpack.c.l.b16 %v57
    %v910 = vunpack.c.h.b16 %v57
    %v911 = vunpack.c.l.b16 %v58
    %v912 = vunpack.c.h.b16 %v58
    %v913 = vunpack.c.l.b16 %v59
    %v914 = vunpack.c.h.b16 %v59
    %v915 = vunpack.c.l.b16 %v60
    %v916 = vunpack.c.h.b16 %v60
    %v917 = vunpack.c.l.b16 %v61
    %v918 = vunpack.c.h.b16 %v61
    %v919 = vunpack.c.l.b16 %v62
    %v920 = vunpack.c.h.b16 %v62
    %v921 = vunpack.c.l.b16 %v63
    %v922 = vunpack.c.h.b16 %v63
    %v923 = vunpack.c.l.b16 %v64
    %v924 = vunpack.c.h.b16 %v64
    %v925 = vunpack.c.l.b16 %v65
    %v926 = vunpack.c.h.b16 %v65
    %v927 = vunpack.c.l.b16 %v66
    %v928 = vunpack.c.h.b16 %v66
    %v929 = vunpack.c.l.b16 %v67
    %v930 = vunpack.c.h.b16 %v67
    %v931 = vunpack.c.l.b16 %v68
    %v932 = vunpack.c.h.b16 %v68
    %v933 = vunpack.c.l.b16 %v69
    %v934 = vunpack.c.h.b16 %v69
    %v935 = vunpack.c.l.b16 %v70
    %v936 = vunpack.c.h.b16 %v70
    %v937 = vunpack.c.l.b16 %v71
    %v938 = vunpack.c.h.b16 %v71
    %v939 = vunpack.c.l.b16 %v72
    %v940 = vunpack.c.h.b16 %v72
    %v941 = vunpack.c.l.b16 %v73
    %v942 = vunpack.c.h.b16 %v73
    %v943 = vunpack.c.l.b16 %v74
    %v944 = vunpack.c.h.b16 %v74
    %v945 = vunpack.c.l.b16 %v75
    %v946 = vunpack.c.h.b16 %v75
    %v947 = vunpack.c.l.b16 %v76
    %v948 = vunpack.c.h.b16 %v76
    %v949 = vunpack.c.l.b16 %v77
    %v950 = vunpack.c.h.b16 %v77
    %v951 = vunpack.c.l.b16 %v78
    %v952 = vunpack.c.h.b16 %v78
    %v953 = vunpack.c.l.b16 %v79
    %v954 = vunpack.c.h.b16 %v79
    %v955 = vunpack.c.l.b16 %v80
    %v956 = vunpack.c.h.b16 %v80
    %v957 = vunpack.c.l.b16 %v81
    %v958 = vunpack.c.h.b16 %v81
    %v959 = vunpack.c.l.b16 %v82
    %v960 = vunpack.c.h.b16 %v82
    %v961 = vunpack.c.l.b16 %v83
    %v962 = vunpack.c.h.b16 %v83
    %v963 = vunpack.c.l.b16 %v84
    %v964 = vunpack.c.h.b16 %v84
    %v965 = vunpack.c.l.b16 %v85
    %v966 = vunpack.c.h.b16 %v85
    %v967 = vunpack.c.l.b16 %v86
    %v968 = vunpack.c.h.b16 %v86
    %v969 = vunpack.c.l.b16 %v87
    %v970 = vunpack.c.h.b16 %v87
    %v971 = vunpack.c.l.b16 %v88
    %v972 = vunpack.c.h.b16 %v88
    %v973 = vunpack.c.l.b16 %v89
    %v974 = vunpack.c.h.b16 %v89
    %v975 = vunpack.c.l.b16 %v90
    %v976 = vunpack.c.h.b16 %v90
    %v977 = vunpack.c.l.b16 %v91
    %v978 = vunpack.c.h.b16 %v91
    %v979 = vunpack.c.l.b16 %v92
    %v980 = vunpack.c.h.b16 %v92
    %v981 = vunpack.c.l.b16 %v93
    %v982 = vunpack.c.h.b16 %v93
    %v983 = vunpack.c.l.b16 %v94
    %v984 = vunpack.c.h.b16 %v94
    %v985 = vunpack.c.l.b16 %v95
    %v986 = vunpack.c.h.b16 %v95
    %v987 = vunpack.c.l.b16 %v96
    %v988 = vunpack.c.h.b16 %v96
    %v989 = vunpack.c.l.b16 %v97
    %v990 = vunpack.c.h.b16 %v97
    %v991 = vunpack.c.l.b16 %v98
    %v992 = vunpack.c.h.b16 %v98
    %v993 = vunpack.c.l.b16 %v99
    %v994 = vunpack.c.h.b16 %v99
    %v995 = vunpack.c.l.b16 %v100
    %v996 = vunpack.c.h.b16 %v100
    %v997 = vunpack.c.l.b16 %v101
    %v998 = vunpack.c.h.b16 %v101
    %v999 = vunpack.c.l.b16 %v102
    %v1000 = vunpack.c.h.b16 %v102
    %v1001 = vunpack.c.l.b16 %v103
    %v1002 = vunpack.c.h.b16 %v103
    %v1003 = vunpack.c.l.b16 %v104
    %v1004 = vunpack.c.h.b16 %v104
    %v1005 = vunpack.c.l.b16 %v105
    %v1006 = vunpack.c.h.b16 %v105
    %v1007 = vunpack.c.l.b16 %v106
    %v1008 = vunpack.c.h.b16 %v106
    %v1009 = vunpack.c.l.b16 %v107
    %v1010 = vunpack.c.h.b16 %v107
    %v1011 = vunpack.c.l.b16 %v108
    %v1012 = vunpack.c.h.b16 %v108
    %v1013 = vunpack.c.l.b16 %v109
    %v1014 = vunpack.c.h.b16 %v109
    %v1015 = vunpack.c.l.b16 %v110
    %v1016 = vunpack.c.h.b16 %v110
    %v1017 = vunpack.c.l.b16 %v111
    %v1018 = vunpack.c.h.b16 %v111
    %v1019 = vunpack.c.l.b16 %v112
    %v1020 = vunpack.c.h.b16 %v112
    %v1021 = vunpack.c.l.b16 %v113
    %v1022 = vunpack.c.h.b16 %v113
    %v1023 = vunpack.c.l.b16 %v114
    %v1024 = vunpack.c.h.b16 %v114
    %v1025 = vunpack.c.l.b16 %v115
    %v1026 = vunpack.c.h.b16 %v115
    %v1027 = vunpack.c.l.b16 %v116
    %v1028 = vunpack.c.h.b16 %v116
    %v1029 = vunpack.c.l.b16 %v117
    %v1030 = vunpack.c.h.b16 %v117
    %v1031 = vunpack.c.l.b16 %v118
    %v1032 = vunpack.c.h.b16 %v118
    %v1033 = vunpack.c.l.b16 %v119
    %v1034 = vunpack.c.h.b16 %v119
    %v1035 = vunpack.c.l.b16 %v120
    %v1036 = vunpack.c.h.b16 %v120
    %v1037 = vunpack.c.l.b16 %v121
    %v1038 = vunpack.c.h.b16 %v121
    %v1039 = vunpack.c.l.b16 %v122
    %v1040 = vunpack.c.h.b16 %v122
    %v1041 = vunpack.c.l.b16 %v123
    %v1042 = vunpack.c.h.b16 %v123
    %v1043 = vunpack.c.l.b16 %v124
    %v1044 = vunpack.c.h.b16 %v124
    %v1045 = vunpack.c.l.b16 %v125
    %v1046 = vunpack.c.h.b16 %v125
    %v1047 = vunpack.c.l.b16 %v126
    %v1048 = vunpack.c.h.b16 %v126
    %v1049 = vunpack.c.l.b16 %v127
    %v1050 = vunpack.c.h.b16 %v127
    %v1051 = vunpack.c.l.b16 %v128
    %v1052 = vunpack.c.h.b16 %v128
    %v1053 = vunpack.c.l.b16 %v129
    %v1054 = vunpack.c.h.b16 %v129
    %v1055 = vunpack.c.l.b16 %v130
    %v1056 = vunpack.c.h.b16 %v130
    %v1057 = vunpack.c.l.b16 %v131
    %v1058 = vunpack.c.h.b16 %v131
    %v1059 = vunpack.c.l.b16 %v132
    %v1060 = vunpack.c.h.b16 %v132
    %v1061 = vunpack.c.l.b16 %v133
    %v1062 = vunpack.c.h.b16 %v133
    %v1063 = vunpack.c.l.b16 %v134
    %v1064 = vunpack.c.h.b16 %v134
    %v1065 = vunpack.c.l.b16 %v135
    %v1066 = vunpack.c.h.b16 %v135
    %v1067 = vunpack.c.l.b16 %v136
    %v1068 = vunpack.c.h.b16 %v136
    %v1069 = vunpack.c.l.b16 %v137
    %v1070 = vunpack.c.h.b16 %v137
    %v1071 = vunpack.c.l.b16 %v138
    %v1072 = vunpack.c.h.b16 %v138
    %v1073 = vunpack.c.l.b16 %v139
    %v1074 = vunpack.c.h.b16 %v139
    %v1075 = vunpack.c.l.b16 %v140
    %v1076 = vunpack.c.h.b16 %v140
    %v1077 = vunpack.c.l.b16 %v141
    %v1078 = vunpack.c.h.b16 %v141
    %v1079 = vunpack.c.l.b16 %v142
    %v1080 = vunpack.c.h.b16 %v142
    %v1081 = vunpack.c.l.b16 %v143
    %v1082 = vunpack.c.h.b16 %v143
    %v1083 = vunpack.c.l.b16 %v144
    %v1084 = vunpack.c.h.b16 %v144
    %v1085 = vunpack.c.l.b16 %v145
    %v1086 = vunpack.c.h.b16 %v145
    %v1087 = vunpack.c.l.b16 %v146
    %v1088 = vunpack.c.h.b16 %v146
    %v1089 = vunpack.c.l.b16 %v147
    %v1090 = vunpack.c.h.b16 %v147
    %v1091 = vunpack.c.l.b16 %v148
    %v1092 = vunpack.c.h.b16 %v148
    %v1093 = vunpack.c.l.b16 %v149
    %v1094 = vunpack.c.h.b16 %v149
    %v1095 = vunpack.c.l.b16 %v150
    %v1096 = vunpack.c.h.b16 %v150
    %v1097 = vunpack.c.l.b16 %v151
    %v1098 = vunpack.c.h.b16 %v151
    %v1099 = vunpack.c.l.b16 %v152
    %v1100 = vunpack.c.h.b16 %v152
    %v1101 = vunpack.c.l.b16 %v153
    %v1102 = vunpack.c.h.b16 %v153
    %v1103 = vunpack.c.l.b16 %v154
    %v1104 = vunpack.c.h.b16 %v154
    %v1105 = vunpack.c.l.b16 %v155
    %v1106 = vunpack.c.h.b16 %v155
    %v1107 = vunpack.c.l.b16 %v156
    %v1108 = vunpack.c.h.b16 %v156
    %v1109 = vunpack.c.l.b16 %v157
    %v1110 = vunpack.c.h.b16 %v157
    %v1111 = vunpack.c.l.b16 %v158
    %v1112 = vunpack.c.h.b16 %v158
    %v1113 = vunpack.c.l.b16 %v159
    %v1114 = vunpack.c.h.b16 %v159
    %v1115 = vunpack.c.l.b16 %v160
    %v1116 = vunpack.c.h.b16 %v160
    %v1117 = vunpack.c.l.b16 %v161
    %v1118 = vunpack.c.h.b16 %v161
    %v1119 = vunpack.c.l.b16 %v162
    %v1120 = vunpack.c.h.b16 %v162
    %v1121 = vunpack.c.l.b16 %v163
    %v1122 = vunpack.c.h.b16 %v163
    %v1123 = vunpack.c.l.b16 %v164
    %v1124 = vunpack.c.h.b16 %v164
    %v1125 = vunpack.c.l.b16 %v165
    %v1126 = vunpack.c.h.b16 %v165
    %v1127 = vunpack.c.l.b16 %v166
    %v1128 = vunpack.c.h.b16 %v166
    %v1129 = vunpack.c.l.b16 %v167
    %v1130 = vunpack.c.h.b16 %v167
    %v1131 = vunpack.c.l.b16 %v168
    %v1132 = vunpack.c.h.b16 %v168
    %v1133 = vunpack.c.l.b16 %v169
    %v1134 = vunpack.c.h.b16 %v169
    %v1135 = vunpack.c.l.b16 %v170
    %v1136 = vunpack.c.h.b16 %v170
    %v1137 = vunpack.c.l.b16 %v171
    %v1138 = vunpack.c.h.b16 %v171
    %v1139 = vunpack.c.l.b16 %v172
    %v1140 = vunpack.c.h.b16 %v172
    %v1141 = vunpack.c.l.b16 %v173
    %v1142 = vunpack.c.h.b16 %v173
    %v1143 = vunpack.c.l.b16 %v174
    %v1144 = vunpack.c.h.b16 %v174
    %v1145 = vunpack.c.l.b16 %v175
    %v1146 = vunpack.c.h.b16 %v175
    %v1147 = vunpack.c.l.b16 %v176
    %v1148 = vunpack.c.h.b16 %v176
    %v1149 = vunpack.c.l.b16 %v177
    %v1150 = vunpack.c.h.b16 %v177
    %v1151 = vunpack.c.l.b16 %v178
    %v1152 = vunpack.c.h.b16 %v178
    %v1153 = vunpack.c.l.b16 %v179
    %v1154 = vunpack.c.h.b16 %v179
    %v1155 = vunpack.c.l.b16 %v180
    %v1156 = vunpack.c.h.b16 %v180
    %v1157 = vunpack.c.l.b16 %v181
    %v1158 = vunpack.c.h.b16 %v181
    %v1159 = vunpack.c.l.b16 %v182
    %v1160 = vunpack.c.h.b16 %v182
    %v1161 = vunpack.c.l.b16 %v183
    %v1162 = vunpack.c.h.b16 %v183
    %v1163 = vunpack.c.l.b16 %v184
    %v1164 = vunpack.c.h.b16 %v184
    %v1165 = vunpack.c.l.b16 %v185
    %v1166 = vunpack.c.h.b16 %v185
    %v1167 = vunpack.c.l.b16 %v186
    %v1168 = vunpack.c.h.b16 %v186
    %v1169 = vunpack.c.l.b16 %v187
    %v1170 = vunpack.c.h.b16 %v187
    %v1171 = vunpack.c.l.b16 %v188
    %v1172 = vunpack.c.h.b16 %v188
    %v1173 = vunpack.c.l.b16 %v189
    %v1174 = vunpack.c.h.b16 %v189
    %v1175 = vunpack.c.l.b16 %v190
    %v1176 = vunpack.c.h.b16 %v190
    %v1177 = vunpack.c.l.b16 %v191
    %v1178 = vunpack.c.h.b16 %v191
    %v1179 = vunpack.c.l.b16 %v192
    %v1180 = vunpack.c.h.b16 %v192
    %v1181 = vunpack.c.l.b16 %v193
    %v1182 = vunpack.c.h.b16 %v193
    %v1183 = vunpack.c.l.b16 %v194
    %v1184 = vunpack.c.h.b16 %v194
    %v1185 = vunpack.c.l.b16 %v195
    %v1186 = vunpack.c.h.b16 %v195
    %v1187 = vunpack.c.l.b16 %v196
    %v1188 = vunpack.c.h.b16 %v196
    %v1189 = vunpack.c.l.b16 %v197
    %v1190 = vunpack.c.h.b16 %v197
    %v1191 = vunpack.c.l.b16 %v198
    %v1192 = vunpack.c.h.b16 %v198
    %v1193 = vunpack.c.l.b16 %v199
    %v1194 = vunpack.c.h.b16 %v199
    %v1195 = vunpack.c.l.b16 %v200
    %v1196 = vunpack.c.h.b16 %v200
    %v1197 = vunpack.c.l.b16 %v201
    %v1198 = vunpack.c.h.b16 %v201
    %v1199 = vunpack.c.l.b16 %v202
    %v1200 = vunpack.c.h.b16 %v202
    %v1201 = vunpack.c.l.b16 %v203
    %v1202 = vunpack.c.h.b16 %v203
    %v1203 = vunpack.c.l.b16 %v204
    %v1204 = vunpack.c.h.b16 %v204
    %v1205 = vunpack.c.l.b16 %v205
    %v1206 = vunpack.c.h.b16 %v205
    %v1207 = vunpack.c.l.b16 %v206
    %v1208 = vunpack.c.h.b16 %v206
    %v1209 = vunpack.c.l.b16 %v207
    %v1210 = vunpack.c.h.b16 %v207
    %v1211 = vunpack.c.l.b16 %v208
    %v1212 = vunpack.c.h.b16 %v208
    %v1213 = vunpack.c.l.b16 %v209
    %v1214 = vunpack.c.h.b16 %v209
    %v1215 = vunpack.c.l.b16 %v210
    %v1216 = vunpack.c.h.b16 %v210
    %v1217 = vunpack.c.l.b16 %v211
    %v1218 = vunpack.c.h.b16 %v211
    %v1219 = vunpack.c.l.b16 %v212
    %v1220 = vunpack.c.h.b16 %v212
    %v1221 = vunpack.c.l.b16 %v213
    %v1222 = vunpack.c.h.b16 %v213
    %v1223 = vunpack.c.l.b16 %v214
    %v1224 = vunpack.c.h.b16 %v214
    %v1225 = vunpack.c.l.b16 %v215
    %v1226 = vunpack.c.h.b16 %v215
    %v1227 = vunpack.c.l.b16 %v216
    %v1228 = vunpack.c.h.b16 %v216
    %v1229 = vunpack.c.l.b16 %v217
    %v1230 = vunpack.c.h.b16 %v217
    %v1231 = vunpack.c.l.b16 %v218
    %v1232 = vunpack.c.h.b16 %v218
    %v1233 = vunpack.c.l.b16 %v219
    %v1234 = vunpack.c.h.b16 %v219
    %v1235 = vunpack.c.l.b16 %v220
    %v1236 = vunpack.c.h.b16 %v220
    %v1237 = vunpack.c.l.b16 %v221
    %v1238 = vunpack.c.h.b16 %v221
    %v1239 = vunpack.c.l.b16 %v222
    %v1240 = vunpack.c.h.b16 %v222
    %v1241 = vunpack.c.l.b16 %v223
    %v1242 = vunpack.c.h.b16 %v223
    %v1243 = vunpack.c.l.b16 %v224
    %v1244 = vunpack.c.h.b16 %v224
    %v1245 = vunpack.c.l.b16 %v225
    %v1246 = vunpack.c.h.b16 %v225
    %v1247 = vunpack.c.l.b16 %v226
    %v1248 = vunpack.c.h.b16 %v226
    %v1249 = vunpack.c.l.b16 %v227
    %v1250 = vunpack.c.h.b16 %v227
    %v1251 = vunpack.c.l.b16 %v228
    %v1252 = vunpack.c.h.b16 %v228
    %v1253 = vunpack.c.l.b16 %v229
    %v1254 = vunpack.c.h.b16 %v229
    %v1255 = vunpack.c.l.b16 %v230
    %v1256 = vunpack.c.h.b16 %v230
    %v1257 = vunpack.c.l.b16 %v231
    %v1258 = vunpack.c.h.b16 %v231
    %v1259 = vunpack.c.l.b16 %v232
    %v1260 = vunpack.c.h.b16 %v232
    %v1261 = vunpack.c.l.b16 %v233
    %v1262 = vunpack.c.h.b16 %v233
    %v1263 = vunpack.c.l.b16 %v234
    %v1264 = vunpack.c.h.b16 %v234
    %v1265 = vunpack.c.l.b16 %v235
    %v1266 = vunpack.c.h.b16 %v235
    %v1267 = vunpack.c.l.b16 %v236
    %v1268 = vunpack.c.h.b16 %v236
    %v1269 = vunpack.c.l.b16 %v237
    %v1270 = vunpack.c.h.b16 %v237
    %v1271 = vunpack.c.l.b16 %v238
    %v1272 = vunpack.c.h.b16 %v238
    %v1273 = vunpack.c.l.b16 %v239
    %v1274 = vunpack.c.h.b16 %v239
    %v1275 = vunpack.c.l.b16 %v240
    %v1276 = vunpack.c.h.b16 %v240
    %v1277 = vunpack.c.l.b16 %v241
    %v1278 = vunpack.c.h.b16 %v241
    %v1279 = vunpack.c.l.b16 %v242
    %v1280 = vunpack.c.h.b16 %v242
    %v1281 = vunpack.c.l.b16 %v243
    %v1282 = vunpack.c.h.b16 %v243
    %v1283 = vunpack.c.l.b16 %v244
    %v1284 = vunpack.c.h.b16 %v244
    %v1285 = vunpack.c.l.b16 %v245
    %v1286 = vunpack.c.h.b16 %v245
    %v1287 = vunpack.c.l.b16 %v246
    %v1288 = vunpack.c.h.b16 %v246
    %v1289 = vunpack.c.l.b16 %v247
    %v1290 = vunpack.c.h.b16 %v247
    %v1291 = vunpack.c.l.b16 %v248
    %v1292 = vunpack.c.h.b16 %v248
    %v1293 = vunpack.c.l.b16 %v249
    %v1294 = vunpack.c.h.b16 %v249
    %v1295 = vunpack.c.l.b16 %v250
    %v1296 = vunpack.c.h.b16 %v250
    %v1297 = vunpack.c.l.b16 %v251
    %v1298 = vunpack.c.h.b16 %v251
    %v1299 = vunpack.c.l.b16 %v252
    %v1300 = vunpack.c.h.b16 %v252
    %v1301 = vunpack.c.l.b16 %v253
    %v1302 = vunpack.c.h.b16 %v253
    %v1303 = vunpack.c.l.b16 %v254
    %v1304 = vunpack.c.h.b16 %v254
    %v1305 = vunpack.c.l.b16 %v255
    %v1306 = vunpack.c.h.b16 %v255
    %v1307 = vunpack.c.l.b16 %v256
    %v1308 = vunpack.c.h.b16 %v256
    %v1309 = vunpack.c.l.b16 %v257
    %v1310 = vunpack.c.h.b16 %v257
    %v1311 = vunpack.c.l.b16 %v258
    %v1312 = vunpack.c.h.b16 %v258
    %v1313 = vunpack.c.l.b16 %v259
    %v1314 = vunpack.c.h.b16 %v259
    %v1315 = vunpack.c.l.b16 %v260
    %v1316 = vunpack.c.h.b16 %v260
    %v1317 = vunpack.c.l.b16 %v261
    %v1318 = vunpack.c.h.b16 %v261
    %v1319 = vunpack.c.l.b16 %v262
    %v1320 = vunpack.c.h.b16 %v262
    %v1321 = vunpack.c.l.b16 %v263
    %v1322 = vunpack.c.h.b16 %v263
    %v1323 = vunpack.c.l.b16 %v264
    %v1324 = vunpack.c.h.b16 %v264
    %v1325 = vunpack.c.l.b16 %v265
    %v1326 = vunpack.c.h.b16 %v265
    %v1327 = vunpack.c.l.b16 %v266
    %v1328 = vunpack.c.h.b16 %v266
    %v1329 = vunpack.c.l.b16 %v267
    %v1330 = vunpack.c.h.b16 %v267
    %v1331 = vunpack.c.l.b16 %v268
    %v1332 = vunpack.c.h.b16 %v268
    %v1333 = vunpack.c.l.b16 %v269
    %v1334 = vunpack.c.h.b16 %v269
    %v1335 = vunpack.c.l.b16 %v270
    %v1336 = vunpack.c.h.b16 %v270
    %v1337 = vunpack.c.l.b16 %v271
    %v1338 = vunpack.c.h.b16 %v271
    %v1339 = vunpack.c.l.b16 %v272
    %v1340 = vunpack.c.h.b16 %v272
    %v1341 = vunpack.c.l.b16 %v273
    %v1342 = vunpack.c.h.b16 %v273
    %v1343 = vunpack.c.l.b16 %v274
    %v1344 = vunpack.c.h.b16 %v274
    %v1345 = vunpack.c.l.b16 %v275
    %v1346 = vunpack.c.h.b16 %v275
    %v1347 = vunpack.c.l.b16 %v276
    %v1348 = vunpack.c.h.b16 %v276
    %v1349 = vunpack.c.l.b16 %v277
    %v1350 = vunpack.c.h.b16 %v277
    %v1351 = vunpack.c.l.b16 %v278
    %v1352 = vunpack.c.h.b16 %v278
    %v1353 = vunpack.c.l.b16 %v279
    %v1354 = vunpack.c.h.b16 %v279
    %v1355 = vunpack.c.l.b16 %v280
    %v1356 = vunpack.c.h.b16 %v280
    %v1357 = vunpack.c.l.b16 %v281
    %v1358 = vunpack.c.h.b16 %v281
    %v1359 = vunpack.c.l.b16 %v282
    %v1360 = vunpack.c.h.b16 %v282
    %v1361 = vunpack.c.l.b16 %v283
    %v1362 = vunpack.c.h.b16 %v283
    %v1363 = vunpack.c.l.b16 %v284
    %v1364 = vunpack.c.h.b16 %v284
    %v1365 = vunpack.c.l.b16 %v285
    %v1366 = vunpack.c.h.b16 %v285
    %v1367 = vunpack.c.l.b16 %v286
    %v1368 = vunpack.c.h.b16 %v286
    %v1369 = vunpack.c.l.b16 %v287
    %v1370 = vunpack.c.h.b16 %v287
    %v1371 = vunpack.c.l.b16 %v288
    %v1372 = vunpack.c.h.b16 %v288
    %v1373 = vunpack.c.l.b16 %v289
    %v1374 = vunpack.c.h.b16 %v289
    %v1375 = vunpack.c.l.b16 %v290
    %v1376 = vunpack.c.h.b16 %v290
    %v1377 = vunpack.c.l.b16 %v291
    %v1378 = vunpack.c.h.b16 %v291
    %v1379 = vunpack.c.l.b16 %v292
    %v1380 = vunpack.c.h.b16 %v292
    %v1381 = vunpack.c.l.b16 %v293
    %v1382 = vunpack.c.h.b16 %v293
    %v1383 = vunpack.c.l.b16 %v294
    %v1384 = vunpack.c.h.b16 %v294
    %v1385 = vunpack.c.l.b16 %v295
    %v1386 = vunpack.c.h.b16 %v295
    %v1387 = vunpack.c.l.b16 %v296
    %v1388 = vunpack.c.h.b16 %v296
    %v1389 = vunpack.c.l.b16 %v297
    %v1390 = vunpack.c.h.b16 %v297
    %v1391 = vunpack.c.l.b16 %v298
    %v1392 = vunpack.c.h.b16 %v298
    %v1393 = vunpack.c.l.b16 %v299
    %v1394 = vunpack.c.h.b16 %v299
    %v1395 = vunpack.c.l.b16 %v300
    %v1396 = vunpack.c.h.b16 %v300
    %v1397 = vunpack.c.l.b16 %v301
    %v1398 = vunpack.c.h.b16 %v301
    %v1399 = vunpack.c.l.b16 %v302
    %v1400 = vunpack.c.h.b16 %v302
    %v1401 = vunpack.c.l.b16 %v303
    %v1402 = vunpack.c.h.b16 %v303
    %v1403 = vunpack.c.l.b16 %v304
    %v1404 = vunpack.c.h.b16 %v304
    %v1405 = vunpack.c.l.b16 %v305
    %v1406 = vunpack.c.h.b16 %v305
    %v1407 = vunpack.c.l.b16 %v306
    %v1408 = vunpack.c.h.b16 %v306
    %v1409 = vunpack.c.l.b16 %v307
    %v1410 = vunpack.c.h.b16 %v307
    %v1411 = vunpack.c.l.b16 %v308
    %v1412 = vunpack.c.h.b16 %v308
    %v1413 = vunpack.c.l.b16 %v309
    %v1414 = vunpack.c.h.b16 %v309
    %v1415 = vunpack.c.l.b16 %v310
    %v1416 = vunpack.c.h.b16 %v310
    %v1417 = vunpack.c.l.b16 %v311
    %v1418 = vunpack.c.h.b16 %v311
    %v1419 = vunpack.c.l.b16 %v312
    %v1420 = vunpack.c.h.b16 %v312
    %v1421 = vunpack.c.l.b16 %v313
    %v1422 = vunpack.c.h.b16 %v313
    %v1423 = vunpack.c.l.b16 %v314
    %v1424 = vunpack.c.h.b16 %v314
    %v1425 = vunpack.c.l.b16 %v315
    %v1426 = vunpack.c.h.b16 %v315
    %v1427 = vunpack.c.l.b16 %v316
    %v1428 = vunpack.c.h.b16 %v316
    %v1429 = vunpack.c.l.b16 %v317
    %v1430 = vunpack.c.h.b16 %v317
    %v1431 = vunpack.c.l.b16 %v318
    %v1432 = vunpack.c.h.b16 %v318
    %v1433 = vunpack.c.l.b16 %v319
    %v1434 = vunpack.c.h.b16 %v319
    %v1435 = vunpack.c.l.b16 %v320
    %v1436 = vunpack.c.h.b16 %v320
    %v1437 = vunpack.c.l.b16 %v321
    %v1438 = vunpack.c.h.b16 %v321
    %v1439 = vunpack.c.l.b16 %v322
    %v1440 = vunpack.c.h.b16 %v322
    %v1441 = vunpack.c.l.b16 %v323
    %v1442 = vunpack.c.h.b16 %v323
    %v1443 = vunpack.c.l.b16 %v324
    %v1444 = vunpack.c.h.b16 %v324
    %v1445 = vunpack.c.l.b16 %v325
    %v1446 = vunpack.c.h.b16 %v325
    %v1447 = vunpack.c.l.b16 %v326
    %v1448 = vunpack.c.h.b16 %v326
    %v1449 = vunpack.c.l.b16 %v327
    %v1450 = vunpack.c.h.b16 %v327
    %v1451 = vunpack.c.l.b16 %v328
    %v1452 = vunpack.c.h.b16 %v328
    %v1453 = vunpack.c.l.b16 %v329
    %v1454 = vunpack.c.h.b16 %v329
    %v1455 = vunpack.c.l.b16 %v330
    %v1456 = vunpack.c.h.b16 %v330
    %v1457 = vunpack.c.l.b16 %v331
    %v1458 = vunpack.c.h.b16 %v331
    %v1459 = vunpack.c.l.b16 %v332
    %v1460 = vunpack.c.h.b16 %v332
    %v1461 = vunpack.c.l.b16 %v333
    %v1462 = vunpack.c.h.b16 %v333
    %v1463 = vunpack.c.l.b16 %v334
    %v1464 = vunpack.c.h.b16 %v334
    %v1465 = vunpack.c.l.b16 %v335
    %v1466 = vunpack.c.h.b16 %v335
    %v1467 = vunpack.c.l.b16 %v336
    %v1468 = vunpack.c.h.b16 %v336
    %v1469 = vunpack.c.l.b16 %v337
    %v1470 = vunpack.c.h.b16 %v337
    %v1471 = vunpack.c.l.b16 %v338
    %v1472 = vunpack.c.h.b16 %v338
    %v1473 = vunpack.c.l.b16 %v339
    %v1474 = vunpack.c.h.b16 %v339
    %v1475 = vunpack.c.l.b16 %v340
    %v1476 = vunpack.c.h.b16 %v340
    %v1477 = vunpack.c.l.b16 %v341
    %v1478 = vunpack.c.h.b16 %v341
    %v1479 = vunpack.c.l.b16 %v342
    %v1480 = vunpack.c.h.b16 %v342
    %v1481 = vunpack.c.l.b16 %v343
    %v1482 = vunpack.c.h.b16 %v343
    %v1483 = vunpack.c.l.b16 %v344
    %v1484 = vunpack.c.h.b16 %v344
    %v1485 = vunpack.c.l.b16 %v345
    %v1486 = vunpack.c.h.b16 %v345
    %v1487 = vunpack.c.l.b16 %v346
    %v1488 = vunpack.c.h.b16 %v346
    %v1489 = vunpack.c.l.b16 %v347
    %v1490 = vunpack.c.h.b16 %v347
    %v1491 = vunpack.c.l.b16 %v348
    %v1492 = vunpack.c.h.b16 %v348
    %v1493 = vpack.c.b16 %v847, %v845
    %v1494 = vpack.c.b16 %v848, %v846
    %v1495 = vpack.c.b16 %v851, %v849
    %v1496 = vpack.c.b16 %v852, %v850
    %v1497 = vpack.c.b16 %v855, %v853
    %v1498 = vpack.c.b16 %v856, %v854
    %v1499 = vpack.c.b16 %v859, %v857
    %v1500 = vpack.c.b16 %v860, %v858
    %v1501 = vpack.c.b16 %v863, %v861
    %v1502 = vpack.c.b16 %v864, %v862
    %v1503 = vpack.c.b16 %v867, %v865
    %v1504 = vpack.c.b16 %v868, %v866
    %v1505 = vpack.c.b16 %v871, %v869
    %v1506 = vpack.c.b16 %v872, %v870
    %v1507 = vpack.c.b16 %v875, %v873
    %v1508 = vpack.c.b16 %v876, %v874
    %v1509 = vpack.c.b16 %v879, %v877
    %v1510 = vpack.c.b16 %v880, %v878
    %v1511 = vpack.c.b16 %v883, %v881
    %v1512 = vpack.c.b16 %v884, %v882
    %v1513 = vpack.c.b16 %v887, %v885
    %v1514 = vpack.c.b16 %v888, %v886
    %v1515 = vpack.c.b16 %v891, %v889
    %v1516 = vpack.c.b16 %v892, %v890
    %v1517 = vpack.c.b16 %v895, %v893
    %v1518 = vpack.c.b16 %v896, %v894
    %v1519 = vpack.c.b16 %v899, %v897
    %v1520 = vpack.c.b16 %v900, %v898
    %v1521 = vpack.c.b16 %v903, %v901
    %v1522 = vpack.c.b16 %v904, %v902
    %v1523 = vpack.c.b16 %v907, %v905
    %v1524 = vpack.c.b16 %v908, %v906
    %v1525 = vpack.c.b16 %v911, %v909
    %v1526 = vpack.c.b16 %v912, %v910
    %v1527 = vpack.c.b16 %v915, %v913
    %v1528 = vpack.c.b16 %v916, %v914
    %v1529 = vpack.c.b16 %v919, %v917
    %v1530 = vpack.c.b16 %v920, %v918
    %v1531 = vpack.c.b16 %v923, %v921
    %v1532 = vpack.c.b16 %v924, %v922
    %v1533 = vpack.c.b16 %v927, %v925
    %v1534 = vpack.c.b16 %v928, %v926
    %v1535 = vpack.c.b16 %v931, %v929
    %v1536 = vpack.c.b16 %v932, %v930
    %v1537 = vpack.c.b16 %v935, %v933
    %v1538 = vpack.c.b16 %v936, %v934
    %v1539 = vpack.c.b16 %v939, %v937
    %v1540 = vpack.c.b16 %v940, %v938
    %v1541 = vpack.c.b16 %v943, %v941
    %v1542 = vpack.c.b16 %v944, %v942
    %v1543 = vpack.c.b16 %v947, %v945
    %v1544 = vpack.c.b16 %v948, %v946
    %v1545 = vpack.c.b16 %v951, %v949
    %v1546 = vpack.c.b16 %v952, %v950
    %v1547 = vpack.c.b16 %v955, %v953
    %v1548 = vpack.c.b16 %v956, %v954
    %v1549 = vpack.c.b16 %v959, %v957
    %v1550 = vpack.c.b16 %v960, %v958
    %v1551 = vpack.c.b16 %v963, %v961
    %v1552 = vpack.c.b16 %v964, %v962
    %v1553 = vpack.c.b16 %v967, %v965
    %v1554 = vpack.c.b16 %v968, %v966
    %v1555 = vpack.c.b16 %v971, %v969
    %v1556 = vpack.c.b16 %v972, %v970
    %v1557 = vpack.c.b16 %v975, %v973
    %v1558 = vpack.c.b16 %v976, %v974
    %v1559 = vpack.c.b16 %v979, %v977
    %v1560 = vpack.c.b16 %v980, %v978
    %v1561 = vpack.c.b16 %v983, %v981
    %v1562 = vpack.c.b16 %v984, %v982
    %v1563 = vpack.c.b16 %v987, %v985
    %v1564 = vpack.c.b16 %v988, %v986
    %v1565 = vpack.c.b16 %v991, %v989
    %v1566 = vpack.c.b16 %v992, %v990
    %v1567 = vpack.c.b16 %v995, %v993
    %v1568 = vpack.c.b16 %v996, %v994
    %v1569 = vpack.c.b16 %v999, %v997
    %v1570 = vpack.c.b16 %v1000, %v998
    %v1571 = vpack.c.b16 %v1003, %v1001
    %v1572 = vpack.c.b16 %v1004, %v1002
    %v1573 = vpack.c.b16 %v1007, %v1005
    %v1574 = vpack.c.b16 %v1008, %v1006
    %v1575 = vpack.c.b16 %v1011, %v1009
    %v1576 = vpack.c.b16 %v1012, %v1010
    %v1577 = vpack.c.b16 %v1015, %v1013
    %v1578 = vpack.c.b16 %v1016, %v1014
    %v1579 = vpack.c.b16 %v1019, %v1017
    %v1580 = vpack.c.b16 %v1020, %v1018
    %v1581 = vpack.c.b16 %v1023, %v1021
    %v1582 = vpack.c.b16 %v1024, %v1022
    %v1583 = vpack.c.b16 %v1027, %v1025
    %v1584 = vpack.c.b16 %v1028, %v1026
    %v1585 = vpack.c.b16 %v1031, %v1029
    %v1586 = vpack.c.b16 %v1032, %v1030
    %v1587 = vpack.c.b16 %v1035, %v1033
    %v1588 = vpack.c.b16 %v1036, %v1034
    %v1589 = vpack.c.b16 %v1039, %v1037
    %v1590 = vpack.c.b16 %v1040, %v1038
    %v1591 = vpack.c.b16 %v1043, %v1041
    %v1592 = vpack.c.b16 %v1044, %v1042
    %v1593 = vpack.c.b16 %v1047, %v1045
    %v1594 = vpack.c.b16 %v1048, %v1046
    %v1595 = vpack.c.b16 %v1051, %v1049
    %v1596 = vpack.c.b16 %v1052, %v1050
    %v1597 = vpack.c.b16 %v1055, %v1053
    %v1598 = vpack.c.b16 %v1056, %v1054
    %v1599 = vpack.c.b16 %v1059, %v1057
    %v1600 = vpack.c.b16 %v1060, %v1058
    %v1601 = vpack.c.b16 %v1063, %v1061
    %v1602 = vpack.c.b16 %v1064, %v1062
    %v1603 = vpack.c.b16 %v1067, %v1065
    %v1604 = vpack.c.b16 %v1068, %v1066
    %v1605 = vpack.c.b16 %v1071, %v1069
    %v1606 = vpack.c.b16 %v1072, %v1070
    %v1607 = vpack.c.b16 %v1075, %v1073
    %v1608 = vpack.c.b16 %v1076, %v1074
    %v1609 = vpack.c.b16 %v1079, %v1077
    %v1610 = vpack.c.b16 %v1080, %v1078
    %v1611 = vpack.c.b16 %v1083, %v1081
    %v1612 = vpack.c.b16 %v1084, %v1082
    %v1613 = vpack.c.b16 %v1087, %v1085
    %v1614 = vpack.c.b16 %v1088, %v1086
    %v1615 = vpack.c.b16 %v1091, %v1089
    %v1616 = vpack.c.b16 %v1092, %v1090
    %v1617 = vpack.c.b16 %v1095, %v1093
    %v1618 = vpack.c.b16 %v1096, %v1094
    %v1619 = vpack.c.b16 %v1099, %v1097
    %v1620 = vpack.c.b16 %v1100, %v1098
    %v1621 = vpack.c.b16 %v1103, %v1101
    %v1622 = vpack.c.b16 %v1104, %v1102
    %v1623 = vpack.c.b16 %v1107, %v1105
    %v1624 = vpack.c.b16 %v1108, %v1106
    %v1625 = vpack.c.b16 %v1111, %v1109
    %v1626 = vpack.c.b16 %v1112, %v1110
    %v1627 = vpack.c.b16 %v1115, %v1113
    %v1628 = vpack.c.b16 %v1116, %v1114
    %v1629 = vpack.c.b16 %v1119, %v1117
    %v1630 = vpack.c.b16 %v1120, %v1118
    %v1631 = vpack.c.b16 %v1123, %v1121
    %v1632 = vpack.c.b16 %v1124, %v1122
    %v1633 = vpack.c.b16 %v1127, %v1125
    %v1634 = vpack.c.b16 %v1128, %v1126
    %v1635 = vpack.c.b16 %v1131, %v1129
    %v1636 = vpack.c.b16 %v1132, %v1130
    %v1637 = vpack.c.b16 %v1135, %v1133
    %v1638 = vpack.c.b16 %v1136, %v1134
    %v1639 = vpack.c.b16 %v1139, %v1137
    %v1640 = vpack.c.b16 %v1140, %v1138
    %v1641 = vpack.c.b16 %v1143, %v1141
    %v1642 = vpack.c.b16 %v1144, %v1142
    %v1643 = vpack.c.b16 %v1147, %v1145
    %v1644 = vpack.c.b16 %v1148, %v1146
    %v1645 = vpack.c.b16 %v1151, %v1149
    %v1646 = vpack.c.b16 %v1152, %v1150
    %v1647 = vpack.c.b16 %v1155, %v1153
    %v1648 = vpack.c.b16 %v1156, %v1154
    %v1649 = vpack.c.b16 %v1159, %v1157
    %v1650 = vpack.c.b16 %v1160, %v1158
    %v1651 = vpack.c.b16 %v1163, %v1161
    %v1652 = vpack.c.b16 %v1164, %v1162
    %v1653 = vpack.c.b16 %v1167, %v1165
    %v1654 = vpack.c.b16 %v1168, %v1166
    %v1655 = vpack.c.b16 %v1171, %v1169
    %v1656 = vpack.c.b16 %v1172, %v1170
    %v1657 = vpack.c.b16 %v1175, %v1173
    %v1658 = vpack.c.b16 %v1176, %v1174
    %v1659 = vpack.c.b16 %v1179, %v1177
    %v1660 = vpack.c.b16 %v1180, %v1178
    %v1661 = vpack.c.b16 %v1183, %v1181
    %v1662 = vpack.c.b16 %v1184, %v1182
    %v1663 = vpack.c.b16 %v1187, %v1185
    %v1664 = vpack.c.b16 %v1188, %v1186
    %v1665 = vpack.c.b16 %v1191, %v1189
    %v1666 = vpack.c.b16 %v1192, %v1190
    %v1667 = vpack.c.b16 %v1195, %v1193
    %v1668 = vpack.c.b16 %v1196, %v1194
    %v1669 = vpack.c.b16 %v1199, %v1197
    %v1670 = vpack.c.b16 %v1200, %v1198
    %v1671 = vpack.c.b16 %v1203, %v1201
    %v1672 = vpack.c.b16 %v1204, %v1202
    %v1673 = vpack.c.b16 %v1207, %v1205
    %v1674 = vpack.c.b16 %v1208, %v1206
    %v1675 = vpack.c.b16 %v1211, %v1209
    %v1676 = vpack.c.b16 %v1212, %v1210
    %v1677 = vpack.c.b16 %v1215, %v1213
    %v1678 = vpack.c.b16 %v1216, %v1214
    %v1679 = vpack.c.b16 %v1219, %v1217
    %v1680 = vpack.c.b16 %v1220, %v1218
    %v1681 = vpack.c.b16 %v1223, %v1221
    %v1682 = vpack.c.b16 %v1224, %v1222
    %v1683 = vpack.c.b16 %v1227, %v1225
    %v1684 = vpack.c.b16 %v1228, %v1226
    %v1685 = vpack.c.b16 %v1231, %v1229
    %v1686 = vpack.c.b16 %v1232, %v1230
    %v1687 = vpack.c.b16 %v1235, %v1233
    %v1688 = vpack.c.b16 %v1236, %v1234
    %v1689 = vpack.c.b16 %v1239, %v1237
    %v1690 = vpack.c.b16 %v1240, %v1238
    %v1691 = vpack.c.b16 %v1243, %v1241
    %v1692 = vpack.c.b16 %v1244, %v1242
    %v1693 = vpack.c.b16 %v1247, %v1245
    %v1694 = vpack.c.b16 %v1248, %v1246
    %v1695 = vpack.c.b16 %v1251, %v1249
    %v1696 = vpack.c.b16 %v1252, %v1250
    %v1697 = vpack.c.b16 %v1255, %v1253
    %v1698 = vpack.c.b16 %v1256, %v1254
    %v1699 = vpack.c.b16 %v1259, %v1257
    %v1700 = vpack.c.b16 %v1260, %v1258
    %v1701 = vpack.c.b16 %v1263, %v1261
    %v1702 = vpack.c.b16 %v1264, %v1262
    %v1703 = vpack.c.b16 %v1267, %v1265
    %v1704 = vpack.c.b16 %v1268, %v1266
    %v1705 = vpack.c.b16 %v1271, %v1269
    %v1706 = vpack.c.b16 %v1272, %v1270
    %v1707 = vpack.c.b16 %v1275, %v1273
    %v1708 = vpack.c.b16 %v1276, %v1274
    %v1709 = vpack.c.b16 %v1279, %v1277
    %v1710 = vpack.c.b16 %v1280, %v1278
    %v1711 = vpack.c.b16 %v1283, %v1281
    %v1712 = vpack.c.b16 %v1284, %v1282
    %v1713 = vpack.c.b16 %v1287, %v1285
    %v1714 = vpack.c.b16 %v1288, %v1286
    %v1715 = vpack.c.b16 %v1291, %v1289
    %v1716 = vpack.c.b16 %v1292, %v1290
    %v1717 = vpack.c.b16 %v1295, %v1293
    %v1718 = vpack.c.b16 %v1296, %v1294
    %v1719 = vpack.c.b16 %v1299, %v1297
    %v1720 = vpack.c.b16 %v1300, %v1298
    %v1721 = vpack.c.b16 %v1303, %v1301
    %v1722 = vpack.c.b16 %v1304, %v1302
    %v1723 = vpack.c.b16 %v1307, %v1305
    %v1724 = vpack.c.b16 %v1308, %v1306
    %v1725 = vpack.c.b16 %v1311, %v1309
    %v1726 = vpack.c.b16 %v1312, %v1310
    %v1727 = vpack.c.b16 %v1315, %v1313
    %v1728 = vpack.c.b16 %v1316, %v1314
    %v1729 = vpack.c.b16 %v1319, %v1317
    %v1730 = vpack.c.b16 %v1320, %v1318
    %v1731 = vpack.c.b16 %v1323, %v1321
    %v1732 = vpack.c.b16 %v1324, %v1322
    %v1733 = vpack.c.b16 %v1327, %v1325
    %v1734 = vpack.c.b16 %v1328, %v1326
    %v1735 = vpack.c.b16 %v1331, %v1329
    %v1736 = vpack.c.b16 %v1332, %v1330
    %v1737 = vpack.c.b16 %v1335, %v1333
    %v1738 = vpack.c.b16 %v1336, %v1334
    %v1739 = vpack.c.b16 %v1339, %v1337
    %v1740 = vpack.c.b16 %v1340, %v1338
    %v1741 = vpack.c.b16 %v1343, %v1341
    %v1742 = vpack.c.b16 %v1344, %v1342
    %v1743 = vpack.c.b16 %v1347, %v1345
    %v1744 = vpack.c.b16 %v1348, %v1346
    %v1745 = vpack.c.b16 %v1351, %v1349
    %v1746 = vpack.c.b16 %v1352, %v1350
    %v1747 = vpack.c.b16 %v1355, %v1353
    %v1748 = vpack.c.b16 %v1356, %v1354
    %v1749 = vpack.c.b16 %v1359, %v1357
    %v1750 = vpack.c.b16 %v1360, %v1358
    %v1751 = vpack.c.b16 %v1363, %v1361
    %v1752 = vpack.c.b16 %v1364, %v1362
    %v1753 = vpack.c.b16 %v1367, %v1365
    %v1754 = vpack.c.b16 %v1368, %v1366
    %v1755 = vpack.c.b16 %v1371, %v1369
    %v1756 = vpack.c.b16 %v1372, %v1370
    %v1757 = vpack.c.b16 %v1375, %v1373
    %v1758 = vpack.c.b16 %v1376, %v1374
    %v1759 = vpack.c.b16 %v1379, %v1377
    %v1760 = vpack.c.b16 %v1380, %v1378
    %v1761 = vpack.c.b16 %v1383, %v1381
    %v1762 = vpack.c.b16 %v1384, %v1382
    %v1763 = vpack.c.b16 %v1387, %v1385
    %v1764 = vpack.c.b16 %v1388, %v1386
    %v1765 = vpack.c.b16 %v1391, %v1389
    %v1766 = vpack.c.b16 %v1392, %v1390
    %v1767 = vpack.c.b16 %v1395, %v1393
    %v1768 = vpack.c.b16 %v1396, %v1394
    %v1769 = vpack.c.b16 %v1399, %v1397
    %v1770 = vpack.c.b16 %v1400, %v1398
    %v1771 = vpack.c.b16 %v1403, %v1401
    %v1772 = vpack.c.b16 %v1404, %v1402
    %v1773 = vpack.c.b16 %v1407, %v1405
    %v1774 = vpack.c.b16 %v1408, %v1406
    %v1775 = vpack.c.b16 %v1411, %v1409
    %v1776 = vpack.c.b16 %v1412, %v1410
    %v1777 = vpack.c.b16 %v1415, %v1413
    %v1778 = vpack.c.b16 %v1416, %v1414
    %v1779 = vpack.c.b16 %v1419, %v1417
    %v1780 = vpack.c.b16 %v1420, %v1418
    %v1781 = vpack.c.b16 %v1423, %v1421
    %v1782 = vpack.c.b16 %v1424, %v1422
    %v1783 = vpack.c.b16 %v1427, %v1425
    %v1784 = vpack.c.b16 %v1428, %v1426
    %v1785 = vpack.c.b16 %v1431, %v1429
    %v1786 = vpack.c.b16 %v1432, %v1430
    %v1787 = vpack.c.b16 %v1435, %v1433
    %v1788 = vpack.c.b16 %v1436, %v1434
    %v1789 = vpack.c.b16 %v1439, %v1437
    %v1790 = vpack.c.b16 %v1440, %v1438
    %v1791 = vpack.c.b16 %v1443, %v1441
    %v1792 = vpack.c.b16 %v1444, %v1442
    %v1793 = vpack.c.b16 %v1447, %v1445
    %v1794 = vpack.c.b16 %v1448, %v1446
    %v1795 = vpack.c.b16 %v1451, %v1449
    %v1796 = vpack.c.b16 %v1452, %v1450
    %v1797 = vpack.c.b16 %v1455, %v1453
    %v1798 = vpack.c.b16 %v1456, %v1454
    %v1799 = vpack.c.b16 %v1459, %v1457
    %v1800 = vpack.c.b16 %v1460, %v1458
    %v1801 = vpack.c.b16 %v1463, %v1461
    %v1802 = vpack.c.b16 %v1464, %v1462
    %v1803 = vpack.c.b16 %v1467, %v1465
    %v1804 = vpack.c.b16 %v1468, %v1466
    %v1805 = vpack.c.b16 %v1471, %v1469
    %v1806 = vpack.c.b16 %v1472, %v1470
    %v1807 = vpack.c.b16 %v1475, %v1473
    %v1808 = vpack.c.b16 %v1476, %v1474
    %v1809 = vpack.c.b16 %v1479, %v1477
    %v1810 = vpack.c.b16 %v1480, %v1478
    %v1811 = vpack.c.b16 %v1483, %v1481
    %v1812 = vpack.c.b16 %v1484, %v1482
    %v1813 = vpack.c.b16 %v1487, %v1485
    %v1814 = vpack.c.b16 %v1488, %v1486
    %v1815 = vpack.c.b16 %v1491, %v1489
    %v1816 = vpack.c.b16 %v1492, %v1490
    %vm2141 = vcmask 261120
    %v2143 = vsel %vm2141, %v491, 0
    %2145 = vmatprep.subr.bf16.mxu0 %v1494
    %2146 = vmatpush1.bf16.msra.mxu0 %v1493
    %2147 = vmatprep.subr.bf16.mxu0 %v1496
    %2148 = vmatpush1.bf16.msra.mxu0 %v1495
    %2149 = vmatprep.subr.bf16.mxu0 %v1498
    %2150 = vmatpush1.bf16.msra.mxu0 %v1497
    %2151 = vmatprep.subr.bf16.mxu0 %v1500
    %2152 = vmatpush1.bf16.msra.mxu0 %v1499
    %2153 = vmatprep.subr.bf16.mxu0 %v1502
    %2154 = vmatpush1.bf16.msra.mxu0 %v1501
    %2155 = vmatprep.subr.bf16.mxu0 %v1504
    %2156 = vmatpush1.bf16.msra.mxu0 %v1503
    %2157 = vmatprep.subr.bf16.mxu0 %v1506
    %2158 = vmatpush1.bf16.msra.mxu0 %v1505
    %2159 = vmatprep.subr.bf16.mxu0 %v1508
    %2160 = vmatpush1.bf16.msra.mxu0 %v1507
    %2161 = vmatprep.subr.bf16.mxu0 %v1510
    %2162 = vmatpush1.bf16.msra.mxu0 %v1509
    %2163 = vmatprep.subr.bf16.mxu0 %v1512
    %2164 = vmatpush1.bf16.msra.mxu0 %v1511
    %2165 = vmatprep.subr.bf16.mxu0 %v1514
    %2166 = vmatpush1.bf16.msra.mxu0 %v1513
    %2167 = vmatprep.subr.bf16.mxu0 %v1516
    %2168 = vmatpush1.bf16.msra.mxu0 %v1515
    %2169 = vmatprep.subr.bf16.mxu0 %v1518
    %2170 = vmatpush1.bf16.msra.mxu0 %v1517
    %2171 = vmatprep.subr.bf16.mxu0 %v1520
    %2172 = vmatpush1.bf16.msra.mxu0 %v1519
    %2173 = vmatprep.subr.bf16.mxu0 %v1522
    %2174 = vmatpush1.bf16.msra.mxu0 %v1521
    %2175 = vmatprep.subr.bf16.mxu0 %v1524
    %2176 = vmatpush1.bf16.msra.mxu0 %v1523
    %2177 = vmatprep.mubr.bf16.mxu0 %v401
    %2178 = vmatmul.mubr.bf16.gmra.mrb[0].mxu0 %v387
    %v2179 = vpop.f32.mrb[0].mxu0
    %v2180 = vadd.f32 %v354, %v2179
    %v2181 = vpop.f32.mrb[0].mxu0
    %v2182 = vadd.f32 %v358, %v2181
    %v2183 = vpop.f32.mrb[0].mxu0
    %v2184 = vpop.f32.mrb[0].mxu0
    %2185 = vdwg.mxu0
    %2186 = vmatprep.subr.bf16.mxu0 %v1526
    %2187 = vmatpush1.bf16.msra.mxu0 %v1525
    %2188 = vmatprep.subr.bf16.mxu0 %v1528
    %2189 = vmatpush1.bf16.msra.mxu0 %v1527
    %2190 = vmatprep.subr.bf16.mxu0 %v1530
    %2191 = vmatpush1.bf16.msra.mxu0 %v1529
    %2192 = vmatprep.subr.bf16.mxu0 %v1532
    %2193 = vmatpush1.bf16.msra.mxu0 %v1531
    %2194 = vmatprep.subr.bf16.mxu0 %v1534
    %2195 = vmatpush1.bf16.msra.mxu0 %v1533
    %2196 = vmatprep.subr.bf16.mxu0 %v1536
    %2197 = vmatpush1.bf16.msra.mxu0 %v1535
    %2198 = vmatprep.subr.bf16.mxu0 %v1538
    %2199 = vmatpush1.bf16.msra.mxu0 %v1537
    %2200 = vmatprep.subr.bf16.mxu0 %v1540
    %2201 = vmatpush1.bf16.msra.mxu0 %v1539
    %2202 = vmatprep.subr.bf16.mxu0 %v1542
    %2203 = vmatpush1.bf16.msra.mxu0 %v1541
    %2204 = vmatprep.subr.bf16.mxu0 %v1544
    %2205 = vmatpush1.bf16.msra.mxu0 %v1543
    %2206 = vmatprep.subr.bf16.mxu0 %v1546
    %2207 = vmatpush1.bf16.msra.mxu0 %v1545
    %2208 = vmatprep.subr.bf16.mxu0 %v1548
    %2209 = vmatpush1.bf16.msra.mxu0 %v1547
    %2210 = vmatprep.subr.bf16.mxu0 %v1550
    %2211 = vmatpush1.bf16.msra.mxu0 %v1549
    %2212 = vmatprep.subr.bf16.mxu0 %v1552
    %2213 = vmatpush1.bf16.msra.mxu0 %v1551
    %2214 = vmatprep.subr.bf16.mxu0 %v1554
    %2215 = vmatpush1.bf16.msra.mxu0 %v1553
    %2216 = vmatprep.subr.bf16.mxu0 %v1556
    %2217 = vmatpush1.bf16.msra.mxu0 %v1555
    %2218 = vmatprep.mubr.bf16.mxu0 %v411
    %2219 = vmatmul.mubr.bf16.gmra.mrb[0].mxu0 %v409
    %v2220 = vpop.f32.mrb[0].mxu0
    %v2221 = vadd.f32 %v2180, %v2220
    %v2222 = vpop.f32.mrb[0].mxu0
    %v2223 = vadd.f32 %v2182, %v2222
    %v2224 = vpop.f32.mrb[0].mxu0
    %v2225 = vpop.f32.mrb[0].mxu0
    %2226 = vdwg.mxu0
    %2227 = vmatprep.subr.bf16.mxu0 %v1558
    %2228 = vmatpush1.bf16.msra.mxu0 %v1557
    %2229 = vmatprep.subr.bf16.mxu0 %v1560
    %2230 = vmatpush1.bf16.msra.mxu0 %v1559
    %2231 = vmatprep.subr.bf16.mxu0 %v1562
    %2232 = vmatpush1.bf16.msra.mxu0 %v1561
    %2233 = vmatprep.subr.bf16.mxu0 %v1564
    %2234 = vmatpush1.bf16.msra.mxu0 %v1563
    %2235 = vmatprep.subr.bf16.mxu0 %v1566
    %2236 = vmatpush1.bf16.msra.mxu0 %v1565
    %2237 = vmatprep.subr.bf16.mxu0 %v1568
    %2238 = vmatpush1.bf16.msra.mxu0 %v1567
    %2239 = vmatprep.subr.bf16.mxu0 %v1570
    %2240 = vmatpush1.bf16.msra.mxu0 %v1569
    %2241 = vmatprep.subr.bf16.mxu0 %v1572
    %2242 = vmatpush1.bf16.msra.mxu0 %v1571
    %2243 = vmatprep.subr.bf16.mxu0 %v1574
    %2244 = vmatpush1.bf16.msra.mxu0 %v1573
    %2245 = vmatprep.subr.bf16.mxu0 %v1576
    %2246 = vmatpush1.bf16.msra.mxu0 %v1575
    %2247 = vmatprep.subr.bf16.mxu0 %v1578
    %2248 = vmatpush1.bf16.msra.mxu0 %v1577
    %2249 = vmatprep.subr.bf16.mxu0 %v1580
    %2250 = vmatpush1.bf16.msra.mxu0 %v1579
    %2251 = vmatprep.subr.bf16.mxu0 %v1582
    %2252 = vmatpush1.bf16.msra.mxu0 %v1581
    %2253 = vmatprep.subr.bf16.mxu0 %v1584
    %2254 = vmatpush1.bf16.msra.mxu0 %v1583
    %2255 = vmatprep.subr.bf16.mxu0 %v1586
    %2256 = vmatpush1.bf16.msra.mxu0 %v1585
    %2257 = vmatprep.subr.bf16.mxu0 %v1588
    %2258 = vmatpush1.bf16.msra.mxu0 %v1587
    %2259 = vmatprep.mubr.bf16.mxu0 %v408
    %2260 = vmatmul.mubr.bf16.gmra.mrb[0].mxu0 %v394
    %v2261 = vpop.f32.mrb[0].mxu0
    %v2262 = vadd.f32 %v2221, %v2261
    %v2263 = vpop.f32.mrb[0].mxu0
    %v2264 = vadd.f32 %v2223, %v2263
    %v2265 = vpop.f32.mrb[0].mxu0
    %v2266 = vpop.f32.mrb[0].mxu0
    %2267 = vdwg.mxu0
    %2268 = vmatprep.subr.bf16.mxu0 %v1590
    %2269 = vmatpush1.bf16.msra.mxu0 %v1589
    %2270 = vmatprep.subr.bf16.mxu0 %v1592
    %2271 = vmatpush1.bf16.msra.mxu0 %v1591
    %2272 = vmatprep.subr.bf16.mxu0 %v1594
    %2273 = vmatpush1.bf16.msra.mxu0 %v1593
    %2274 = vmatprep.subr.bf16.mxu0 %v1596
    %2275 = vmatpush1.bf16.msra.mxu0 %v1595
    %2276 = vmatprep.subr.bf16.mxu0 %v1598
    %2277 = vmatpush1.bf16.msra.mxu0 %v1597
    %2278 = vmatprep.subr.bf16.mxu0 %v1600
    %2279 = vmatpush1.bf16.msra.mxu0 %v1599
    %2280 = vmatprep.subr.bf16.mxu0 %v1602
    %2281 = vmatpush1.bf16.msra.mxu0 %v1601
    %2282 = vmatprep.subr.bf16.mxu0 %v1604
    %2283 = vmatpush1.bf16.msra.mxu0 %v1603
    %2284 = vmatprep.subr.bf16.mxu0 %v1606
    %2285 = vmatpush1.bf16.msra.mxu0 %v1605
    %2286 = vmatprep.subr.bf16.mxu0 %v1608
    %2287 = vmatpush1.bf16.msra.mxu0 %v1607
    %2288 = vmatprep.subr.bf16.mxu0 %v1610
    %2289 = vmatpush1.bf16.msra.mxu0 %v1609
    %2290 = vmatprep.subr.bf16.mxu0 %v1612
    %2291 = vmatpush1.bf16.msra.mxu0 %v1611
    %2292 = vmatprep.subr.bf16.mxu0 %v1614
    %2293 = vmatpush1.bf16.msra.mxu0 %v1613
    %2294 = vmatprep.subr.bf16.mxu0 %v1616
    %2295 = vmatpush1.bf16.msra.mxu0 %v1615
    %2296 = vmatprep.subr.bf16.mxu0 %v1618
    %2297 = vmatpush1.bf16.msra.mxu0 %v1617
    %2298 = vmatprep.subr.bf16.mxu0 %v1620
    %2299 = vmatpush1.bf16.msra.mxu0 %v1619
    %2300 = vmatprep.mubr.bf16.mxu0 %v412
    %2301 = vmatmul.mubr.bf16.gmra.mrb[0].mxu0 %v410
    %v2302 = vpop.f32.mrb[0].mxu0
    %v2303 = vadd.f32 %v2262, %v2302
    %v2304 = vpop.f32.mrb[0].mxu0
    %v2305 = vadd.f32 %v2264, %v2304
    %v2306 = vpop.f32.mrb[0].mxu0
    %v2307 = vpop.f32.mrb[0].mxu0
    %2308 = vdwg.mxu0
    %2309 = vmatprep.subr.bf16.mxu0 %v1622
    %2310 = vmatpush1.bf16.msra.mxu0 %v1621
    %2311 = vmatprep.subr.bf16.mxu0 %v1624
    %2312 = vmatpush1.bf16.msra.mxu0 %v1623
    %2313 = vmatprep.subr.bf16.mxu0 %v1626
    %2314 = vmatpush1.bf16.msra.mxu0 %v1625
    %2315 = vmatprep.subr.bf16.mxu0 %v1628
    %2316 = vmatpush1.bf16.msra.mxu0 %v1627
    %2317 = vmatprep.subr.bf16.mxu0 %v1630
    %2318 = vmatpush1.bf16.msra.mxu0 %v1629
    %2319 = vmatprep.subr.bf16.mxu0 %v1632
    %2320 = vmatpush1.bf16.msra.mxu0 %v1631
    %2321 = vmatprep.subr.bf16.mxu0 %v1634
    %2322 = vmatpush1.bf16.msra.mxu0 %v1633
    %2323 = vmatprep.subr.bf16.mxu0 %v1636
    %2324 = vmatpush1.bf16.msra.mxu0 %v1635
    %2325 = vmatprep.subr.bf16.mxu0 %v1638
    %2326 = vmatpush1.bf16.msra.mxu0 %v1637
    %2327 = vmatprep.subr.bf16.mxu0 %v1640
    %2328 = vmatpush1.bf16.msra.mxu0 %v1639
    %2329 = vmatprep.subr.bf16.mxu0 %v1642
    %2330 = vmatpush1.bf16.msra.mxu0 %v1641
    %2331 = vmatprep.subr.bf16.mxu0 %v1644
    %2332 = vmatpush1.bf16.msra.mxu0 %v1643
    %2333 = vmatprep.subr.bf16.mxu0 %v1646
    %2334 = vmatpush1.bf16.msra.mxu0 %v1645
    %2335 = vmatprep.subr.bf16.mxu0 %v1648
    %2336 = vmatpush1.bf16.msra.mxu0 %v1647
    %2337 = vmatprep.subr.bf16.mxu0 %v1650
    %2338 = vmatpush1.bf16.msra.mxu0 %v1649
    %2339 = vmatprep.subr.bf16.mxu0 %v1652
    %2340 = vmatpush1.bf16.msra.mxu0 %v1651
    %2341 = vmatprep.mubr.bf16.mxu0 %v450
    %2342 = vmatmul.mubr.bf16.gmra.mrb[0].mxu0 %v436
    %v2343 = vpop.f32.mrb[0].mxu0
    %v2344 = vadd.f32 %v2303, %v2343
    %v2345 = vpop.f32.mrb[0].mxu0
    %v2346 = vadd.f32 %v2305, %v2345
    %v2347 = vpop.f32.mrb[0].mxu0
    %v2348 = vpop.f32.mrb[0].mxu0
    %2349 = vdwg.mxu0
    %2350 = vmatprep.subr.bf16.mxu0 %v1654
    %2351 = vmatpush1.bf16.msra.mxu0 %v1653
    %2352 = vmatprep.subr.bf16.mxu0 %v1656
    %2353 = vmatpush1.bf16.msra.mxu0 %v1655
    %2354 = vmatprep.subr.bf16.mxu0 %v1658
    %2355 = vmatpush1.bf16.msra.mxu0 %v1657
    %2356 = vmatprep.subr.bf16.mxu0 %v1660
    %2357 = vmatpush1.bf16.msra.mxu0 %v1659
    %2358 = vmatprep.subr.bf16.mxu0 %v1662
    %2359 = vmatpush1.bf16.msra.mxu0 %v1661
    %2360 = vmatprep.subr.bf16.mxu0 %v1664
    %2361 = vmatpush1.bf16.msra.mxu0 %v1663
    %2362 = vmatprep.subr.bf16.mxu0 %v1666
    %2363 = vmatpush1.bf16.msra.mxu0 %v1665
    %2364 = vmatprep.subr.bf16.mxu0 %v1668
    %2365 = vmatpush1.bf16.msra.mxu0 %v1667
    %2366 = vmatprep.subr.bf16.mxu0 %v1670
    %2367 = vmatpush1.bf16.msra.mxu0 %v1669
    %2368 = vmatprep.subr.bf16.mxu0 %v1672
    %2369 = vmatpush1.bf16.msra.mxu0 %v1671
    %2370 = vmatprep.subr.bf16.mxu0 %v1674
    %2371 = vmatpush1.bf16.msra.mxu0 %v1673
    %2372 = vmatprep.subr.bf16.mxu0 %v1676
    %2373 = vmatpush1.bf16.msra.mxu0 %v1675
    %2374 = vmatprep.subr.bf16.mxu0 %v1678
    %2375 = vmatpush1.bf16.msra.mxu0 %v1677
    %2376 = vmatprep.subr.bf16.mxu0 %v1680
    %2377 = vmatpush1.bf16.msra.mxu0 %v1679
    %2378 = vmatprep.subr.bf16.mxu0 %v1682
    %2379 = vmatpush1.bf16.msra.mxu0 %v1681
    %2380 = vmatprep.subr.bf16.mxu0 %v1684
    %2381 = vmatpush1.bf16.msra.mxu0 %v1683
    %2382 = vmatprep.mubr.bf16.mxu0 %v460
    %2383 = vmatmul.mubr.bf16.gmra.mrb[0].mxu0 %v458
    %v2384 = vpop.f32.mrb[0].mxu0
    %v2385 = vadd.f32 %v2344, %v2384
    %v2386 = vpop.f32.mrb[0].mxu0
    %v2387 = vadd.f32 %v2346, %v2386
    %v2388 = vpop.f32.mrb[0].mxu0
    %v2389 = vpop.f32.mrb[0].mxu0
    %2390 = vdwg.mxu0
    %2391 = vmatprep.subr.bf16.mxu0 %v1686
    %2392 = vmatpush1.bf16.msra.mxu0 %v1685
    %2393 = vmatprep.subr.bf16.mxu0 %v1688
    %2394 = vmatpush1.bf16.msra.mxu0 %v1687
    %2395 = vmatprep.subr.bf16.mxu0 %v1690
    %2396 = vmatpush1.bf16.msra.mxu0 %v1689
    %2397 = vmatprep.subr.bf16.mxu0 %v1692
    %2398 = vmatpush1.bf16.msra.mxu0 %v1691
    %2399 = vmatprep.subr.bf16.mxu0 %v1694
    %2400 = vmatpush1.bf16.msra.mxu0 %v1693
    %2401 = vmatprep.subr.bf16.mxu0 %v1696
    %2402 = vmatpush1.bf16.msra.mxu0 %v1695
    %2403 = vmatprep.subr.bf16.mxu0 %v1698
    %2404 = vmatpush1.bf16.msra.mxu0 %v1697
    %2405 = vmatprep.subr.bf16.mxu0 %v1700
    %2406 = vmatpush1.bf16.msra.mxu0 %v1699
    %2407 = vmatprep.subr.bf16.mxu0 %v1702
    %2408 = vmatpush1.bf16.msra.mxu0 %v1701
    %2409 = vmatprep.subr.bf16.mxu0 %v1704
    %2410 = vmatpush1.bf16.msra.mxu0 %v1703
    %2411 = vmatprep.subr.bf16.mxu0 %v1706
    %2412 = vmatpush1.bf16.msra.mxu0 %v1705
    %2413 = vmatprep.subr.bf16.mxu0 %v1708
    %2414 = vmatpush1.bf16.msra.mxu0 %v1707
    %2415 = vmatprep.subr.bf16.mxu0 %v1710
    %2416 = vmatpush1.bf16.msra.mxu0 %v1709
    %2417 = vmatprep.subr.bf16.mxu0 %v1712
    %2418 = vmatpush1.bf16.msra.mxu0 %v1711
    %2419 = vmatprep.subr.bf16.mxu0 %v1714
    %2420 = vmatpush1.bf16.msra.mxu0 %v1713
    %2421 = vmatprep.subr.bf16.mxu0 %v1716
    %2422 = vmatpush1.bf16.msra.mxu0 %v1715
    %2423 = vmatprep.mubr.bf16.mxu0 %v457
    %2424 = vmatmul.mubr.bf16.gmra.mrb[0].mxu0 %v443
    %v2425 = vpop.f32.mrb[0].mxu0
    %v2426 = vadd.f32 %v2385, %v2425
    %v2427 = vpop.f32.mrb[0].mxu0
    %v2428 = vadd.f32 %v2387, %v2427
    %v2429 = vpop.f32.mrb[0].mxu0
    %v2430 = vpop.f32.mrb[0].mxu0
    %2431 = vdwg.mxu0
    %2432 = vmatprep.subr.bf16.mxu0 %v1718
    %2433 = vmatpush1.bf16.msra.mxu0 %v1717
    %2434 = vmatprep.subr.bf16.mxu0 %v1720
    %2435 = vmatpush1.bf16.msra.mxu0 %v1719
    %2436 = vmatprep.subr.bf16.mxu0 %v1722
    %2437 = vmatpush1.bf16.msra.mxu0 %v1721
    %2438 = vmatprep.subr.bf16.mxu0 %v1724
    %2439 = vmatpush1.bf16.msra.mxu0 %v1723
    %2440 = vmatprep.subr.bf16.mxu0 %v1726
    %2441 = vmatpush1.bf16.msra.mxu0 %v1725
    %2442 = vmatprep.subr.bf16.mxu0 %v1728
    %2443 = vmatpush1.bf16.msra.mxu0 %v1727
    %2444 = vmatprep.subr.bf16.mxu0 %v1730
    %2445 = vmatpush1.bf16.msra.mxu0 %v1729
    %2446 = vmatprep.subr.bf16.mxu0 %v1732
    %2447 = vmatpush1.bf16.msra.mxu0 %v1731
    %2448 = vmatprep.subr.bf16.mxu0 %v1734
    %2449 = vmatpush1.bf16.msra.mxu0 %v1733
    %2450 = vmatprep.subr.bf16.mxu0 %v1736
    %2451 = vmatpush1.bf16.msra.mxu0 %v1735
    %2452 = vmatprep.subr.bf16.mxu0 %v1738
    %2453 = vmatpush1.bf16.msra.mxu0 %v1737
    %2454 = vmatprep.subr.bf16.mxu0 %v1740
    %2455 = vmatpush1.bf16.msra.mxu0 %v1739
    %2456 = vmatprep.subr.bf16.mxu0 %v1742
    %2457 = vmatpush1.bf16.msra.mxu0 %v1741
    %2458 = vmatprep.subr.bf16.mxu0 %v1744
    %2459 = vmatpush1.bf16.msra.mxu0 %v1743
    %2460 = vmatprep.subr.bf16.mxu0 %v1746
    %2461 = vmatpush1.bf16.msra.mxu0 %v1745
    %2462 = vmatprep.subr.bf16.mxu0 %v1748
    %2463 = vmatpush1.bf16.msra.mxu0 %v1747
    %2464 = vmatprep.mubr.bf16.mxu0 %v461
    %2465 = vmatmul.mubr.bf16.gmra.mrb[0].mxu0 %v459
    %v2466 = vpop.f32.mrb[0].mxu0
    %v2467 = vadd.f32 %v2426, %v2466
    %v2468 = vpop.f32.mrb[0].mxu0
    %v2469 = vadd.f32 %v2428, %v2468
    %v2470 = vpop.f32.mrb[0].mxu0
    %v2471 = vpop.f32.mrb[0].mxu0
    %2472 = vdwg.mxu0
    %2473 = vmatprep.subr.bf16.mxu0 %v1750
    %2474 = vmatpush1.bf16.msra.mxu0 %v1749
    %2475 = vmatprep.subr.bf16.mxu0 %v1752
    %2476 = vmatpush1.bf16.msra.mxu0 %v1751
    %2477 = vmatprep.subr.bf16.mxu0 %v1754
    %2478 = vmatpush1.bf16.msra.mxu0 %v1753
    %2479 = vmatprep.subr.bf16.mxu0 %v1756
    %2480 = vmatpush1.bf16.msra.mxu0 %v1755
    %2481 = vmatprep.subr.bf16.mxu0 %v1758
    %2482 = vmatpush1.bf16.msra.mxu0 %v1757
    %2483 = vmatprep.subr.bf16.mxu0 %v1760
    %2484 = vmatpush1.bf16.msra.mxu0 %v1759
    %2485 = vmatprep.subr.bf16.mxu0 %v1762
    %2486 = vmatpush1.bf16.msra.mxu0 %v1761
    %2487 = vmatprep.subr.bf16.mxu0 %v1764
    %2488 = vmatpush1.bf16.msra.mxu0 %v1763
    %2489 = vmatprep.subr.bf16.mxu0 %v1766
    %2490 = vmatpush1.bf16.msra.mxu0 %v1765
    %2491 = vmatprep.subr.bf16.mxu0 %v1768
    %2492 = vmatpush1.bf16.msra.mxu0 %v1767
    %2493 = vmatprep.subr.bf16.mxu0 %v1770
    %2494 = vmatpush1.bf16.msra.mxu0 %v1769
    %2495 = vmatprep.subr.bf16.mxu0 %v1772
    %2496 = vmatpush1.bf16.msra.mxu0 %v1771
    %2497 = vmatprep.subr.bf16.mxu0 %v1774
    %2498 = vmatpush1.bf16.msra.mxu0 %v1773
    %2499 = vmatprep.subr.bf16.mxu0 %v1776
    %2500 = vmatpush1.bf16.msra.mxu0 %v1775
    %2501 = vmatprep.subr.bf16.mxu0 %v1778
    %2502 = vmatpush1.bf16.msra.mxu0 %v1777
    %2503 = vmatprep.subr.bf16.mxu0 %v1780
    %2504 = vmatpush1.bf16.msra.mxu0 %v1779
    %2505 = vmatprep.mubr.bf16.mxu0 %v498
    %2506 = vmatmul.mubr.bf16.gmra.mrb[0].mxu0 %v484
    %v2507 = vpop.f32.mrb[0].mxu0
    %v2508 = vadd.f32 %v2467, %v2507
    %v2509 = vpop.f32.mrb[0].mxu0
    %v2510 = vadd.f32 %v2469, %v2509
    %v2511 = vpop.f32.mrb[0].mxu0
    %v2512 = vpop.f32.mrb[0].mxu0
    %2513 = vdwg.mxu0
    %2514 = vmatprep.subr.bf16.mxu0 %v1782
    %2515 = vmatpush1.bf16.msra.mxu0 %v1781
    %2516 = vmatprep.subr.bf16.mxu0 %v1784
    %2517 = vmatpush1.bf16.msra.mxu0 %v1783
    %2518 = vmatprep.subr.bf16.mxu0 %v1786
    %2519 = vmatpush1.bf16.msra.mxu0 %v1785
    %2520 = vmatprep.subr.bf16.mxu0 %v1788
    %2521 = vmatpush1.bf16.msra.mxu0 %v1787
    %2522 = vmatprep.subr.bf16.mxu0 %v1790
    %2523 = vmatpush1.bf16.msra.mxu0 %v1789
    %2524 = vmatprep.subr.bf16.mxu0 %v1792
    %2525 = vmatpush1.bf16.msra.mxu0 %v1791
    %2526 = vmatprep.subr.bf16.mxu0 %v1794
    %2527 = vmatpush1.bf16.msra.mxu0 %v1793
    %2528 = vmatprep.subr.bf16.mxu0 %v1796
    %2529 = vmatpush1.bf16.msra.mxu0 %v1795
    %2530 = vmatprep.subr.bf16.mxu0 %v1798
    %2531 = vmatpush1.bf16.msra.mxu0 %v1797
    %2532 = vmatprep.subr.bf16.mxu0 %v1800
    %2533 = vmatpush1.bf16.msra.mxu0 %v1799
    %2534 = vmatprep.subr.bf16.mxu0 %v1802
    %2535 = vmatpush1.bf16.msra.mxu0 %v1801
    %2536 = vmatprep.subr.bf16.mxu0 %v1804
    %2537 = vmatpush1.bf16.msra.mxu0 %v1803
    %2538 = vmatprep.subr.bf16.mxu0 %v1806
    %2539 = vmatpush1.bf16.msra.mxu0 %v1805
    %2540 = vmatprep.subr.bf16.mxu0 %v1808
    %2541 = vmatpush1.bf16.msra.mxu0 %v1807
    %2542 = vmatprep.subr.bf16.mxu0 %v1810
    %2543 = vmatpush1.bf16.msra.mxu0 %v1809
    %2544 = vmatprep.subr.bf16.mxu0 %v1812
    %2545 = vmatpush1.bf16.msra.mxu0 %v1811
    %2546 = vmatprep.mubr.bf16.mxu0 %v500
    %2547 = vmatmul.mubr.bf16.gmra.mrb[0].mxu0 %v499
    %v2548 = vpop.f32.mrb[0].mxu0
    %v2549 = vadd.f32 %v2508, %v2548
    %v2550 = vpop.f32.mrb[0].mxu0
    %v2551 = vadd.f32 %v2510, %v2550
    %v2552 = vpop.f32.mrb[0].mxu0
    %v2553 = vpop.f32.mrb[0].mxu0
    %2554 = vdwg.mxu0
    %2555 = vmatprep.subr.bf16.mxu0 %v1814
    %2556 = vmatpush1.bf16.msra.mxu0 %v1813
    %2557 = vmatprep.subr.bf16.mxu0 %v1816
    %2558 = vmatpush1.bf16.msra.mxu0 %v1815
    %2559 = vmatprep.subr.bf16.mxu0 0
    %2560 = vmatpush1.bf16.msra.mxu0 0
    %2561 = vmatprep.subr.bf16.mxu0 0
    %2562 = vmatpush1.bf16.msra.mxu0 0
    %2563 = vmatprep.subr.bf16.mxu0 0
    %2564 = vmatpush1.bf16.msra.mxu0 0
    %2565 = vmatprep.subr.bf16.mxu0 0
    %2566 = vmatpush1.bf16.msra.mxu0 0
    %2567 = vmatprep.subr.bf16.mxu0 0
    %2568 = vmatpush1.bf16.msra.mxu0 0
    %2569 = vmatprep.subr.bf16.mxu0 0
    %2570 = vmatpush1.bf16.msra.mxu0 0
    %2571 = vmatprep.subr.bf16.mxu0 0
    %2572 = vmatpush1.bf16.msra.mxu0 0
    %2573 = vmatprep.subr.bf16.mxu0 0
    %2574 = vmatpush1.bf16.msra.mxu0 0
    %2575 = vmatprep.subr.bf16.mxu0 0
    %2576 = vmatpush1.bf16.msra.mxu0 0
    %2577 = vmatprep.subr.bf16.mxu0 0
    %2578 = vmatpush1.bf16.msra.mxu0 0
    %2579 = vmatprep.subr.bf16.mxu0 0
    %2580 = vmatpush1.bf16.msra.mxu0 0
    %2581 = vmatprep.subr.bf16.mxu0 0
    %2582 = vmatpush1.bf16.msra.mxu0 0
    %2583 = vmatprep.subr.bf16.mxu0 0
    %2584 = vmatpush1.bf16.msra.mxu0 0
    %2585 = vmatprep.subr.bf16.mxu0 0
    %2586 = vmatpush1.bf16.msra.mxu0 0
    %2587 = vmatprep.mubr.bf16.mxu0 0
    %2588 = vmatmul.mubr.bf16.gmra.mrb[0].mxu0 %v2143
    %v2589 = vpop.f32.mrb[0].mxu0
    %v2590 = vadd.f32 %v2549, %v2589
    %v2591 = vpop.f32.mrb[0].mxu0
    %v2592 = vadd.f32 %v2551, %v2591
    %v2593 = vpop.f32.mrb[0].mxu0
    %v2594 = vpop.f32.mrb[0].mxu0
    %2595 = vdwg.mxu0
    %v2596 = vmax.f32 %v2590, 0.0
    %v2597 = vmax.f32 %v2592, 0.0
    %v2598 = vpack.c.bf16 %v2596, %v2596
    %v2599 = vpack.c.bf16 %v2597, %v2597
    %v2600 = vld [vmem:[%s3] sm:$0xf]
    %v2601 = vld [vmem:[%s3 + $0x4] sm:$0xf]
    %v2602 = vld [vmem:[%s3 + $0x8] sm:$0xf]
    %v2603 = vld [vmem:[%s3 + $0xc] sm:$0xf]
    %v2604 = vld [vmem:[%s3 + $0x10] sm:$0xf]
    %v2605 = vld [vmem:[%s3 + $0x14] sm:$0xf]
    %v2606 = vld [vmem:[%s3 + $0x18] sm:$0xf]
    %v2607 = vld [vmem:[%s3 + $0x1c] sm:$0xf]
    %v2608 = vld [vmem:[%s3 + $0x20] sm:$0xf]
    %v2609 = vld [vmem:[%s3 + $0x24] sm:$0xf]
    %v2610 = vld [vmem:[%s3 + $0x28] sm:$0xf]
    %v2611 = vld [vmem:[%s3 + $0x2c] sm:$0xf]
    %v2612 = vld [vmem:[%s3 + $0x30] sm:$0xf]
    %v2613 = vld [vmem:[%s3 + $0x34] sm:$0xf]
    %v2614 = vld [vmem:[%s3 + $0x38] sm:$0xf]
    %v2615 = vld [vmem:[%s3 + $0x3c] sm:$0xf]
    %v2616 = vld [vmem:[%s3 + $0x40] sm:$0xf]
    %v2617 = vld [vmem:[%s3 + $0x44] sm:$0xf]
    %v2618 = vld [vmem:[%s3 + $0x48] sm:$0xf]
    %v2619 = vld [vmem:[%s3 + $0x4c] sm:$0xf]
    %v2620 = vld [vmem:[%s3 + $0x50] sm:$0xf]
    %v2621 = vld [vmem:[%s3 + $0x54] sm:$0xf]
    %v2622 = vld [vmem:[%s3 + $0x58] sm:$0xf]
    %v2623 = vld [vmem:[%s3 + $0x5c] sm:$0xf]
    %v2624 = vld [vmem:[%s3 + $0x60] sm:$0xf]
    %v2625 = vld [vmem:[%s3 + $0x64] sm:$0xf]
    %v2626 = vld [vmem:[%s3 + $0x68] sm:$0xf]
    %v2627 = vld [vmem:[%s3 + $0x6c] sm:$0xf]
    %v2628 = vld [vmem:[%s3 + $0x70] sm:$0xf]
    %v2629 = vld [vmem:[%s3 + $0x74] sm:$0xf]
    %v2630 = vld [vmem:[%s3 + $0x78] sm:$0xf]
    %v2631 = vld [vmem:[%s3 + $0x7c] sm:$0xf]
    %v2632 = vld [vmem:[%s4] sm:$0x1]
    %v2634 = vlaneseq
    %v2635 = vshrl.u32 %v2634, 7
    %v2636 = vsub.s32 0, %v2635
    %v2637 = vrot.slane %v2632, %v2636
    %v2671 = vunpack.c.l.b16 %v2600
    %v2672 = vunpack.c.l.b16 %v2601
    %v2673 = vunpack.c.l.b16 %v2602
    %v2674 = vunpack.c.l.b16 %v2603
    %v2675 = vunpack.c.l.b16 %v2604
    %v2676 = vunpack.c.l.b16 %v2605
    %v2677 = vunpack.c.l.b16 %v2606
    %v2678 = vunpack.c.l.b16 %v2607
    %v2679 = vunpack.c.l.b16 %v2608
    %v2680 = vunpack.c.l.b16 %v2609
    %v2681 = vunpack.c.l.b16 %v2610
    %v2682 = vunpack.c.l.b16 %v2611
    %v2683 = vunpack.c.l.b16 %v2612
    %v2684 = vunpack.c.l.b16 %v2613
    %v2685 = vunpack.c.l.b16 %v2614
    %v2686 = vunpack.c.l.b16 %v2615
    %v2687 = vunpack.c.l.b16 %v2616
    %v2688 = vunpack.c.l.b16 %v2617
    %v2689 = vunpack.c.l.b16 %v2618
    %v2690 = vunpack.c.l.b16 %v2619
    %v2691 = vunpack.c.l.b16 %v2620
    %v2692 = vunpack.c.l.b16 %v2621
    %v2693 = vunpack.c.l.b16 %v2622
    %v2694 = vunpack.c.l.b16 %v2623
    %v2695 = vunpack.c.l.b16 %v2624
    %v2696 = vunpack.c.l.b16 %v2625
    %v2697 = vunpack.c.l.b16 %v2626
    %v2698 = vunpack.c.l.b16 %v2627
    %v2699 = vunpack.c.l.b16 %v2628
    %v2700 = vunpack.c.l.b16 %v2629
    %v2701 = vunpack.c.l.b16 %v2630
    %v2702 = vunpack.c.l.b16 %v2631
    %v2703 = vpack.c.b16 %v2672, %v2671
    %v2704 = vpack.c.b16 %v2674, %v2673
    %v2705 = vpack.c.b16 %v2676, %v2675
    %v2706 = vpack.c.b16 %v2678, %v2677
    %v2707 = vpack.c.b16 %v2680, %v2679
    %v2708 = vpack.c.b16 %v2682, %v2681
    %v2709 = vpack.c.b16 %v2684, %v2683
    %v2710 = vpack.c.b16 %v2686, %v2685
    %v2711 = vpack.c.b16 %v2688, %v2687
    %v2712 = vpack.c.b16 %v2690, %v2689
    %v2713 = vpack.c.b16 %v2692, %v2691
    %v2714 = vpack.c.b16 %v2694, %v2693
    %v2715 = vpack.c.b16 %v2696, %v2695
    %v2716 = vpack.c.b16 %v2698, %v2697
    %v2717 = vpack.c.b16 %v2700, %v2699
    %v2718 = vpack.c.b16 %v2702, %v2701
    %2735 = vmatprep.subr.bf16.mxu0 0
    %2736 = vmatpush1.bf16.msra.mxu0 %v2703
    %2737 = vmatprep.subr.bf16.mxu0 0
    %2738 = vmatpush1.bf16.msra.mxu0 %v2704
    %2739 = vmatprep.subr.bf16.mxu0 0
    %2740 = vmatpush1.bf16.msra.mxu0 %v2705
    %2741 = vmatprep.subr.bf16.mxu0 0
    %2742 = vmatpush1.bf16.msra.mxu0 %v2706
    %2743 = vmatprep.subr.bf16.mxu0 0
    %2744 = vmatpush1.bf16.msra.mxu0 %v2707
    %2745 = vmatprep.subr.bf16.mxu0 0
    %2746 = vmatpush1.bf16.msra.mxu0 %v2708
    %2747 = vmatprep.subr.bf16.mxu0 0
    %2748 = vmatpush1.bf16.msra.mxu0 %v2709
    %2749 = vmatprep.subr.bf16.mxu0 0
    %2750 = vmatpush1.bf16.msra.mxu0 %v2710
    %2751 = vmatprep.subr.bf16.mxu0 0
    %2752 = vmatpush1.bf16.msra.mxu0 %v2711
    %2753 = vmatprep.subr.bf16.mxu0 0
    %2754 = vmatpush1.bf16.msra.mxu0 %v2712
    %2755 = vmatprep.subr.bf16.mxu0 0
    %2756 = vmatpush1.bf16.msra.mxu0 %v2713
    %2757 = vmatprep.subr.bf16.mxu0 0
    %2758 = vmatpush1.bf16.msra.mxu0 %v2714
    %2759 = vmatprep.subr.bf16.mxu0 0
    %2760 = vmatpush1.bf16.msra.mxu0 %v2715
    %2761 = vmatprep.subr.bf16.mxu0 0
    %2762 = vmatpush1.bf16.msra.mxu0 %v2716
    %2763 = vmatprep.subr.bf16.mxu0 0
    %2764 = vmatpush1.bf16.msra.mxu0 %v2717
    %2765 = vmatprep.subr.bf16.mxu0 0
    %2766 = vmatpush1.bf16.msra.mxu0 %v2718
    %2767 = vmatprep.mubr.bf16.mxu0 %v2599
    %2768 = vmatmul.mubr.bf16.gmra.mrb[0].mxu0 %v2598
    %v2769 = vpop.f32.mrb[0].mxu0
    %v2770 = vadd.f32 %v2637, %v2769
    %v2771 = vpop.f32.mrb[0].mxu0
    %v2772 = vpop.f32.mrb[0].mxu0
    %v2773 = vpop.f32.mrb[0].mxu0
    %2774 = vdwg.mxu0
    %2775 = vst [vmem:[#allocation2] sm:$0x3] %v2770
    // Predicated region
    $region22: #{dqn_forward.3} parent=1 // pred_check
      _
    $region23: #{dqn_forward.3} parent=1 // pred_check_branch
      %2777 = sbr.rel (0) target = $region25
    $region24: #{dqn_forward.3} parent=1 // pred_region
      %s2779 = ssub.s32 32, 32
      %2780 = vsyncadd [#allocation3], %s2779
      %s2782 = sshll.u32 [#allocation2], 4
      %s2783 = int_to_ptr.vmem [resolvable:$true] %s2782
      %2785 = dma.vmem_to_hbm [thread:$0]  %s2783, 32, %s5, [#allocation3]
    $region25: #{dqn_forward.3} parent=1 // pred_fallthru
      _
    // Predicated region
    $region26: #{dqn_forward.3} parent=1 // pred_check
      _
    $region27: #{dqn_forward.3} parent=1 // pred_check_branch
      %2787 = sbr.rel (0) target = $region29
    $region28: #{dqn_forward.3} parent=1 // pred_region
      %2788 = dma.done [#allocation3], 32
    $region29: #{dqn_forward.3} parent=1 // pred_fallthru
      _
    %2789 = vsyncpa [#allocation3], 1

</llo_original>
